<compile_context>
chip_gen: v5e
topology: v5e:2x2
jax: 0.10.0
libtpu: 0.0.40
codegen_flags: <defaults>
</compile_context>

<pallas_src>
import math
import functools

import jax
import jax.numpy as jnp
from jax.experimental import pallas as pl
from jax.experimental.pallas import tpu as pltpu


# ----------------------------- Pallas kernel --------------------------------

def _pinn_kernel(*refs, num_layers, use_fourier, act_dtype):
    """refs layout:
         xp_ref,                                        packed input (bt2, 2*d_in)
         [B2pi_ref, W0_sin_ref, W0_cos_ref, b0_ref]     (only if use_fourier)
         W_i, b_i ... for the remaining layers,
         o_ref                                          packed output (bt2, 2*out)
    All weights are block-diagonal diag(W, W); biases are tiled [b|b].
    """
    idx = 0
    x_ref = refs[idx]; idx += 1
    h = x_ref[...]                             # (bt2, 2*d_in) f32

    layer_offset = 0
    if use_fourier:
        bproj_ref = refs[idx]; idx += 1
        w0s_ref = refs[idx]; idx += 1
        w0c_ref = refs[idx]; idx += 1
        b0_ref = refs[idx]; idx += 1

        bproj = bproj_ref[...]                 # (2*d_in, 2*F) f32, 2*pi folded in
        k_in = h.shape[-1]
        if k_in <= 8:
            # Tiny contraction depth: VPU broadcast-MADs beat an MXU round trip.
            proj = h[:, 0:1] * bproj[0:1, :]
            for k in range(1, k_in):
                proj = proj + h[:, k:k + 1] * bproj[k:k + 1, :]
        else:
            proj = jnp.dot(h, bproj, preferred_element_type=jnp.float32)

        # sin/cos arguments must stay f32 (can be O(100) rad); only the
        # *results* (in [-1,1]) are cast down for the bf16 matmul path.
        w0s = w0s_ref[...]
        w0c = w0c_ref[...]
        s = jnp.sin(proj).astype(w0s.dtype)
        c = jnp.cos(proj).astype(w0c.dtype)
        # concat(sin, cos) @ W0  ==  sin @ W0_sin + cos @ W0_cos  (no XLU concat)
        pre = (jnp.dot(s, w0s, preferred_element_type=jnp.float32)
               + jnp.dot(c, w0c, preferred_element_type=jnp.float32)
               + b0_ref[...])
        h = jnp.tanh(pre.astype(act_dtype)) if num_layers > 1 else pre
        layer_offset = 1

    o_ref = refs[-1]
    wb = refs[idx:-1]
    for li in range(len(wb) // 2):
        w = wb[2 * li][...]
        b = wb[2 * li + 1][...]
        pre = jnp.dot(h.astype(w.dtype), w, preferred_element_type=jnp.float32) + b
        if (li + layer_offset) < num_layers - 1:     # tanh on all but the output layer
            h = jnp.tanh(pre.astype(act_dtype))
        else:
            h = pre
    o_ref[...] = h.astype(o_ref.dtype)


# --------------------------- host-side packing helpers -----------------------

def _blkdiag2(w):
    """(a, b) -> (2a, 2b) block-diagonal diag(w, w)."""
    z = jnp.zeros_like(w)
    top = jnp.concatenate([w, z], axis=1)
    bot = jnp.concatenate([z, w], axis=1)
    return jnp.concatenate([top, bot], axis=0)


def _tile2(b):
    """(1, n) -> (1, 2n) tiled bias [b | b]."""
    return jnp.concatenate([b, b], axis=-1)


def _default_batch_tile(n, max_tile=2048):
    """Single-TC chips (v5e/v6e): largest tile covering the batch (grid=1).
    Dual-TC v7x: keep >=2 'parallel' grid steps so both TensorCores get work."""
    kind = jax.devices()[0].device_kind.lower()
    dual_tc = ("v7" in kind) or ("7x" in kind)
    min_grid = 2 if dual_tc else 1
    tile = min(-(-n // min_grid), max_tile)
    return max(16, ((tile + 15) // 16) * 16)        # row pairing needs tile % 16 == 0


# ------------------------------- wrapper -------------------------------------

def pinn_forward(x, params, fourier_B=None, *, batch_tile=None,
                 compute_dtype=jnp.float32):
    """x: (N, d_in) f32.  params: list of (W(in,out), b(1,out)) with weight-norm
    already folded in.  compute_dtype=jnp.bfloat16 enables the bf16 EUP/MXU path
    (v6e / v7x only; keep f32 on v5e).  Returns (N, out_dim) f32."""
    n, d_in = x.shape
    x = x.astype(jnp.float32)
    use_fourier = fourier_B is not None
    num_layers = len(params)
    out_dim = params[-1][1].shape[-1]

    if batch_tile is None:
        batch_tile = _default_batch_tile(n)
    assert batch_tile % 16 == 0
    bt2 = batch_tile // 2

    # Ragged tail: pad only when needed (no-op for the common exact-multiple case).
    n_pad = pl.cdiv(n, batch_tile) * batch_tile
    if n_pad != n:
        x = jnp.pad(x, ((0, n_pad - n), (0, 0)))

    # Pack two adjacent batch rows per packed row -> 128-lane-dense hidden
    # activations for the EUP-bound sin/cos/tanh path.
    xp = x.reshape(n_pad // 2, 2 * d_in)

    in_specs = [pl.BlockSpec((bt2, 2 * d_in), lambda i: (i, 0))]
    args = [xp]

    def add_const(arr):
        # Grid-invariant block: not re-DMA'd across grid steps.
        in_specs.append(pl.BlockSpec(arr.shape, lambda i: (0, 0)))
        args.append(arr)

    if use_fourier:
        fdim = fourier_B.shape[1]
        # Fold 2*pi on the host; keep f32 (sin/cos argument precision).
        add_const(_blkdiag2((2.0 * math.pi) * fourier_B.astype(jnp.float32)))
        w0, b0 = params[0]
        w0_sin, w0_cos = w0[:fdim], w0[fdim:]        # split W0: kill the sin/cos concat
        add_const(_blkdiag2(w0_sin).astype(compute_dtype))
        add_const(_blkdiag2(w0_cos).astype(compute_dtype))
        add_const(_tile2(b0).astype(jnp.float32))
        rest = params[1:]
    else:
        rest = params

    for w, b in rest:
        add_const(_blkdiag2(w).astype(compute_dtype))
        add_const(_tile2(b).astype(jnp.float32))

    kernel = functools.partial(_pinn_kernel, num_layers=num_layers,
                               use_fourier=use_fourier, act_dtype=compute_dtype)

    out = pl.pallas_call(
        kernel,
        out_shape=jax.ShapeDtypeStruct((n_pad // 2, 2 * out_dim), jnp.float32),
        grid_spec=pltpu.PrefetchScalarGridSpec(
            num_scalar_prefetch=0,
            grid=(n_pad // batch_tile,),
            in_specs=in_specs,
            out_specs=pl.BlockSpec((bt2, 2 * out_dim), lambda i: (i, 0)),
        ),
        compiler_params=pltpu.CompilerParams(
            dimension_semantics=("parallel",)),
    )(*args)

    # (n_pad/2, 2*out_dim) -> (n_pad, out_dim) is a contiguous row-major view.
    return out.reshape(n_pad, out_dim)[:n]


# --------------------------- parameter setup (glue) --------------------------

def _weight_norm_linear(key, in_dim, out_dim):
    """nn.utils.weight_norm(nn.Linear(in,out), dim=0): W = g * v / ||v||_row."""
    kv, kg, kb = jax.random.split(key, 3)
    bound = 1.0 / math.sqrt(in_dim)
    v = jax.random.uniform(kv, (out_dim, in_dim), jnp.float32, -bound, bound)
    row_norm = jnp.linalg.norm(v, axis=1, keepdims=True)
    # g initialized to ||v|| (PyTorch default); perturb so g is non-trivial.
    g = row_norm * (1.0 + 0.1 * jax.random.uniform(kg, (out_dim, 1), jnp.float32))
    w_eff = g * v / row_norm                           # (out, in)
    b = jax.random.uniform(kb, (out_dim,), jnp.float32, -bound, bound)
    return w_eff.T, b.reshape(1, out_dim)              # store as (in,out), (1,out)


def _plain_linear(key, in_dim, out_dim):
    kw, kb = jax.random.split(key)
    bound = 1.0 / math.sqrt(in_dim)
    w = jax.random.uniform(kw, (out_dim, in_dim), jnp.float32, -bound, bound)
    b = jax.random.uniform(kb, (out_dim,), jnp.float32, -bound, bound)
    return w.T, b.reshape(1, out_dim)


def make_pinn_params(key, layer_list, use_fourier, fourier_dim, fourier_scale):
    keys = jax.random.split(key, len(layer_list) + 1)
    fourier_B = None
    if use_fourier:
        fourier_B = fourier_scale * jax.random.normal(
            keys[0], (layer_list[0], fourier_dim), jnp.float32)
        input_dim = 2 * fourier_dim
    else:
        input_dim = layer_list[0]

    params = []
    # input_layer (weight-norm)
    params.append(_weight_norm_linear(keys[1], input_dim, layer_list[1]))
    # hidden LinearBlocks (weight-norm) over layer_list[1:-1]
    hidden = layer_list[1:-1]
    for i in range(len(hidden) - 1):
        params.append(_weight_norm_linear(keys[2 + i], hidden[i], hidden[i + 1]))
    # output_layer (plain Linear, no tanh)
    params.append(_plain_linear(keys[-1], layer_list[-2], layer_list[-1]))
    return params, fourier_B


# ------------------------------ reference (JAX) ------------------------------

def pinn_reference(x, params, fourier_B=None):
    h = x
    if fourier_B is not None:
        proj = 2.0 * math.pi * (h @ fourier_B)
        h = jnp.concatenate([jnp.sin(proj), jnp.cos(proj)], axis=-1)
    for li, (w, b) in enumerate(params):
        h = h @ w + b
        if li < len(params) - 1:
            h = jnp.tanh(h)
    return h


# ----------------------------------- main ------------------------------------

if __name__ == "__main__":
    key = jax.random.PRNGKey(0)
    k_param, k_x = jax.random.split(key)

    layer_list = [2, 64, 64, 64, 1]     # PINN(layer_list, use_fourier=True, ...)
    use_fourier = True
    fourier_dim = 64
    fourier_scale = 10.0
    batch = 512

    params, fourier_B = make_pinn_params(
        k_param, layer_list, use_fourier, fourier_dim, fourier_scale)
    x = jax.random.normal(k_x, (batch, layer_list[0]), jnp.float32)

    # f32 path (auto, generation-aware tiling: grid=1 on v5e/v6e, 2 on v7x).
    out = jax.block_until_ready(pinn_forward(x, params, fourier_B))
    ref = pinn_reference(x, params, fourier_B)

    assert out.shape == (batch, layer_list[-1])
    # Tolerance covers ulp-level argument-reduction differences of sin/cos on the
    # O(100)-radian Fourier-scaled arguments (kernel vs XLA implementations).
    assert jnp.allclose(out, ref, atol=3e-3, rtol=3e-3), "mismatch vs JAX reference"

    # bf16 EUP/MXU path: only exercised on chips with a bf16 VPU/EUP datapath
    # (v6e / v7x).  Skipped on v5e per the perf review.
    kind = jax.devices()[0].device_kind.lower()
    if ("v6" in kind) or ("v7" in kind) or ("7x" in kind):
        out_bf16 = jax.block_until_ready(
            pinn_forward(x, params, fourier_B, compute_dtype=jnp.bfloat16))
        assert jnp.allclose(out_bf16, ref, atol=5e-2, rtol=5e-2), "bf16 path mismatch"

    # TODO(synk): input-gradient path (PINN residual losses) is out of scope for
    # this fused forward kernel.
    print("KERNEL_OK")
</pallas_src>

<mosaic_0001>
module attributes {stable_mosaic.version = 11 : i64} {
  func.func @_pinn_kernel(%arg0: i32, %arg1: memref<256x4xf32, #tpu.memory_space<vmem>>, %arg2: memref<4x128xf32, #tpu.memory_space<vmem>>, %arg3: memref<128x128xf32, #tpu.memory_space<vmem>>, %arg4: memref<128x128xf32, #tpu.memory_space<vmem>>, %arg5: memref<1x128xf32, #tpu.memory_space<vmem>>, %arg6: memref<128x128xf32, #tpu.memory_space<vmem>>, %arg7: memref<1x128xf32, #tpu.memory_space<vmem>>, %arg8: memref<128x128xf32, #tpu.memory_space<vmem>>, %arg9: memref<1x128xf32, #tpu.memory_space<vmem>>, %arg10: memref<128x2xf32, #tpu.memory_space<vmem>>, %arg11: memref<1x2xf32, #tpu.memory_space<vmem>>, %arg12: memref<256x2xf32, #tpu.memory_space<vmem>>) attributes {dimension_semantics = [#tpu.dimension_semantics<parallel>], iteration_bounds = array<i64: 1>, scalar_prefetch = 0 : i64, scratch_operands = 0 : i64, tpu.core_type = #tpu.core_type<tc>, window_params = [{transform_indices = @transform_0, window_bounds = array<i64: 256, 4>}, {pipeline_mode = #tpu.pipeline_mode<synchronous>, transform_indices = @transform_1, window_bounds = array<i64: 4, 128>}, {pipeline_mode = #tpu.pipeline_mode<synchronous>, transform_indices = @transform_2, window_bounds = array<i64: 128, 128>}, {pipeline_mode = #tpu.pipeline_mode<synchronous>, transform_indices = @transform_3, window_bounds = array<i64: 128, 128>}, {pipeline_mode = #tpu.pipeline_mode<synchronous>, transform_indices = @transform_4, window_bounds = array<i64: 1, 128>}, {pipeline_mode = #tpu.pipeline_mode<synchronous>, transform_indices = @transform_5, window_bounds = array<i64: 128, 128>}, {pipeline_mode = #tpu.pipeline_mode<synchronous>, transform_indices = @transform_6, window_bounds = array<i64: 1, 128>}, {pipeline_mode = #tpu.pipeline_mode<synchronous>, transform_indices = @transform_7, window_bounds = array<i64: 128, 128>}, {pipeline_mode = #tpu.pipeline_mode<synchronous>, transform_indices = @transform_8, window_bounds = array<i64: 1, 128>}, {pipeline_mode = #tpu.pipeline_mode<synchronous>, transform_indices = @transform_9, window_bounds = array<i64: 128, 2>}, {pipeline_mode = #tpu.pipeline_mode<synchronous>, transform_indices = @transform_10, window_bounds = array<i64: 1, 2>}, {transform_indices = @transform_11, window_bounds = array<i64: 256, 2>}]} {
    %c0 = arith.constant 0 : index
    %c0_0 = arith.constant 0 : index
    %0 = vector.load %arg1[%c0, %c0_0] : memref<256x4xf32, #tpu.memory_space<vmem>>, vector<256x4xf32>
    %c0_1 = arith.constant 0 : index
    %c0_2 = arith.constant 0 : index
    %1 = vector.load %arg2[%c0_1, %c0_2] : memref<4x128xf32, #tpu.memory_space<vmem>>, vector<4x128xf32>
    %2 = vector.extract_strided_slice %0 {offsets = [0, 0], sizes = [256, 1], strides = [1, 1]} : vector<256x4xf32> to vector<256x1xf32>
    %3 = vector.extract_strided_slice %1 {offsets = [0, 0], sizes = [1, 128], strides = [1, 1]} : vector<4x128xf32> to vector<1x128xf32>
    %4 = vector.broadcast %2 : vector<256x1xf32> to vector<256x128xf32>
    %5 = vector.broadcast %3 : vector<1x128xf32> to vector<256x128xf32>
    %6 = arith.mulf %4, %5 : vector<256x128xf32>
    %7 = vector.extract_strided_slice %0 {offsets = [0, 1], sizes = [256, 1], strides = [1, 1]} : vector<256x4xf32> to vector<256x1xf32>
    %8 = vector.extract_strided_slice %1 {offsets = [1, 0], sizes = [1, 128], strides = [1, 1]} : vector<4x128xf32> to vector<1x128xf32>
    %9 = vector.broadcast %7 : vector<256x1xf32> to vector<256x128xf32>
    %10 = vector.broadcast %8 : vector<1x128xf32> to vector<256x128xf32>
    %11 = arith.mulf %9, %10 : vector<256x128xf32>
    %12 = arith.addf %6, %11 : vector<256x128xf32>
    %13 = vector.extract_strided_slice %0 {offsets = [0, 2], sizes = [256, 1], strides = [1, 1]} : vector<256x4xf32> to vector<256x1xf32>
    %14 = vector.extract_strided_slice %1 {offsets = [2, 0], sizes = [1, 128], strides = [1, 1]} : vector<4x128xf32> to vector<1x128xf32>
    %15 = vector.broadcast %13 : vector<256x1xf32> to vector<256x128xf32>
    %16 = vector.broadcast %14 : vector<1x128xf32> to vector<256x128xf32>
    %17 = arith.mulf %15, %16 : vector<256x128xf32>
    %18 = arith.addf %12, %17 : vector<256x128xf32>
    %19 = vector.extract_strided_slice %0 {offsets = [0, 3], sizes = [256, 1], strides = [1, 1]} : vector<256x4xf32> to vector<256x1xf32>
    %20 = vector.extract_strided_slice %1 {offsets = [3, 0], sizes = [1, 128], strides = [1, 1]} : vector<4x128xf32> to vector<1x128xf32>
    %21 = vector.broadcast %19 : vector<256x1xf32> to vector<256x128xf32>
    %22 = vector.broadcast %20 : vector<1x128xf32> to vector<256x128xf32>
    %23 = arith.mulf %21, %22 : vector<256x128xf32>
    %24 = arith.addf %18, %23 : vector<256x128xf32>
    %c0_3 = arith.constant 0 : index
    %c0_4 = arith.constant 0 : index
    %25 = vector.load %arg3[%c0_3, %c0_4] : memref<128x128xf32, #tpu.memory_space<vmem>>, vector<128x128xf32>
    %c0_5 = arith.constant 0 : index
    %c0_6 = arith.constant 0 : index
    %26 = vector.load %arg4[%c0_5, %c0_6] : memref<128x128xf32, #tpu.memory_space<vmem>>, vector<128x128xf32>
    %27 = math.sin %24 : vector<256x128xf32>
    %28 = math.cos %24 : vector<256x128xf32>
    %cst = arith.constant dense<0.000000e+00> : vector<256x128xf32>
    %29 = tpu.matmul %27, %25, %cst {dimension_numbers = #tpu.dot_dimension_numbers<[1], [0], [0], [1], [0, 0, 1, 1], [], []>} : vector<256x128xf32>, vector<128x128xf32>, vector<256x128xf32> -> vector<256x128xf32>
    %cst_7 = arith.constant dense<0.000000e+00> : vector<256x128xf32>
    %30 = tpu.matmul %28, %26, %cst_7 {dimension_numbers = #tpu.dot_dimension_numbers<[1], [0], [0], [1], [0, 0, 1, 1], [], []>} : vector<256x128xf32>, vector<128x128xf32>, vector<256x128xf32> -> vector<256x128xf32>
    %31 = arith.addf %29, %30 : vector<256x128xf32>
    %c0_8 = arith.constant 0 : index
    %c0_9 = arith.constant 0 : index
    %32 = vector.load %arg5[%c0_8, %c0_9] : memref<1x128xf32, #tpu.memory_space<vmem>>, vector<1x128xf32>
    %33 = vector.broadcast %32 : vector<1x128xf32> to vector<256x128xf32>
    %34 = arith.addf %31, %33 : vector<256x128xf32>
    %35 = math.tanh %34 : vector<256x128xf32>
    %c0_10 = arith.constant 0 : index
    %c0_11 = arith.constant 0 : index
    %36 = vector.load %arg6[%c0_10, %c0_11] : memref<128x128xf32, #tpu.memory_space<vmem>>, vector<128x128xf32>
    %c0_12 = arith.constant 0 : index
    %c0_13 = arith.constant 0 : index
    %37 = vector.load %arg7[%c0_12, %c0_13] : memref<1x128xf32, #tpu.memory_space<vmem>>, vector<1x128xf32>
    %cst_14 = arith.constant dense<0.000000e+00> : vector<256x128xf32>
    %38 = tpu.matmul %35, %36, %cst_14 {dimension_numbers = #tpu.dot_dimension_numbers<[1], [0], [0], [1], [0, 0, 1, 1], [], []>} : vector<256x128xf32>, vector<128x128xf32>, vector<256x128xf32> -> vector<256x128xf32>
    %39 = vector.broadcast %37 : vector<1x128xf32> to vector<256x128xf32>
    %40 = arith.addf %38, %39 : vector<256x128xf32>
    %41 = math.tanh %40 : vector<256x128xf32>
    %c0_15 = arith.constant 0 : index
    %c0_16 = arith.constant 0 : index
    %42 = vector.load %arg8[%c0_15, %c0_16] : memref<128x128xf32, #tpu.memory_space<vmem>>, vector<128x128xf32>
    %c0_17 = arith.constant 0 : index
    %c0_18 = arith.constant 0 : index
    %43 = vector.load %arg9[%c0_17, %c0_18] : memref<1x128xf32, #tpu.memory_space<vmem>>, vector<1x128xf32>
    %cst_19 = arith.constant dense<0.000000e+00> : vector<256x128xf32>
    %44 = tpu.matmul %41, %42, %cst_19 {dimension_numbers = #tpu.dot_dimension_numbers<[1], [0], [0], [1], [0, 0, 1, 1], [], []>} : vector<256x128xf32>, vector<128x128xf32>, vector<256x128xf32> -> vector<256x128xf32>
    %45 = vector.broadcast %43 : vector<1x128xf32> to vector<256x128xf32>
    %46 = arith.addf %44, %45 : vector<256x128xf32>
    %47 = math.tanh %46 : vector<256x128xf32>
    %c0_20 = arith.constant 0 : index
    %c0_21 = arith.constant 0 : index
    %48 = vector.load %arg10[%c0_20, %c0_21] : memref<128x2xf32, #tpu.memory_space<vmem>>, vector<128x2xf32>
    %c0_22 = arith.constant 0 : index
    %c0_23 = arith.constant 0 : index
    %49 = vector.load %arg11[%c0_22, %c0_23] : memref<1x2xf32, #tpu.memory_space<vmem>>, vector<1x2xf32>
    %cst_24 = arith.constant dense<0.000000e+00> : vector<256x2xf32>
    %50 = tpu.matmul %47, %48, %cst_24 {dimension_numbers = #tpu.dot_dimension_numbers<[1], [0], [0], [1], [0, 0, 1, 1], [], []>} : vector<256x128xf32>, vector<128x2xf32>, vector<256x2xf32> -> vector<256x2xf32>
    %51 = vector.broadcast %49 : vector<1x2xf32> to vector<256x2xf32>
    %52 = arith.addf %50, %51 : vector<256x2xf32>
    %c0_25 = arith.constant 0 : index
    %c0_26 = arith.constant 0 : index
    %53 = vector.load %arg12[%c0_25, %c0_26] : memref<256x2xf32, #tpu.memory_space<vmem>>, vector<256x2xf32>
    tpu.vector_store %arg12[%c0_25, %c0_26], %52 {strides = array<i32>} : memref<256x2xf32, #tpu.memory_space<vmem>>, vector<256x2xf32>,
    return
  }
  func.func @transform_0(%arg0: i32) -> (i32, i32) {
    %c0_i32 = arith.constant 0 : i32
    %c0_i32_0 = arith.constant 0 : i32
    return %arg0, %c0_i32 : i32, i32
  }
  func.func @transform_1(%arg0: i32) -> (i32, i32) {
    %c0_i32 = arith.constant 0 : i32
    %c0_i32_0 = arith.constant 0 : i32
    %c0_i32_1 = arith.constant 0 : i32
    return %c0_i32, %c0_i32_0 : i32, i32
  }
  func.func @transform_2(%arg0: i32) -> (i32, i32) {
    %c0_i32 = arith.constant 0 : i32
    %c0_i32_0 = arith.constant 0 : i32
    %c0_i32_1 = arith.constant 0 : i32
    return %c0_i32, %c0_i32_0 : i32, i32
  }
  func.func @transform_3(%arg0: i32) -> (i32, i32) {
    %c0_i32 = arith.constant 0 : i32
    %c0_i32_0 = arith.constant 0 : i32
    %c0_i32_1 = arith.constant 0 : i32
    return %c0_i32, %c0_i32_0 : i32, i32
  }
  func.func @transform_4(%arg0: i32) -> (i32, i32) {
    %c0_i32 = arith.constant 0 : i32
    %c0_i32_0 = arith.constant 0 : i32
    %c0_i32_1 = arith.constant 0 : i32
    return %c0_i32, %c0_i32_0 : i32, i32
  }
  func.func @transform_5(%arg0: i32) -> (i32, i32) {
    %c0_i32 = arith.constant 0 : i32
    %c0_i32_0 = arith.constant 0 : i32
    %c0_i32_1 = arith.constant 0 : i32
    return %c0_i32, %c0_i32_0 : i32, i32
  }
  func.func @transform_6(%arg0: i32) -> (i32, i32) {
    %c0_i32 = arith.constant 0 : i32
    %c0_i32_0 = arith.constant 0 : i32
    %c0_i32_1 = arith.constant 0 : i32
    return %c0_i32, %c0_i32_0 : i32, i32
  }
  func.func @transform_7(%arg0: i32) -> (i32, i32) {
    %c0_i32 = arith.constant 0 : i32
    %c0_i32_0 = arith.constant 0 : i32
    %c0_i32_1 = arith.constant 0 : i32
    return %c0_i32, %c0_i32_0 : i32, i32
  }
  func.func @transform_8(%arg0: i32) -> (i32, i32) {
    %c0_i32 = arith.constant 0 : i32
    %c0_i32_0 = arith.constant 0 : i32
    %c0_i32_1 = arith.constant 0 : i32
    return %c0_i32, %c0_i32_0 : i32, i32
  }
  func.func @transform_9(%arg0: i32) -> (i32, i32) {
    %c0_i32 = arith.constant 0 : i32
    %c0_i32_0 = arith.constant 0 : i32
    %c0_i32_1 = arith.constant 0 : i32
    return %c0_i32, %c0_i32_0 : i32, i32
  }
  func.func @transform_10(%arg0: i32) -> (i32, i32) {
    %c0_i32 = arith.constant 0 : i32
    %c0_i32_0 = arith.constant 0 : i32
    %c0_i32_1 = arith.constant 0 : i32
    return %c0_i32, %c0_i32_0 : i32, i32
  }
  func.func @transform_11(%arg0: i32) -> (i32, i32) {
    %c0_i32 = arith.constant 0 : i32
    %c0_i32_0 = arith.constant 0 : i32
    return %arg0, %c0_i32 : i32, i32
  }
}

</mosaic_0001>

<llo_original>
// kernel: tpu_custom_call.1
$region0: #{tpu_custom_call.1}
  #allocation0 [shape = 'u32[]', space=smem, size = 0x4, offset = 0x4, fixed_abs, tag = 'smem constant byte address 0x4 - core index']
  #allocation1 [shape = 'u32[72,128]{1,0:T(1,128)}', space=vmem, size = 0x9000, scoped, tag = 'internal scratch']
  %s0 = inlined_call_operand.vmem [shape: f32[256,4], index: 0, kind: input, shape index: {}]
  %s1 = inlined_call_operand.hbm [shape: f32[4,128], index: 1, kind: input, shape index: {}]
  %s2 = inlined_call_operand.vmem [shape: f32[128,128], index: 2, kind: input, shape index: {}]
  %s3 = inlined_call_operand.vmem [shape: f32[128,128], index: 3, kind: input, shape index: {}]
  %s4 = inlined_call_operand.vmem [shape: f32[1,128], index: 4, kind: input, shape index: {}]
  %s5 = inlined_call_operand.vmem [shape: f32[128,128], index: 5, kind: input, shape index: {}]
  %s6 = inlined_call_operand.vmem [shape: f32[1,128], index: 6, kind: input, shape index: {}]
  %s7 = inlined_call_operand.hbm [shape: f32[128,128], index: 7, kind: input, shape index: {}]
  %s8 = inlined_call_operand.vmem [shape: f32[1,128], index: 8, kind: input, shape index: {}]
  %s9 = inlined_call_operand.vmem [shape: f32[128,2], index: 9, kind: input, shape index: {}]
  %s10 = inlined_call_operand.vmem [shape: f32[1,2], index: 10, kind: input, shape index: {}]
  %s11 = inlined_call_operand.vmem [shape: f32[256,2], index: 11, kind: output, shape index: {}]
  %s12 = sld [smem:[#allocation0]]
  $region62: #{tpu_custom_call.1} parent=0
    _
  %s14 = ssub.s32 1, %s12
  %s15 = scalar_select 0, %s14, %s12
  $region1: #{tpu_custom_call.1} parent=0
    #allocation2 [shape = 'u8[2048]{0}', space=vmem, size = 0x800, scoped, tag = 'input window, operand 1, single buffered']
    #allocation3 [shape = 's32[1]{0}', space=sflag, size = 0x4, scoped, tag = 'scoped memory for tpu_custom_call.1']
    #allocation4 [shape = 'u8[65536]{0}', space=vmem, size = 0x10000, scoped, tag = 'input window, operand 7, single buffered']
    #allocation5 [shape = 's32[1]{0}', space=sflag, size = 0x4, scoped, tag = 'scoped memory for tpu_custom_call.1']
    %16 = vsyncpa [#allocation3], 0
    %17 = vsyncpa [#allocation5], 0
    // Predicated region
    $region2: #{tpu_custom_call.1} parent=1 // pred_check
      _
    $region3: #{tpu_custom_call.1} parent=1 // pred_check_branch
      %19 = sbr.rel (0) target = $region5
    $region4: #{tpu_custom_call.1} parent=1 // pred_region
      _
    $region5: #{tpu_custom_call.1} parent=1 // pred_fallthru
      _
    // Predicated region
    $region6: #{tpu_custom_call.1} parent=1 // pred_check
      _
    $region7: #{tpu_custom_call.1} parent=1 // pred_check_branch
      %21 = sbr.rel (0) target = $region9
    $region8: #{tpu_custom_call.1} parent=1 // pred_region
      %23 = vsyncadd [#allocation3], 0
      %s25 = sshll.u32 %s1, 4
      %s26 = int_to_ptr.hbm [resolvable:$true] %s25
      %s27 = sshll.u32 [#allocation2], 4
      %s28 = int_to_ptr.vmem [resolvable:$true] %s27
      %30 = dma.hbm_to_vmem [thread:$0]  %s26, 64, %s28, [#allocation3]
    $region9: #{tpu_custom_call.1} parent=1 // pred_fallthru
      _
    // Predicated region
    $region10: #{tpu_custom_call.1} parent=1 // pred_check
      _
    $region11: #{tpu_custom_call.1} parent=1 // pred_check_branch
      %32 = sbr.rel (0) target = $region13
    $region12: #{tpu_custom_call.1} parent=1 // pred_region
      _
    $region13: #{tpu_custom_call.1} parent=1 // pred_fallthru
      _
    // Predicated region
    $region14: #{tpu_custom_call.1} parent=1 // pred_check
      _
    $region15: #{tpu_custom_call.1} parent=1 // pred_check_branch
      %34 = sbr.rel (0) target = $region17
    $region16: #{tpu_custom_call.1} parent=1 // pred_region
      _
    $region17: #{tpu_custom_call.1} parent=1 // pred_fallthru
      _
    // Predicated region
    $region18: #{tpu_custom_call.1} parent=1 // pred_check
      _
    $region19: #{tpu_custom_call.1} parent=1 // pred_check_branch
      %36 = sbr.rel (0) target = $region21
    $region20: #{tpu_custom_call.1} parent=1 // pred_region
      _
    $region21: #{tpu_custom_call.1} parent=1 // pred_fallthru
      _
    // Predicated region
    $region22: #{tpu_custom_call.1} parent=1 // pred_check
      _
    $region23: #{tpu_custom_call.1} parent=1 // pred_check_branch
      %38 = sbr.rel (0) target = $region25
    $region24: #{tpu_custom_call.1} parent=1 // pred_region
      _
    $region25: #{tpu_custom_call.1} parent=1 // pred_fallthru
      _
    // Predicated region
    $region26: #{tpu_custom_call.1} parent=1 // pred_check
      _
    $region27: #{tpu_custom_call.1} parent=1 // pred_check_branch
      %40 = sbr.rel (0) target = $region29
    $region28: #{tpu_custom_call.1} parent=1 // pred_region
      _
    $region29: #{tpu_custom_call.1} parent=1 // pred_fallthru
      _
    // Predicated region
    $region30: #{tpu_custom_call.1} parent=1 // pred_check
      _
    $region31: #{tpu_custom_call.1} parent=1 // pred_check_branch
      %42 = sbr.rel (0) target = $region33
    $region32: #{tpu_custom_call.1} parent=1 // pred_region
      %44 = vsyncadd [#allocation5], 0
      %s45 = sshll.u32 %s7, 4
      %s46 = int_to_ptr.hbm [resolvable:$true] %s45
      %s47 = sshll.u32 [#allocation4], 4
      %s48 = int_to_ptr.vmem [resolvable:$true] %s47
      %53 = dma.hbm_to_vmem [thread:$0]  %s46, 2048, %s48, [#allocation5], 128, 128, 8
    $region33: #{tpu_custom_call.1} parent=1 // pred_fallthru
      _
    // Predicated region
    $region34: #{tpu_custom_call.1} parent=1 // pred_check
      _
    $region35: #{tpu_custom_call.1} parent=1 // pred_check_branch
      %55 = sbr.rel (0) target = $region37
    $region36: #{tpu_custom_call.1} parent=1 // pred_region
      _
    $region37: #{tpu_custom_call.1} parent=1 // pred_fallthru
      _
    // Predicated region
    $region38: #{tpu_custom_call.1} parent=1 // pred_check
      _
    $region39: #{tpu_custom_call.1} parent=1 // pred_check_branch
      %57 = sbr.rel (0) target = $region41
    $region40: #{tpu_custom_call.1} parent=1 // pred_region
      _
    $region41: #{tpu_custom_call.1} parent=1 // pred_fallthru
      _
    // Predicated region
    $region42: #{tpu_custom_call.1} parent=1 // pred_check
      _
    $region43: #{tpu_custom_call.1} parent=1 // pred_check_branch
      %59 = sbr.rel (0) target = $region45
    $region44: #{tpu_custom_call.1} parent=1 // pred_region
      _
    $region45: #{tpu_custom_call.1} parent=1 // pred_fallthru
      _
    // Predicated region
    $region46: #{tpu_custom_call.1} parent=1 // pred_check
      _
    $region47: #{tpu_custom_call.1} parent=1 // pred_check_branch
      %61 = sbr.rel (0) target = $region49
    $region48: #{tpu_custom_call.1} parent=1 // pred_region
      %63 = dma.done [#allocation3], 64
    $region49: #{tpu_custom_call.1} parent=1 // pred_fallthru
      _
    // Predicated region
    $region50: #{tpu_custom_call.1} parent=1 // pred_check
      _
    $region51: #{tpu_custom_call.1} parent=1 // pred_check_branch
      %65 = sbr.rel (0) target = $region53
    $region52: #{tpu_custom_call.1} parent=1 // pred_region
      %67 = dma.done [#allocation5], 2048
    $region53: #{tpu_custom_call.1} parent=1 // pred_fallthru
      _
    %v68 = vld [vmem:[%s0] sm:$0xff]
    %v69 = vld [vmem:[%s0 + $0x8] sm:$0xff]
    %v70 = vld [vmem:[%s0 + $0x10] sm:$0xff]
    %v71 = vld [vmem:[%s0 + $0x18] sm:$0xff]
    %v72 = vld [vmem:[%s0 + $0x20] sm:$0xff]
    %v73 = vld [vmem:[%s0 + $0x28] sm:$0xff]
    %v74 = vld [vmem:[%s0 + $0x30] sm:$0xff]
    %v75 = vld [vmem:[%s0 + $0x38] sm:$0xff]
    %v76 = vld [vmem:[%s0 + $0x40] sm:$0xff]
    %v77 = vld [vmem:[%s0 + $0x48] sm:$0xff]
    %v78 = vld [vmem:[%s0 + $0x50] sm:$0xff]
    %v79 = vld [vmem:[%s0 + $0x58] sm:$0xff]
    %v80 = vld [vmem:[%s0 + $0x60] sm:$0xff]
    %v81 = vld [vmem:[%s0 + $0x68] sm:$0xff]
    %v82 = vld [vmem:[%s0 + $0x70] sm:$0xff]
    %v83 = vld [vmem:[%s0 + $0x78] sm:$0xff]
    %v84 = vld [vmem:[%s0 + $0x80] sm:$0xff]
    %v85 = vld [vmem:[%s0 + $0x88] sm:$0xff]
    %v86 = vld [vmem:[%s0 + $0x90] sm:$0xff]
    %v87 = vld [vmem:[%s0 + $0x98] sm:$0xff]
    %v88 = vld [vmem:[%s0 + $0xa0] sm:$0xff]
    %v89 = vld [vmem:[%s0 + $0xa8] sm:$0xff]
    %v90 = vld [vmem:[%s0 + $0xb0] sm:$0xff]
    %v91 = vld [vmem:[%s0 + $0xb8] sm:$0xff]
    %v92 = vld [vmem:[%s0 + $0xc0] sm:$0xff]
    %v93 = vld [vmem:[%s0 + $0xc8] sm:$0xff]
    %v94 = vld [vmem:[%s0 + $0xd0] sm:$0xff]
    %v95 = vld [vmem:[%s0 + $0xd8] sm:$0xff]
    %v96 = vld [vmem:[%s0 + $0xe0] sm:$0xff]
    %v97 = vld [vmem:[%s0 + $0xe8] sm:$0xff]
    %v98 = vld [vmem:[%s0 + $0xf0] sm:$0xff]
    %v99 = vld [vmem:[%s0 + $0xf8] sm:$0xff]
    %v100 = vld [vmem:[#allocation2] sm:$0xf]
    %102 = vset.pattern.permute.xlu0 0
    %103 = vperm.xlu0 %102, %v68
    %v104 = vpop.permute.xlu0 %103
    %107 = vset.pattern.permute.xlu0 0
    %108 = vperm.xlu0 %107, %v69
    %v109 = vpop.permute.xlu0 %108
    %112 = vset.pattern.permute.xlu0 0
    %113 = vperm.xlu0 %112, %v70
    %v114 = vpop.permute.xlu0 %113
    %117 = vset.pattern.permute.xlu0 0
    %118 = vperm.xlu0 %117, %v71
    %v119 = vpop.permute.xlu0 %118
    %122 = vset.pattern.permute.xlu0 0
    %123 = vperm.xlu0 %122, %v72
    %v124 = vpop.permute.xlu0 %123
    %127 = vset.pattern.permute.xlu0 0
    %128 = vperm.xlu0 %127, %v73
    %v129 = vpop.permute.xlu0 %128
    %132 = vset.pattern.permute.xlu0 0
    %133 = vperm.xlu0 %132, %v74
    %v134 = vpop.permute.xlu0 %133
    %137 = vset.pattern.permute.xlu0 0
    %138 = vperm.xlu0 %137, %v75
    %v139 = vpop.permute.xlu0 %138
    %142 = vset.pattern.permute.xlu0 0
    %143 = vperm.xlu0 %142, %v76
    %v144 = vpop.permute.xlu0 %143
    %147 = vset.pattern.permute.xlu0 0
    %148 = vperm.xlu0 %147, %v77
    %v149 = vpop.permute.xlu0 %148
    %152 = vset.pattern.permute.xlu0 0
    %153 = vperm.xlu0 %152, %v78
    %v154 = vpop.permute.xlu0 %153
    %157 = vset.pattern.permute.xlu0 0
    %158 = vperm.xlu0 %157, %v79
    %v159 = vpop.permute.xlu0 %158
    %162 = vset.pattern.permute.xlu0 0
    %163 = vperm.xlu0 %162, %v80
    %v164 = vpop.permute.xlu0 %163
    %167 = vset.pattern.permute.xlu0 0
    %168 = vperm.xlu0 %167, %v81
    %v169 = vpop.permute.xlu0 %168
    %172 = vset.pattern.permute.xlu0 0
    %173 = vperm.xlu0 %172, %v82
    %v174 = vpop.permute.xlu0 %173
    %177 = vset.pattern.permute.xlu0 0
    %178 = vperm.xlu0 %177, %v83
    %v179 = vpop.permute.xlu0 %178
    %182 = vset.pattern.permute.xlu0 0
    %183 = vperm.xlu0 %182, %v84
    %v184 = vpop.permute.xlu0 %183
    %187 = vset.pattern.permute.xlu0 0
    %188 = vperm.xlu0 %187, %v85
    %v189 = vpop.permute.xlu0 %188
    %192 = vset.pattern.permute.xlu0 0
    %193 = vperm.xlu0 %192, %v86
    %v194 = vpop.permute.xlu0 %193
    %197 = vset.pattern.permute.xlu0 0
    %198 = vperm.xlu0 %197, %v87
    %v199 = vpop.permute.xlu0 %198
    %202 = vset.pattern.permute.xlu0 0
    %203 = vperm.xlu0 %202, %v88
    %v204 = vpop.permute.xlu0 %203
    %207 = vset.pattern.permute.xlu0 0
    %208 = vperm.xlu0 %207, %v89
    %v209 = vpop.permute.xlu0 %208
    %212 = vset.pattern.permute.xlu0 0
    %213 = vperm.xlu0 %212, %v90
    %v214 = vpop.permute.xlu0 %213
    %217 = vset.pattern.permute.xlu0 0
    %218 = vperm.xlu0 %217, %v91
    %v219 = vpop.permute.xlu0 %218
    %222 = vset.pattern.permute.xlu0 0
    %223 = vperm.xlu0 %222, %v92
    %v224 = vpop.permute.xlu0 %223
    %227 = vset.pattern.permute.xlu0 0
    %228 = vperm.xlu0 %227, %v93
    %v229 = vpop.permute.xlu0 %228
    %232 = vset.pattern.permute.xlu0 0
    %233 = vperm.xlu0 %232, %v94
    %v234 = vpop.permute.xlu0 %233
    %237 = vset.pattern.permute.xlu0 0
    %238 = vperm.xlu0 %237, %v95
    %v239 = vpop.permute.xlu0 %238
    %242 = vset.pattern.permute.xlu0 0
    %243 = vperm.xlu0 %242, %v96
    %v244 = vpop.permute.xlu0 %243
    %247 = vset.pattern.permute.xlu0 0
    %248 = vperm.xlu0 %247, %v97
    %v249 = vpop.permute.xlu0 %248
    %252 = vset.pattern.permute.xlu0 0
    %253 = vperm.xlu0 %252, %v98
    %v254 = vpop.permute.xlu0 %253
    %257 = vset.pattern.permute.xlu0 0
    %258 = vperm.xlu0 %257, %v99
    %v259 = vpop.permute.xlu0 %258
    %v261 = vperm.slane %v100, 0
    %v262 = vmul.f32 %v104, %v261
    %v263 = vmul.f32 %v109, %v261
    %v264 = vmul.f32 %v114, %v261
    %v265 = vmul.f32 %v119, %v261
    %v266 = vmul.f32 %v124, %v261
    %v267 = vmul.f32 %v129, %v261
    %v268 = vmul.f32 %v134, %v261
    %v269 = vmul.f32 %v139, %v261
    %v270 = vmul.f32 %v144, %v261
    %v271 = vmul.f32 %v149, %v261
    %v272 = vmul.f32 %v154, %v261
    %v273 = vmul.f32 %v159, %v261
    %v274 = vmul.f32 %v164, %v261
    %v275 = vmul.f32 %v169, %v261
    %v276 = vmul.f32 %v174, %v261
    %v277 = vmul.f32 %v179, %v261
    %v278 = vmul.f32 %v184, %v261
    %v279 = vmul.f32 %v189, %v261
    %v280 = vmul.f32 %v194, %v261
    %v281 = vmul.f32 %v199, %v261
    %v282 = vmul.f32 %v204, %v261
    %v283 = vmul.f32 %v209, %v261
    %v284 = vmul.f32 %v214, %v261
    %v285 = vmul.f32 %v219, %v261
    %v286 = vmul.f32 %v224, %v261
    %v287 = vmul.f32 %v229, %v261
    %v288 = vmul.f32 %v234, %v261
    %v289 = vmul.f32 %v239, %v261
    %v290 = vmul.f32 %v244, %v261
    %v291 = vmul.f32 %v249, %v261
    %v292 = vmul.f32 %v254, %v261
    %v293 = vmul.f32 %v259, %v261
    %294 = vset.pattern.permute.xlu0 1
    %295 = vperm.xlu0 %294, %v68
    %v296 = vpop.permute.xlu0 %295
    %298 = vset.pattern.permute.xlu0 1
    %299 = vperm.xlu0 %298, %v69
    %v300 = vpop.permute.xlu0 %299
    %302 = vset.pattern.permute.xlu0 1
    %303 = vperm.xlu0 %302, %v70
    %v304 = vpop.permute.xlu0 %303
    %306 = vset.pattern.permute.xlu0 1
    %307 = vperm.xlu0 %306, %v71
    %v308 = vpop.permute.xlu0 %307
    %310 = vset.pattern.permute.xlu0 1
    %311 = vperm.xlu0 %310, %v72
    %v312 = vpop.permute.xlu0 %311
    %314 = vset.pattern.permute.xlu0 1
    %315 = vperm.xlu0 %314, %v73
    %v316 = vpop.permute.xlu0 %315
    %318 = vset.pattern.permute.xlu0 1
    %319 = vperm.xlu0 %318, %v74
    %v320 = vpop.permute.xlu0 %319
    %322 = vset.pattern.permute.xlu0 1
    %323 = vperm.xlu0 %322, %v75
    %v324 = vpop.permute.xlu0 %323
    %326 = vset.pattern.permute.xlu0 1
    %327 = vperm.xlu0 %326, %v76
    %v328 = vpop.permute.xlu0 %327
    %330 = vset.pattern.permute.xlu0 1
    %331 = vperm.xlu0 %330, %v77
    %v332 = vpop.permute.xlu0 %331
    %334 = vset.pattern.permute.xlu0 1
    %335 = vperm.xlu0 %334, %v78
    %v336 = vpop.permute.xlu0 %335
    %338 = vset.pattern.permute.xlu0 1
    %339 = vperm.xlu0 %338, %v79
    %v340 = vpop.permute.xlu0 %339
    %342 = vset.pattern.permute.xlu0 1
    %343 = vperm.xlu0 %342, %v80
    %v344 = vpop.permute.xlu0 %343
    %346 = vset.pattern.permute.xlu0 1
    %347 = vperm.xlu0 %346, %v81
    %v348 = vpop.permute.xlu0 %347
    %350 = vset.pattern.permute.xlu0 1
    %351 = vperm.xlu0 %350, %v82
    %v352 = vpop.permute.xlu0 %351
    %354 = vset.pattern.permute.xlu0 1
    %355 = vperm.xlu0 %354, %v83
    %v356 = vpop.permute.xlu0 %355
    %358 = vset.pattern.permute.xlu0 1
    %359 = vperm.xlu0 %358, %v84
    %v360 = vpop.permute.xlu0 %359
    %362 = vset.pattern.permute.xlu0 1
    %363 = vperm.xlu0 %362, %v85
    %v364 = vpop.permute.xlu0 %363
    %366 = vset.pattern.permute.xlu0 1
    %367 = vperm.xlu0 %366, %v86
    %v368 = vpop.permute.xlu0 %367
    %370 = vset.pattern.permute.xlu0 1
    %371 = vperm.xlu0 %370, %v87
    %v372 = vpop.permute.xlu0 %371
    %374 = vset.pattern.permute.xlu0 1
    %375 = vperm.xlu0 %374, %v88
    %v376 = vpop.permute.xlu0 %375
    %378 = vset.pattern.permute.xlu0 1
    %379 = vperm.xlu0 %378, %v89
    %v380 = vpop.permute.xlu0 %379
    %382 = vset.pattern.permute.xlu0 1
    %383 = vperm.xlu0 %382, %v90
    %v384 = vpop.permute.xlu0 %383
    %386 = vset.pattern.permute.xlu0 1
    %387 = vperm.xlu0 %386, %v91
    %v388 = vpop.permute.xlu0 %387
    %390 = vset.pattern.permute.xlu0 1
    %391 = vperm.xlu0 %390, %v92
    %v392 = vpop.permute.xlu0 %391
    %394 = vset.pattern.permute.xlu0 1
    %395 = vperm.xlu0 %394, %v93
    %v396 = vpop.permute.xlu0 %395
    %398 = vset.pattern.permute.xlu0 1
    %399 = vperm.xlu0 %398, %v94
    %v400 = vpop.permute.xlu0 %399
    %402 = vset.pattern.permute.xlu0 1
    %403 = vperm.xlu0 %402, %v95
    %v404 = vpop.permute.xlu0 %403
    %406 = vset.pattern.permute.xlu0 1
    %407 = vperm.xlu0 %406, %v96
    %v408 = vpop.permute.xlu0 %407
    %410 = vset.pattern.permute.xlu0 1
    %411 = vperm.xlu0 %410, %v97
    %v412 = vpop.permute.xlu0 %411
    %414 = vset.pattern.permute.xlu0 1
    %415 = vperm.xlu0 %414, %v98
    %v416 = vpop.permute.xlu0 %415
    %418 = vset.pattern.permute.xlu0 1
    %419 = vperm.xlu0 %418, %v99
    %v420 = vpop.permute.xlu0 %419
    %v422 = vperm.slane %v100, 1
    %v423 = vmul.f32 %v296, %v422
    %v424 = vmul.f32 %v300, %v422
    %v425 = vmul.f32 %v304, %v422
    %v426 = vmul.f32 %v308, %v422
    %v427 = vmul.f32 %v312, %v422
    %v428 = vmul.f32 %v316, %v422
    %v429 = vmul.f32 %v320, %v422
    %v430 = vmul.f32 %v324, %v422
    %v431 = vmul.f32 %v328, %v422
    %v432 = vmul.f32 %v332, %v422
    %v433 = vmul.f32 %v336, %v422
    %v434 = vmul.f32 %v340, %v422
    %v435 = vmul.f32 %v344, %v422
    %v436 = vmul.f32 %v348, %v422
    %v437 = vmul.f32 %v352, %v422
    %v438 = vmul.f32 %v356, %v422
    %v439 = vmul.f32 %v360, %v422
    %v440 = vmul.f32 %v364, %v422
    %v441 = vmul.f32 %v368, %v422
    %v442 = vmul.f32 %v372, %v422
    %v443 = vmul.f32 %v376, %v422
    %v444 = vmul.f32 %v380, %v422
    %v445 = vmul.f32 %v384, %v422
    %v446 = vmul.f32 %v388, %v422
    %v447 = vmul.f32 %v392, %v422
    %v448 = vmul.f32 %v396, %v422
    %v449 = vmul.f32 %v400, %v422
    %v450 = vmul.f32 %v404, %v422
    %v451 = vmul.f32 %v408, %v422
    %v452 = vmul.f32 %v412, %v422
    %v453 = vmul.f32 %v416, %v422
    %v454 = vmul.f32 %v420, %v422
    %v455 = vadd.f32 %v262, %v423
    %v456 = vadd.f32 %v263, %v424
    %v457 = vadd.f32 %v264, %v425
    %v458 = vadd.f32 %v265, %v426
    %v459 = vadd.f32 %v266, %v427
    %v460 = vadd.f32 %v267, %v428
    %v461 = vadd.f32 %v268, %v429
    %v462 = vadd.f32 %v269, %v430
    %v463 = vadd.f32 %v270, %v431
    %v464 = vadd.f32 %v271, %v432
    %v465 = vadd.f32 %v272, %v433
    %v466 = vadd.f32 %v273, %v434
    %v467 = vadd.f32 %v274, %v435
    %v468 = vadd.f32 %v275, %v436
    %v469 = vadd.f32 %v276, %v437
    %v470 = vadd.f32 %v277, %v438
    %v471 = vadd.f32 %v278, %v439
    %v472 = vadd.f32 %v279, %v440
    %v473 = vadd.f32 %v280, %v441
    %v474 = vadd.f32 %v281, %v442
    %v475 = vadd.f32 %v282, %v443
    %v476 = vadd.f32 %v283, %v444
    %v477 = vadd.f32 %v284, %v445
    %v478 = vadd.f32 %v285, %v446
    %v479 = vadd.f32 %v286, %v447
    %v480 = vadd.f32 %v287, %v448
    %v481 = vadd.f32 %v288, %v449
    %v482 = vadd.f32 %v289, %v450
    %v483 = vadd.f32 %v290, %v451
    %v484 = vadd.f32 %v291, %v452
    %v485 = vadd.f32 %v292, %v453
    %v486 = vadd.f32 %v293, %v454
    %487 = vset.pattern.permute.xlu0 2
    %488 = vperm.xlu0 %487, %v68
    %v489 = vpop.permute.xlu0 %488
    %491 = vset.pattern.permute.xlu0 2
    %492 = vperm.xlu0 %491, %v69
    %v493 = vpop.permute.xlu0 %492
    %495 = vset.pattern.permute.xlu0 2
    %496 = vperm.xlu0 %495, %v70
    %v497 = vpop.permute.xlu0 %496
    %499 = vset.pattern.permute.xlu0 2
    %500 = vperm.xlu0 %499, %v71
    %v501 = vpop.permute.xlu0 %500
    %503 = vset.pattern.permute.xlu0 2
    %504 = vperm.xlu0 %503, %v72
    %v505 = vpop.permute.xlu0 %504
    %507 = vset.pattern.permute.xlu0 2
    %508 = vperm.xlu0 %507, %v73
    %v509 = vpop.permute.xlu0 %508
    %511 = vset.pattern.permute.xlu0 2
    %512 = vperm.xlu0 %511, %v74
    %v513 = vpop.permute.xlu0 %512
    %515 = vset.pattern.permute.xlu0 2
    %516 = vperm.xlu0 %515, %v75
    %v517 = vpop.permute.xlu0 %516
    %519 = vset.pattern.permute.xlu0 2
    %520 = vperm.xlu0 %519, %v76
    %v521 = vpop.permute.xlu0 %520
    %523 = vset.pattern.permute.xlu0 2
    %524 = vperm.xlu0 %523, %v77
    %v525 = vpop.permute.xlu0 %524
    %527 = vset.pattern.permute.xlu0 2
    %528 = vperm.xlu0 %527, %v78
    %v529 = vpop.permute.xlu0 %528
    %531 = vset.pattern.permute.xlu0 2
    %532 = vperm.xlu0 %531, %v79
    %v533 = vpop.permute.xlu0 %532
    %535 = vset.pattern.permute.xlu0 2
    %536 = vperm.xlu0 %535, %v80
    %v537 = vpop.permute.xlu0 %536
    %539 = vset.pattern.permute.xlu0 2
    %540 = vperm.xlu0 %539, %v81
    %v541 = vpop.permute.xlu0 %540
    %543 = vset.pattern.permute.xlu0 2
    %544 = vperm.xlu0 %543, %v82
    %v545 = vpop.permute.xlu0 %544
    %547 = vset.pattern.permute.xlu0 2
    %548 = vperm.xlu0 %547, %v83
    %v549 = vpop.permute.xlu0 %548
    %551 = vset.pattern.permute.xlu0 2
    %552 = vperm.xlu0 %551, %v84
    %v553 = vpop.permute.xlu0 %552
    %555 = vset.pattern.permute.xlu0 2
    %556 = vperm.xlu0 %555, %v85
    %v557 = vpop.permute.xlu0 %556
    %559 = vset.pattern.permute.xlu0 2
    %560 = vperm.xlu0 %559, %v86
    %v561 = vpop.permute.xlu0 %560
    %563 = vset.pattern.permute.xlu0 2
    %564 = vperm.xlu0 %563, %v87
    %v565 = vpop.permute.xlu0 %564
    %567 = vset.pattern.permute.xlu0 2
    %568 = vperm.xlu0 %567, %v88
    %v569 = vpop.permute.xlu0 %568
    %571 = vset.pattern.permute.xlu0 2
    %572 = vperm.xlu0 %571, %v89
    %v573 = vpop.permute.xlu0 %572
    %575 = vset.pattern.permute.xlu0 2
    %576 = vperm.xlu0 %575, %v90
    %v577 = vpop.permute.xlu0 %576
    %579 = vset.pattern.permute.xlu0 2
    %580 = vperm.xlu0 %579, %v91
    %v581 = vpop.permute.xlu0 %580
    %583 = vset.pattern.permute.xlu0 2
    %584 = vperm.xlu0 %583, %v92
    %v585 = vpop.permute.xlu0 %584
    %587 = vset.pattern.permute.xlu0 2
    %588 = vperm.xlu0 %587, %v93
    %v589 = vpop.permute.xlu0 %588
    %591 = vset.pattern.permute.xlu0 2
    %592 = vperm.xlu0 %591, %v94
    %v593 = vpop.permute.xlu0 %592
    %595 = vset.pattern.permute.xlu0 2
    %596 = vperm.xlu0 %595, %v95
    %v597 = vpop.permute.xlu0 %596
    %599 = vset.pattern.permute.xlu0 2
    %600 = vperm.xlu0 %599, %v96
    %v601 = vpop.permute.xlu0 %600
    %603 = vset.pattern.permute.xlu0 2
    %604 = vperm.xlu0 %603, %v97
    %v605 = vpop.permute.xlu0 %604
    %607 = vset.pattern.permute.xlu0 2
    %608 = vperm.xlu0 %607, %v98
    %v609 = vpop.permute.xlu0 %608
    %611 = vset.pattern.permute.xlu0 2
    %612 = vperm.xlu0 %611, %v99
    %v613 = vpop.permute.xlu0 %612
    %v615 = vperm.slane %v100, 2
    %v616 = vmul.f32 %v489, %v615
    %v617 = vmul.f32 %v493, %v615
    %v618 = vmul.f32 %v497, %v615
    %v619 = vmul.f32 %v501, %v615
    %v620 = vmul.f32 %v505, %v615
    %v621 = vmul.f32 %v509, %v615
    %v622 = vmul.f32 %v513, %v615
    %v623 = vmul.f32 %v517, %v615
    %v624 = vmul.f32 %v521, %v615
    %v625 = vmul.f32 %v525, %v615
    %v626 = vmul.f32 %v529, %v615
    %v627 = vmul.f32 %v533, %v615
    %v628 = vmul.f32 %v537, %v615
    %v629 = vmul.f32 %v541, %v615
    %v630 = vmul.f32 %v545, %v615
    %v631 = vmul.f32 %v549, %v615
    %v632 = vmul.f32 %v553, %v615
    %v633 = vmul.f32 %v557, %v615
    %v634 = vmul.f32 %v561, %v615
    %v635 = vmul.f32 %v565, %v615
    %v636 = vmul.f32 %v569, %v615
    %v637 = vmul.f32 %v573, %v615
    %v638 = vmul.f32 %v577, %v615
    %v639 = vmul.f32 %v581, %v615
    %v640 = vmul.f32 %v585, %v615
    %v641 = vmul.f32 %v589, %v615
    %v642 = vmul.f32 %v593, %v615
    %v643 = vmul.f32 %v597, %v615
    %v644 = vmul.f32 %v601, %v615
    %v645 = vmul.f32 %v605, %v615
    %v646 = vmul.f32 %v609, %v615
    %v647 = vmul.f32 %v613, %v615
    %v648 = vadd.f32 %v455, %v616
    %v649 = vadd.f32 %v456, %v617
    %v650 = vadd.f32 %v457, %v618
    %v651 = vadd.f32 %v458, %v619
    %v652 = vadd.f32 %v459, %v620
    %v653 = vadd.f32 %v460, %v621
    %v654 = vadd.f32 %v461, %v622
    %v655 = vadd.f32 %v462, %v623
    %v656 = vadd.f32 %v463, %v624
    %v657 = vadd.f32 %v464, %v625
    %v658 = vadd.f32 %v465, %v626
    %v659 = vadd.f32 %v466, %v627
    %v660 = vadd.f32 %v467, %v628
    %v661 = vadd.f32 %v468, %v629
    %v662 = vadd.f32 %v469, %v630
    %v663 = vadd.f32 %v470, %v631
    %v664 = vadd.f32 %v471, %v632
    %v665 = vadd.f32 %v472, %v633
    %v666 = vadd.f32 %v473, %v634
    %v667 = vadd.f32 %v474, %v635
    %v668 = vadd.f32 %v475, %v636
    %v669 = vadd.f32 %v476, %v637
    %v670 = vadd.f32 %v477, %v638
    %v671 = vadd.f32 %v478, %v639
    %v672 = vadd.f32 %v479, %v640
    %v673 = vadd.f32 %v480, %v641
    %v674 = vadd.f32 %v481, %v642
    %v675 = vadd.f32 %v482, %v643
    %v676 = vadd.f32 %v483, %v644
    %v677 = vadd.f32 %v484, %v645
    %v678 = vadd.f32 %v485, %v646
    %v679 = vadd.f32 %v486, %v647
    %680 = vset.pattern.permute.xlu0 3
    %681 = vperm.xlu0 %680, %v68
    %v682 = vpop.permute.xlu0 %681
    %684 = vset.pattern.permute.xlu0 3
    %685 = vperm.xlu0 %684, %v69
    %v686 = vpop.permute.xlu0 %685
    %688 = vset.pattern.permute.xlu0 3
    %689 = vperm.xlu0 %688, %v70
    %v690 = vpop.permute.xlu0 %689
    %692 = vset.pattern.permute.xlu0 3
    %693 = vperm.xlu0 %692, %v71
    %v694 = vpop.permute.xlu0 %693
    %696 = vset.pattern.permute.xlu0 3
    %697 = vperm.xlu0 %696, %v72
    %v698 = vpop.permute.xlu0 %697
    %700 = vset.pattern.permute.xlu0 3
    %701 = vperm.xlu0 %700, %v73
    %v702 = vpop.permute.xlu0 %701
    %704 = vset.pattern.permute.xlu0 3
    %705 = vperm.xlu0 %704, %v74
    %v706 = vpop.permute.xlu0 %705
    %708 = vset.pattern.permute.xlu0 3
    %709 = vperm.xlu0 %708, %v75
    %v710 = vpop.permute.xlu0 %709
    %712 = vset.pattern.permute.xlu0 3
    %713 = vperm.xlu0 %712, %v76
    %v714 = vpop.permute.xlu0 %713
    %716 = vset.pattern.permute.xlu0 3
    %717 = vperm.xlu0 %716, %v77
    %v718 = vpop.permute.xlu0 %717
    %720 = vset.pattern.permute.xlu0 3
    %721 = vperm.xlu0 %720, %v78
    %v722 = vpop.permute.xlu0 %721
    %724 = vset.pattern.permute.xlu0 3
    %725 = vperm.xlu0 %724, %v79
    %v726 = vpop.permute.xlu0 %725
    %728 = vset.pattern.permute.xlu0 3
    %729 = vperm.xlu0 %728, %v80
    %v730 = vpop.permute.xlu0 %729
    %732 = vset.pattern.permute.xlu0 3
    %733 = vperm.xlu0 %732, %v81
    %v734 = vpop.permute.xlu0 %733
    %736 = vset.pattern.permute.xlu0 3
    %737 = vperm.xlu0 %736, %v82
    %v738 = vpop.permute.xlu0 %737
    %740 = vset.pattern.permute.xlu0 3
    %741 = vperm.xlu0 %740, %v83
    %v742 = vpop.permute.xlu0 %741
    %744 = vset.pattern.permute.xlu0 3
    %745 = vperm.xlu0 %744, %v84
    %v746 = vpop.permute.xlu0 %745
    %748 = vset.pattern.permute.xlu0 3
    %749 = vperm.xlu0 %748, %v85
    %v750 = vpop.permute.xlu0 %749
    %752 = vset.pattern.permute.xlu0 3
    %753 = vperm.xlu0 %752, %v86
    %v754 = vpop.permute.xlu0 %753
    %756 = vset.pattern.permute.xlu0 3
    %757 = vperm.xlu0 %756, %v87
    %v758 = vpop.permute.xlu0 %757
    %760 = vset.pattern.permute.xlu0 3
    %761 = vperm.xlu0 %760, %v88
    %v762 = vpop.permute.xlu0 %761
    %764 = vset.pattern.permute.xlu0 3
    %765 = vperm.xlu0 %764, %v89
    %v766 = vpop.permute.xlu0 %765
    %768 = vset.pattern.permute.xlu0 3
    %769 = vperm.xlu0 %768, %v90
    %v770 = vpop.permute.xlu0 %769
    %772 = vset.pattern.permute.xlu0 3
    %773 = vperm.xlu0 %772, %v91
    %v774 = vpop.permute.xlu0 %773
    %776 = vset.pattern.permute.xlu0 3
    %777 = vperm.xlu0 %776, %v92
    %v778 = vpop.permute.xlu0 %777
    %780 = vset.pattern.permute.xlu0 3
    %781 = vperm.xlu0 %780, %v93
    %v782 = vpop.permute.xlu0 %781
    %784 = vset.pattern.permute.xlu0 3
    %785 = vperm.xlu0 %784, %v94
    %v786 = vpop.permute.xlu0 %785
    %788 = vset.pattern.permute.xlu0 3
    %789 = vperm.xlu0 %788, %v95
    %v790 = vpop.permute.xlu0 %789
    %792 = vset.pattern.permute.xlu0 3
    %793 = vperm.xlu0 %792, %v96
    %v794 = vpop.permute.xlu0 %793
    %796 = vset.pattern.permute.xlu0 3
    %797 = vperm.xlu0 %796, %v97
    %v798 = vpop.permute.xlu0 %797
    %800 = vset.pattern.permute.xlu0 3
    %801 = vperm.xlu0 %800, %v98
    %v802 = vpop.permute.xlu0 %801
    %804 = vset.pattern.permute.xlu0 3
    %805 = vperm.xlu0 %804, %v99
    %v806 = vpop.permute.xlu0 %805
    %v808 = vperm.slane %v100, 3
    %v809 = vmul.f32 %v682, %v808
    %v810 = vmul.f32 %v686, %v808
    %v811 = vmul.f32 %v690, %v808
    %v812 = vmul.f32 %v694, %v808
    %v813 = vmul.f32 %v698, %v808
    %v814 = vmul.f32 %v702, %v808
    %v815 = vmul.f32 %v706, %v808
    %v816 = vmul.f32 %v710, %v808
    %v817 = vmul.f32 %v714, %v808
    %v818 = vmul.f32 %v718, %v808
    %v819 = vmul.f32 %v722, %v808
    %v820 = vmul.f32 %v726, %v808
    %v821 = vmul.f32 %v730, %v808
    %v822 = vmul.f32 %v734, %v808
    %v823 = vmul.f32 %v738, %v808
    %v824 = vmul.f32 %v742, %v808
    %v825 = vmul.f32 %v746, %v808
    %v826 = vmul.f32 %v750, %v808
    %v827 = vmul.f32 %v754, %v808
    %v828 = vmul.f32 %v758, %v808
    %v829 = vmul.f32 %v762, %v808
    %v830 = vmul.f32 %v766, %v808
    %v831 = vmul.f32 %v770, %v808
    %v832 = vmul.f32 %v774, %v808
    %v833 = vmul.f32 %v778, %v808
    %v834 = vmul.f32 %v782, %v808
    %v835 = vmul.f32 %v786, %v808
    %v836 = vmul.f32 %v790, %v808
    %v837 = vmul.f32 %v794, %v808
    %v838 = vmul.f32 %v798, %v808
    %v839 = vmul.f32 %v802, %v808
    %v840 = vmul.f32 %v806, %v808
    %v841 = vadd.f32 %v648, %v809
    %v842 = vadd.f32 %v649, %v810
    %v843 = vadd.f32 %v650, %v811
    %v844 = vadd.f32 %v651, %v812
    %v845 = vadd.f32 %v652, %v813
    %v846 = vadd.f32 %v653, %v814
    %v847 = vadd.f32 %v654, %v815
    %v848 = vadd.f32 %v655, %v816
    %v849 = vadd.f32 %v656, %v817
    %v850 = vadd.f32 %v657, %v818
    %v851 = vadd.f32 %v658, %v819
    %v852 = vadd.f32 %v659, %v820
    %v853 = vadd.f32 %v660, %v821
    %v854 = vadd.f32 %v661, %v822
    %v855 = vadd.f32 %v662, %v823
    %v856 = vadd.f32 %v663, %v824
    %v857 = vadd.f32 %v664, %v825
    %v858 = vadd.f32 %v665, %v826
    %v859 = vadd.f32 %v666, %v827
    %v860 = vadd.f32 %v667, %v828
    %v861 = vadd.f32 %v668, %v829
    %v862 = vadd.f32 %v669, %v830
    %v863 = vadd.f32 %v670, %v831
    %v864 = vadd.f32 %v671, %v832
    %v865 = vadd.f32 %v672, %v833
    %v866 = vadd.f32 %v673, %v834
    %v867 = vadd.f32 %v674, %v835
    %v868 = vadd.f32 %v675, %v836
    %v869 = vadd.f32 %v676, %v837
    %v870 = vadd.f32 %v677, %v838
    %v871 = vadd.f32 %v678, %v839
    %v872 = vadd.f32 %v679, %v840
    %v873 = vld [vmem:[%s2] sm:$0xff]
    %v874 = vld [vmem:[%s2 + $0x8] sm:$0xff]
    %v875 = vld [vmem:[%s2 + $0x10] sm:$0xff]
    %v876 = vld [vmem:[%s2 + $0x18] sm:$0xff]
    %v877 = vld [vmem:[%s2 + $0x20] sm:$0xff]
    %v878 = vld [vmem:[%s2 + $0x28] sm:$0xff]
    %v879 = vld [vmem:[%s2 + $0x30] sm:$0xff]
    %v880 = vld [vmem:[%s2 + $0x38] sm:$0xff]
    %v881 = vld [vmem:[%s2 + $0x40] sm:$0xff]
    %v882 = vld [vmem:[%s2 + $0x48] sm:$0xff]
    %v883 = vld [vmem:[%s2 + $0x50] sm:$0xff]
    %v884 = vld [vmem:[%s2 + $0x58] sm:$0xff]
    %v885 = vld [vmem:[%s2 + $0x60] sm:$0xff]
    %v886 = vld [vmem:[%s2 + $0x68] sm:$0xff]
    %v887 = vld [vmem:[%s2 + $0x70] sm:$0xff]
    %v888 = vld [vmem:[%s2 + $0x78] sm:$0xff]
    %v889 = vld [vmem:[%s3] sm:$0xff]
    %v890 = vld [vmem:[%s3 + $0x8] sm:$0xff]
    %v891 = vld [vmem:[%s3 + $0x10] sm:$0xff]
    %v892 = vld [vmem:[%s3 + $0x18] sm:$0xff]
    %v893 = vld [vmem:[%s3 + $0x20] sm:$0xff]
    %v894 = vld [vmem:[%s3 + $0x28] sm:$0xff]
    %v895 = vld [vmem:[%s3 + $0x30] sm:$0xff]
    %v896 = vld [vmem:[%s3 + $0x38] sm:$0xff]
    %v897 = vld [vmem:[%s3 + $0x40] sm:$0xff]
    %v898 = vld [vmem:[%s3 + $0x48] sm:$0xff]
    %v899 = vld [vmem:[%s3 + $0x50] sm:$0xff]
    %v900 = vld [vmem:[%s3 + $0x58] sm:$0xff]
    %v901 = vld [vmem:[%s3 + $0x60] sm:$0xff]
    %v902 = vld [vmem:[%s3 + $0x68] sm:$0xff]
    %v903 = vld [vmem:[%s3 + $0x70] sm:$0xff]
    %v904 = vld [vmem:[%s3 + $0x78] sm:$0xff]
    %v905 = vand.u32 2147483647, %v841
    %vm906 = vcmp.le.f32.partialorder %v905, 0.7853982
    %vm907 = vcmp.lt.s32.totalorder %v841, 0
    %v908 = vand.u32 %v841, 2139095040
    %v909 = vshrl.u32 %v908, 23
    %v910 = vsub.s32 %v909, 127
    %v911 = vand.u32 2147483647, %v841
    %v912 = vand.u32 %v911, 8388607
    %v913 = vor.u32 %v912, 8388608
    %v914 = vsub.s32 0, %v913
    %v915 = vadd.s32 %v910, 1
    %vm916 = vcmp.gt.s32.totalorder %v915, 0
    %v917 = vsel %vm916, %v915, 0
    %v918 = vshrl.u32 %v917, 5
    %v919 = vand.u32 %v917, 31
    %v920 = vsub.s32 32, %v919
    %v921 = vshrl.u32 683565275, %v920
    %v922 = vshll.u32 683565275, %v919
    %v923 = vshrl.u32 2475754826, %v920
    %v924 = vor.u32 %v922, %v923
    %v925 = vshll.u32 2475754826, %v919
    %v926 = vshrl.u32 2131351028, %v920
    %v927 = vor.u32 %v925, %v926
    %v928 = vshll.u32 2131351028, %v919
    %v929 = vshrl.u32 2102212464, %v920
    %v930 = vor.u32 %v928, %v929
    %v931 = vshll.u32 2102212464, %v919
    %v932 = vshrl.u32 920167782, %v920
    %v933 = vor.u32 %v931, %v932
    %v934 = vshll.u32 920167782, %v919
    %v935 = vshrl.u32 1326507024, %v920
    %v936 = vor.u32 %v934, %v935
    %vm937 = vcmp.lt.s32.totalorder %v918, 1
    %vm938 = vcmp.lt.s32.totalorder %v918, 2
    %vm939 = vcmp.lt.s32.totalorder %v918, 3
    %vm940 = vcmp.lt.s32.totalorder %v918, 4
    %v941 = vsel %vm937, %v921, %v924
    %v942 = vsel %vm940, %v930, 2102212464
    %v943 = vsel %vm939, %v927, %v942
    %v944 = vsel %vm938, %v941, %v943
    %v945 = vsel %vm937, %v924, %v927
    %v946 = vsel %vm940, %v933, 920167782
    %v947 = vsel %vm939, %v930, %v946
    %v948 = vsel %vm938, %v945, %v947
    %v949 = vsel %vm937, %v927, %v930
    %v950 = vsel %vm940, %v936, 1326507024
    %v951 = vsel %vm939, %v933, %v950
    %v952 = vsel %vm938, %v949, %v951
    %v953 = vshll.u32 %v913, 8
    %v954 = vand.u32 %v953, 65535
    %v955 = vshrl.u32 %v953, 16
    %v956 = vand.u32 %v952, 65535
    %v957 = vshrl.u32 %v952, 16
    %v958 = vmul.u32 %v954, %v956
    %v959 = vmul.u32 %v954, %v957
    %v960 = vmul.u32 %v955, %v956
    %v961 = vmul.u32 %v955, %v957
    %v962 = vshll.u32 %v959, 16
    %v963 = vshrl.u32 %v959, 16
    %v964 = vshll.u32 %v960, 16
    %v965 = vshrl.u32 %v960, 16
    %vm966 = vc.u32 %v958, %v962
    %v967 = vsel %vm966, 1, 0
    %v968 = vadd.s32 %v958, %v962
    %v969 = vadd.s32 %v961, %v967
    %vm970 = vc.u32 %v968, %v964
    %v971 = vsel %vm970, 1, 0
    %v972 = vadd.s32 %v968, %v964
    %v973 = vadd.s32 %v969, %v971
    %v974 = vadd.s32 %v973, %v963
    %v975 = vadd.s32 %v974, %v965
    %v976 = vand.u32 %v953, 65535
    %v977 = vshrl.u32 %v953, 16
    %v978 = vand.u32 %v948, 65535
    %v979 = vshrl.u32 %v948, 16
    %v980 = vmul.u32 %v976, %v978
    %v981 = vmul.u32 %v976, %v979
    %v982 = vmul.u32 %v977, %v978
    %v983 = vmul.u32 %v977, %v979
    %v984 = vshll.u32 %v981, 16
    %v985 = vshrl.u32 %v981, 16
    %v986 = vshll.u32 %v982, 16
    %v987 = vshrl.u32 %v982, 16
    %vm988 = vc.u32 %v980, %v984
    %v989 = vsel %vm988, 1, 0
    %v990 = vadd.s32 %v980, %v984
    %v991 = vadd.s32 %v983, %v989
    %vm992 = vc.u32 %v990, %v986
    %v993 = vsel %vm992, 1, 0
    %v994 = vadd.s32 %v990, %v986
    %v995 = vadd.s32 %v991, %v993
    %v996 = vadd.s32 %v995, %v985
    %v997 = vadd.s32 %v996, %v987
    %v998 = vmul.u32 %v953, %v944
    %v999 = vadd.s32 %v975, %v994
    %vm1000 = vc.u32 %v975, %v994
    %v1001 = vadd.s32 %v997, 1
    %v1002 = vsel %vm1000, %v1001, %v997
    %v1003 = vadd.s32 %v998, %v1002
    %v1004 = vadd.s32 %v1003, 536870912
    %v1005 = vshrl.u32 %v1004, 30
    %v1006 = vshll.u32 %v1005, 30
    %v1007 = vsub.s32 %v1003, %v1006
    %vm1008 = vcmp.lt.s32.totalorder %v1007, 0
    %v1009 = vsub.s32 0, %v1007
    %v1010 = vsel %vm1008, %v1009, %v1007
    %v1011 = vclz %v1010
    %v1012 = vsub.s32 %v1011, 2
    %vm1013 = vcmp.gt.s32.totalorder 0, %v1012
    %v1014 = vsel %vm1013, 0, %v1012
    %v1015 = vsub.s32 32, %v1014
    %v1016 = vshll.u32 %v1007, %v1014
    %v1017 = vshrl.u32 %v999, %v1015
    %v1018 = vor.u32 %v1016, %v1017
    %v1019 = vsub.s32 4294967266, %v1014
    %v1020 = vadd.s32 %v1019, 127
    %v1021 = vshll.u32 %v1020, 23
    %v1022 = vor.u32 4788187, %v1021
    %v1023 = vand.u32 2147483647, %v1022
    %v1025 = vcvt.s32.f32 %v1018
    %v1026 = vmul.f32 %v1025, %v1023
    %v1027 = vxor.u32 %v1026, 2147483648
    %v1028 = vsel %vm907, %v1027, %v1026
    %v1029 = vsub.s32 4, %v1005
    %v1030 = vsel %vm907, %v1029, %v1005
    %v1031 = vsel %vm906, %v841, %v1028
    %v1032 = vsel %vm906, 0, %v1030
    %v1033 = vmul.f32 %v1031, %v1031
    %v1034 = vmul.f32 %v1033, -0.001358992
    %v1035 = vadd.f32 %v1034, 0.041655596
    %v1036 = vmul.f32 %v1033, %v1035
    %v1037 = vadd.f32 %v1036, -0.4999988
    %v1038 = vmul.f32 %v1033, %v1037
    %v1039 = vadd.f32 1.0, %v1038
    %v1040 = vmul.f32 %v1031, %v1031
    %v1041 = vmul.f32 %v1040, -0.00019511016
    %v1042 = vadd.f32 %v1041, 0.008332121
    %v1043 = vmul.f32 %v1040, %v1042
    %v1044 = vadd.f32 %v1043, -0.16666654
    %v1045 = vmul.f32 %v1040, %v1044
    %v1046 = vadd.f32 %v1045, 1.0
    %v1047 = vmul.f32 %v1046, %v1031
    %vm1048 = vweird.f32 %v841
    %v1049 = vadd.s32 %v1032, 3
    %v1050 = vand.u32 %v1049, 3
    %vm1051 = vcmp.lt.s32.totalorder %v1050, 2
    %vm1052 = vcmp.eq.s32.totalorder %v1050, 0
    %v1053 = vxor.u32 %v1047, 2147483648
    %v1054 = vsel %vm1052, %v1039, %v1053
    %vm1055 = vcmp.eq.s32.totalorder %v1050, 2
    %v1056 = vxor.u32 %v1039, 2147483648
    %v1057 = vsel %vm1055, %v1056, %v1047
    %v1058 = vsel %vm1051, %v1054, %v1057
    %v1059 = vsel %vm1048, nan, %v1058
    %v1060 = vand.u32 2147483647, %v842
    %vm1061 = vcmp.le.f32.partialorder %v1060, 0.7853982
    %vm1062 = vcmp.lt.s32.totalorder %v842, 0
    %v1063 = vand.u32 %v842, 2139095040
    %v1064 = vshrl.u32 %v1063, 23
    %v1065 = vsub.s32 %v1064, 127
    %v1066 = vand.u32 2147483647, %v842
    %v1067 = vand.u32 %v1066, 8388607
    %v1068 = vor.u32 %v1067, 8388608
    %v1069 = vsub.s32 0, %v1068
    %v1070 = vadd.s32 %v1065, 1
    %vm1071 = vcmp.gt.s32.totalorder %v1070, 0
    %v1072 = vsel %vm1071, %v1070, 0
    %v1073 = vshrl.u32 %v1072, 5
    %v1074 = vand.u32 %v1072, 31
    %v1075 = vsub.s32 32, %v1074
    %v1076 = vshrl.u32 683565275, %v1075
    %v1077 = vshll.u32 683565275, %v1074
    %v1078 = vshrl.u32 2475754826, %v1075
    %v1079 = vor.u32 %v1077, %v1078
    %v1080 = vshll.u32 2475754826, %v1074
    %v1081 = vshrl.u32 2131351028, %v1075
    %v1082 = vor.u32 %v1080, %v1081
    %v1083 = vshll.u32 2131351028, %v1074
    %v1084 = vshrl.u32 2102212464, %v1075
    %v1085 = vor.u32 %v1083, %v1084
    %v1086 = vshll.u32 2102212464, %v1074
    %v1087 = vshrl.u32 920167782, %v1075
    %v1088 = vor.u32 %v1086, %v1087
    %v1089 = vshll.u32 920167782, %v1074
    %v1090 = vshrl.u32 1326507024, %v1075
    %v1091 = vor.u32 %v1089, %v1090
    %vm1092 = vcmp.lt.s32.totalorder %v1073, 1
    %vm1093 = vcmp.lt.s32.totalorder %v1073, 2
    %vm1094 = vcmp.lt.s32.totalorder %v1073, 3
    %vm1095 = vcmp.lt.s32.totalorder %v1073, 4
    %v1096 = vsel %vm1092, %v1076, %v1079
    %v1097 = vsel %vm1095, %v1085, 2102212464
    %v1098 = vsel %vm1094, %v1082, %v1097
    %v1099 = vsel %vm1093, %v1096, %v1098
    %v1100 = vsel %vm1092, %v1079, %v1082
    %v1101 = vsel %vm1095, %v1088, 920167782
    %v1102 = vsel %vm1094, %v1085, %v1101
    %v1103 = vsel %vm1093, %v1100, %v1102
    %v1104 = vsel %vm1092, %v1082, %v1085
    %v1105 = vsel %vm1095, %v1091, 1326507024
    %v1106 = vsel %vm1094, %v1088, %v1105
    %v1107 = vsel %vm1093, %v1104, %v1106
    %v1108 = vshll.u32 %v1068, 8
    %v1109 = vand.u32 %v1108, 65535
    %v1110 = vshrl.u32 %v1108, 16
    %v1111 = vand.u32 %v1107, 65535
    %v1112 = vshrl.u32 %v1107, 16
    %v1113 = vmul.u32 %v1109, %v1111
    %v1114 = vmul.u32 %v1109, %v1112
    %v1115 = vmul.u32 %v1110, %v1111
    %v1116 = vmul.u32 %v1110, %v1112
    %v1117 = vshll.u32 %v1114, 16
    %v1118 = vshrl.u32 %v1114, 16
    %v1119 = vshll.u32 %v1115, 16
    %v1120 = vshrl.u32 %v1115, 16
    %vm1121 = vc.u32 %v1113, %v1117
    %v1122 = vsel %vm1121, 1, 0
    %v1123 = vadd.s32 %v1113, %v1117
    %v1124 = vadd.s32 %v1116, %v1122
    %vm1125 = vc.u32 %v1123, %v1119
    %v1126 = vsel %vm1125, 1, 0
    %v1127 = vadd.s32 %v1123, %v1119
    %v1128 = vadd.s32 %v1124, %v1126
    %v1129 = vadd.s32 %v1128, %v1118
    %v1130 = vadd.s32 %v1129, %v1120
    %v1131 = vand.u32 %v1108, 65535
    %v1132 = vshrl.u32 %v1108, 16
    %v1133 = vand.u32 %v1103, 65535
    %v1134 = vshrl.u32 %v1103, 16
    %v1135 = vmul.u32 %v1131, %v1133
    %v1136 = vmul.u32 %v1131, %v1134
    %v1137 = vmul.u32 %v1132, %v1133
    %v1138 = vmul.u32 %v1132, %v1134
    %v1139 = vshll.u32 %v1136, 16
    %v1140 = vshrl.u32 %v1136, 16
    %v1141 = vshll.u32 %v1137, 16
    %v1142 = vshrl.u32 %v1137, 16
    %vm1143 = vc.u32 %v1135, %v1139
    %v1144 = vsel %vm1143, 1, 0
    %v1145 = vadd.s32 %v1135, %v1139
    %v1146 = vadd.s32 %v1138, %v1144
    %vm1147 = vc.u32 %v1145, %v1141
    %v1148 = vsel %vm1147, 1, 0
    %v1149 = vadd.s32 %v1145, %v1141
    %v1150 = vadd.s32 %v1146, %v1148
    %v1151 = vadd.s32 %v1150, %v1140
    %v1152 = vadd.s32 %v1151, %v1142
    %v1153 = vmul.u32 %v1108, %v1099
    %v1154 = vadd.s32 %v1130, %v1149
    %vm1155 = vc.u32 %v1130, %v1149
    %v1156 = vadd.s32 %v1152, 1
    %v1157 = vsel %vm1155, %v1156, %v1152
    %v1158 = vadd.s32 %v1153, %v1157
    %v1159 = vadd.s32 %v1158, 536870912
    %v1160 = vshrl.u32 %v1159, 30
    %v1161 = vshll.u32 %v1160, 30
    %v1162 = vsub.s32 %v1158, %v1161
    %vm1163 = vcmp.lt.s32.totalorder %v1162, 0
    %v1164 = vsub.s32 0, %v1162
    %v1165 = vsel %vm1163, %v1164, %v1162
    %v1166 = vclz %v1165
    %v1167 = vsub.s32 %v1166, 2
    %vm1168 = vcmp.gt.s32.totalorder 0, %v1167
    %v1169 = vsel %vm1168, 0, %v1167
    %v1170 = vsub.s32 32, %v1169
    %v1171 = vshll.u32 %v1162, %v1169
    %v1172 = vshrl.u32 %v1154, %v1170
    %v1173 = vor.u32 %v1171, %v1172
    %v1174 = vsub.s32 4294967266, %v1169
    %v1175 = vadd.s32 %v1174, 127
    %v1176 = vshll.u32 %v1175, 23
    %v1177 = vor.u32 4788187, %v1176
    %v1178 = vand.u32 2147483647, %v1177
    %v1180 = vcvt.s32.f32 %v1173
    %v1181 = vmul.f32 %v1180, %v1178
    %v1182 = vxor.u32 %v1181, 2147483648
    %v1183 = vsel %vm1062, %v1182, %v1181
    %v1184 = vsub.s32 4, %v1160
    %v1185 = vsel %vm1062, %v1184, %v1160
    %v1186 = vsel %vm1061, %v842, %v1183
    %v1187 = vsel %vm1061, 0, %v1185
    %v1188 = vmul.f32 %v1186, %v1186
    %v1189 = vmul.f32 %v1188, -0.001358992
    %v1190 = vadd.f32 %v1189, 0.041655596
    %v1191 = vmul.f32 %v1188, %v1190
    %v1192 = vadd.f32 %v1191, -0.4999988
    %v1193 = vmul.f32 %v1188, %v1192
    %v1194 = vadd.f32 1.0, %v1193
    %v1195 = vmul.f32 %v1186, %v1186
    %v1196 = vmul.f32 %v1195, -0.00019511016
    %v1197 = vadd.f32 %v1196, 0.008332121
    %v1198 = vmul.f32 %v1195, %v1197
    %v1199 = vadd.f32 %v1198, -0.16666654
    %v1200 = vmul.f32 %v1195, %v1199
    %v1201 = vadd.f32 %v1200, 1.0
    %v1202 = vmul.f32 %v1201, %v1186
    %vm1203 = vweird.f32 %v842
    %v1204 = vadd.s32 %v1187, 3
    %v1205 = vand.u32 %v1204, 3
    %vm1206 = vcmp.lt.s32.totalorder %v1205, 2
    %vm1207 = vcmp.eq.s32.totalorder %v1205, 0
    %v1208 = vxor.u32 %v1202, 2147483648
    %v1209 = vsel %vm1207, %v1194, %v1208
    %vm1210 = vcmp.eq.s32.totalorder %v1205, 2
    %v1211 = vxor.u32 %v1194, 2147483648
    %v1212 = vsel %vm1210, %v1211, %v1202
    %v1213 = vsel %vm1206, %v1209, %v1212
    %v1214 = vsel %vm1203, nan, %v1213
    %v1215 = vand.u32 2147483647, %v843
    %vm1216 = vcmp.le.f32.partialorder %v1215, 0.7853982
    %vm1217 = vcmp.lt.s32.totalorder %v843, 0
    %v1218 = vand.u32 %v843, 2139095040
    %v1219 = vshrl.u32 %v1218, 23
    %v1220 = vsub.s32 %v1219, 127
    %v1221 = vand.u32 2147483647, %v843
    %v1222 = vand.u32 %v1221, 8388607
    %v1223 = vor.u32 %v1222, 8388608
    %v1224 = vsub.s32 0, %v1223
    %v1225 = vadd.s32 %v1220, 1
    %vm1226 = vcmp.gt.s32.totalorder %v1225, 0
    %v1227 = vsel %vm1226, %v1225, 0
    %v1228 = vshrl.u32 %v1227, 5
    %v1229 = vand.u32 %v1227, 31
    %v1230 = vsub.s32 32, %v1229
    %v1231 = vshrl.u32 683565275, %v1230
    %v1232 = vshll.u32 683565275, %v1229
    %v1233 = vshrl.u32 2475754826, %v1230
    %v1234 = vor.u32 %v1232, %v1233
    %v1235 = vshll.u32 2475754826, %v1229
    %v1236 = vshrl.u32 2131351028, %v1230
    %v1237 = vor.u32 %v1235, %v1236
    %v1238 = vshll.u32 2131351028, %v1229
    %v1239 = vshrl.u32 2102212464, %v1230
    %v1240 = vor.u32 %v1238, %v1239
    %v1241 = vshll.u32 2102212464, %v1229
    %v1242 = vshrl.u32 920167782, %v1230
    %v1243 = vor.u32 %v1241, %v1242
    %v1244 = vshll.u32 920167782, %v1229
    %v1245 = vshrl.u32 1326507024, %v1230
    %v1246 = vor.u32 %v1244, %v1245
    %vm1247 = vcmp.lt.s32.totalorder %v1228, 1
    %vm1248 = vcmp.lt.s32.totalorder %v1228, 2
    %vm1249 = vcmp.lt.s32.totalorder %v1228, 3
    %vm1250 = vcmp.lt.s32.totalorder %v1228, 4
    %v1251 = vsel %vm1247, %v1231, %v1234
    %v1252 = vsel %vm1250, %v1240, 2102212464
    %v1253 = vsel %vm1249, %v1237, %v1252
    %v1254 = vsel %vm1248, %v1251, %v1253
    %v1255 = vsel %vm1247, %v1234, %v1237
    %v1256 = vsel %vm1250, %v1243, 920167782
    %v1257 = vsel %vm1249, %v1240, %v1256
    %v1258 = vsel %vm1248, %v1255, %v1257
    %v1259 = vsel %vm1247, %v1237, %v1240
    %v1260 = vsel %vm1250, %v1246, 1326507024
    %v1261 = vsel %vm1249, %v1243, %v1260
    %v1262 = vsel %vm1248, %v1259, %v1261
    %v1263 = vshll.u32 %v1223, 8
    %v1264 = vand.u32 %v1263, 65535
    %v1265 = vshrl.u32 %v1263, 16
    %v1266 = vand.u32 %v1262, 65535
    %v1267 = vshrl.u32 %v1262, 16
    %v1268 = vmul.u32 %v1264, %v1266
    %v1269 = vmul.u32 %v1264, %v1267
    %v1270 = vmul.u32 %v1265, %v1266
    %v1271 = vmul.u32 %v1265, %v1267
    %v1272 = vshll.u32 %v1269, 16
    %v1273 = vshrl.u32 %v1269, 16
    %v1274 = vshll.u32 %v1270, 16
    %v1275 = vshrl.u32 %v1270, 16
    %vm1276 = vc.u32 %v1268, %v1272
    %v1277 = vsel %vm1276, 1, 0
    %v1278 = vadd.s32 %v1268, %v1272
    %v1279 = vadd.s32 %v1271, %v1277
    %vm1280 = vc.u32 %v1278, %v1274
    %v1281 = vsel %vm1280, 1, 0
    %v1282 = vadd.s32 %v1278, %v1274
    %v1283 = vadd.s32 %v1279, %v1281
    %v1284 = vadd.s32 %v1283, %v1273
    %v1285 = vadd.s32 %v1284, %v1275
    %v1286 = vand.u32 %v1263, 65535
    %v1287 = vshrl.u32 %v1263, 16
    %v1288 = vand.u32 %v1258, 65535
    %v1289 = vshrl.u32 %v1258, 16
    %v1290 = vmul.u32 %v1286, %v1288
    %v1291 = vmul.u32 %v1286, %v1289
    %v1292 = vmul.u32 %v1287, %v1288
    %v1293 = vmul.u32 %v1287, %v1289
    %v1294 = vshll.u32 %v1291, 16
    %v1295 = vshrl.u32 %v1291, 16
    %v1296 = vshll.u32 %v1292, 16
    %v1297 = vshrl.u32 %v1292, 16
    %vm1298 = vc.u32 %v1290, %v1294
    %v1299 = vsel %vm1298, 1, 0
    %v1300 = vadd.s32 %v1290, %v1294
    %v1301 = vadd.s32 %v1293, %v1299
    %vm1302 = vc.u32 %v1300, %v1296
    %v1303 = vsel %vm1302, 1, 0
    %v1304 = vadd.s32 %v1300, %v1296
    %v1305 = vadd.s32 %v1301, %v1303
    %v1306 = vadd.s32 %v1305, %v1295
    %v1307 = vadd.s32 %v1306, %v1297
    %v1308 = vmul.u32 %v1263, %v1254
    %v1309 = vadd.s32 %v1285, %v1304
    %vm1310 = vc.u32 %v1285, %v1304
    %v1311 = vadd.s32 %v1307, 1
    %v1312 = vsel %vm1310, %v1311, %v1307
    %v1313 = vadd.s32 %v1308, %v1312
    %v1314 = vadd.s32 %v1313, 536870912
    %v1315 = vshrl.u32 %v1314, 30
    %v1316 = vshll.u32 %v1315, 30
    %v1317 = vsub.s32 %v1313, %v1316
    %vm1318 = vcmp.lt.s32.totalorder %v1317, 0
    %v1319 = vsub.s32 0, %v1317
    %v1320 = vsel %vm1318, %v1319, %v1317
    %v1321 = vclz %v1320
    %v1322 = vsub.s32 %v1321, 2
    %vm1323 = vcmp.gt.s32.totalorder 0, %v1322
    %v1324 = vsel %vm1323, 0, %v1322
    %v1325 = vsub.s32 32, %v1324
    %v1326 = vshll.u32 %v1317, %v1324
    %v1327 = vshrl.u32 %v1309, %v1325
    %v1328 = vor.u32 %v1326, %v1327
    %v1329 = vsub.s32 4294967266, %v1324
    %v1330 = vadd.s32 %v1329, 127
    %v1331 = vshll.u32 %v1330, 23
    %v1332 = vor.u32 4788187, %v1331
    %v1333 = vand.u32 2147483647, %v1332
    %v1335 = vcvt.s32.f32 %v1328
    %v1336 = vmul.f32 %v1335, %v1333
    %v1337 = vxor.u32 %v1336, 2147483648
    %v1338 = vsel %vm1217, %v1337, %v1336
    %v1339 = vsub.s32 4, %v1315
    %v1340 = vsel %vm1217, %v1339, %v1315
    %v1341 = vsel %vm1216, %v843, %v1338
    %v1342 = vsel %vm1216, 0, %v1340
    %v1343 = vmul.f32 %v1341, %v1341
    %v1344 = vmul.f32 %v1343, -0.001358992
    %v1345 = vadd.f32 %v1344, 0.041655596
    %v1346 = vmul.f32 %v1343, %v1345
    %v1347 = vadd.f32 %v1346, -0.4999988
    %v1348 = vmul.f32 %v1343, %v1347
    %v1349 = vadd.f32 1.0, %v1348
    %v1350 = vmul.f32 %v1341, %v1341
    %v1351 = vmul.f32 %v1350, -0.00019511016
    %v1352 = vadd.f32 %v1351, 0.008332121
    %v1353 = vmul.f32 %v1350, %v1352
    %v1354 = vadd.f32 %v1353, -0.16666654
    %v1355 = vmul.f32 %v1350, %v1354
    %v1356 = vadd.f32 %v1355, 1.0
    %v1357 = vmul.f32 %v1356, %v1341
    %vm1358 = vweird.f32 %v843
    %v1359 = vadd.s32 %v1342, 3
    %v1360 = vand.u32 %v1359, 3
    %vm1361 = vcmp.lt.s32.totalorder %v1360, 2
    %vm1362 = vcmp.eq.s32.totalorder %v1360, 0
    %v1363 = vxor.u32 %v1357, 2147483648
    %v1364 = vsel %vm1362, %v1349, %v1363
    %vm1365 = vcmp.eq.s32.totalorder %v1360, 2
    %v1366 = vxor.u32 %v1349, 2147483648
    %v1367 = vsel %vm1365, %v1366, %v1357
    %v1368 = vsel %vm1361, %v1364, %v1367
    %v1369 = vsel %vm1358, nan, %v1368
    %v1370 = vand.u32 2147483647, %v844
    %vm1371 = vcmp.le.f32.partialorder %v1370, 0.7853982
    %vm1372 = vcmp.lt.s32.totalorder %v844, 0
    %v1373 = vand.u32 %v844, 2139095040
    %v1374 = vshrl.u32 %v1373, 23
    %v1375 = vsub.s32 %v1374, 127
    %v1376 = vand.u32 2147483647, %v844
    %v1377 = vand.u32 %v1376, 8388607
    %v1378 = vor.u32 %v1377, 8388608
    %v1379 = vsub.s32 0, %v1378
    %v1380 = vadd.s32 %v1375, 1
    %vm1381 = vcmp.gt.s32.totalorder %v1380, 0
    %v1382 = vsel %vm1381, %v1380, 0
    %v1383 = vshrl.u32 %v1382, 5
    %v1384 = vand.u32 %v1382, 31
    %v1385 = vsub.s32 32, %v1384
    %v1386 = vshrl.u32 683565275, %v1385
    %v1387 = vshll.u32 683565275, %v1384
    %v1388 = vshrl.u32 2475754826, %v1385
    %v1389 = vor.u32 %v1387, %v1388
    %v1390 = vshll.u32 2475754826, %v1384
    %v1391 = vshrl.u32 2131351028, %v1385
    %v1392 = vor.u32 %v1390, %v1391
    %v1393 = vshll.u32 2131351028, %v1384
    %v1394 = vshrl.u32 2102212464, %v1385
    %v1395 = vor.u32 %v1393, %v1394
    %v1396 = vshll.u32 2102212464, %v1384
    %v1397 = vshrl.u32 920167782, %v1385
    %v1398 = vor.u32 %v1396, %v1397
    %v1399 = vshll.u32 920167782, %v1384
    %v1400 = vshrl.u32 1326507024, %v1385
    %v1401 = vor.u32 %v1399, %v1400
    %vm1402 = vcmp.lt.s32.totalorder %v1383, 1
    %vm1403 = vcmp.lt.s32.totalorder %v1383, 2
    %vm1404 = vcmp.lt.s32.totalorder %v1383, 3
    %vm1405 = vcmp.lt.s32.totalorder %v1383, 4
    %v1406 = vsel %vm1402, %v1386, %v1389
    %v1407 = vsel %vm1405, %v1395, 2102212464
    %v1408 = vsel %vm1404, %v1392, %v1407
    %v1409 = vsel %vm1403, %v1406, %v1408
    %v1410 = vsel %vm1402, %v1389, %v1392
    %v1411 = vsel %vm1405, %v1398, 920167782
    %v1412 = vsel %vm1404, %v1395, %v1411
    %v1413 = vsel %vm1403, %v1410, %v1412
    %v1414 = vsel %vm1402, %v1392, %v1395
    %v1415 = vsel %vm1405, %v1401, 1326507024
    %v1416 = vsel %vm1404, %v1398, %v1415
    %v1417 = vsel %vm1403, %v1414, %v1416
    %v1418 = vshll.u32 %v1378, 8
    %v1419 = vand.u32 %v1418, 65535
    %v1420 = vshrl.u32 %v1418, 16
    %v1421 = vand.u32 %v1417, 65535
    %v1422 = vshrl.u32 %v1417, 16
    %v1423 = vmul.u32 %v1419, %v1421
    %v1424 = vmul.u32 %v1419, %v1422
    %v1425 = vmul.u32 %v1420, %v1421
    %v1426 = vmul.u32 %v1420, %v1422
    %v1427 = vshll.u32 %v1424, 16
    %v1428 = vshrl.u32 %v1424, 16
    %v1429 = vshll.u32 %v1425, 16
    %v1430 = vshrl.u32 %v1425, 16
    %vm1431 = vc.u32 %v1423, %v1427
    %v1432 = vsel %vm1431, 1, 0
    %v1433 = vadd.s32 %v1423, %v1427
    %v1434 = vadd.s32 %v1426, %v1432
    %vm1435 = vc.u32 %v1433, %v1429
    %v1436 = vsel %vm1435, 1, 0
    %v1437 = vadd.s32 %v1433, %v1429
    %v1438 = vadd.s32 %v1434, %v1436
    %v1439 = vadd.s32 %v1438, %v1428
    %v1440 = vadd.s32 %v1439, %v1430
    %v1441 = vand.u32 %v1418, 65535
    %v1442 = vshrl.u32 %v1418, 16
    %v1443 = vand.u32 %v1413, 65535
    %v1444 = vshrl.u32 %v1413, 16
    %v1445 = vmul.u32 %v1441, %v1443
    %v1446 = vmul.u32 %v1441, %v1444
    %v1447 = vmul.u32 %v1442, %v1443
    %v1448 = vmul.u32 %v1442, %v1444
    %v1449 = vshll.u32 %v1446, 16
    %v1450 = vshrl.u32 %v1446, 16
    %v1451 = vshll.u32 %v1447, 16
    %v1452 = vshrl.u32 %v1447, 16
    %vm1453 = vc.u32 %v1445, %v1449
    %v1454 = vsel %vm1453, 1, 0
    %v1455 = vadd.s32 %v1445, %v1449
    %v1456 = vadd.s32 %v1448, %v1454
    %vm1457 = vc.u32 %v1455, %v1451
    %v1458 = vsel %vm1457, 1, 0
    %v1459 = vadd.s32 %v1455, %v1451
    %v1460 = vadd.s32 %v1456, %v1458
    %v1461 = vadd.s32 %v1460, %v1450
    %v1462 = vadd.s32 %v1461, %v1452
    %v1463 = vmul.u32 %v1418, %v1409
    %v1464 = vadd.s32 %v1440, %v1459
    %vm1465 = vc.u32 %v1440, %v1459
    %v1466 = vadd.s32 %v1462, 1
    %v1467 = vsel %vm1465, %v1466, %v1462
    %v1468 = vadd.s32 %v1463, %v1467
    %v1469 = vadd.s32 %v1468, 536870912
    %v1470 = vshrl.u32 %v1469, 30
    %v1471 = vshll.u32 %v1470, 30
    %v1472 = vsub.s32 %v1468, %v1471
    %vm1473 = vcmp.lt.s32.totalorder %v1472, 0
    %v1474 = vsub.s32 0, %v1472
    %v1475 = vsel %vm1473, %v1474, %v1472
    %v1476 = vclz %v1475
    %v1477 = vsub.s32 %v1476, 2
    %vm1478 = vcmp.gt.s32.totalorder 0, %v1477
    %v1479 = vsel %vm1478, 0, %v1477
    %v1480 = vsub.s32 32, %v1479
    %v1481 = vshll.u32 %v1472, %v1479
    %v1482 = vshrl.u32 %v1464, %v1480
    %v1483 = vor.u32 %v1481, %v1482
    %v1484 = vsub.s32 4294967266, %v1479
    %v1485 = vadd.s32 %v1484, 127
    %v1486 = vshll.u32 %v1485, 23
    %v1487 = vor.u32 4788187, %v1486
    %v1488 = vand.u32 2147483647, %v1487
    %v1490 = vcvt.s32.f32 %v1483
    %v1491 = vmul.f32 %v1490, %v1488
    %v1492 = vxor.u32 %v1491, 2147483648
    %v1493 = vsel %vm1372, %v1492, %v1491
    %v1494 = vsub.s32 4, %v1470
    %v1495 = vsel %vm1372, %v1494, %v1470
    %v1496 = vsel %vm1371, %v844, %v1493
    %v1497 = vsel %vm1371, 0, %v1495
    %v1498 = vmul.f32 %v1496, %v1496
    %v1499 = vmul.f32 %v1498, -0.001358992
    %v1500 = vadd.f32 %v1499, 0.041655596
    %v1501 = vmul.f32 %v1498, %v1500
    %v1502 = vadd.f32 %v1501, -0.4999988
    %v1503 = vmul.f32 %v1498, %v1502
    %v1504 = vadd.f32 1.0, %v1503
    %v1505 = vmul.f32 %v1496, %v1496
    %v1506 = vmul.f32 %v1505, -0.00019511016
    %v1507 = vadd.f32 %v1506, 0.008332121
    %v1508 = vmul.f32 %v1505, %v1507
    %v1509 = vadd.f32 %v1508, -0.16666654
    %v1510 = vmul.f32 %v1505, %v1509
    %v1511 = vadd.f32 %v1510, 1.0
    %v1512 = vmul.f32 %v1511, %v1496
    %vm1513 = vweird.f32 %v844
    %v1514 = vadd.s32 %v1497, 3
    %v1515 = vand.u32 %v1514, 3
    %vm1516 = vcmp.lt.s32.totalorder %v1515, 2
    %vm1517 = vcmp.eq.s32.totalorder %v1515, 0
    %v1518 = vxor.u32 %v1512, 2147483648
    %v1519 = vsel %vm1517, %v1504, %v1518
    %vm1520 = vcmp.eq.s32.totalorder %v1515, 2
    %v1521 = vxor.u32 %v1504, 2147483648
    %v1522 = vsel %vm1520, %v1521, %v1512
    %v1523 = vsel %vm1516, %v1519, %v1522
    %v1524 = vsel %vm1513, nan, %v1523
    %v1525 = vand.u32 2147483647, %v845
    %vm1526 = vcmp.le.f32.partialorder %v1525, 0.7853982
    %vm1527 = vcmp.lt.s32.totalorder %v845, 0
    %v1528 = vand.u32 %v845, 2139095040
    %v1529 = vshrl.u32 %v1528, 23
    %v1530 = vsub.s32 %v1529, 127
    %v1531 = vand.u32 2147483647, %v845
    %v1532 = vand.u32 %v1531, 8388607
    %v1533 = vor.u32 %v1532, 8388608
    %v1534 = vsub.s32 0, %v1533
    %v1535 = vadd.s32 %v1530, 1
    %vm1536 = vcmp.gt.s32.totalorder %v1535, 0
    %v1537 = vsel %vm1536, %v1535, 0
    %v1538 = vshrl.u32 %v1537, 5
    %v1539 = vand.u32 %v1537, 31
    %v1540 = vsub.s32 32, %v1539
    %v1541 = vshrl.u32 683565275, %v1540
    %v1542 = vshll.u32 683565275, %v1539
    %v1543 = vshrl.u32 2475754826, %v1540
    %v1544 = vor.u32 %v1542, %v1543
    %v1545 = vshll.u32 2475754826, %v1539
    %v1546 = vshrl.u32 2131351028, %v1540
    %v1547 = vor.u32 %v1545, %v1546
    %v1548 = vshll.u32 2131351028, %v1539
    %v1549 = vshrl.u32 2102212464, %v1540
    %v1550 = vor.u32 %v1548, %v1549
    %v1551 = vshll.u32 2102212464, %v1539
    %v1552 = vshrl.u32 920167782, %v1540
    %v1553 = vor.u32 %v1551, %v1552
    %v1554 = vshll.u32 920167782, %v1539
    %v1555 = vshrl.u32 1326507024, %v1540
    %v1556 = vor.u32 %v1554, %v1555
    %vm1557 = vcmp.lt.s32.totalorder %v1538, 1
    %vm1558 = vcmp.lt.s32.totalorder %v1538, 2
    %vm1559 = vcmp.lt.s32.totalorder %v1538, 3
    %vm1560 = vcmp.lt.s32.totalorder %v1538, 4
    %v1561 = vsel %vm1557, %v1541, %v1544
    %v1562 = vsel %vm1560, %v1550, 2102212464
    %v1563 = vsel %vm1559, %v1547, %v1562
    %v1564 = vsel %vm1558, %v1561, %v1563
    %v1565 = vsel %vm1557, %v1544, %v1547
    %v1566 = vsel %vm1560, %v1553, 920167782
    %v1567 = vsel %vm1559, %v1550, %v1566
    %v1568 = vsel %vm1558, %v1565, %v1567
    %v1569 = vsel %vm1557, %v1547, %v1550
    %v1570 = vsel %vm1560, %v1556, 1326507024
    %v1571 = vsel %vm1559, %v1553, %v1570
    %v1572 = vsel %vm1558, %v1569, %v1571
    %v1573 = vshll.u32 %v1533, 8
    %v1574 = vand.u32 %v1573, 65535
    %v1575 = vshrl.u32 %v1573, 16
    %v1576 = vand.u32 %v1572, 65535
    %v1577 = vshrl.u32 %v1572, 16
    %v1578 = vmul.u32 %v1574, %v1576
    %v1579 = vmul.u32 %v1574, %v1577
    %v1580 = vmul.u32 %v1575, %v1576
    %v1581 = vmul.u32 %v1575, %v1577
    %v1582 = vshll.u32 %v1579, 16
    %v1583 = vshrl.u32 %v1579, 16
    %v1584 = vshll.u32 %v1580, 16
    %v1585 = vshrl.u32 %v1580, 16
    %vm1586 = vc.u32 %v1578, %v1582
    %v1587 = vsel %vm1586, 1, 0
    %v1588 = vadd.s32 %v1578, %v1582
    %v1589 = vadd.s32 %v1581, %v1587
    %vm1590 = vc.u32 %v1588, %v1584
    %v1591 = vsel %vm1590, 1, 0
    %v1592 = vadd.s32 %v1588, %v1584
    %v1593 = vadd.s32 %v1589, %v1591
    %v1594 = vadd.s32 %v1593, %v1583
    %v1595 = vadd.s32 %v1594, %v1585
    %v1596 = vand.u32 %v1573, 65535
    %v1597 = vshrl.u32 %v1573, 16
    %v1598 = vand.u32 %v1568, 65535
    %v1599 = vshrl.u32 %v1568, 16
    %v1600 = vmul.u32 %v1596, %v1598
    %v1601 = vmul.u32 %v1596, %v1599
    %v1602 = vmul.u32 %v1597, %v1598
    %v1603 = vmul.u32 %v1597, %v1599
    %v1604 = vshll.u32 %v1601, 16
    %v1605 = vshrl.u32 %v1601, 16
    %v1606 = vshll.u32 %v1602, 16
    %v1607 = vshrl.u32 %v1602, 16
    %vm1608 = vc.u32 %v1600, %v1604
    %v1609 = vsel %vm1608, 1, 0
    %v1610 = vadd.s32 %v1600, %v1604
    %v1611 = vadd.s32 %v1603, %v1609
    %vm1612 = vc.u32 %v1610, %v1606
    %v1613 = vsel %vm1612, 1, 0
    %v1614 = vadd.s32 %v1610, %v1606
    %v1615 = vadd.s32 %v1611, %v1613
    %v1616 = vadd.s32 %v1615, %v1605
    %v1617 = vadd.s32 %v1616, %v1607
    %v1618 = vmul.u32 %v1573, %v1564
    %v1619 = vadd.s32 %v1595, %v1614
    %vm1620 = vc.u32 %v1595, %v1614
    %v1621 = vadd.s32 %v1617, 1
    %v1622 = vsel %vm1620, %v1621, %v1617
    %v1623 = vadd.s32 %v1618, %v1622
    %v1624 = vadd.s32 %v1623, 536870912
    %v1625 = vshrl.u32 %v1624, 30
    %v1626 = vshll.u32 %v1625, 30
    %v1627 = vsub.s32 %v1623, %v1626
    %vm1628 = vcmp.lt.s32.totalorder %v1627, 0
    %v1629 = vsub.s32 0, %v1627
    %v1630 = vsel %vm1628, %v1629, %v1627
    %v1631 = vclz %v1630
    %v1632 = vsub.s32 %v1631, 2
    %vm1633 = vcmp.gt.s32.totalorder 0, %v1632
    %v1634 = vsel %vm1633, 0, %v1632
    %v1635 = vsub.s32 32, %v1634
    %v1636 = vshll.u32 %v1627, %v1634
    %v1637 = vshrl.u32 %v1619, %v1635
    %v1638 = vor.u32 %v1636, %v1637
    %v1639 = vsub.s32 4294967266, %v1634
    %v1640 = vadd.s32 %v1639, 127
    %v1641 = vshll.u32 %v1640, 23
    %v1642 = vor.u32 4788187, %v1641
    %v1643 = vand.u32 2147483647, %v1642
    %v1645 = vcvt.s32.f32 %v1638
    %v1646 = vmul.f32 %v1645, %v1643
    %v1647 = vxor.u32 %v1646, 2147483648
    %v1648 = vsel %vm1527, %v1647, %v1646
    %v1649 = vsub.s32 4, %v1625
    %v1650 = vsel %vm1527, %v1649, %v1625
    %v1651 = vsel %vm1526, %v845, %v1648
    %v1652 = vsel %vm1526, 0, %v1650
    %v1653 = vmul.f32 %v1651, %v1651
    %v1654 = vmul.f32 %v1653, -0.001358992
    %v1655 = vadd.f32 %v1654, 0.041655596
    %v1656 = vmul.f32 %v1653, %v1655
    %v1657 = vadd.f32 %v1656, -0.4999988
    %v1658 = vmul.f32 %v1653, %v1657
    %v1659 = vadd.f32 1.0, %v1658
    %v1660 = vmul.f32 %v1651, %v1651
    %v1661 = vmul.f32 %v1660, -0.00019511016
    %v1662 = vadd.f32 %v1661, 0.008332121
    %v1663 = vmul.f32 %v1660, %v1662
    %v1664 = vadd.f32 %v1663, -0.16666654
    %v1665 = vmul.f32 %v1660, %v1664
    %v1666 = vadd.f32 %v1665, 1.0
    %v1667 = vmul.f32 %v1666, %v1651
    %vm1668 = vweird.f32 %v845
    %v1669 = vadd.s32 %v1652, 3
    %v1670 = vand.u32 %v1669, 3
    %vm1671 = vcmp.lt.s32.totalorder %v1670, 2
    %vm1672 = vcmp.eq.s32.totalorder %v1670, 0
    %v1673 = vxor.u32 %v1667, 2147483648
    %v1674 = vsel %vm1672, %v1659, %v1673
    %vm1675 = vcmp.eq.s32.totalorder %v1670, 2
    %v1676 = vxor.u32 %v1659, 2147483648
    %v1677 = vsel %vm1675, %v1676, %v1667
    %v1678 = vsel %vm1671, %v1674, %v1677
    %v1679 = vsel %vm1668, nan, %v1678
    %v1680 = vand.u32 2147483647, %v846
    %vm1681 = vcmp.le.f32.partialorder %v1680, 0.7853982
    %vm1682 = vcmp.lt.s32.totalorder %v846, 0
    %v1683 = vand.u32 %v846, 2139095040
    %v1684 = vshrl.u32 %v1683, 23
    %v1685 = vsub.s32 %v1684, 127
    %v1686 = vand.u32 2147483647, %v846
    %v1687 = vand.u32 %v1686, 8388607
    %v1688 = vor.u32 %v1687, 8388608
    %v1689 = vsub.s32 0, %v1688
    %v1690 = vadd.s32 %v1685, 1
    %vm1691 = vcmp.gt.s32.totalorder %v1690, 0
    %v1692 = vsel %vm1691, %v1690, 0
    %v1693 = vshrl.u32 %v1692, 5
    %v1694 = vand.u32 %v1692, 31
    %v1695 = vsub.s32 32, %v1694
    %v1696 = vshrl.u32 683565275, %v1695
    %v1697 = vshll.u32 683565275, %v1694
    %v1698 = vshrl.u32 2475754826, %v1695
    %v1699 = vor.u32 %v1697, %v1698
    %v1700 = vshll.u32 2475754826, %v1694
    %v1701 = vshrl.u32 2131351028, %v1695
    %v1702 = vor.u32 %v1700, %v1701
    %v1703 = vshll.u32 2131351028, %v1694
    %v1704 = vshrl.u32 2102212464, %v1695
    %v1705 = vor.u32 %v1703, %v1704
    %v1706 = vshll.u32 2102212464, %v1694
    %v1707 = vshrl.u32 920167782, %v1695
    %v1708 = vor.u32 %v1706, %v1707
    %v1709 = vshll.u32 920167782, %v1694
    %v1710 = vshrl.u32 1326507024, %v1695
    %v1711 = vor.u32 %v1709, %v1710
    %vm1712 = vcmp.lt.s32.totalorder %v1693, 1
    %vm1713 = vcmp.lt.s32.totalorder %v1693, 2
    %vm1714 = vcmp.lt.s32.totalorder %v1693, 3
    %vm1715 = vcmp.lt.s32.totalorder %v1693, 4
    %v1716 = vsel %vm1712, %v1696, %v1699
    %v1717 = vsel %vm1715, %v1705, 2102212464
    %v1718 = vsel %vm1714, %v1702, %v1717
    %v1719 = vsel %vm1713, %v1716, %v1718
    %v1720 = vsel %vm1712, %v1699, %v1702
    %v1721 = vsel %vm1715, %v1708, 920167782
    %v1722 = vsel %vm1714, %v1705, %v1721
    %v1723 = vsel %vm1713, %v1720, %v1722
    %v1724 = vsel %vm1712, %v1702, %v1705
    %v1725 = vsel %vm1715, %v1711, 1326507024
    %v1726 = vsel %vm1714, %v1708, %v1725
    %v1727 = vsel %vm1713, %v1724, %v1726
    %v1728 = vshll.u32 %v1688, 8
    %v1729 = vand.u32 %v1728, 65535
    %v1730 = vshrl.u32 %v1728, 16
    %v1731 = vand.u32 %v1727, 65535
    %v1732 = vshrl.u32 %v1727, 16
    %v1733 = vmul.u32 %v1729, %v1731
    %v1734 = vmul.u32 %v1729, %v1732
    %v1735 = vmul.u32 %v1730, %v1731
    %v1736 = vmul.u32 %v1730, %v1732
    %v1737 = vshll.u32 %v1734, 16
    %v1738 = vshrl.u32 %v1734, 16
    %v1739 = vshll.u32 %v1735, 16
    %v1740 = vshrl.u32 %v1735, 16
    %vm1741 = vc.u32 %v1733, %v1737
    %v1742 = vsel %vm1741, 1, 0
    %v1743 = vadd.s32 %v1733, %v1737
    %v1744 = vadd.s32 %v1736, %v1742
    %vm1745 = vc.u32 %v1743, %v1739
    %v1746 = vsel %vm1745, 1, 0
    %v1747 = vadd.s32 %v1743, %v1739
    %v1748 = vadd.s32 %v1744, %v1746
    %v1749 = vadd.s32 %v1748, %v1738
    %v1750 = vadd.s32 %v1749, %v1740
    %v1751 = vand.u32 %v1728, 65535
    %v1752 = vshrl.u32 %v1728, 16
    %v1753 = vand.u32 %v1723, 65535
    %v1754 = vshrl.u32 %v1723, 16
    %v1755 = vmul.u32 %v1751, %v1753
    %v1756 = vmul.u32 %v1751, %v1754
    %v1757 = vmul.u32 %v1752, %v1753
    %v1758 = vmul.u32 %v1752, %v1754
    %v1759 = vshll.u32 %v1756, 16
    %v1760 = vshrl.u32 %v1756, 16
    %v1761 = vshll.u32 %v1757, 16
    %v1762 = vshrl.u32 %v1757, 16
    %vm1763 = vc.u32 %v1755, %v1759
    %v1764 = vsel %vm1763, 1, 0
    %v1765 = vadd.s32 %v1755, %v1759
    %v1766 = vadd.s32 %v1758, %v1764
    %vm1767 = vc.u32 %v1765, %v1761
    %v1768 = vsel %vm1767, 1, 0
    %v1769 = vadd.s32 %v1765, %v1761
    %v1770 = vadd.s32 %v1766, %v1768
    %v1771 = vadd.s32 %v1770, %v1760
    %v1772 = vadd.s32 %v1771, %v1762
    %v1773 = vmul.u32 %v1728, %v1719
    %v1774 = vadd.s32 %v1750, %v1769
    %vm1775 = vc.u32 %v1750, %v1769
    %v1776 = vadd.s32 %v1772, 1
    %v1777 = vsel %vm1775, %v1776, %v1772
    %v1778 = vadd.s32 %v1773, %v1777
    %v1779 = vadd.s32 %v1778, 536870912
    %v1780 = vshrl.u32 %v1779, 30
    %v1781 = vshll.u32 %v1780, 30
    %v1782 = vsub.s32 %v1778, %v1781
    %vm1783 = vcmp.lt.s32.totalorder %v1782, 0
    %v1784 = vsub.s32 0, %v1782
    %v1785 = vsel %vm1783, %v1784, %v1782
    %v1786 = vclz %v1785
    %v1787 = vsub.s32 %v1786, 2
    %vm1788 = vcmp.gt.s32.totalorder 0, %v1787
    %v1789 = vsel %vm1788, 0, %v1787
    %v1790 = vsub.s32 32, %v1789
    %v1791 = vshll.u32 %v1782, %v1789
    %v1792 = vshrl.u32 %v1774, %v1790
    %v1793 = vor.u32 %v1791, %v1792
    %v1794 = vsub.s32 4294967266, %v1789
    %v1795 = vadd.s32 %v1794, 127
    %v1796 = vshll.u32 %v1795, 23
    %v1797 = vor.u32 4788187, %v1796
    %v1798 = vand.u32 2147483647, %v1797
    %v1800 = vcvt.s32.f32 %v1793
    %v1801 = vmul.f32 %v1800, %v1798
    %v1802 = vxor.u32 %v1801, 2147483648
    %v1803 = vsel %vm1682, %v1802, %v1801
    %v1804 = vsub.s32 4, %v1780
    %v1805 = vsel %vm1682, %v1804, %v1780
    %v1806 = vsel %vm1681, %v846, %v1803
    %v1807 = vsel %vm1681, 0, %v1805
    %v1808 = vmul.f32 %v1806, %v1806
    %v1809 = vmul.f32 %v1808, -0.001358992
    %v1810 = vadd.f32 %v1809, 0.041655596
    %v1811 = vmul.f32 %v1808, %v1810
    %v1812 = vadd.f32 %v1811, -0.4999988
    %v1813 = vmul.f32 %v1808, %v1812
    %v1814 = vadd.f32 1.0, %v1813
    %v1815 = vmul.f32 %v1806, %v1806
    %v1816 = vmul.f32 %v1815, -0.00019511016
    %v1817 = vadd.f32 %v1816, 0.008332121
    %v1818 = vmul.f32 %v1815, %v1817
    %v1819 = vadd.f32 %v1818, -0.16666654
    %v1820 = vmul.f32 %v1815, %v1819
    %v1821 = vadd.f32 %v1820, 1.0
    %v1822 = vmul.f32 %v1821, %v1806
    %vm1823 = vweird.f32 %v846
    %v1824 = vadd.s32 %v1807, 3
    %v1825 = vand.u32 %v1824, 3
    %vm1826 = vcmp.lt.s32.totalorder %v1825, 2
    %vm1827 = vcmp.eq.s32.totalorder %v1825, 0
    %v1828 = vxor.u32 %v1822, 2147483648
    %v1829 = vsel %vm1827, %v1814, %v1828
    %vm1830 = vcmp.eq.s32.totalorder %v1825, 2
    %v1831 = vxor.u32 %v1814, 2147483648
    %v1832 = vsel %vm1830, %v1831, %v1822
    %v1833 = vsel %vm1826, %v1829, %v1832
    %v1834 = vsel %vm1823, nan, %v1833
    %v1835 = vand.u32 2147483647, %v847
    %vm1836 = vcmp.le.f32.partialorder %v1835, 0.7853982
    %vm1837 = vcmp.lt.s32.totalorder %v847, 0
    %v1838 = vand.u32 %v847, 2139095040
    %v1839 = vshrl.u32 %v1838, 23
    %v1840 = vsub.s32 %v1839, 127
    %v1841 = vand.u32 2147483647, %v847
    %v1842 = vand.u32 %v1841, 8388607
    %v1843 = vor.u32 %v1842, 8388608
    %v1844 = vsub.s32 0, %v1843
    %v1845 = vadd.s32 %v1840, 1
    %vm1846 = vcmp.gt.s32.totalorder %v1845, 0
    %v1847 = vsel %vm1846, %v1845, 0
    %v1848 = vshrl.u32 %v1847, 5
    %v1849 = vand.u32 %v1847, 31
    %v1850 = vsub.s32 32, %v1849
    %v1851 = vshrl.u32 683565275, %v1850
    %v1852 = vshll.u32 683565275, %v1849
    %v1853 = vshrl.u32 2475754826, %v1850
    %v1854 = vor.u32 %v1852, %v1853
    %v1855 = vshll.u32 2475754826, %v1849
    %v1856 = vshrl.u32 2131351028, %v1850
    %v1857 = vor.u32 %v1855, %v1856
    %v1858 = vshll.u32 2131351028, %v1849
    %v1859 = vshrl.u32 2102212464, %v1850
    %v1860 = vor.u32 %v1858, %v1859
    %v1861 = vshll.u32 2102212464, %v1849
    %v1862 = vshrl.u32 920167782, %v1850
    %v1863 = vor.u32 %v1861, %v1862
    %v1864 = vshll.u32 920167782, %v1849
    %v1865 = vshrl.u32 1326507024, %v1850
    %v1866 = vor.u32 %v1864, %v1865
    %vm1867 = vcmp.lt.s32.totalorder %v1848, 1
    %vm1868 = vcmp.lt.s32.totalorder %v1848, 2
    %vm1869 = vcmp.lt.s32.totalorder %v1848, 3
    %vm1870 = vcmp.lt.s32.totalorder %v1848, 4
    %v1871 = vsel %vm1867, %v1851, %v1854
    %v1872 = vsel %vm1870, %v1860, 2102212464
    %v1873 = vsel %vm1869, %v1857, %v1872
    %v1874 = vsel %vm1868, %v1871, %v1873
    %v1875 = vsel %vm1867, %v1854, %v1857
    %v1876 = vsel %vm1870, %v1863, 920167782
    %v1877 = vsel %vm1869, %v1860, %v1876
    %v1878 = vsel %vm1868, %v1875, %v1877
    %v1879 = vsel %vm1867, %v1857, %v1860
    %v1880 = vsel %vm1870, %v1866, 1326507024
    %v1881 = vsel %vm1869, %v1863, %v1880
    %v1882 = vsel %vm1868, %v1879, %v1881
    %v1883 = vshll.u32 %v1843, 8
    %v1884 = vand.u32 %v1883, 65535
    %v1885 = vshrl.u32 %v1883, 16
    %v1886 = vand.u32 %v1882, 65535
    %v1887 = vshrl.u32 %v1882, 16
    %v1888 = vmul.u32 %v1884, %v1886
    %v1889 = vmul.u32 %v1884, %v1887
    %v1890 = vmul.u32 %v1885, %v1886
    %v1891 = vmul.u32 %v1885, %v1887
    %v1892 = vshll.u32 %v1889, 16
    %v1893 = vshrl.u32 %v1889, 16
    %v1894 = vshll.u32 %v1890, 16
    %v1895 = vshrl.u32 %v1890, 16
    %vm1896 = vc.u32 %v1888, %v1892
    %v1897 = vsel %vm1896, 1, 0
    %v1898 = vadd.s32 %v1888, %v1892
    %v1899 = vadd.s32 %v1891, %v1897
    %vm1900 = vc.u32 %v1898, %v1894
    %v1901 = vsel %vm1900, 1, 0
    %v1902 = vadd.s32 %v1898, %v1894
    %v1903 = vadd.s32 %v1899, %v1901
    %v1904 = vadd.s32 %v1903, %v1893
    %v1905 = vadd.s32 %v1904, %v1895
    %v1906 = vand.u32 %v1883, 65535
    %v1907 = vshrl.u32 %v1883, 16
    %v1908 = vand.u32 %v1878, 65535
    %v1909 = vshrl.u32 %v1878, 16
    %v1910 = vmul.u32 %v1906, %v1908
    %v1911 = vmul.u32 %v1906, %v1909
    %v1912 = vmul.u32 %v1907, %v1908
    %v1913 = vmul.u32 %v1907, %v1909
    %v1914 = vshll.u32 %v1911, 16
    %v1915 = vshrl.u32 %v1911, 16
    %v1916 = vshll.u32 %v1912, 16
    %v1917 = vshrl.u32 %v1912, 16
    %vm1918 = vc.u32 %v1910, %v1914
    %v1919 = vsel %vm1918, 1, 0
    %v1920 = vadd.s32 %v1910, %v1914
    %v1921 = vadd.s32 %v1913, %v1919
    %vm1922 = vc.u32 %v1920, %v1916
    %v1923 = vsel %vm1922, 1, 0
    %v1924 = vadd.s32 %v1920, %v1916
    %v1925 = vadd.s32 %v1921, %v1923
    %v1926 = vadd.s32 %v1925, %v1915
    %v1927 = vadd.s32 %v1926, %v1917
    %v1928 = vmul.u32 %v1883, %v1874
    %v1929 = vadd.s32 %v1905, %v1924
    %vm1930 = vc.u32 %v1905, %v1924
    %v1931 = vadd.s32 %v1927, 1
    %v1932 = vsel %vm1930, %v1931, %v1927
    %v1933 = vadd.s32 %v1928, %v1932
    %v1934 = vadd.s32 %v1933, 536870912
    %v1935 = vshrl.u32 %v1934, 30
    %v1936 = vshll.u32 %v1935, 30
    %v1937 = vsub.s32 %v1933, %v1936
    %vm1938 = vcmp.lt.s32.totalorder %v1937, 0
    %v1939 = vsub.s32 0, %v1937
    %v1940 = vsel %vm1938, %v1939, %v1937
    %v1941 = vclz %v1940
    %v1942 = vsub.s32 %v1941, 2
    %vm1943 = vcmp.gt.s32.totalorder 0, %v1942
    %v1944 = vsel %vm1943, 0, %v1942
    %v1945 = vsub.s32 32, %v1944
    %v1946 = vshll.u32 %v1937, %v1944
    %v1947 = vshrl.u32 %v1929, %v1945
    %v1948 = vor.u32 %v1946, %v1947
    %v1949 = vsub.s32 4294967266, %v1944
    %v1950 = vadd.s32 %v1949, 127
    %v1951 = vshll.u32 %v1950, 23
    %v1952 = vor.u32 4788187, %v1951
    %v1953 = vand.u32 2147483647, %v1952
    %v1955 = vcvt.s32.f32 %v1948
    %v1956 = vmul.f32 %v1955, %v1953
    %v1957 = vxor.u32 %v1956, 2147483648
    %v1958 = vsel %vm1837, %v1957, %v1956
    %v1959 = vsub.s32 4, %v1935
    %v1960 = vsel %vm1837, %v1959, %v1935
    %v1961 = vsel %vm1836, %v847, %v1958
    %v1962 = vsel %vm1836, 0, %v1960
    %v1963 = vmul.f32 %v1961, %v1961
    %v1964 = vmul.f32 %v1963, -0.001358992
    %v1965 = vadd.f32 %v1964, 0.041655596
    %v1966 = vmul.f32 %v1963, %v1965
    %v1967 = vadd.f32 %v1966, -0.4999988
    %v1968 = vmul.f32 %v1963, %v1967
    %v1969 = vadd.f32 1.0, %v1968
    %v1970 = vmul.f32 %v1961, %v1961
    %v1971 = vmul.f32 %v1970, -0.00019511016
    %v1972 = vadd.f32 %v1971, 0.008332121
    %v1973 = vmul.f32 %v1970, %v1972
    %v1974 = vadd.f32 %v1973, -0.16666654
    %v1975 = vmul.f32 %v1970, %v1974
    %v1976 = vadd.f32 %v1975, 1.0
    %v1977 = vmul.f32 %v1976, %v1961
    %vm1978 = vweird.f32 %v847
    %v1979 = vadd.s32 %v1962, 3
    %v1980 = vand.u32 %v1979, 3
    %vm1981 = vcmp.lt.s32.totalorder %v1980, 2
    %vm1982 = vcmp.eq.s32.totalorder %v1980, 0
    %v1983 = vxor.u32 %v1977, 2147483648
    %v1984 = vsel %vm1982, %v1969, %v1983
    %vm1985 = vcmp.eq.s32.totalorder %v1980, 2
    %v1986 = vxor.u32 %v1969, 2147483648
    %v1987 = vsel %vm1985, %v1986, %v1977
    %v1988 = vsel %vm1981, %v1984, %v1987
    %v1989 = vsel %vm1978, nan, %v1988
    %v1990 = vand.u32 2147483647, %v848
    %vm1991 = vcmp.le.f32.partialorder %v1990, 0.7853982
    %vm1992 = vcmp.lt.s32.totalorder %v848, 0
    %v1993 = vand.u32 %v848, 2139095040
    %v1994 = vshrl.u32 %v1993, 23
    %v1995 = vsub.s32 %v1994, 127
    %v1996 = vand.u32 2147483647, %v848
    %v1997 = vand.u32 %v1996, 8388607
    %v1998 = vor.u32 %v1997, 8388608
    %v1999 = vsub.s32 0, %v1998
    %v2000 = vadd.s32 %v1995, 1
    %vm2001 = vcmp.gt.s32.totalorder %v2000, 0
    %v2002 = vsel %vm2001, %v2000, 0
    %v2003 = vshrl.u32 %v2002, 5
    %v2004 = vand.u32 %v2002, 31
    %v2005 = vsub.s32 32, %v2004
    %v2006 = vshrl.u32 683565275, %v2005
    %v2007 = vshll.u32 683565275, %v2004
    %v2008 = vshrl.u32 2475754826, %v2005
    %v2009 = vor.u32 %v2007, %v2008
    %v2010 = vshll.u32 2475754826, %v2004
    %v2011 = vshrl.u32 2131351028, %v2005
    %v2012 = vor.u32 %v2010, %v2011
    %v2013 = vshll.u32 2131351028, %v2004
    %v2014 = vshrl.u32 2102212464, %v2005
    %v2015 = vor.u32 %v2013, %v2014
    %v2016 = vshll.u32 2102212464, %v2004
    %v2017 = vshrl.u32 920167782, %v2005
    %v2018 = vor.u32 %v2016, %v2017
    %v2019 = vshll.u32 920167782, %v2004
    %v2020 = vshrl.u32 1326507024, %v2005
    %v2021 = vor.u32 %v2019, %v2020
    %vm2022 = vcmp.lt.s32.totalorder %v2003, 1
    %vm2023 = vcmp.lt.s32.totalorder %v2003, 2
    %vm2024 = vcmp.lt.s32.totalorder %v2003, 3
    %vm2025 = vcmp.lt.s32.totalorder %v2003, 4
    %v2026 = vsel %vm2022, %v2006, %v2009
    %v2027 = vsel %vm2025, %v2015, 2102212464
    %v2028 = vsel %vm2024, %v2012, %v2027
    %v2029 = vsel %vm2023, %v2026, %v2028
    %v2030 = vsel %vm2022, %v2009, %v2012
    %v2031 = vsel %vm2025, %v2018, 920167782
    %v2032 = vsel %vm2024, %v2015, %v2031
    %v2033 = vsel %vm2023, %v2030, %v2032
    %v2034 = vsel %vm2022, %v2012, %v2015
    %v2035 = vsel %vm2025, %v2021, 1326507024
    %v2036 = vsel %vm2024, %v2018, %v2035
    %v2037 = vsel %vm2023, %v2034, %v2036
    %v2038 = vshll.u32 %v1998, 8
    %v2039 = vand.u32 %v2038, 65535
    %v2040 = vshrl.u32 %v2038, 16
    %v2041 = vand.u32 %v2037, 65535
    %v2042 = vshrl.u32 %v2037, 16
    %v2043 = vmul.u32 %v2039, %v2041
    %v2044 = vmul.u32 %v2039, %v2042
    %v2045 = vmul.u32 %v2040, %v2041
    %v2046 = vmul.u32 %v2040, %v2042
    %v2047 = vshll.u32 %v2044, 16
    %v2048 = vshrl.u32 %v2044, 16
    %v2049 = vshll.u32 %v2045, 16
    %v2050 = vshrl.u32 %v2045, 16
    %vm2051 = vc.u32 %v2043, %v2047
    %v2052 = vsel %vm2051, 1, 0
    %v2053 = vadd.s32 %v2043, %v2047
    %v2054 = vadd.s32 %v2046, %v2052
    %vm2055 = vc.u32 %v2053, %v2049
    %v2056 = vsel %vm2055, 1, 0
    %v2057 = vadd.s32 %v2053, %v2049
    %v2058 = vadd.s32 %v2054, %v2056
    %v2059 = vadd.s32 %v2058, %v2048
    %v2060 = vadd.s32 %v2059, %v2050
    %v2061 = vand.u32 %v2038, 65535
    %v2062 = vshrl.u32 %v2038, 16
    %v2063 = vand.u32 %v2033, 65535
    %v2064 = vshrl.u32 %v2033, 16
    %v2065 = vmul.u32 %v2061, %v2063
    %v2066 = vmul.u32 %v2061, %v2064
    %v2067 = vmul.u32 %v2062, %v2063
    %v2068 = vmul.u32 %v2062, %v2064
    %v2069 = vshll.u32 %v2066, 16
    %v2070 = vshrl.u32 %v2066, 16
    %v2071 = vshll.u32 %v2067, 16
    %v2072 = vshrl.u32 %v2067, 16
    %vm2073 = vc.u32 %v2065, %v2069
    %v2074 = vsel %vm2073, 1, 0
    %v2075 = vadd.s32 %v2065, %v2069
    %v2076 = vadd.s32 %v2068, %v2074
    %vm2077 = vc.u32 %v2075, %v2071
    %v2078 = vsel %vm2077, 1, 0
    %v2079 = vadd.s32 %v2075, %v2071
    %v2080 = vadd.s32 %v2076, %v2078
    %v2081 = vadd.s32 %v2080, %v2070
    %v2082 = vadd.s32 %v2081, %v2072
    %v2083 = vmul.u32 %v2038, %v2029
    %v2084 = vadd.s32 %v2060, %v2079
    %vm2085 = vc.u32 %v2060, %v2079
    %v2086 = vadd.s32 %v2082, 1
    %v2087 = vsel %vm2085, %v2086, %v2082
    %v2088 = vadd.s32 %v2083, %v2087
    %v2089 = vadd.s32 %v2088, 536870912
    %v2090 = vshrl.u32 %v2089, 30
    %v2091 = vshll.u32 %v2090, 30
    %v2092 = vsub.s32 %v2088, %v2091
    %vm2093 = vcmp.lt.s32.totalorder %v2092, 0
    %v2094 = vsub.s32 0, %v2092
    %v2095 = vsel %vm2093, %v2094, %v2092
    %v2096 = vclz %v2095
    %v2097 = vsub.s32 %v2096, 2
    %vm2098 = vcmp.gt.s32.totalorder 0, %v2097
    %v2099 = vsel %vm2098, 0, %v2097
    %v2100 = vsub.s32 32, %v2099
    %v2101 = vshll.u32 %v2092, %v2099
    %v2102 = vshrl.u32 %v2084, %v2100
    %v2103 = vor.u32 %v2101, %v2102
    %v2104 = vsub.s32 4294967266, %v2099
    %v2105 = vadd.s32 %v2104, 127
    %v2106 = vshll.u32 %v2105, 23
    %v2107 = vor.u32 4788187, %v2106
    %v2108 = vand.u32 2147483647, %v2107
    %v2110 = vcvt.s32.f32 %v2103
    %v2111 = vmul.f32 %v2110, %v2108
    %v2112 = vxor.u32 %v2111, 2147483648
    %v2113 = vsel %vm1992, %v2112, %v2111
    %v2114 = vsub.s32 4, %v2090
    %v2115 = vsel %vm1992, %v2114, %v2090
    %v2116 = vsel %vm1991, %v848, %v2113
    %v2117 = vsel %vm1991, 0, %v2115
    %v2118 = vmul.f32 %v2116, %v2116
    %v2119 = vmul.f32 %v2118, -0.001358992
    %v2120 = vadd.f32 %v2119, 0.041655596
    %v2121 = vmul.f32 %v2118, %v2120
    %v2122 = vadd.f32 %v2121, -0.4999988
    %v2123 = vmul.f32 %v2118, %v2122
    %v2124 = vadd.f32 1.0, %v2123
    %v2125 = vmul.f32 %v2116, %v2116
    %v2126 = vmul.f32 %v2125, -0.00019511016
    %v2127 = vadd.f32 %v2126, 0.008332121
    %v2128 = vmul.f32 %v2125, %v2127
    %v2129 = vadd.f32 %v2128, -0.16666654
    %v2130 = vmul.f32 %v2125, %v2129
    %v2131 = vadd.f32 %v2130, 1.0
    %v2132 = vmul.f32 %v2131, %v2116
    %vm2133 = vweird.f32 %v848
    %v2134 = vadd.s32 %v2117, 3
    %v2135 = vand.u32 %v2134, 3
    %vm2136 = vcmp.lt.s32.totalorder %v2135, 2
    %vm2137 = vcmp.eq.s32.totalorder %v2135, 0
    %v2138 = vxor.u32 %v2132, 2147483648
    %v2139 = vsel %vm2137, %v2124, %v2138
    %vm2140 = vcmp.eq.s32.totalorder %v2135, 2
    %v2141 = vxor.u32 %v2124, 2147483648
    %v2142 = vsel %vm2140, %v2141, %v2132
    %v2143 = vsel %vm2136, %v2139, %v2142
    %v2144 = vsel %vm2133, nan, %v2143
    %v2145 = vand.u32 2147483647, %v849
    %vm2146 = vcmp.le.f32.partialorder %v2145, 0.7853982
    %vm2147 = vcmp.lt.s32.totalorder %v849, 0
    %v2148 = vand.u32 %v849, 2139095040
    %v2149 = vshrl.u32 %v2148, 23
    %v2150 = vsub.s32 %v2149, 127
    %v2151 = vand.u32 2147483647, %v849
    %v2152 = vand.u32 %v2151, 8388607
    %v2153 = vor.u32 %v2152, 8388608
    %v2154 = vsub.s32 0, %v2153
    %v2155 = vadd.s32 %v2150, 1
    %vm2156 = vcmp.gt.s32.totalorder %v2155, 0
    %v2157 = vsel %vm2156, %v2155, 0
    %v2158 = vshrl.u32 %v2157, 5
    %v2159 = vand.u32 %v2157, 31
    %v2160 = vsub.s32 32, %v2159
    %v2161 = vshrl.u32 683565275, %v2160
    %v2162 = vshll.u32 683565275, %v2159
    %v2163 = vshrl.u32 2475754826, %v2160
    %v2164 = vor.u32 %v2162, %v2163
    %v2165 = vshll.u32 2475754826, %v2159
    %v2166 = vshrl.u32 2131351028, %v2160
    %v2167 = vor.u32 %v2165, %v2166
    %v2168 = vshll.u32 2131351028, %v2159
    %v2169 = vshrl.u32 2102212464, %v2160
    %v2170 = vor.u32 %v2168, %v2169
    %v2171 = vshll.u32 2102212464, %v2159
    %v2172 = vshrl.u32 920167782, %v2160
    %v2173 = vor.u32 %v2171, %v2172
    %v2174 = vshll.u32 920167782, %v2159
    %v2175 = vshrl.u32 1326507024, %v2160
    %v2176 = vor.u32 %v2174, %v2175
    %vm2177 = vcmp.lt.s32.totalorder %v2158, 1
    %vm2178 = vcmp.lt.s32.totalorder %v2158, 2
    %vm2179 = vcmp.lt.s32.totalorder %v2158, 3
    %vm2180 = vcmp.lt.s32.totalorder %v2158, 4
    %v2181 = vsel %vm2177, %v2161, %v2164
    %v2182 = vsel %vm2180, %v2170, 2102212464
    %v2183 = vsel %vm2179, %v2167, %v2182
    %v2184 = vsel %vm2178, %v2181, %v2183
    %v2185 = vsel %vm2177, %v2164, %v2167
    %v2186 = vsel %vm2180, %v2173, 920167782
    %v2187 = vsel %vm2179, %v2170, %v2186
    %v2188 = vsel %vm2178, %v2185, %v2187
    %v2189 = vsel %vm2177, %v2167, %v2170
    %v2190 = vsel %vm2180, %v2176, 1326507024
    %v2191 = vsel %vm2179, %v2173, %v2190
    %v2192 = vsel %vm2178, %v2189, %v2191
    %v2193 = vshll.u32 %v2153, 8
    %v2194 = vand.u32 %v2193, 65535
    %v2195 = vshrl.u32 %v2193, 16
    %v2196 = vand.u32 %v2192, 65535
    %v2197 = vshrl.u32 %v2192, 16
    %v2198 = vmul.u32 %v2194, %v2196
    %v2199 = vmul.u32 %v2194, %v2197
    %v2200 = vmul.u32 %v2195, %v2196
    %v2201 = vmul.u32 %v2195, %v2197
    %v2202 = vshll.u32 %v2199, 16
    %v2203 = vshrl.u32 %v2199, 16
    %v2204 = vshll.u32 %v2200, 16
    %v2205 = vshrl.u32 %v2200, 16
    %vm2206 = vc.u32 %v2198, %v2202
    %v2207 = vsel %vm2206, 1, 0
    %v2208 = vadd.s32 %v2198, %v2202
    %v2209 = vadd.s32 %v2201, %v2207
    %vm2210 = vc.u32 %v2208, %v2204
    %v2211 = vsel %vm2210, 1, 0
    %v2212 = vadd.s32 %v2208, %v2204
    %v2213 = vadd.s32 %v2209, %v2211
    %v2214 = vadd.s32 %v2213, %v2203
    %v2215 = vadd.s32 %v2214, %v2205
    %v2216 = vand.u32 %v2193, 65535
    %v2217 = vshrl.u32 %v2193, 16
    %v2218 = vand.u32 %v2188, 65535
    %v2219 = vshrl.u32 %v2188, 16
    %v2220 = vmul.u32 %v2216, %v2218
    %v2221 = vmul.u32 %v2216, %v2219
    %v2222 = vmul.u32 %v2217, %v2218
    %v2223 = vmul.u32 %v2217, %v2219
    %v2224 = vshll.u32 %v2221, 16
    %v2225 = vshrl.u32 %v2221, 16
    %v2226 = vshll.u32 %v2222, 16
    %v2227 = vshrl.u32 %v2222, 16
    %vm2228 = vc.u32 %v2220, %v2224
    %v2229 = vsel %vm2228, 1, 0
    %v2230 = vadd.s32 %v2220, %v2224
    %v2231 = vadd.s32 %v2223, %v2229
    %vm2232 = vc.u32 %v2230, %v2226
    %v2233 = vsel %vm2232, 1, 0
    %v2234 = vadd.s32 %v2230, %v2226
    %v2235 = vadd.s32 %v2231, %v2233
    %v2236 = vadd.s32 %v2235, %v2225
    %v2237 = vadd.s32 %v2236, %v2227
    %v2238 = vmul.u32 %v2193, %v2184
    %v2239 = vadd.s32 %v2215, %v2234
    %vm2240 = vc.u32 %v2215, %v2234
    %v2241 = vadd.s32 %v2237, 1
    %v2242 = vsel %vm2240, %v2241, %v2237
    %v2243 = vadd.s32 %v2238, %v2242
    %v2244 = vadd.s32 %v2243, 536870912
    %v2245 = vshrl.u32 %v2244, 30
    %v2246 = vshll.u32 %v2245, 30
    %v2247 = vsub.s32 %v2243, %v2246
    %vm2248 = vcmp.lt.s32.totalorder %v2247, 0
    %v2249 = vsub.s32 0, %v2247
    %v2250 = vsel %vm2248, %v2249, %v2247
    %v2251 = vclz %v2250
    %v2252 = vsub.s32 %v2251, 2
    %vm2253 = vcmp.gt.s32.totalorder 0, %v2252
    %v2254 = vsel %vm2253, 0, %v2252
    %v2255 = vsub.s32 32, %v2254
    %v2256 = vshll.u32 %v2247, %v2254
    %v2257 = vshrl.u32 %v2239, %v2255
    %v2258 = vor.u32 %v2256, %v2257
    %v2259 = vsub.s32 4294967266, %v2254
    %v2260 = vadd.s32 %v2259, 127
    %v2261 = vshll.u32 %v2260, 23
    %v2262 = vor.u32 4788187, %v2261
    %v2263 = vand.u32 2147483647, %v2262
    %v2265 = vcvt.s32.f32 %v2258
    %v2266 = vmul.f32 %v2265, %v2263
    %v2267 = vxor.u32 %v2266, 2147483648
    %v2268 = vsel %vm2147, %v2267, %v2266
    %v2269 = vsub.s32 4, %v2245
    %v2270 = vsel %vm2147, %v2269, %v2245
    %v2271 = vsel %vm2146, %v849, %v2268
    %v2272 = vsel %vm2146, 0, %v2270
    %v2273 = vmul.f32 %v2271, %v2271
    %v2274 = vmul.f32 %v2273, -0.001358992
    %v2275 = vadd.f32 %v2274, 0.041655596
    %v2276 = vmul.f32 %v2273, %v2275
    %v2277 = vadd.f32 %v2276, -0.4999988
    %v2278 = vmul.f32 %v2273, %v2277
    %v2279 = vadd.f32 1.0, %v2278
    %v2280 = vmul.f32 %v2271, %v2271
    %v2281 = vmul.f32 %v2280, -0.00019511016
    %v2282 = vadd.f32 %v2281, 0.008332121
    %v2283 = vmul.f32 %v2280, %v2282
    %v2284 = vadd.f32 %v2283, -0.16666654
    %v2285 = vmul.f32 %v2280, %v2284
    %v2286 = vadd.f32 %v2285, 1.0
    %v2287 = vmul.f32 %v2286, %v2271
    %vm2288 = vweird.f32 %v849
    %v2289 = vadd.s32 %v2272, 3
    %v2290 = vand.u32 %v2289, 3
    %vm2291 = vcmp.lt.s32.totalorder %v2290, 2
    %vm2292 = vcmp.eq.s32.totalorder %v2290, 0
    %v2293 = vxor.u32 %v2287, 2147483648
    %v2294 = vsel %vm2292, %v2279, %v2293
    %vm2295 = vcmp.eq.s32.totalorder %v2290, 2
    %v2296 = vxor.u32 %v2279, 2147483648
    %v2297 = vsel %vm2295, %v2296, %v2287
    %v2298 = vsel %vm2291, %v2294, %v2297
    %v2299 = vsel %vm2288, nan, %v2298
    %v2300 = vand.u32 2147483647, %v850
    %vm2301 = vcmp.le.f32.partialorder %v2300, 0.7853982
    %vm2302 = vcmp.lt.s32.totalorder %v850, 0
    %v2303 = vand.u32 %v850, 2139095040
    %v2304 = vshrl.u32 %v2303, 23
    %v2305 = vsub.s32 %v2304, 127
    %v2306 = vand.u32 2147483647, %v850
    %v2307 = vand.u32 %v2306, 8388607
    %v2308 = vor.u32 %v2307, 8388608
    %v2309 = vsub.s32 0, %v2308
    %v2310 = vadd.s32 %v2305, 1
    %vm2311 = vcmp.gt.s32.totalorder %v2310, 0
    %v2312 = vsel %vm2311, %v2310, 0
    %v2313 = vshrl.u32 %v2312, 5
    %v2314 = vand.u32 %v2312, 31
    %v2315 = vsub.s32 32, %v2314
    %v2316 = vshrl.u32 683565275, %v2315
    %v2317 = vshll.u32 683565275, %v2314
    %v2318 = vshrl.u32 2475754826, %v2315
    %v2319 = vor.u32 %v2317, %v2318
    %v2320 = vshll.u32 2475754826, %v2314
    %v2321 = vshrl.u32 2131351028, %v2315
    %v2322 = vor.u32 %v2320, %v2321
    %v2323 = vshll.u32 2131351028, %v2314
    %v2324 = vshrl.u32 2102212464, %v2315
    %v2325 = vor.u32 %v2323, %v2324
    %v2326 = vshll.u32 2102212464, %v2314
    %v2327 = vshrl.u32 920167782, %v2315
    %v2328 = vor.u32 %v2326, %v2327
    %v2329 = vshll.u32 920167782, %v2314
    %v2330 = vshrl.u32 1326507024, %v2315
    %v2331 = vor.u32 %v2329, %v2330
    %vm2332 = vcmp.lt.s32.totalorder %v2313, 1
    %vm2333 = vcmp.lt.s32.totalorder %v2313, 2
    %vm2334 = vcmp.lt.s32.totalorder %v2313, 3
    %vm2335 = vcmp.lt.s32.totalorder %v2313, 4
    %v2336 = vsel %vm2332, %v2316, %v2319
    %v2337 = vsel %vm2335, %v2325, 2102212464
    %v2338 = vsel %vm2334, %v2322, %v2337
    %v2339 = vsel %vm2333, %v2336, %v2338
    %v2340 = vsel %vm2332, %v2319, %v2322
    %v2341 = vsel %vm2335, %v2328, 920167782
    %v2342 = vsel %vm2334, %v2325, %v2341
    %v2343 = vsel %vm2333, %v2340, %v2342
    %v2344 = vsel %vm2332, %v2322, %v2325
    %v2345 = vsel %vm2335, %v2331, 1326507024
    %v2346 = vsel %vm2334, %v2328, %v2345
    %v2347 = vsel %vm2333, %v2344, %v2346
    %v2348 = vshll.u32 %v2308, 8
    %v2349 = vand.u32 %v2348, 65535
    %v2350 = vshrl.u32 %v2348, 16
    %v2351 = vand.u32 %v2347, 65535
    %v2352 = vshrl.u32 %v2347, 16
    %v2353 = vmul.u32 %v2349, %v2351
    %v2354 = vmul.u32 %v2349, %v2352
    %v2355 = vmul.u32 %v2350, %v2351
    %v2356 = vmul.u32 %v2350, %v2352
    %v2357 = vshll.u32 %v2354, 16
    %v2358 = vshrl.u32 %v2354, 16
    %v2359 = vshll.u32 %v2355, 16
    %v2360 = vshrl.u32 %v2355, 16
    %vm2361 = vc.u32 %v2353, %v2357
    %v2362 = vsel %vm2361, 1, 0
    %v2363 = vadd.s32 %v2353, %v2357
    %v2364 = vadd.s32 %v2356, %v2362
    %vm2365 = vc.u32 %v2363, %v2359
    %v2366 = vsel %vm2365, 1, 0
    %v2367 = vadd.s32 %v2363, %v2359
    %v2368 = vadd.s32 %v2364, %v2366
    %v2369 = vadd.s32 %v2368, %v2358
    %v2370 = vadd.s32 %v2369, %v2360
    %v2371 = vand.u32 %v2348, 65535
    %v2372 = vshrl.u32 %v2348, 16
    %v2373 = vand.u32 %v2343, 65535
    %v2374 = vshrl.u32 %v2343, 16
    %v2375 = vmul.u32 %v2371, %v2373
    %v2376 = vmul.u32 %v2371, %v2374
    %v2377 = vmul.u32 %v2372, %v2373
    %v2378 = vmul.u32 %v2372, %v2374
    %v2379 = vshll.u32 %v2376, 16
    %v2380 = vshrl.u32 %v2376, 16
    %v2381 = vshll.u32 %v2377, 16
    %v2382 = vshrl.u32 %v2377, 16
    %vm2383 = vc.u32 %v2375, %v2379
    %v2384 = vsel %vm2383, 1, 0
    %v2385 = vadd.s32 %v2375, %v2379
    %v2386 = vadd.s32 %v2378, %v2384
    %vm2387 = vc.u32 %v2385, %v2381
    %v2388 = vsel %vm2387, 1, 0
    %v2389 = vadd.s32 %v2385, %v2381
    %v2390 = vadd.s32 %v2386, %v2388
    %v2391 = vadd.s32 %v2390, %v2380
    %v2392 = vadd.s32 %v2391, %v2382
    %v2393 = vmul.u32 %v2348, %v2339
    %v2394 = vadd.s32 %v2370, %v2389
    %vm2395 = vc.u32 %v2370, %v2389
    %v2396 = vadd.s32 %v2392, 1
    %v2397 = vsel %vm2395, %v2396, %v2392
    %v2398 = vadd.s32 %v2393, %v2397
    %v2399 = vadd.s32 %v2398, 536870912
    %v2400 = vshrl.u32 %v2399, 30
    %v2401 = vshll.u32 %v2400, 30
    %v2402 = vsub.s32 %v2398, %v2401
    %vm2403 = vcmp.lt.s32.totalorder %v2402, 0
    %v2404 = vsub.s32 0, %v2402
    %v2405 = vsel %vm2403, %v2404, %v2402
    %v2406 = vclz %v2405
    %v2407 = vsub.s32 %v2406, 2
    %vm2408 = vcmp.gt.s32.totalorder 0, %v2407
    %v2409 = vsel %vm2408, 0, %v2407
    %v2410 = vsub.s32 32, %v2409
    %v2411 = vshll.u32 %v2402, %v2409
    %v2412 = vshrl.u32 %v2394, %v2410
    %v2413 = vor.u32 %v2411, %v2412
    %v2414 = vsub.s32 4294967266, %v2409
    %v2415 = vadd.s32 %v2414, 127
    %v2416 = vshll.u32 %v2415, 23
    %v2417 = vor.u32 4788187, %v2416
    %v2418 = vand.u32 2147483647, %v2417
    %v2420 = vcvt.s32.f32 %v2413
    %v2421 = vmul.f32 %v2420, %v2418
    %v2422 = vxor.u32 %v2421, 2147483648
    %v2423 = vsel %vm2302, %v2422, %v2421
    %v2424 = vsub.s32 4, %v2400
    %v2425 = vsel %vm2302, %v2424, %v2400
    %v2426 = vsel %vm2301, %v850, %v2423
    %v2427 = vsel %vm2301, 0, %v2425
    %v2428 = vmul.f32 %v2426, %v2426
    %v2429 = vmul.f32 %v2428, -0.001358992
    %v2430 = vadd.f32 %v2429, 0.041655596
    %v2431 = vmul.f32 %v2428, %v2430
    %v2432 = vadd.f32 %v2431, -0.4999988
    %v2433 = vmul.f32 %v2428, %v2432
    %v2434 = vadd.f32 1.0, %v2433
    %v2435 = vmul.f32 %v2426, %v2426
    %v2436 = vmul.f32 %v2435, -0.00019511016
    %v2437 = vadd.f32 %v2436, 0.008332121
    %v2438 = vmul.f32 %v2435, %v2437
    %v2439 = vadd.f32 %v2438, -0.16666654
    %v2440 = vmul.f32 %v2435, %v2439
    %v2441 = vadd.f32 %v2440, 1.0
    %v2442 = vmul.f32 %v2441, %v2426
    %vm2443 = vweird.f32 %v850
    %v2444 = vadd.s32 %v2427, 3
    %v2445 = vand.u32 %v2444, 3
    %vm2446 = vcmp.lt.s32.totalorder %v2445, 2
    %vm2447 = vcmp.eq.s32.totalorder %v2445, 0
    %v2448 = vxor.u32 %v2442, 2147483648
    %v2449 = vsel %vm2447, %v2434, %v2448
    %vm2450 = vcmp.eq.s32.totalorder %v2445, 2
    %v2451 = vxor.u32 %v2434, 2147483648
    %v2452 = vsel %vm2450, %v2451, %v2442
    %v2453 = vsel %vm2446, %v2449, %v2452
    %v2454 = vsel %vm2443, nan, %v2453
    %v2455 = vand.u32 2147483647, %v851
    %vm2456 = vcmp.le.f32.partialorder %v2455, 0.7853982
    %vm2457 = vcmp.lt.s32.totalorder %v851, 0
    %v2458 = vand.u32 %v851, 2139095040
    %v2459 = vshrl.u32 %v2458, 23
    %v2460 = vsub.s32 %v2459, 127
    %v2461 = vand.u32 2147483647, %v851
    %v2462 = vand.u32 %v2461, 8388607
    %v2463 = vor.u32 %v2462, 8388608
    %v2464 = vsub.s32 0, %v2463
    %v2465 = vadd.s32 %v2460, 1
    %vm2466 = vcmp.gt.s32.totalorder %v2465, 0
    %v2467 = vsel %vm2466, %v2465, 0
    %v2468 = vshrl.u32 %v2467, 5
    %v2469 = vand.u32 %v2467, 31
    %v2470 = vsub.s32 32, %v2469
    %v2471 = vshrl.u32 683565275, %v2470
    %v2472 = vshll.u32 683565275, %v2469
    %v2473 = vshrl.u32 2475754826, %v2470
    %v2474 = vor.u32 %v2472, %v2473
    %v2475 = vshll.u32 2475754826, %v2469
    %v2476 = vshrl.u32 2131351028, %v2470
    %v2477 = vor.u32 %v2475, %v2476
    %v2478 = vshll.u32 2131351028, %v2469
    %v2479 = vshrl.u32 2102212464, %v2470
    %v2480 = vor.u32 %v2478, %v2479
    %v2481 = vshll.u32 2102212464, %v2469
    %v2482 = vshrl.u32 920167782, %v2470
    %v2483 = vor.u32 %v2481, %v2482
    %v2484 = vshll.u32 920167782, %v2469
    %v2485 = vshrl.u32 1326507024, %v2470
    %v2486 = vor.u32 %v2484, %v2485
    %vm2487 = vcmp.lt.s32.totalorder %v2468, 1
    %vm2488 = vcmp.lt.s32.totalorder %v2468, 2
    %vm2489 = vcmp.lt.s32.totalorder %v2468, 3
    %vm2490 = vcmp.lt.s32.totalorder %v2468, 4
    %v2491 = vsel %vm2487, %v2471, %v2474
    %v2492 = vsel %vm2490, %v2480, 2102212464
    %v2493 = vsel %vm2489, %v2477, %v2492
    %v2494 = vsel %vm2488, %v2491, %v2493
    %v2495 = vsel %vm2487, %v2474, %v2477
    %v2496 = vsel %vm2490, %v2483, 920167782
    %v2497 = vsel %vm2489, %v2480, %v2496
    %v2498 = vsel %vm2488, %v2495, %v2497
    %v2499 = vsel %vm2487, %v2477, %v2480
    %v2500 = vsel %vm2490, %v2486, 1326507024
    %v2501 = vsel %vm2489, %v2483, %v2500
    %v2502 = vsel %vm2488, %v2499, %v2501
    %v2503 = vshll.u32 %v2463, 8
    %v2504 = vand.u32 %v2503, 65535
    %v2505 = vshrl.u32 %v2503, 16
    %v2506 = vand.u32 %v2502, 65535
    %v2507 = vshrl.u32 %v2502, 16
    %v2508 = vmul.u32 %v2504, %v2506
    %v2509 = vmul.u32 %v2504, %v2507
    %v2510 = vmul.u32 %v2505, %v2506
    %v2511 = vmul.u32 %v2505, %v2507
    %v2512 = vshll.u32 %v2509, 16
    %v2513 = vshrl.u32 %v2509, 16
    %v2514 = vshll.u32 %v2510, 16
    %v2515 = vshrl.u32 %v2510, 16
    %vm2516 = vc.u32 %v2508, %v2512
    %v2517 = vsel %vm2516, 1, 0
    %v2518 = vadd.s32 %v2508, %v2512
    %v2519 = vadd.s32 %v2511, %v2517
    %vm2520 = vc.u32 %v2518, %v2514
    %v2521 = vsel %vm2520, 1, 0
    %v2522 = vadd.s32 %v2518, %v2514
    %v2523 = vadd.s32 %v2519, %v2521
    %v2524 = vadd.s32 %v2523, %v2513
    %v2525 = vadd.s32 %v2524, %v2515
    %v2526 = vand.u32 %v2503, 65535
    %v2527 = vshrl.u32 %v2503, 16
    %v2528 = vand.u32 %v2498, 65535
    %v2529 = vshrl.u32 %v2498, 16
    %v2530 = vmul.u32 %v2526, %v2528
    %v2531 = vmul.u32 %v2526, %v2529
    %v2532 = vmul.u32 %v2527, %v2528
    %v2533 = vmul.u32 %v2527, %v2529
    %v2534 = vshll.u32 %v2531, 16
    %v2535 = vshrl.u32 %v2531, 16
    %v2536 = vshll.u32 %v2532, 16
    %v2537 = vshrl.u32 %v2532, 16
    %vm2538 = vc.u32 %v2530, %v2534
    %v2539 = vsel %vm2538, 1, 0
    %v2540 = vadd.s32 %v2530, %v2534
    %v2541 = vadd.s32 %v2533, %v2539
    %vm2542 = vc.u32 %v2540, %v2536
    %v2543 = vsel %vm2542, 1, 0
    %v2544 = vadd.s32 %v2540, %v2536
    %v2545 = vadd.s32 %v2541, %v2543
    %v2546 = vadd.s32 %v2545, %v2535
    %v2547 = vadd.s32 %v2546, %v2537
    %v2548 = vmul.u32 %v2503, %v2494
    %v2549 = vadd.s32 %v2525, %v2544
    %vm2550 = vc.u32 %v2525, %v2544
    %v2551 = vadd.s32 %v2547, 1
    %v2552 = vsel %vm2550, %v2551, %v2547
    %v2553 = vadd.s32 %v2548, %v2552
    %v2554 = vadd.s32 %v2553, 536870912
    %v2555 = vshrl.u32 %v2554, 30
    %v2556 = vshll.u32 %v2555, 30
    %v2557 = vsub.s32 %v2553, %v2556
    %vm2558 = vcmp.lt.s32.totalorder %v2557, 0
    %v2559 = vsub.s32 0, %v2557
    %v2560 = vsel %vm2558, %v2559, %v2557
    %v2561 = vclz %v2560
    %v2562 = vsub.s32 %v2561, 2
    %vm2563 = vcmp.gt.s32.totalorder 0, %v2562
    %v2564 = vsel %vm2563, 0, %v2562
    %v2565 = vsub.s32 32, %v2564
    %v2566 = vshll.u32 %v2557, %v2564
    %v2567 = vshrl.u32 %v2549, %v2565
    %v2568 = vor.u32 %v2566, %v2567
    %v2569 = vsub.s32 4294967266, %v2564
    %v2570 = vadd.s32 %v2569, 127
    %v2571 = vshll.u32 %v2570, 23
    %v2572 = vor.u32 4788187, %v2571
    %v2573 = vand.u32 2147483647, %v2572
    %v2575 = vcvt.s32.f32 %v2568
    %v2576 = vmul.f32 %v2575, %v2573
    %v2577 = vxor.u32 %v2576, 2147483648
    %v2578 = vsel %vm2457, %v2577, %v2576
    %v2579 = vsub.s32 4, %v2555
    %v2580 = vsel %vm2457, %v2579, %v2555
    %v2581 = vsel %vm2456, %v851, %v2578
    %v2582 = vsel %vm2456, 0, %v2580
    %v2583 = vmul.f32 %v2581, %v2581
    %v2584 = vmul.f32 %v2583, -0.001358992
    %v2585 = vadd.f32 %v2584, 0.041655596
    %v2586 = vmul.f32 %v2583, %v2585
    %v2587 = vadd.f32 %v2586, -0.4999988
    %v2588 = vmul.f32 %v2583, %v2587
    %v2589 = vadd.f32 1.0, %v2588
    %v2590 = vmul.f32 %v2581, %v2581
    %v2591 = vmul.f32 %v2590, -0.00019511016
    %v2592 = vadd.f32 %v2591, 0.008332121
    %v2593 = vmul.f32 %v2590, %v2592
    %v2594 = vadd.f32 %v2593, -0.16666654
    %v2595 = vmul.f32 %v2590, %v2594
    %v2596 = vadd.f32 %v2595, 1.0
    %v2597 = vmul.f32 %v2596, %v2581
    %vm2598 = vweird.f32 %v851
    %v2599 = vadd.s32 %v2582, 3
    %v2600 = vand.u32 %v2599, 3
    %vm2601 = vcmp.lt.s32.totalorder %v2600, 2
    %vm2602 = vcmp.eq.s32.totalorder %v2600, 0
    %v2603 = vxor.u32 %v2597, 2147483648
    %v2604 = vsel %vm2602, %v2589, %v2603
    %vm2605 = vcmp.eq.s32.totalorder %v2600, 2
    %v2606 = vxor.u32 %v2589, 2147483648
    %v2607 = vsel %vm2605, %v2606, %v2597
    %v2608 = vsel %vm2601, %v2604, %v2607
    %v2609 = vsel %vm2598, nan, %v2608
    %v2610 = vand.u32 2147483647, %v852
    %vm2611 = vcmp.le.f32.partialorder %v2610, 0.7853982
    %vm2612 = vcmp.lt.s32.totalorder %v852, 0
    %v2613 = vand.u32 %v852, 2139095040
    %v2614 = vshrl.u32 %v2613, 23
    %v2615 = vsub.s32 %v2614, 127
    %v2616 = vand.u32 2147483647, %v852
    %v2617 = vand.u32 %v2616, 8388607
    %v2618 = vor.u32 %v2617, 8388608
    %v2619 = vsub.s32 0, %v2618
    %v2620 = vadd.s32 %v2615, 1
    %vm2621 = vcmp.gt.s32.totalorder %v2620, 0
    %v2622 = vsel %vm2621, %v2620, 0
    %v2623 = vshrl.u32 %v2622, 5
    %v2624 = vand.u32 %v2622, 31
    %v2625 = vsub.s32 32, %v2624
    %v2626 = vshrl.u32 683565275, %v2625
    %v2627 = vshll.u32 683565275, %v2624
    %v2628 = vshrl.u32 2475754826, %v2625
    %v2629 = vor.u32 %v2627, %v2628
    %v2630 = vshll.u32 2475754826, %v2624
    %v2631 = vshrl.u32 2131351028, %v2625
    %v2632 = vor.u32 %v2630, %v2631
    %v2633 = vshll.u32 2131351028, %v2624
    %v2634 = vshrl.u32 2102212464, %v2625
    %v2635 = vor.u32 %v2633, %v2634
    %v2636 = vshll.u32 2102212464, %v2624
    %v2637 = vshrl.u32 920167782, %v2625
    %v2638 = vor.u32 %v2636, %v2637
    %v2639 = vshll.u32 920167782, %v2624
    %v2640 = vshrl.u32 1326507024, %v2625
    %v2641 = vor.u32 %v2639, %v2640
    %vm2642 = vcmp.lt.s32.totalorder %v2623, 1
    %vm2643 = vcmp.lt.s32.totalorder %v2623, 2
    %vm2644 = vcmp.lt.s32.totalorder %v2623, 3
    %vm2645 = vcmp.lt.s32.totalorder %v2623, 4
    %v2646 = vsel %vm2642, %v2626, %v2629
    %v2647 = vsel %vm2645, %v2635, 2102212464
    %v2648 = vsel %vm2644, %v2632, %v2647
    %v2649 = vsel %vm2643, %v2646, %v2648
    %v2650 = vsel %vm2642, %v2629, %v2632
    %v2651 = vsel %vm2645, %v2638, 920167782
    %v2652 = vsel %vm2644, %v2635, %v2651
    %v2653 = vsel %vm2643, %v2650, %v2652
    %v2654 = vsel %vm2642, %v2632, %v2635
    %v2655 = vsel %vm2645, %v2641, 1326507024
    %v2656 = vsel %vm2644, %v2638, %v2655
    %v2657 = vsel %vm2643, %v2654, %v2656
    %v2658 = vshll.u32 %v2618, 8
    %v2659 = vand.u32 %v2658, 65535
    %v2660 = vshrl.u32 %v2658, 16
    %v2661 = vand.u32 %v2657, 65535
    %v2662 = vshrl.u32 %v2657, 16
    %v2663 = vmul.u32 %v2659, %v2661
    %v2664 = vmul.u32 %v2659, %v2662
    %v2665 = vmul.u32 %v2660, %v2661
    %v2666 = vmul.u32 %v2660, %v2662
    %v2667 = vshll.u32 %v2664, 16
    %v2668 = vshrl.u32 %v2664, 16
    %v2669 = vshll.u32 %v2665, 16
    %v2670 = vshrl.u32 %v2665, 16
    %vm2671 = vc.u32 %v2663, %v2667
    %v2672 = vsel %vm2671, 1, 0
    %v2673 = vadd.s32 %v2663, %v2667
    %v2674 = vadd.s32 %v2666, %v2672
    %vm2675 = vc.u32 %v2673, %v2669
    %v2676 = vsel %vm2675, 1, 0
    %v2677 = vadd.s32 %v2673, %v2669
    %v2678 = vadd.s32 %v2674, %v2676
    %v2679 = vadd.s32 %v2678, %v2668
    %v2680 = vadd.s32 %v2679, %v2670
    %v2681 = vand.u32 %v2658, 65535
    %v2682 = vshrl.u32 %v2658, 16
    %v2683 = vand.u32 %v2653, 65535
    %v2684 = vshrl.u32 %v2653, 16
    %v2685 = vmul.u32 %v2681, %v2683
    %v2686 = vmul.u32 %v2681, %v2684
    %v2687 = vmul.u32 %v2682, %v2683
    %v2688 = vmul.u32 %v2682, %v2684
    %v2689 = vshll.u32 %v2686, 16
    %v2690 = vshrl.u32 %v2686, 16
    %v2691 = vshll.u32 %v2687, 16
    %v2692 = vshrl.u32 %v2687, 16
    %vm2693 = vc.u32 %v2685, %v2689
    %v2694 = vsel %vm2693, 1, 0
    %v2695 = vadd.s32 %v2685, %v2689
    %v2696 = vadd.s32 %v2688, %v2694
    %vm2697 = vc.u32 %v2695, %v2691
    %v2698 = vsel %vm2697, 1, 0
    %v2699 = vadd.s32 %v2695, %v2691
    %v2700 = vadd.s32 %v2696, %v2698
    %v2701 = vadd.s32 %v2700, %v2690
    %v2702 = vadd.s32 %v2701, %v2692
    %v2703 = vmul.u32 %v2658, %v2649
    %v2704 = vadd.s32 %v2680, %v2699
    %vm2705 = vc.u32 %v2680, %v2699
    %v2706 = vadd.s32 %v2702, 1
    %v2707 = vsel %vm2705, %v2706, %v2702
    %v2708 = vadd.s32 %v2703, %v2707
    %v2709 = vadd.s32 %v2708, 536870912
    %v2710 = vshrl.u32 %v2709, 30
    %v2711 = vshll.u32 %v2710, 30
    %v2712 = vsub.s32 %v2708, %v2711
    %vm2713 = vcmp.lt.s32.totalorder %v2712, 0
    %v2714 = vsub.s32 0, %v2712
    %v2715 = vsel %vm2713, %v2714, %v2712
    %v2716 = vclz %v2715
    %v2717 = vsub.s32 %v2716, 2
    %vm2718 = vcmp.gt.s32.totalorder 0, %v2717
    %v2719 = vsel %vm2718, 0, %v2717
    %v2720 = vsub.s32 32, %v2719
    %v2721 = vshll.u32 %v2712, %v2719
    %v2722 = vshrl.u32 %v2704, %v2720
    %v2723 = vor.u32 %v2721, %v2722
    %v2724 = vsub.s32 4294967266, %v2719
    %v2725 = vadd.s32 %v2724, 127
    %v2726 = vshll.u32 %v2725, 23
    %v2727 = vor.u32 4788187, %v2726
    %v2728 = vand.u32 2147483647, %v2727
    %v2730 = vcvt.s32.f32 %v2723
    %v2731 = vmul.f32 %v2730, %v2728
    %v2732 = vxor.u32 %v2731, 2147483648
    %v2733 = vsel %vm2612, %v2732, %v2731
    %v2734 = vsub.s32 4, %v2710
    %v2735 = vsel %vm2612, %v2734, %v2710
    %v2736 = vsel %vm2611, %v852, %v2733
    %v2737 = vsel %vm2611, 0, %v2735
    %v2738 = vmul.f32 %v2736, %v2736
    %v2739 = vmul.f32 %v2738, -0.001358992
    %v2740 = vadd.f32 %v2739, 0.041655596
    %v2741 = vmul.f32 %v2738, %v2740
    %v2742 = vadd.f32 %v2741, -0.4999988
    %v2743 = vmul.f32 %v2738, %v2742
    %v2744 = vadd.f32 1.0, %v2743
    %v2745 = vmul.f32 %v2736, %v2736
    %v2746 = vmul.f32 %v2745, -0.00019511016
    %v2747 = vadd.f32 %v2746, 0.008332121
    %v2748 = vmul.f32 %v2745, %v2747
    %v2749 = vadd.f32 %v2748, -0.16666654
    %v2750 = vmul.f32 %v2745, %v2749
    %v2751 = vadd.f32 %v2750, 1.0
    %v2752 = vmul.f32 %v2751, %v2736
    %vm2753 = vweird.f32 %v852
    %v2754 = vadd.s32 %v2737, 3
    %v2755 = vand.u32 %v2754, 3
    %vm2756 = vcmp.lt.s32.totalorder %v2755, 2
    %vm2757 = vcmp.eq.s32.totalorder %v2755, 0
    %v2758 = vxor.u32 %v2752, 2147483648
    %v2759 = vsel %vm2757, %v2744, %v2758
    %vm2760 = vcmp.eq.s32.totalorder %v2755, 2
    %v2761 = vxor.u32 %v2744, 2147483648
    %v2762 = vsel %vm2760, %v2761, %v2752
    %v2763 = vsel %vm2756, %v2759, %v2762
    %v2764 = vsel %vm2753, nan, %v2763
    %v2765 = vand.u32 2147483647, %v853
    %vm2766 = vcmp.le.f32.partialorder %v2765, 0.7853982
    %vm2767 = vcmp.lt.s32.totalorder %v853, 0
    %v2768 = vand.u32 %v853, 2139095040
    %v2769 = vshrl.u32 %v2768, 23
    %v2770 = vsub.s32 %v2769, 127
    %v2771 = vand.u32 2147483647, %v853
    %v2772 = vand.u32 %v2771, 8388607
    %v2773 = vor.u32 %v2772, 8388608
    %v2774 = vsub.s32 0, %v2773
    %v2775 = vadd.s32 %v2770, 1
    %vm2776 = vcmp.gt.s32.totalorder %v2775, 0
    %v2777 = vsel %vm2776, %v2775, 0
    %v2778 = vshrl.u32 %v2777, 5
    %v2779 = vand.u32 %v2777, 31
    %v2780 = vsub.s32 32, %v2779
    %v2781 = vshrl.u32 683565275, %v2780
    %v2782 = vshll.u32 683565275, %v2779
    %v2783 = vshrl.u32 2475754826, %v2780
    %v2784 = vor.u32 %v2782, %v2783
    %v2785 = vshll.u32 2475754826, %v2779
    %v2786 = vshrl.u32 2131351028, %v2780
    %v2787 = vor.u32 %v2785, %v2786
    %v2788 = vshll.u32 2131351028, %v2779
    %v2789 = vshrl.u32 2102212464, %v2780
    %v2790 = vor.u32 %v2788, %v2789
    %v2791 = vshll.u32 2102212464, %v2779
    %v2792 = vshrl.u32 920167782, %v2780
    %v2793 = vor.u32 %v2791, %v2792
    %v2794 = vshll.u32 920167782, %v2779
    %v2795 = vshrl.u32 1326507024, %v2780
    %v2796 = vor.u32 %v2794, %v2795
    %vm2797 = vcmp.lt.s32.totalorder %v2778, 1
    %vm2798 = vcmp.lt.s32.totalorder %v2778, 2
    %vm2799 = vcmp.lt.s32.totalorder %v2778, 3
    %vm2800 = vcmp.lt.s32.totalorder %v2778, 4
    %v2801 = vsel %vm2797, %v2781, %v2784
    %v2802 = vsel %vm2800, %v2790, 2102212464
    %v2803 = vsel %vm2799, %v2787, %v2802
    %v2804 = vsel %vm2798, %v2801, %v2803
    %v2805 = vsel %vm2797, %v2784, %v2787
    %v2806 = vsel %vm2800, %v2793, 920167782
    %v2807 = vsel %vm2799, %v2790, %v2806
    %v2808 = vsel %vm2798, %v2805, %v2807
    %v2809 = vsel %vm2797, %v2787, %v2790
    %v2810 = vsel %vm2800, %v2796, 1326507024
    %v2811 = vsel %vm2799, %v2793, %v2810
    %v2812 = vsel %vm2798, %v2809, %v2811
    %v2813 = vshll.u32 %v2773, 8
    %v2814 = vand.u32 %v2813, 65535
    %v2815 = vshrl.u32 %v2813, 16
    %v2816 = vand.u32 %v2812, 65535
    %v2817 = vshrl.u32 %v2812, 16
    %v2818 = vmul.u32 %v2814, %v2816
    %v2819 = vmul.u32 %v2814, %v2817
    %v2820 = vmul.u32 %v2815, %v2816
    %v2821 = vmul.u32 %v2815, %v2817
    %v2822 = vshll.u32 %v2819, 16
    %v2823 = vshrl.u32 %v2819, 16
    %v2824 = vshll.u32 %v2820, 16
    %v2825 = vshrl.u32 %v2820, 16
    %vm2826 = vc.u32 %v2818, %v2822
    %v2827 = vsel %vm2826, 1, 0
    %v2828 = vadd.s32 %v2818, %v2822
    %v2829 = vadd.s32 %v2821, %v2827
    %vm2830 = vc.u32 %v2828, %v2824
    %v2831 = vsel %vm2830, 1, 0
    %v2832 = vadd.s32 %v2828, %v2824
    %v2833 = vadd.s32 %v2829, %v2831
    %v2834 = vadd.s32 %v2833, %v2823
    %v2835 = vadd.s32 %v2834, %v2825
    %v2836 = vand.u32 %v2813, 65535
    %v2837 = vshrl.u32 %v2813, 16
    %v2838 = vand.u32 %v2808, 65535
    %v2839 = vshrl.u32 %v2808, 16
    %v2840 = vmul.u32 %v2836, %v2838
    %v2841 = vmul.u32 %v2836, %v2839
    %v2842 = vmul.u32 %v2837, %v2838
    %v2843 = vmul.u32 %v2837, %v2839
    %v2844 = vshll.u32 %v2841, 16
    %v2845 = vshrl.u32 %v2841, 16
    %v2846 = vshll.u32 %v2842, 16
    %v2847 = vshrl.u32 %v2842, 16
    %vm2848 = vc.u32 %v2840, %v2844
    %v2849 = vsel %vm2848, 1, 0
    %v2850 = vadd.s32 %v2840, %v2844
    %v2851 = vadd.s32 %v2843, %v2849
    %vm2852 = vc.u32 %v2850, %v2846
    %v2853 = vsel %vm2852, 1, 0
    %v2854 = vadd.s32 %v2850, %v2846
    %v2855 = vadd.s32 %v2851, %v2853
    %v2856 = vadd.s32 %v2855, %v2845
    %v2857 = vadd.s32 %v2856, %v2847
    %v2858 = vmul.u32 %v2813, %v2804
    %v2859 = vadd.s32 %v2835, %v2854
    %vm2860 = vc.u32 %v2835, %v2854
    %v2861 = vadd.s32 %v2857, 1
    %v2862 = vsel %vm2860, %v2861, %v2857
    %v2863 = vadd.s32 %v2858, %v2862
    %v2864 = vadd.s32 %v2863, 536870912
    %v2865 = vshrl.u32 %v2864, 30
    %v2866 = vshll.u32 %v2865, 30
    %v2867 = vsub.s32 %v2863, %v2866
    %vm2868 = vcmp.lt.s32.totalorder %v2867, 0
    %v2869 = vsub.s32 0, %v2867
    %v2870 = vsel %vm2868, %v2869, %v2867
    %v2871 = vclz %v2870
    %v2872 = vsub.s32 %v2871, 2
    %vm2873 = vcmp.gt.s32.totalorder 0, %v2872
    %v2874 = vsel %vm2873, 0, %v2872
    %v2875 = vsub.s32 32, %v2874
    %v2876 = vshll.u32 %v2867, %v2874
    %v2877 = vshrl.u32 %v2859, %v2875
    %v2878 = vor.u32 %v2876, %v2877
    %v2879 = vsub.s32 4294967266, %v2874
    %v2880 = vadd.s32 %v2879, 127
    %v2881 = vshll.u32 %v2880, 23
    %v2882 = vor.u32 4788187, %v2881
    %v2883 = vand.u32 2147483647, %v2882
    %v2885 = vcvt.s32.f32 %v2878
    %v2886 = vmul.f32 %v2885, %v2883
    %v2887 = vxor.u32 %v2886, 2147483648
    %v2888 = vsel %vm2767, %v2887, %v2886
    %v2889 = vsub.s32 4, %v2865
    %v2890 = vsel %vm2767, %v2889, %v2865
    %v2891 = vsel %vm2766, %v853, %v2888
    %v2892 = vsel %vm2766, 0, %v2890
    %v2893 = vmul.f32 %v2891, %v2891
    %v2894 = vmul.f32 %v2893, -0.001358992
    %v2895 = vadd.f32 %v2894, 0.041655596
    %v2896 = vmul.f32 %v2893, %v2895
    %v2897 = vadd.f32 %v2896, -0.4999988
    %v2898 = vmul.f32 %v2893, %v2897
    %v2899 = vadd.f32 1.0, %v2898
    %v2900 = vmul.f32 %v2891, %v2891
    %v2901 = vmul.f32 %v2900, -0.00019511016
    %v2902 = vadd.f32 %v2901, 0.008332121
    %v2903 = vmul.f32 %v2900, %v2902
    %v2904 = vadd.f32 %v2903, -0.16666654
    %v2905 = vmul.f32 %v2900, %v2904
    %v2906 = vadd.f32 %v2905, 1.0
    %v2907 = vmul.f32 %v2906, %v2891
    %vm2908 = vweird.f32 %v853
    %v2909 = vadd.s32 %v2892, 3
    %v2910 = vand.u32 %v2909, 3
    %vm2911 = vcmp.lt.s32.totalorder %v2910, 2
    %vm2912 = vcmp.eq.s32.totalorder %v2910, 0
    %v2913 = vxor.u32 %v2907, 2147483648
    %v2914 = vsel %vm2912, %v2899, %v2913
    %vm2915 = vcmp.eq.s32.totalorder %v2910, 2
    %v2916 = vxor.u32 %v2899, 2147483648
    %v2917 = vsel %vm2915, %v2916, %v2907
    %v2918 = vsel %vm2911, %v2914, %v2917
    %v2919 = vsel %vm2908, nan, %v2918
    %v2920 = vand.u32 2147483647, %v854
    %vm2921 = vcmp.le.f32.partialorder %v2920, 0.7853982
    %vm2922 = vcmp.lt.s32.totalorder %v854, 0
    %v2923 = vand.u32 %v854, 2139095040
    %v2924 = vshrl.u32 %v2923, 23
    %v2925 = vsub.s32 %v2924, 127
    %v2926 = vand.u32 2147483647, %v854
    %v2927 = vand.u32 %v2926, 8388607
    %v2928 = vor.u32 %v2927, 8388608
    %v2929 = vsub.s32 0, %v2928
    %v2930 = vadd.s32 %v2925, 1
    %vm2931 = vcmp.gt.s32.totalorder %v2930, 0
    %v2932 = vsel %vm2931, %v2930, 0
    %v2933 = vshrl.u32 %v2932, 5
    %v2934 = vand.u32 %v2932, 31
    %v2935 = vsub.s32 32, %v2934
    %v2936 = vshrl.u32 683565275, %v2935
    %v2937 = vshll.u32 683565275, %v2934
    %v2938 = vshrl.u32 2475754826, %v2935
    %v2939 = vor.u32 %v2937, %v2938
    %v2940 = vshll.u32 2475754826, %v2934
    %v2941 = vshrl.u32 2131351028, %v2935
    %v2942 = vor.u32 %v2940, %v2941
    %v2943 = vshll.u32 2131351028, %v2934
    %v2944 = vshrl.u32 2102212464, %v2935
    %v2945 = vor.u32 %v2943, %v2944
    %v2946 = vshll.u32 2102212464, %v2934
    %v2947 = vshrl.u32 920167782, %v2935
    %v2948 = vor.u32 %v2946, %v2947
    %v2949 = vshll.u32 920167782, %v2934
    %v2950 = vshrl.u32 1326507024, %v2935
    %v2951 = vor.u32 %v2949, %v2950
    %vm2952 = vcmp.lt.s32.totalorder %v2933, 1
    %vm2953 = vcmp.lt.s32.totalorder %v2933, 2
    %vm2954 = vcmp.lt.s32.totalorder %v2933, 3
    %vm2955 = vcmp.lt.s32.totalorder %v2933, 4
    %v2956 = vsel %vm2952, %v2936, %v2939
    %v2957 = vsel %vm2955, %v2945, 2102212464
    %v2958 = vsel %vm2954, %v2942, %v2957
    %v2959 = vsel %vm2953, %v2956, %v2958
    %v2960 = vsel %vm2952, %v2939, %v2942
    %v2961 = vsel %vm2955, %v2948, 920167782
    %v2962 = vsel %vm2954, %v2945, %v2961
    %v2963 = vsel %vm2953, %v2960, %v2962
    %v2964 = vsel %vm2952, %v2942, %v2945
    %v2965 = vsel %vm2955, %v2951, 1326507024
    %v2966 = vsel %vm2954, %v2948, %v2965
    %v2967 = vsel %vm2953, %v2964, %v2966
    %v2968 = vshll.u32 %v2928, 8
    %v2969 = vand.u32 %v2968, 65535
    %v2970 = vshrl.u32 %v2968, 16
    %v2971 = vand.u32 %v2967, 65535
    %v2972 = vshrl.u32 %v2967, 16
    %v2973 = vmul.u32 %v2969, %v2971
    %v2974 = vmul.u32 %v2969, %v2972
    %v2975 = vmul.u32 %v2970, %v2971
    %v2976 = vmul.u32 %v2970, %v2972
    %v2977 = vshll.u32 %v2974, 16
    %v2978 = vshrl.u32 %v2974, 16
    %v2979 = vshll.u32 %v2975, 16
    %v2980 = vshrl.u32 %v2975, 16
    %vm2981 = vc.u32 %v2973, %v2977
    %v2982 = vsel %vm2981, 1, 0
    %v2983 = vadd.s32 %v2973, %v2977
    %v2984 = vadd.s32 %v2976, %v2982
    %vm2985 = vc.u32 %v2983, %v2979
    %v2986 = vsel %vm2985, 1, 0
    %v2987 = vadd.s32 %v2983, %v2979
    %v2988 = vadd.s32 %v2984, %v2986
    %v2989 = vadd.s32 %v2988, %v2978
    %v2990 = vadd.s32 %v2989, %v2980
    %v2991 = vand.u32 %v2968, 65535
    %v2992 = vshrl.u32 %v2968, 16
    %v2993 = vand.u32 %v2963, 65535
    %v2994 = vshrl.u32 %v2963, 16
    %v2995 = vmul.u32 %v2991, %v2993
    %v2996 = vmul.u32 %v2991, %v2994
    %v2997 = vmul.u32 %v2992, %v2993
    %v2998 = vmul.u32 %v2992, %v2994
    %v2999 = vshll.u32 %v2996, 16
    %v3000 = vshrl.u32 %v2996, 16
    %v3001 = vshll.u32 %v2997, 16
    %v3002 = vshrl.u32 %v2997, 16
    %vm3003 = vc.u32 %v2995, %v2999
    %v3004 = vsel %vm3003, 1, 0
    %v3005 = vadd.s32 %v2995, %v2999
    %v3006 = vadd.s32 %v2998, %v3004
    %vm3007 = vc.u32 %v3005, %v3001
    %v3008 = vsel %vm3007, 1, 0
    %v3009 = vadd.s32 %v3005, %v3001
    %v3010 = vadd.s32 %v3006, %v3008
    %v3011 = vadd.s32 %v3010, %v3000
    %v3012 = vadd.s32 %v3011, %v3002
    %v3013 = vmul.u32 %v2968, %v2959
    %v3014 = vadd.s32 %v2990, %v3009
    %vm3015 = vc.u32 %v2990, %v3009
    %v3016 = vadd.s32 %v3012, 1
    %v3017 = vsel %vm3015, %v3016, %v3012
    %v3018 = vadd.s32 %v3013, %v3017
    %v3019 = vadd.s32 %v3018, 536870912
    %v3020 = vshrl.u32 %v3019, 30
    %v3021 = vshll.u32 %v3020, 30
    %v3022 = vsub.s32 %v3018, %v3021
    %vm3023 = vcmp.lt.s32.totalorder %v3022, 0
    %v3024 = vsub.s32 0, %v3022
    %v3025 = vsel %vm3023, %v3024, %v3022
    %v3026 = vclz %v3025
    %v3027 = vsub.s32 %v3026, 2
    %vm3028 = vcmp.gt.s32.totalorder 0, %v3027
    %v3029 = vsel %vm3028, 0, %v3027
    %v3030 = vsub.s32 32, %v3029
    %v3031 = vshll.u32 %v3022, %v3029
    %v3032 = vshrl.u32 %v3014, %v3030
    %v3033 = vor.u32 %v3031, %v3032
    %v3034 = vsub.s32 4294967266, %v3029
    %v3035 = vadd.s32 %v3034, 127
    %v3036 = vshll.u32 %v3035, 23
    %v3037 = vor.u32 4788187, %v3036
    %v3038 = vand.u32 2147483647, %v3037
    %v3040 = vcvt.s32.f32 %v3033
    %v3041 = vmul.f32 %v3040, %v3038
    %v3042 = vxor.u32 %v3041, 2147483648
    %v3043 = vsel %vm2922, %v3042, %v3041
    %v3044 = vsub.s32 4, %v3020
    %v3045 = vsel %vm2922, %v3044, %v3020
    %v3046 = vsel %vm2921, %v854, %v3043
    %v3047 = vsel %vm2921, 0, %v3045
    %v3048 = vmul.f32 %v3046, %v3046
    %v3049 = vmul.f32 %v3048, -0.001358992
    %v3050 = vadd.f32 %v3049, 0.041655596
    %v3051 = vmul.f32 %v3048, %v3050
    %v3052 = vadd.f32 %v3051, -0.4999988
    %v3053 = vmul.f32 %v3048, %v3052
    %v3054 = vadd.f32 1.0, %v3053
    %v3055 = vmul.f32 %v3046, %v3046
    %v3056 = vmul.f32 %v3055, -0.00019511016
    %v3057 = vadd.f32 %v3056, 0.008332121
    %v3058 = vmul.f32 %v3055, %v3057
    %v3059 = vadd.f32 %v3058, -0.16666654
    %v3060 = vmul.f32 %v3055, %v3059
    %v3061 = vadd.f32 %v3060, 1.0
    %v3062 = vmul.f32 %v3061, %v3046
    %vm3063 = vweird.f32 %v854
    %v3064 = vadd.s32 %v3047, 3
    %v3065 = vand.u32 %v3064, 3
    %vm3066 = vcmp.lt.s32.totalorder %v3065, 2
    %vm3067 = vcmp.eq.s32.totalorder %v3065, 0
    %v3068 = vxor.u32 %v3062, 2147483648
    %v3069 = vsel %vm3067, %v3054, %v3068
    %vm3070 = vcmp.eq.s32.totalorder %v3065, 2
    %v3071 = vxor.u32 %v3054, 2147483648
    %v3072 = vsel %vm3070, %v3071, %v3062
    %v3073 = vsel %vm3066, %v3069, %v3072
    %v3074 = vsel %vm3063, nan, %v3073
    %v3075 = vand.u32 2147483647, %v855
    %vm3076 = vcmp.le.f32.partialorder %v3075, 0.7853982
    %vm3077 = vcmp.lt.s32.totalorder %v855, 0
    %v3078 = vand.u32 %v855, 2139095040
    %v3079 = vshrl.u32 %v3078, 23
    %v3080 = vsub.s32 %v3079, 127
    %v3081 = vand.u32 2147483647, %v855
    %v3082 = vand.u32 %v3081, 8388607
    %v3083 = vor.u32 %v3082, 8388608
    %v3084 = vsub.s32 0, %v3083
    %v3085 = vadd.s32 %v3080, 1
    %vm3086 = vcmp.gt.s32.totalorder %v3085, 0
    %v3087 = vsel %vm3086, %v3085, 0
    %v3088 = vshrl.u32 %v3087, 5
    %v3089 = vand.u32 %v3087, 31
    %v3090 = vsub.s32 32, %v3089
    %v3091 = vshrl.u32 683565275, %v3090
    %v3092 = vshll.u32 683565275, %v3089
    %v3093 = vshrl.u32 2475754826, %v3090
    %v3094 = vor.u32 %v3092, %v3093
    %v3095 = vshll.u32 2475754826, %v3089
    %v3096 = vshrl.u32 2131351028, %v3090
    %v3097 = vor.u32 %v3095, %v3096
    %v3098 = vshll.u32 2131351028, %v3089
    %v3099 = vshrl.u32 2102212464, %v3090
    %v3100 = vor.u32 %v3098, %v3099
    %v3101 = vshll.u32 2102212464, %v3089
    %v3102 = vshrl.u32 920167782, %v3090
    %v3103 = vor.u32 %v3101, %v3102
    %v3104 = vshll.u32 920167782, %v3089
    %v3105 = vshrl.u32 1326507024, %v3090
    %v3106 = vor.u32 %v3104, %v3105
    %vm3107 = vcmp.lt.s32.totalorder %v3088, 1
    %vm3108 = vcmp.lt.s32.totalorder %v3088, 2
    %vm3109 = vcmp.lt.s32.totalorder %v3088, 3
    %vm3110 = vcmp.lt.s32.totalorder %v3088, 4
    %v3111 = vsel %vm3107, %v3091, %v3094
    %v3112 = vsel %vm3110, %v3100, 2102212464
    %v3113 = vsel %vm3109, %v3097, %v3112
    %v3114 = vsel %vm3108, %v3111, %v3113
    %v3115 = vsel %vm3107, %v3094, %v3097
    %v3116 = vsel %vm3110, %v3103, 920167782
    %v3117 = vsel %vm3109, %v3100, %v3116
    %v3118 = vsel %vm3108, %v3115, %v3117
    %v3119 = vsel %vm3107, %v3097, %v3100
    %v3120 = vsel %vm3110, %v3106, 1326507024
    %v3121 = vsel %vm3109, %v3103, %v3120
    %v3122 = vsel %vm3108, %v3119, %v3121
    %v3123 = vshll.u32 %v3083, 8
    %v3124 = vand.u32 %v3123, 65535
    %v3125 = vshrl.u32 %v3123, 16
    %v3126 = vand.u32 %v3122, 65535
    %v3127 = vshrl.u32 %v3122, 16
    %v3128 = vmul.u32 %v3124, %v3126
    %v3129 = vmul.u32 %v3124, %v3127
    %v3130 = vmul.u32 %v3125, %v3126
    %v3131 = vmul.u32 %v3125, %v3127
    %v3132 = vshll.u32 %v3129, 16
    %v3133 = vshrl.u32 %v3129, 16
    %v3134 = vshll.u32 %v3130, 16
    %v3135 = vshrl.u32 %v3130, 16
    %vm3136 = vc.u32 %v3128, %v3132
    %v3137 = vsel %vm3136, 1, 0
    %v3138 = vadd.s32 %v3128, %v3132
    %v3139 = vadd.s32 %v3131, %v3137
    %vm3140 = vc.u32 %v3138, %v3134
    %v3141 = vsel %vm3140, 1, 0
    %v3142 = vadd.s32 %v3138, %v3134
    %v3143 = vadd.s32 %v3139, %v3141
    %v3144 = vadd.s32 %v3143, %v3133
    %v3145 = vadd.s32 %v3144, %v3135
    %v3146 = vand.u32 %v3123, 65535
    %v3147 = vshrl.u32 %v3123, 16
    %v3148 = vand.u32 %v3118, 65535
    %v3149 = vshrl.u32 %v3118, 16
    %v3150 = vmul.u32 %v3146, %v3148
    %v3151 = vmul.u32 %v3146, %v3149
    %v3152 = vmul.u32 %v3147, %v3148
    %v3153 = vmul.u32 %v3147, %v3149
    %v3154 = vshll.u32 %v3151, 16
    %v3155 = vshrl.u32 %v3151, 16
    %v3156 = vshll.u32 %v3152, 16
    %v3157 = vshrl.u32 %v3152, 16
    %vm3158 = vc.u32 %v3150, %v3154
    %v3159 = vsel %vm3158, 1, 0
    %v3160 = vadd.s32 %v3150, %v3154
    %v3161 = vadd.s32 %v3153, %v3159
    %vm3162 = vc.u32 %v3160, %v3156
    %v3163 = vsel %vm3162, 1, 0
    %v3164 = vadd.s32 %v3160, %v3156
    %v3165 = vadd.s32 %v3161, %v3163
    %v3166 = vadd.s32 %v3165, %v3155
    %v3167 = vadd.s32 %v3166, %v3157
    %v3168 = vmul.u32 %v3123, %v3114
    %v3169 = vadd.s32 %v3145, %v3164
    %vm3170 = vc.u32 %v3145, %v3164
    %v3171 = vadd.s32 %v3167, 1
    %v3172 = vsel %vm3170, %v3171, %v3167
    %v3173 = vadd.s32 %v3168, %v3172
    %v3174 = vadd.s32 %v3173, 536870912
    %v3175 = vshrl.u32 %v3174, 30
    %v3176 = vshll.u32 %v3175, 30
    %v3177 = vsub.s32 %v3173, %v3176
    %vm3178 = vcmp.lt.s32.totalorder %v3177, 0
    %v3179 = vsub.s32 0, %v3177
    %v3180 = vsel %vm3178, %v3179, %v3177
    %v3181 = vclz %v3180
    %v3182 = vsub.s32 %v3181, 2
    %vm3183 = vcmp.gt.s32.totalorder 0, %v3182
    %v3184 = vsel %vm3183, 0, %v3182
    %v3185 = vsub.s32 32, %v3184
    %v3186 = vshll.u32 %v3177, %v3184
    %v3187 = vshrl.u32 %v3169, %v3185
    %v3188 = vor.u32 %v3186, %v3187
    %v3189 = vsub.s32 4294967266, %v3184
    %v3190 = vadd.s32 %v3189, 127
    %v3191 = vshll.u32 %v3190, 23
    %v3192 = vor.u32 4788187, %v3191
    %v3193 = vand.u32 2147483647, %v3192
    %v3195 = vcvt.s32.f32 %v3188
    %v3196 = vmul.f32 %v3195, %v3193
    %v3197 = vxor.u32 %v3196, 2147483648
    %v3198 = vsel %vm3077, %v3197, %v3196
    %v3199 = vsub.s32 4, %v3175
    %v3200 = vsel %vm3077, %v3199, %v3175
    %v3201 = vsel %vm3076, %v855, %v3198
    %v3202 = vsel %vm3076, 0, %v3200
    %v3203 = vmul.f32 %v3201, %v3201
    %v3204 = vmul.f32 %v3203, -0.001358992
    %v3205 = vadd.f32 %v3204, 0.041655596
    %v3206 = vmul.f32 %v3203, %v3205
    %v3207 = vadd.f32 %v3206, -0.4999988
    %v3208 = vmul.f32 %v3203, %v3207
    %v3209 = vadd.f32 1.0, %v3208
    %v3210 = vmul.f32 %v3201, %v3201
    %v3211 = vmul.f32 %v3210, -0.00019511016
    %v3212 = vadd.f32 %v3211, 0.008332121
    %v3213 = vmul.f32 %v3210, %v3212
    %v3214 = vadd.f32 %v3213, -0.16666654
    %v3215 = vmul.f32 %v3210, %v3214
    %v3216 = vadd.f32 %v3215, 1.0
    %v3217 = vmul.f32 %v3216, %v3201
    %vm3218 = vweird.f32 %v855
    %v3219 = vadd.s32 %v3202, 3
    %v3220 = vand.u32 %v3219, 3
    %vm3221 = vcmp.lt.s32.totalorder %v3220, 2
    %vm3222 = vcmp.eq.s32.totalorder %v3220, 0
    %v3223 = vxor.u32 %v3217, 2147483648
    %v3224 = vsel %vm3222, %v3209, %v3223
    %vm3225 = vcmp.eq.s32.totalorder %v3220, 2
    %v3226 = vxor.u32 %v3209, 2147483648
    %v3227 = vsel %vm3225, %v3226, %v3217
    %v3228 = vsel %vm3221, %v3224, %v3227
    %v3229 = vsel %vm3218, nan, %v3228
    %v3230 = vand.u32 2147483647, %v856
    %vm3231 = vcmp.le.f32.partialorder %v3230, 0.7853982
    %vm3232 = vcmp.lt.s32.totalorder %v856, 0
    %v3233 = vand.u32 %v856, 2139095040
    %v3234 = vshrl.u32 %v3233, 23
    %v3235 = vsub.s32 %v3234, 127
    %v3236 = vand.u32 2147483647, %v856
    %v3237 = vand.u32 %v3236, 8388607
    %v3238 = vor.u32 %v3237, 8388608
    %v3239 = vsub.s32 0, %v3238
    %v3240 = vadd.s32 %v3235, 1
    %vm3241 = vcmp.gt.s32.totalorder %v3240, 0
    %v3242 = vsel %vm3241, %v3240, 0
    %v3243 = vshrl.u32 %v3242, 5
    %v3244 = vand.u32 %v3242, 31
    %v3245 = vsub.s32 32, %v3244
    %v3246 = vshrl.u32 683565275, %v3245
    %v3247 = vshll.u32 683565275, %v3244
    %v3248 = vshrl.u32 2475754826, %v3245
    %v3249 = vor.u32 %v3247, %v3248
    %v3250 = vshll.u32 2475754826, %v3244
    %v3251 = vshrl.u32 2131351028, %v3245
    %v3252 = vor.u32 %v3250, %v3251
    %v3253 = vshll.u32 2131351028, %v3244
    %v3254 = vshrl.u32 2102212464, %v3245
    %v3255 = vor.u32 %v3253, %v3254
    %v3256 = vshll.u32 2102212464, %v3244
    %v3257 = vshrl.u32 920167782, %v3245
    %v3258 = vor.u32 %v3256, %v3257
    %v3259 = vshll.u32 920167782, %v3244
    %v3260 = vshrl.u32 1326507024, %v3245
    %v3261 = vor.u32 %v3259, %v3260
    %vm3262 = vcmp.lt.s32.totalorder %v3243, 1
    %vm3263 = vcmp.lt.s32.totalorder %v3243, 2
    %vm3264 = vcmp.lt.s32.totalorder %v3243, 3
    %vm3265 = vcmp.lt.s32.totalorder %v3243, 4
    %v3266 = vsel %vm3262, %v3246, %v3249
    %v3267 = vsel %vm3265, %v3255, 2102212464
    %v3268 = vsel %vm3264, %v3252, %v3267
    %v3269 = vsel %vm3263, %v3266, %v3268
    %v3270 = vsel %vm3262, %v3249, %v3252
    %v3271 = vsel %vm3265, %v3258, 920167782
    %v3272 = vsel %vm3264, %v3255, %v3271
    %v3273 = vsel %vm3263, %v3270, %v3272
    %v3274 = vsel %vm3262, %v3252, %v3255
    %v3275 = vsel %vm3265, %v3261, 1326507024
    %v3276 = vsel %vm3264, %v3258, %v3275
    %v3277 = vsel %vm3263, %v3274, %v3276
    %v3278 = vshll.u32 %v3238, 8
    %v3279 = vand.u32 %v3278, 65535
    %v3280 = vshrl.u32 %v3278, 16
    %v3281 = vand.u32 %v3277, 65535
    %v3282 = vshrl.u32 %v3277, 16
    %v3283 = vmul.u32 %v3279, %v3281
    %v3284 = vmul.u32 %v3279, %v3282
    %v3285 = vmul.u32 %v3280, %v3281
    %v3286 = vmul.u32 %v3280, %v3282
    %v3287 = vshll.u32 %v3284, 16
    %v3288 = vshrl.u32 %v3284, 16
    %v3289 = vshll.u32 %v3285, 16
    %v3290 = vshrl.u32 %v3285, 16
    %vm3291 = vc.u32 %v3283, %v3287
    %v3292 = vsel %vm3291, 1, 0
    %v3293 = vadd.s32 %v3283, %v3287
    %v3294 = vadd.s32 %v3286, %v3292
    %vm3295 = vc.u32 %v3293, %v3289
    %v3296 = vsel %vm3295, 1, 0
    %v3297 = vadd.s32 %v3293, %v3289
    %v3298 = vadd.s32 %v3294, %v3296
    %v3299 = vadd.s32 %v3298, %v3288
    %v3300 = vadd.s32 %v3299, %v3290
    %v3301 = vand.u32 %v3278, 65535
    %v3302 = vshrl.u32 %v3278, 16
    %v3303 = vand.u32 %v3273, 65535
    %v3304 = vshrl.u32 %v3273, 16
    %v3305 = vmul.u32 %v3301, %v3303
    %v3306 = vmul.u32 %v3301, %v3304
    %v3307 = vmul.u32 %v3302, %v3303
    %v3308 = vmul.u32 %v3302, %v3304
    %v3309 = vshll.u32 %v3306, 16
    %v3310 = vshrl.u32 %v3306, 16
    %v3311 = vshll.u32 %v3307, 16
    %v3312 = vshrl.u32 %v3307, 16
    %vm3313 = vc.u32 %v3305, %v3309
    %v3314 = vsel %vm3313, 1, 0
    %v3315 = vadd.s32 %v3305, %v3309
    %v3316 = vadd.s32 %v3308, %v3314
    %vm3317 = vc.u32 %v3315, %v3311
    %v3318 = vsel %vm3317, 1, 0
    %v3319 = vadd.s32 %v3315, %v3311
    %v3320 = vadd.s32 %v3316, %v3318
    %v3321 = vadd.s32 %v3320, %v3310
    %v3322 = vadd.s32 %v3321, %v3312
    %v3323 = vmul.u32 %v3278, %v3269
    %v3324 = vadd.s32 %v3300, %v3319
    %vm3325 = vc.u32 %v3300, %v3319
    %v3326 = vadd.s32 %v3322, 1
    %v3327 = vsel %vm3325, %v3326, %v3322
    %v3328 = vadd.s32 %v3323, %v3327
    %v3329 = vadd.s32 %v3328, 536870912
    %v3330 = vshrl.u32 %v3329, 30
    %v3331 = vshll.u32 %v3330, 30
    %v3332 = vsub.s32 %v3328, %v3331
    %vm3333 = vcmp.lt.s32.totalorder %v3332, 0
    %v3334 = vsub.s32 0, %v3332
    %v3335 = vsel %vm3333, %v3334, %v3332
    %v3336 = vclz %v3335
    %v3337 = vsub.s32 %v3336, 2
    %vm3338 = vcmp.gt.s32.totalorder 0, %v3337
    %v3339 = vsel %vm3338, 0, %v3337
    %v3340 = vsub.s32 32, %v3339
    %v3341 = vshll.u32 %v3332, %v3339
    %v3342 = vshrl.u32 %v3324, %v3340
    %v3343 = vor.u32 %v3341, %v3342
    %v3344 = vsub.s32 4294967266, %v3339
    %v3345 = vadd.s32 %v3344, 127
    %v3346 = vshll.u32 %v3345, 23
    %v3347 = vor.u32 4788187, %v3346
    %v3348 = vand.u32 2147483647, %v3347
    %v3350 = vcvt.s32.f32 %v3343
    %v3351 = vmul.f32 %v3350, %v3348
    %v3352 = vxor.u32 %v3351, 2147483648
    %v3353 = vsel %vm3232, %v3352, %v3351
    %v3354 = vsub.s32 4, %v3330
    %v3355 = vsel %vm3232, %v3354, %v3330
    %v3356 = vsel %vm3231, %v856, %v3353
    %v3357 = vsel %vm3231, 0, %v3355
    %v3358 = vmul.f32 %v3356, %v3356
    %v3359 = vmul.f32 %v3358, -0.001358992
    %v3360 = vadd.f32 %v3359, 0.041655596
    %v3361 = vmul.f32 %v3358, %v3360
    %v3362 = vadd.f32 %v3361, -0.4999988
    %v3363 = vmul.f32 %v3358, %v3362
    %v3364 = vadd.f32 1.0, %v3363
    %v3365 = vmul.f32 %v3356, %v3356
    %v3366 = vmul.f32 %v3365, -0.00019511016
    %v3367 = vadd.f32 %v3366, 0.008332121
    %v3368 = vmul.f32 %v3365, %v3367
    %v3369 = vadd.f32 %v3368, -0.16666654
    %v3370 = vmul.f32 %v3365, %v3369
    %v3371 = vadd.f32 %v3370, 1.0
    %v3372 = vmul.f32 %v3371, %v3356
    %vm3373 = vweird.f32 %v856
    %v3374 = vadd.s32 %v3357, 3
    %v3375 = vand.u32 %v3374, 3
    %vm3376 = vcmp.lt.s32.totalorder %v3375, 2
    %vm3377 = vcmp.eq.s32.totalorder %v3375, 0
    %v3378 = vxor.u32 %v3372, 2147483648
    %v3379 = vsel %vm3377, %v3364, %v3378
    %vm3380 = vcmp.eq.s32.totalorder %v3375, 2
    %v3381 = vxor.u32 %v3364, 2147483648
    %v3382 = vsel %vm3380, %v3381, %v3372
    %v3383 = vsel %vm3376, %v3379, %v3382
    %v3384 = vsel %vm3373, nan, %v3383
    %v3385 = vand.u32 2147483647, %v857
    %vm3386 = vcmp.le.f32.partialorder %v3385, 0.7853982
    %vm3387 = vcmp.lt.s32.totalorder %v857, 0
    %v3388 = vand.u32 %v857, 2139095040
    %v3389 = vshrl.u32 %v3388, 23
    %v3390 = vsub.s32 %v3389, 127
    %v3391 = vand.u32 2147483647, %v857
    %v3392 = vand.u32 %v3391, 8388607
    %v3393 = vor.u32 %v3392, 8388608
    %v3394 = vsub.s32 0, %v3393
    %v3395 = vadd.s32 %v3390, 1
    %vm3396 = vcmp.gt.s32.totalorder %v3395, 0
    %v3397 = vsel %vm3396, %v3395, 0
    %v3398 = vshrl.u32 %v3397, 5
    %v3399 = vand.u32 %v3397, 31
    %v3400 = vsub.s32 32, %v3399
    %v3401 = vshrl.u32 683565275, %v3400
    %v3402 = vshll.u32 683565275, %v3399
    %v3403 = vshrl.u32 2475754826, %v3400
    %v3404 = vor.u32 %v3402, %v3403
    %v3405 = vshll.u32 2475754826, %v3399
    %v3406 = vshrl.u32 2131351028, %v3400
    %v3407 = vor.u32 %v3405, %v3406
    %v3408 = vshll.u32 2131351028, %v3399
    %v3409 = vshrl.u32 2102212464, %v3400
    %v3410 = vor.u32 %v3408, %v3409
    %v3411 = vshll.u32 2102212464, %v3399
    %v3412 = vshrl.u32 920167782, %v3400
    %v3413 = vor.u32 %v3411, %v3412
    %v3414 = vshll.u32 920167782, %v3399
    %v3415 = vshrl.u32 1326507024, %v3400
    %v3416 = vor.u32 %v3414, %v3415
    %vm3417 = vcmp.lt.s32.totalorder %v3398, 1
    %vm3418 = vcmp.lt.s32.totalorder %v3398, 2
    %vm3419 = vcmp.lt.s32.totalorder %v3398, 3
    %vm3420 = vcmp.lt.s32.totalorder %v3398, 4
    %v3421 = vsel %vm3417, %v3401, %v3404
    %v3422 = vsel %vm3420, %v3410, 2102212464
    %v3423 = vsel %vm3419, %v3407, %v3422
    %v3424 = vsel %vm3418, %v3421, %v3423
    %v3425 = vsel %vm3417, %v3404, %v3407
    %v3426 = vsel %vm3420, %v3413, 920167782
    %v3427 = vsel %vm3419, %v3410, %v3426
    %v3428 = vsel %vm3418, %v3425, %v3427
    %v3429 = vsel %vm3417, %v3407, %v3410
    %v3430 = vsel %vm3420, %v3416, 1326507024
    %v3431 = vsel %vm3419, %v3413, %v3430
    %v3432 = vsel %vm3418, %v3429, %v3431
    %v3433 = vshll.u32 %v3393, 8
    %v3434 = vand.u32 %v3433, 65535
    %v3435 = vshrl.u32 %v3433, 16
    %v3436 = vand.u32 %v3432, 65535
    %v3437 = vshrl.u32 %v3432, 16
    %v3438 = vmul.u32 %v3434, %v3436
    %v3439 = vmul.u32 %v3434, %v3437
    %v3440 = vmul.u32 %v3435, %v3436
    %v3441 = vmul.u32 %v3435, %v3437
    %v3442 = vshll.u32 %v3439, 16
    %v3443 = vshrl.u32 %v3439, 16
    %v3444 = vshll.u32 %v3440, 16
    %v3445 = vshrl.u32 %v3440, 16
    %vm3446 = vc.u32 %v3438, %v3442
    %v3447 = vsel %vm3446, 1, 0
    %v3448 = vadd.s32 %v3438, %v3442
    %v3449 = vadd.s32 %v3441, %v3447
    %vm3450 = vc.u32 %v3448, %v3444
    %v3451 = vsel %vm3450, 1, 0
    %v3452 = vadd.s32 %v3448, %v3444
    %v3453 = vadd.s32 %v3449, %v3451
    %v3454 = vadd.s32 %v3453, %v3443
    %v3455 = vadd.s32 %v3454, %v3445
    %v3456 = vand.u32 %v3433, 65535
    %v3457 = vshrl.u32 %v3433, 16
    %v3458 = vand.u32 %v3428, 65535
    %v3459 = vshrl.u32 %v3428, 16
    %v3460 = vmul.u32 %v3456, %v3458
    %v3461 = vmul.u32 %v3456, %v3459
    %v3462 = vmul.u32 %v3457, %v3458
    %v3463 = vmul.u32 %v3457, %v3459
    %v3464 = vshll.u32 %v3461, 16
    %v3465 = vshrl.u32 %v3461, 16
    %v3466 = vshll.u32 %v3462, 16
    %v3467 = vshrl.u32 %v3462, 16
    %vm3468 = vc.u32 %v3460, %v3464
    %v3469 = vsel %vm3468, 1, 0
    %v3470 = vadd.s32 %v3460, %v3464
    %v3471 = vadd.s32 %v3463, %v3469
    %vm3472 = vc.u32 %v3470, %v3466
    %v3473 = vsel %vm3472, 1, 0
    %v3474 = vadd.s32 %v3470, %v3466
    %v3475 = vadd.s32 %v3471, %v3473
    %v3476 = vadd.s32 %v3475, %v3465
    %v3477 = vadd.s32 %v3476, %v3467
    %v3478 = vmul.u32 %v3433, %v3424
    %v3479 = vadd.s32 %v3455, %v3474
    %vm3480 = vc.u32 %v3455, %v3474
    %v3481 = vadd.s32 %v3477, 1
    %v3482 = vsel %vm3480, %v3481, %v3477
    %v3483 = vadd.s32 %v3478, %v3482
    %v3484 = vadd.s32 %v3483, 536870912
    %v3485 = vshrl.u32 %v3484, 30
    %v3486 = vshll.u32 %v3485, 30
    %v3487 = vsub.s32 %v3483, %v3486
    %vm3488 = vcmp.lt.s32.totalorder %v3487, 0
    %v3489 = vsub.s32 0, %v3487
    %v3490 = vsel %vm3488, %v3489, %v3487
    %v3491 = vclz %v3490
    %v3492 = vsub.s32 %v3491, 2
    %vm3493 = vcmp.gt.s32.totalorder 0, %v3492
    %v3494 = vsel %vm3493, 0, %v3492
    %v3495 = vsub.s32 32, %v3494
    %v3496 = vshll.u32 %v3487, %v3494
    %v3497 = vshrl.u32 %v3479, %v3495
    %v3498 = vor.u32 %v3496, %v3497
    %v3499 = vsub.s32 4294967266, %v3494
    %v3500 = vadd.s32 %v3499, 127
    %v3501 = vshll.u32 %v3500, 23
    %v3502 = vor.u32 4788187, %v3501
    %v3503 = vand.u32 2147483647, %v3502
    %v3505 = vcvt.s32.f32 %v3498
    %v3506 = vmul.f32 %v3505, %v3503
    %v3507 = vxor.u32 %v3506, 2147483648
    %v3508 = vsel %vm3387, %v3507, %v3506
    %v3509 = vsub.s32 4, %v3485
    %v3510 = vsel %vm3387, %v3509, %v3485
    %v3511 = vsel %vm3386, %v857, %v3508
    %v3512 = vsel %vm3386, 0, %v3510
    %v3513 = vmul.f32 %v3511, %v3511
    %v3514 = vmul.f32 %v3513, -0.001358992
    %v3515 = vadd.f32 %v3514, 0.041655596
    %v3516 = vmul.f32 %v3513, %v3515
    %v3517 = vadd.f32 %v3516, -0.4999988
    %v3518 = vmul.f32 %v3513, %v3517
    %v3519 = vadd.f32 1.0, %v3518
    %v3520 = vmul.f32 %v3511, %v3511
    %v3521 = vmul.f32 %v3520, -0.00019511016
    %v3522 = vadd.f32 %v3521, 0.008332121
    %v3523 = vmul.f32 %v3520, %v3522
    %v3524 = vadd.f32 %v3523, -0.16666654
    %v3525 = vmul.f32 %v3520, %v3524
    %v3526 = vadd.f32 %v3525, 1.0
    %v3527 = vmul.f32 %v3526, %v3511
    %vm3528 = vweird.f32 %v857
    %v3529 = vadd.s32 %v3512, 3
    %v3530 = vand.u32 %v3529, 3
    %vm3531 = vcmp.lt.s32.totalorder %v3530, 2
    %vm3532 = vcmp.eq.s32.totalorder %v3530, 0
    %v3533 = vxor.u32 %v3527, 2147483648
    %v3534 = vsel %vm3532, %v3519, %v3533
    %vm3535 = vcmp.eq.s32.totalorder %v3530, 2
    %v3536 = vxor.u32 %v3519, 2147483648
    %v3537 = vsel %vm3535, %v3536, %v3527
    %v3538 = vsel %vm3531, %v3534, %v3537
    %v3539 = vsel %vm3528, nan, %v3538
    %v3540 = vand.u32 2147483647, %v858
    %vm3541 = vcmp.le.f32.partialorder %v3540, 0.7853982
    %vm3542 = vcmp.lt.s32.totalorder %v858, 0
    %v3543 = vand.u32 %v858, 2139095040
    %v3544 = vshrl.u32 %v3543, 23
    %v3545 = vsub.s32 %v3544, 127
    %v3546 = vand.u32 2147483647, %v858
    %v3547 = vand.u32 %v3546, 8388607
    %v3548 = vor.u32 %v3547, 8388608
    %v3549 = vsub.s32 0, %v3548
    %v3550 = vadd.s32 %v3545, 1
    %vm3551 = vcmp.gt.s32.totalorder %v3550, 0
    %v3552 = vsel %vm3551, %v3550, 0
    %v3553 = vshrl.u32 %v3552, 5
    %v3554 = vand.u32 %v3552, 31
    %v3555 = vsub.s32 32, %v3554
    %v3556 = vshrl.u32 683565275, %v3555
    %v3557 = vshll.u32 683565275, %v3554
    %v3558 = vshrl.u32 2475754826, %v3555
    %v3559 = vor.u32 %v3557, %v3558
    %v3560 = vshll.u32 2475754826, %v3554
    %v3561 = vshrl.u32 2131351028, %v3555
    %v3562 = vor.u32 %v3560, %v3561
    %v3563 = vshll.u32 2131351028, %v3554
    %v3564 = vshrl.u32 2102212464, %v3555
    %v3565 = vor.u32 %v3563, %v3564
    %v3566 = vshll.u32 2102212464, %v3554
    %v3567 = vshrl.u32 920167782, %v3555
    %v3568 = vor.u32 %v3566, %v3567
    %v3569 = vshll.u32 920167782, %v3554
    %v3570 = vshrl.u32 1326507024, %v3555
    %v3571 = vor.u32 %v3569, %v3570
    %vm3572 = vcmp.lt.s32.totalorder %v3553, 1
    %vm3573 = vcmp.lt.s32.totalorder %v3553, 2
    %vm3574 = vcmp.lt.s32.totalorder %v3553, 3
    %vm3575 = vcmp.lt.s32.totalorder %v3553, 4
    %v3576 = vsel %vm3572, %v3556, %v3559
    %v3577 = vsel %vm3575, %v3565, 2102212464
    %v3578 = vsel %vm3574, %v3562, %v3577
    %v3579 = vsel %vm3573, %v3576, %v3578
    %v3580 = vsel %vm3572, %v3559, %v3562
    %v3581 = vsel %vm3575, %v3568, 920167782
    %v3582 = vsel %vm3574, %v3565, %v3581
    %v3583 = vsel %vm3573, %v3580, %v3582
    %v3584 = vsel %vm3572, %v3562, %v3565
    %v3585 = vsel %vm3575, %v3571, 1326507024
    %v3586 = vsel %vm3574, %v3568, %v3585
    %v3587 = vsel %vm3573, %v3584, %v3586
    %v3588 = vshll.u32 %v3548, 8
    %v3589 = vand.u32 %v3588, 65535
    %v3590 = vshrl.u32 %v3588, 16
    %v3591 = vand.u32 %v3587, 65535
    %v3592 = vshrl.u32 %v3587, 16
    %v3593 = vmul.u32 %v3589, %v3591
    %v3594 = vmul.u32 %v3589, %v3592
    %v3595 = vmul.u32 %v3590, %v3591
    %v3596 = vmul.u32 %v3590, %v3592
    %v3597 = vshll.u32 %v3594, 16
    %v3598 = vshrl.u32 %v3594, 16
    %v3599 = vshll.u32 %v3595, 16
    %v3600 = vshrl.u32 %v3595, 16
    %vm3601 = vc.u32 %v3593, %v3597
    %v3602 = vsel %vm3601, 1, 0
    %v3603 = vadd.s32 %v3593, %v3597
    %v3604 = vadd.s32 %v3596, %v3602
    %vm3605 = vc.u32 %v3603, %v3599
    %v3606 = vsel %vm3605, 1, 0
    %v3607 = vadd.s32 %v3603, %v3599
    %v3608 = vadd.s32 %v3604, %v3606
    %v3609 = vadd.s32 %v3608, %v3598
    %v3610 = vadd.s32 %v3609, %v3600
    %v3611 = vand.u32 %v3588, 65535
    %v3612 = vshrl.u32 %v3588, 16
    %v3613 = vand.u32 %v3583, 65535
    %v3614 = vshrl.u32 %v3583, 16
    %v3615 = vmul.u32 %v3611, %v3613
    %v3616 = vmul.u32 %v3611, %v3614
    %v3617 = vmul.u32 %v3612, %v3613
    %v3618 = vmul.u32 %v3612, %v3614
    %v3619 = vshll.u32 %v3616, 16
    %v3620 = vshrl.u32 %v3616, 16
    %v3621 = vshll.u32 %v3617, 16
    %v3622 = vshrl.u32 %v3617, 16
    %vm3623 = vc.u32 %v3615, %v3619
    %v3624 = vsel %vm3623, 1, 0
    %v3625 = vadd.s32 %v3615, %v3619
    %v3626 = vadd.s32 %v3618, %v3624
    %vm3627 = vc.u32 %v3625, %v3621
    %v3628 = vsel %vm3627, 1, 0
    %v3629 = vadd.s32 %v3625, %v3621
    %v3630 = vadd.s32 %v3626, %v3628
    %v3631 = vadd.s32 %v3630, %v3620
    %v3632 = vadd.s32 %v3631, %v3622
    %v3633 = vmul.u32 %v3588, %v3579
    %v3634 = vadd.s32 %v3610, %v3629
    %vm3635 = vc.u32 %v3610, %v3629
    %v3636 = vadd.s32 %v3632, 1
    %v3637 = vsel %vm3635, %v3636, %v3632
    %v3638 = vadd.s32 %v3633, %v3637
    %v3639 = vadd.s32 %v3638, 536870912
    %v3640 = vshrl.u32 %v3639, 30
    %v3641 = vshll.u32 %v3640, 30
    %v3642 = vsub.s32 %v3638, %v3641
    %vm3643 = vcmp.lt.s32.totalorder %v3642, 0
    %v3644 = vsub.s32 0, %v3642
    %v3645 = vsel %vm3643, %v3644, %v3642
    %v3646 = vclz %v3645
    %v3647 = vsub.s32 %v3646, 2
    %vm3648 = vcmp.gt.s32.totalorder 0, %v3647
    %v3649 = vsel %vm3648, 0, %v3647
    %v3650 = vsub.s32 32, %v3649
    %v3651 = vshll.u32 %v3642, %v3649
    %v3652 = vshrl.u32 %v3634, %v3650
    %v3653 = vor.u32 %v3651, %v3652
    %v3654 = vsub.s32 4294967266, %v3649
    %v3655 = vadd.s32 %v3654, 127
    %v3656 = vshll.u32 %v3655, 23
    %v3657 = vor.u32 4788187, %v3656
    %v3658 = vand.u32 2147483647, %v3657
    %v3660 = vcvt.s32.f32 %v3653
    %v3661 = vmul.f32 %v3660, %v3658
    %v3662 = vxor.u32 %v3661, 2147483648
    %v3663 = vsel %vm3542, %v3662, %v3661
    %v3664 = vsub.s32 4, %v3640
    %v3665 = vsel %vm3542, %v3664, %v3640
    %v3666 = vsel %vm3541, %v858, %v3663
    %v3667 = vsel %vm3541, 0, %v3665
    %v3668 = vmul.f32 %v3666, %v3666
    %v3669 = vmul.f32 %v3668, -0.001358992
    %v3670 = vadd.f32 %v3669, 0.041655596
    %v3671 = vmul.f32 %v3668, %v3670
    %v3672 = vadd.f32 %v3671, -0.4999988
    %v3673 = vmul.f32 %v3668, %v3672
    %v3674 = vadd.f32 1.0, %v3673
    %v3675 = vmul.f32 %v3666, %v3666
    %v3676 = vmul.f32 %v3675, -0.00019511016
    %v3677 = vadd.f32 %v3676, 0.008332121
    %v3678 = vmul.f32 %v3675, %v3677
    %v3679 = vadd.f32 %v3678, -0.16666654
    %v3680 = vmul.f32 %v3675, %v3679
    %v3681 = vadd.f32 %v3680, 1.0
    %v3682 = vmul.f32 %v3681, %v3666
    %vm3683 = vweird.f32 %v858
    %v3684 = vadd.s32 %v3667, 3
    %v3685 = vand.u32 %v3684, 3
    %vm3686 = vcmp.lt.s32.totalorder %v3685, 2
    %vm3687 = vcmp.eq.s32.totalorder %v3685, 0
    %v3688 = vxor.u32 %v3682, 2147483648
    %v3689 = vsel %vm3687, %v3674, %v3688
    %vm3690 = vcmp.eq.s32.totalorder %v3685, 2
    %v3691 = vxor.u32 %v3674, 2147483648
    %v3692 = vsel %vm3690, %v3691, %v3682
    %v3693 = vsel %vm3686, %v3689, %v3692
    %v3694 = vsel %vm3683, nan, %v3693
    %v3695 = vand.u32 2147483647, %v859
    %vm3696 = vcmp.le.f32.partialorder %v3695, 0.7853982
    %vm3697 = vcmp.lt.s32.totalorder %v859, 0
    %v3698 = vand.u32 %v859, 2139095040
    %v3699 = vshrl.u32 %v3698, 23
    %v3700 = vsub.s32 %v3699, 127
    %v3701 = vand.u32 2147483647, %v859
    %v3702 = vand.u32 %v3701, 8388607
    %v3703 = vor.u32 %v3702, 8388608
    %v3704 = vsub.s32 0, %v3703
    %v3705 = vadd.s32 %v3700, 1
    %vm3706 = vcmp.gt.s32.totalorder %v3705, 0
    %v3707 = vsel %vm3706, %v3705, 0
    %v3708 = vshrl.u32 %v3707, 5
    %v3709 = vand.u32 %v3707, 31
    %v3710 = vsub.s32 32, %v3709
    %v3711 = vshrl.u32 683565275, %v3710
    %v3712 = vshll.u32 683565275, %v3709
    %v3713 = vshrl.u32 2475754826, %v3710
    %v3714 = vor.u32 %v3712, %v3713
    %v3715 = vshll.u32 2475754826, %v3709
    %v3716 = vshrl.u32 2131351028, %v3710
    %v3717 = vor.u32 %v3715, %v3716
    %v3718 = vshll.u32 2131351028, %v3709
    %v3719 = vshrl.u32 2102212464, %v3710
    %v3720 = vor.u32 %v3718, %v3719
    %v3721 = vshll.u32 2102212464, %v3709
    %v3722 = vshrl.u32 920167782, %v3710
    %v3723 = vor.u32 %v3721, %v3722
    %v3724 = vshll.u32 920167782, %v3709
    %v3725 = vshrl.u32 1326507024, %v3710
    %v3726 = vor.u32 %v3724, %v3725
    %vm3727 = vcmp.lt.s32.totalorder %v3708, 1
    %vm3728 = vcmp.lt.s32.totalorder %v3708, 2
    %vm3729 = vcmp.lt.s32.totalorder %v3708, 3
    %vm3730 = vcmp.lt.s32.totalorder %v3708, 4
    %v3731 = vsel %vm3727, %v3711, %v3714
    %v3732 = vsel %vm3730, %v3720, 2102212464
    %v3733 = vsel %vm3729, %v3717, %v3732
    %v3734 = vsel %vm3728, %v3731, %v3733
    %v3735 = vsel %vm3727, %v3714, %v3717
    %v3736 = vsel %vm3730, %v3723, 920167782
    %v3737 = vsel %vm3729, %v3720, %v3736
    %v3738 = vsel %vm3728, %v3735, %v3737
    %v3739 = vsel %vm3727, %v3717, %v3720
    %v3740 = vsel %vm3730, %v3726, 1326507024
    %v3741 = vsel %vm3729, %v3723, %v3740
    %v3742 = vsel %vm3728, %v3739, %v3741
    %v3743 = vshll.u32 %v3703, 8
    %v3744 = vand.u32 %v3743, 65535
    %v3745 = vshrl.u32 %v3743, 16
    %v3746 = vand.u32 %v3742, 65535
    %v3747 = vshrl.u32 %v3742, 16
    %v3748 = vmul.u32 %v3744, %v3746
    %v3749 = vmul.u32 %v3744, %v3747
    %v3750 = vmul.u32 %v3745, %v3746
    %v3751 = vmul.u32 %v3745, %v3747
    %v3752 = vshll.u32 %v3749, 16
    %v3753 = vshrl.u32 %v3749, 16
    %v3754 = vshll.u32 %v3750, 16
    %v3755 = vshrl.u32 %v3750, 16
    %vm3756 = vc.u32 %v3748, %v3752
    %v3757 = vsel %vm3756, 1, 0
    %v3758 = vadd.s32 %v3748, %v3752
    %v3759 = vadd.s32 %v3751, %v3757
    %vm3760 = vc.u32 %v3758, %v3754
    %v3761 = vsel %vm3760, 1, 0
    %v3762 = vadd.s32 %v3758, %v3754
    %v3763 = vadd.s32 %v3759, %v3761
    %v3764 = vadd.s32 %v3763, %v3753
    %v3765 = vadd.s32 %v3764, %v3755
    %v3766 = vand.u32 %v3743, 65535
    %v3767 = vshrl.u32 %v3743, 16
    %v3768 = vand.u32 %v3738, 65535
    %v3769 = vshrl.u32 %v3738, 16
    %v3770 = vmul.u32 %v3766, %v3768
    %v3771 = vmul.u32 %v3766, %v3769
    %v3772 = vmul.u32 %v3767, %v3768
    %v3773 = vmul.u32 %v3767, %v3769
    %v3774 = vshll.u32 %v3771, 16
    %v3775 = vshrl.u32 %v3771, 16
    %v3776 = vshll.u32 %v3772, 16
    %v3777 = vshrl.u32 %v3772, 16
    %vm3778 = vc.u32 %v3770, %v3774
    %v3779 = vsel %vm3778, 1, 0
    %v3780 = vadd.s32 %v3770, %v3774
    %v3781 = vadd.s32 %v3773, %v3779
    %vm3782 = vc.u32 %v3780, %v3776
    %v3783 = vsel %vm3782, 1, 0
    %v3784 = vadd.s32 %v3780, %v3776
    %v3785 = vadd.s32 %v3781, %v3783
    %v3786 = vadd.s32 %v3785, %v3775
    %v3787 = vadd.s32 %v3786, %v3777
    %v3788 = vmul.u32 %v3743, %v3734
    %v3789 = vadd.s32 %v3765, %v3784
    %vm3790 = vc.u32 %v3765, %v3784
    %v3791 = vadd.s32 %v3787, 1
    %v3792 = vsel %vm3790, %v3791, %v3787
    %v3793 = vadd.s32 %v3788, %v3792
    %v3794 = vadd.s32 %v3793, 536870912
    %v3795 = vshrl.u32 %v3794, 30
    %v3796 = vshll.u32 %v3795, 30
    %v3797 = vsub.s32 %v3793, %v3796
    %vm3798 = vcmp.lt.s32.totalorder %v3797, 0
    %v3799 = vsub.s32 0, %v3797
    %v3800 = vsel %vm3798, %v3799, %v3797
    %v3801 = vclz %v3800
    %v3802 = vsub.s32 %v3801, 2
    %vm3803 = vcmp.gt.s32.totalorder 0, %v3802
    %v3804 = vsel %vm3803, 0, %v3802
    %v3805 = vsub.s32 32, %v3804
    %v3806 = vshll.u32 %v3797, %v3804
    %v3807 = vshrl.u32 %v3789, %v3805
    %v3808 = vor.u32 %v3806, %v3807
    %v3809 = vsub.s32 4294967266, %v3804
    %v3810 = vadd.s32 %v3809, 127
    %v3811 = vshll.u32 %v3810, 23
    %v3812 = vor.u32 4788187, %v3811
    %v3813 = vand.u32 2147483647, %v3812
    %v3815 = vcvt.s32.f32 %v3808
    %v3816 = vmul.f32 %v3815, %v3813
    %v3817 = vxor.u32 %v3816, 2147483648
    %v3818 = vsel %vm3697, %v3817, %v3816
    %v3819 = vsub.s32 4, %v3795
    %v3820 = vsel %vm3697, %v3819, %v3795
    %v3821 = vsel %vm3696, %v859, %v3818
    %v3822 = vsel %vm3696, 0, %v3820
    %v3823 = vmul.f32 %v3821, %v3821
    %v3824 = vmul.f32 %v3823, -0.001358992
    %v3825 = vadd.f32 %v3824, 0.041655596
    %v3826 = vmul.f32 %v3823, %v3825
    %v3827 = vadd.f32 %v3826, -0.4999988
    %v3828 = vmul.f32 %v3823, %v3827
    %v3829 = vadd.f32 1.0, %v3828
    %v3830 = vmul.f32 %v3821, %v3821
    %v3831 = vmul.f32 %v3830, -0.00019511016
    %v3832 = vadd.f32 %v3831, 0.008332121
    %v3833 = vmul.f32 %v3830, %v3832
    %v3834 = vadd.f32 %v3833, -0.16666654
    %v3835 = vmul.f32 %v3830, %v3834
    %v3836 = vadd.f32 %v3835, 1.0
    %v3837 = vmul.f32 %v3836, %v3821
    %vm3838 = vweird.f32 %v859
    %v3839 = vadd.s32 %v3822, 3
    %v3840 = vand.u32 %v3839, 3
    %vm3841 = vcmp.lt.s32.totalorder %v3840, 2
    %vm3842 = vcmp.eq.s32.totalorder %v3840, 0
    %v3843 = vxor.u32 %v3837, 2147483648
    %v3844 = vsel %vm3842, %v3829, %v3843
    %vm3845 = vcmp.eq.s32.totalorder %v3840, 2
    %v3846 = vxor.u32 %v3829, 2147483648
    %v3847 = vsel %vm3845, %v3846, %v3837
    %v3848 = vsel %vm3841, %v3844, %v3847
    %v3849 = vsel %vm3838, nan, %v3848
    %v3850 = vand.u32 2147483647, %v860
    %vm3851 = vcmp.le.f32.partialorder %v3850, 0.7853982
    %vm3852 = vcmp.lt.s32.totalorder %v860, 0
    %v3853 = vand.u32 %v860, 2139095040
    %v3854 = vshrl.u32 %v3853, 23
    %v3855 = vsub.s32 %v3854, 127
    %v3856 = vand.u32 2147483647, %v860
    %v3857 = vand.u32 %v3856, 8388607
    %v3858 = vor.u32 %v3857, 8388608
    %v3859 = vsub.s32 0, %v3858
    %v3860 = vadd.s32 %v3855, 1
    %vm3861 = vcmp.gt.s32.totalorder %v3860, 0
    %v3862 = vsel %vm3861, %v3860, 0
    %v3863 = vshrl.u32 %v3862, 5
    %v3864 = vand.u32 %v3862, 31
    %v3865 = vsub.s32 32, %v3864
    %v3866 = vshrl.u32 683565275, %v3865
    %v3867 = vshll.u32 683565275, %v3864
    %v3868 = vshrl.u32 2475754826, %v3865
    %v3869 = vor.u32 %v3867, %v3868
    %v3870 = vshll.u32 2475754826, %v3864
    %v3871 = vshrl.u32 2131351028, %v3865
    %v3872 = vor.u32 %v3870, %v3871
    %v3873 = vshll.u32 2131351028, %v3864
    %v3874 = vshrl.u32 2102212464, %v3865
    %v3875 = vor.u32 %v3873, %v3874
    %v3876 = vshll.u32 2102212464, %v3864
    %v3877 = vshrl.u32 920167782, %v3865
    %v3878 = vor.u32 %v3876, %v3877
    %v3879 = vshll.u32 920167782, %v3864
    %v3880 = vshrl.u32 1326507024, %v3865
    %v3881 = vor.u32 %v3879, %v3880
    %vm3882 = vcmp.lt.s32.totalorder %v3863, 1
    %vm3883 = vcmp.lt.s32.totalorder %v3863, 2
    %vm3884 = vcmp.lt.s32.totalorder %v3863, 3
    %vm3885 = vcmp.lt.s32.totalorder %v3863, 4
    %v3886 = vsel %vm3882, %v3866, %v3869
    %v3887 = vsel %vm3885, %v3875, 2102212464
    %v3888 = vsel %vm3884, %v3872, %v3887
    %v3889 = vsel %vm3883, %v3886, %v3888
    %v3890 = vsel %vm3882, %v3869, %v3872
    %v3891 = vsel %vm3885, %v3878, 920167782
    %v3892 = vsel %vm3884, %v3875, %v3891
    %v3893 = vsel %vm3883, %v3890, %v3892
    %v3894 = vsel %vm3882, %v3872, %v3875
    %v3895 = vsel %vm3885, %v3881, 1326507024
    %v3896 = vsel %vm3884, %v3878, %v3895
    %v3897 = vsel %vm3883, %v3894, %v3896
    %v3898 = vshll.u32 %v3858, 8
    %v3899 = vand.u32 %v3898, 65535
    %v3900 = vshrl.u32 %v3898, 16
    %v3901 = vand.u32 %v3897, 65535
    %v3902 = vshrl.u32 %v3897, 16
    %v3903 = vmul.u32 %v3899, %v3901
    %v3904 = vmul.u32 %v3899, %v3902
    %v3905 = vmul.u32 %v3900, %v3901
    %v3906 = vmul.u32 %v3900, %v3902
    %v3907 = vshll.u32 %v3904, 16
    %v3908 = vshrl.u32 %v3904, 16
    %v3909 = vshll.u32 %v3905, 16
    %v3910 = vshrl.u32 %v3905, 16
    %vm3911 = vc.u32 %v3903, %v3907
    %v3912 = vsel %vm3911, 1, 0
    %v3913 = vadd.s32 %v3903, %v3907
    %v3914 = vadd.s32 %v3906, %v3912
    %vm3915 = vc.u32 %v3913, %v3909
    %v3916 = vsel %vm3915, 1, 0
    %v3917 = vadd.s32 %v3913, %v3909
    %v3918 = vadd.s32 %v3914, %v3916
    %v3919 = vadd.s32 %v3918, %v3908
    %v3920 = vadd.s32 %v3919, %v3910
    %v3921 = vand.u32 %v3898, 65535
    %v3922 = vshrl.u32 %v3898, 16
    %v3923 = vand.u32 %v3893, 65535
    %v3924 = vshrl.u32 %v3893, 16
    %v3925 = vmul.u32 %v3921, %v3923
    %v3926 = vmul.u32 %v3921, %v3924
    %v3927 = vmul.u32 %v3922, %v3923
    %v3928 = vmul.u32 %v3922, %v3924
    %v3929 = vshll.u32 %v3926, 16
    %v3930 = vshrl.u32 %v3926, 16
    %v3931 = vshll.u32 %v3927, 16
    %v3932 = vshrl.u32 %v3927, 16
    %vm3933 = vc.u32 %v3925, %v3929
    %v3934 = vsel %vm3933, 1, 0
    %v3935 = vadd.s32 %v3925, %v3929
    %v3936 = vadd.s32 %v3928, %v3934
    %vm3937 = vc.u32 %v3935, %v3931
    %v3938 = vsel %vm3937, 1, 0
    %v3939 = vadd.s32 %v3935, %v3931
    %v3940 = vadd.s32 %v3936, %v3938
    %v3941 = vadd.s32 %v3940, %v3930
    %v3942 = vadd.s32 %v3941, %v3932
    %v3943 = vmul.u32 %v3898, %v3889
    %v3944 = vadd.s32 %v3920, %v3939
    %vm3945 = vc.u32 %v3920, %v3939
    %v3946 = vadd.s32 %v3942, 1
    %v3947 = vsel %vm3945, %v3946, %v3942
    %v3948 = vadd.s32 %v3943, %v3947
    %v3949 = vadd.s32 %v3948, 536870912
    %v3950 = vshrl.u32 %v3949, 30
    %v3951 = vshll.u32 %v3950, 30
    %v3952 = vsub.s32 %v3948, %v3951
    %vm3953 = vcmp.lt.s32.totalorder %v3952, 0
    %v3954 = vsub.s32 0, %v3952
    %v3955 = vsel %vm3953, %v3954, %v3952
    %v3956 = vclz %v3955
    %v3957 = vsub.s32 %v3956, 2
    %vm3958 = vcmp.gt.s32.totalorder 0, %v3957
    %v3959 = vsel %vm3958, 0, %v3957
    %v3960 = vsub.s32 32, %v3959
    %v3961 = vshll.u32 %v3952, %v3959
    %v3962 = vshrl.u32 %v3944, %v3960
    %v3963 = vor.u32 %v3961, %v3962
    %v3964 = vsub.s32 4294967266, %v3959
    %v3965 = vadd.s32 %v3964, 127
    %v3966 = vshll.u32 %v3965, 23
    %v3967 = vor.u32 4788187, %v3966
    %v3968 = vand.u32 2147483647, %v3967
    %v3970 = vcvt.s32.f32 %v3963
    %v3971 = vmul.f32 %v3970, %v3968
    %v3972 = vxor.u32 %v3971, 2147483648
    %v3973 = vsel %vm3852, %v3972, %v3971
    %v3974 = vsub.s32 4, %v3950
    %v3975 = vsel %vm3852, %v3974, %v3950
    %v3976 = vsel %vm3851, %v860, %v3973
    %v3977 = vsel %vm3851, 0, %v3975
    %v3978 = vmul.f32 %v3976, %v3976
    %v3979 = vmul.f32 %v3978, -0.001358992
    %v3980 = vadd.f32 %v3979, 0.041655596
    %v3981 = vmul.f32 %v3978, %v3980
    %v3982 = vadd.f32 %v3981, -0.4999988
    %v3983 = vmul.f32 %v3978, %v3982
    %v3984 = vadd.f32 1.0, %v3983
    %v3985 = vmul.f32 %v3976, %v3976
    %v3986 = vmul.f32 %v3985, -0.00019511016
    %v3987 = vadd.f32 %v3986, 0.008332121
    %v3988 = vmul.f32 %v3985, %v3987
    %v3989 = vadd.f32 %v3988, -0.16666654
    %v3990 = vmul.f32 %v3985, %v3989
    %v3991 = vadd.f32 %v3990, 1.0
    %v3992 = vmul.f32 %v3991, %v3976
    %vm3993 = vweird.f32 %v860
    %v3994 = vadd.s32 %v3977, 3
    %v3995 = vand.u32 %v3994, 3
    %vm3996 = vcmp.lt.s32.totalorder %v3995, 2
    %vm3997 = vcmp.eq.s32.totalorder %v3995, 0
    %v3998 = vxor.u32 %v3992, 2147483648
    %v3999 = vsel %vm3997, %v3984, %v3998
    %vm4000 = vcmp.eq.s32.totalorder %v3995, 2
    %v4001 = vxor.u32 %v3984, 2147483648
    %v4002 = vsel %vm4000, %v4001, %v3992
    %v4003 = vsel %vm3996, %v3999, %v4002
    %v4004 = vsel %vm3993, nan, %v4003
    %v4005 = vand.u32 2147483647, %v861
    %vm4006 = vcmp.le.f32.partialorder %v4005, 0.7853982
    %vm4007 = vcmp.lt.s32.totalorder %v861, 0
    %v4008 = vand.u32 %v861, 2139095040
    %v4009 = vshrl.u32 %v4008, 23
    %v4010 = vsub.s32 %v4009, 127
    %v4011 = vand.u32 2147483647, %v861
    %v4012 = vand.u32 %v4011, 8388607
    %v4013 = vor.u32 %v4012, 8388608
    %v4014 = vsub.s32 0, %v4013
    %v4015 = vadd.s32 %v4010, 1
    %vm4016 = vcmp.gt.s32.totalorder %v4015, 0
    %v4017 = vsel %vm4016, %v4015, 0
    %v4018 = vshrl.u32 %v4017, 5
    %v4019 = vand.u32 %v4017, 31
    %v4020 = vsub.s32 32, %v4019
    %v4021 = vshrl.u32 683565275, %v4020
    %v4022 = vshll.u32 683565275, %v4019
    %v4023 = vshrl.u32 2475754826, %v4020
    %v4024 = vor.u32 %v4022, %v4023
    %v4025 = vshll.u32 2475754826, %v4019
    %v4026 = vshrl.u32 2131351028, %v4020
    %v4027 = vor.u32 %v4025, %v4026
    %v4028 = vshll.u32 2131351028, %v4019
    %v4029 = vshrl.u32 2102212464, %v4020
    %v4030 = vor.u32 %v4028, %v4029
    %v4031 = vshll.u32 2102212464, %v4019
    %v4032 = vshrl.u32 920167782, %v4020
    %v4033 = vor.u32 %v4031, %v4032
    %v4034 = vshll.u32 920167782, %v4019
    %v4035 = vshrl.u32 1326507024, %v4020
    %v4036 = vor.u32 %v4034, %v4035
    %vm4037 = vcmp.lt.s32.totalorder %v4018, 1
    %vm4038 = vcmp.lt.s32.totalorder %v4018, 2
    %vm4039 = vcmp.lt.s32.totalorder %v4018, 3
    %vm4040 = vcmp.lt.s32.totalorder %v4018, 4
    %v4041 = vsel %vm4037, %v4021, %v4024
    %v4042 = vsel %vm4040, %v4030, 2102212464
    %v4043 = vsel %vm4039, %v4027, %v4042
    %v4044 = vsel %vm4038, %v4041, %v4043
    %v4045 = vsel %vm4037, %v4024, %v4027
    %v4046 = vsel %vm4040, %v4033, 920167782
    %v4047 = vsel %vm4039, %v4030, %v4046
    %v4048 = vsel %vm4038, %v4045, %v4047
    %v4049 = vsel %vm4037, %v4027, %v4030
    %v4050 = vsel %vm4040, %v4036, 1326507024
    %v4051 = vsel %vm4039, %v4033, %v4050
    %v4052 = vsel %vm4038, %v4049, %v4051
    %v4053 = vshll.u32 %v4013, 8
    %v4054 = vand.u32 %v4053, 65535
    %v4055 = vshrl.u32 %v4053, 16
    %v4056 = vand.u32 %v4052, 65535
    %v4057 = vshrl.u32 %v4052, 16
    %v4058 = vmul.u32 %v4054, %v4056
    %v4059 = vmul.u32 %v4054, %v4057
    %v4060 = vmul.u32 %v4055, %v4056
    %v4061 = vmul.u32 %v4055, %v4057
    %v4062 = vshll.u32 %v4059, 16
    %v4063 = vshrl.u32 %v4059, 16
    %v4064 = vshll.u32 %v4060, 16
    %v4065 = vshrl.u32 %v4060, 16
    %vm4066 = vc.u32 %v4058, %v4062
    %v4067 = vsel %vm4066, 1, 0
    %v4068 = vadd.s32 %v4058, %v4062
    %v4069 = vadd.s32 %v4061, %v4067
    %vm4070 = vc.u32 %v4068, %v4064
    %v4071 = vsel %vm4070, 1, 0
    %v4072 = vadd.s32 %v4068, %v4064
    %v4073 = vadd.s32 %v4069, %v4071
    %v4074 = vadd.s32 %v4073, %v4063
    %v4075 = vadd.s32 %v4074, %v4065
    %v4076 = vand.u32 %v4053, 65535
    %v4077 = vshrl.u32 %v4053, 16
    %v4078 = vand.u32 %v4048, 65535
    %v4079 = vshrl.u32 %v4048, 16
    %v4080 = vmul.u32 %v4076, %v4078
    %v4081 = vmul.u32 %v4076, %v4079
    %v4082 = vmul.u32 %v4077, %v4078
    %v4083 = vmul.u32 %v4077, %v4079
    %v4084 = vshll.u32 %v4081, 16
    %v4085 = vshrl.u32 %v4081, 16
    %v4086 = vshll.u32 %v4082, 16
    %v4087 = vshrl.u32 %v4082, 16
    %vm4088 = vc.u32 %v4080, %v4084
    %v4089 = vsel %vm4088, 1, 0
    %v4090 = vadd.s32 %v4080, %v4084
    %v4091 = vadd.s32 %v4083, %v4089
    %vm4092 = vc.u32 %v4090, %v4086
    %v4093 = vsel %vm4092, 1, 0
    %v4094 = vadd.s32 %v4090, %v4086
    %v4095 = vadd.s32 %v4091, %v4093
    %v4096 = vadd.s32 %v4095, %v4085
    %v4097 = vadd.s32 %v4096, %v4087
    %v4098 = vmul.u32 %v4053, %v4044
    %v4099 = vadd.s32 %v4075, %v4094
    %vm4100 = vc.u32 %v4075, %v4094
    %v4101 = vadd.s32 %v4097, 1
    %v4102 = vsel %vm4100, %v4101, %v4097
    %v4103 = vadd.s32 %v4098, %v4102
    %v4104 = vadd.s32 %v4103, 536870912
    %v4105 = vshrl.u32 %v4104, 30
    %v4106 = vshll.u32 %v4105, 30
    %v4107 = vsub.s32 %v4103, %v4106
    %vm4108 = vcmp.lt.s32.totalorder %v4107, 0
    %v4109 = vsub.s32 0, %v4107
    %v4110 = vsel %vm4108, %v4109, %v4107
    %v4111 = vclz %v4110
    %v4112 = vsub.s32 %v4111, 2
    %vm4113 = vcmp.gt.s32.totalorder 0, %v4112
    %v4114 = vsel %vm4113, 0, %v4112
    %v4115 = vsub.s32 32, %v4114
    %v4116 = vshll.u32 %v4107, %v4114
    %v4117 = vshrl.u32 %v4099, %v4115
    %v4118 = vor.u32 %v4116, %v4117
    %v4119 = vsub.s32 4294967266, %v4114
    %v4120 = vadd.s32 %v4119, 127
    %v4121 = vshll.u32 %v4120, 23
    %v4122 = vor.u32 4788187, %v4121
    %v4123 = vand.u32 2147483647, %v4122
    %v4125 = vcvt.s32.f32 %v4118
    %v4126 = vmul.f32 %v4125, %v4123
    %v4127 = vxor.u32 %v4126, 2147483648
    %v4128 = vsel %vm4007, %v4127, %v4126
    %v4129 = vsub.s32 4, %v4105
    %v4130 = vsel %vm4007, %v4129, %v4105
    %v4131 = vsel %vm4006, %v861, %v4128
    %v4132 = vsel %vm4006, 0, %v4130
    %v4133 = vmul.f32 %v4131, %v4131
    %v4134 = vmul.f32 %v4133, -0.001358992
    %v4135 = vadd.f32 %v4134, 0.041655596
    %v4136 = vmul.f32 %v4133, %v4135
    %v4137 = vadd.f32 %v4136, -0.4999988
    %v4138 = vmul.f32 %v4133, %v4137
    %v4139 = vadd.f32 1.0, %v4138
    %v4140 = vmul.f32 %v4131, %v4131
    %v4141 = vmul.f32 %v4140, -0.00019511016
    %v4142 = vadd.f32 %v4141, 0.008332121
    %v4143 = vmul.f32 %v4140, %v4142
    %v4144 = vadd.f32 %v4143, -0.16666654
    %v4145 = vmul.f32 %v4140, %v4144
    %v4146 = vadd.f32 %v4145, 1.0
    %v4147 = vmul.f32 %v4146, %v4131
    %vm4148 = vweird.f32 %v861
    %v4149 = vadd.s32 %v4132, 3
    %v4150 = vand.u32 %v4149, 3
    %vm4151 = vcmp.lt.s32.totalorder %v4150, 2
    %vm4152 = vcmp.eq.s32.totalorder %v4150, 0
    %v4153 = vxor.u32 %v4147, 2147483648
    %v4154 = vsel %vm4152, %v4139, %v4153
    %vm4155 = vcmp.eq.s32.totalorder %v4150, 2
    %v4156 = vxor.u32 %v4139, 2147483648
    %v4157 = vsel %vm4155, %v4156, %v4147
    %v4158 = vsel %vm4151, %v4154, %v4157
    %v4159 = vsel %vm4148, nan, %v4158
    %v4160 = vand.u32 2147483647, %v862
    %vm4161 = vcmp.le.f32.partialorder %v4160, 0.7853982
    %vm4162 = vcmp.lt.s32.totalorder %v862, 0
    %v4163 = vand.u32 %v862, 2139095040
    %v4164 = vshrl.u32 %v4163, 23
    %v4165 = vsub.s32 %v4164, 127
    %v4166 = vand.u32 2147483647, %v862
    %v4167 = vand.u32 %v4166, 8388607
    %v4168 = vor.u32 %v4167, 8388608
    %v4169 = vsub.s32 0, %v4168
    %v4170 = vadd.s32 %v4165, 1
    %vm4171 = vcmp.gt.s32.totalorder %v4170, 0
    %v4172 = vsel %vm4171, %v4170, 0
    %v4173 = vshrl.u32 %v4172, 5
    %v4174 = vand.u32 %v4172, 31
    %v4175 = vsub.s32 32, %v4174
    %v4176 = vshrl.u32 683565275, %v4175
    %v4177 = vshll.u32 683565275, %v4174
    %v4178 = vshrl.u32 2475754826, %v4175
    %v4179 = vor.u32 %v4177, %v4178
    %v4180 = vshll.u32 2475754826, %v4174
    %v4181 = vshrl.u32 2131351028, %v4175
    %v4182 = vor.u32 %v4180, %v4181
    %v4183 = vshll.u32 2131351028, %v4174
    %v4184 = vshrl.u32 2102212464, %v4175
    %v4185 = vor.u32 %v4183, %v4184
    %v4186 = vshll.u32 2102212464, %v4174
    %v4187 = vshrl.u32 920167782, %v4175
    %v4188 = vor.u32 %v4186, %v4187
    %v4189 = vshll.u32 920167782, %v4174
    %v4190 = vshrl.u32 1326507024, %v4175
    %v4191 = vor.u32 %v4189, %v4190
    %vm4192 = vcmp.lt.s32.totalorder %v4173, 1
    %vm4193 = vcmp.lt.s32.totalorder %v4173, 2
    %vm4194 = vcmp.lt.s32.totalorder %v4173, 3
    %vm4195 = vcmp.lt.s32.totalorder %v4173, 4
    %v4196 = vsel %vm4192, %v4176, %v4179
    %v4197 = vsel %vm4195, %v4185, 2102212464
    %v4198 = vsel %vm4194, %v4182, %v4197
    %v4199 = vsel %vm4193, %v4196, %v4198
    %v4200 = vsel %vm4192, %v4179, %v4182
    %v4201 = vsel %vm4195, %v4188, 920167782
    %v4202 = vsel %vm4194, %v4185, %v4201
    %v4203 = vsel %vm4193, %v4200, %v4202
    %v4204 = vsel %vm4192, %v4182, %v4185
    %v4205 = vsel %vm4195, %v4191, 1326507024
    %v4206 = vsel %vm4194, %v4188, %v4205
    %v4207 = vsel %vm4193, %v4204, %v4206
    %v4208 = vshll.u32 %v4168, 8
    %v4209 = vand.u32 %v4208, 65535
    %v4210 = vshrl.u32 %v4208, 16
    %v4211 = vand.u32 %v4207, 65535
    %v4212 = vshrl.u32 %v4207, 16
    %v4213 = vmul.u32 %v4209, %v4211
    %v4214 = vmul.u32 %v4209, %v4212
    %v4215 = vmul.u32 %v4210, %v4211
    %v4216 = vmul.u32 %v4210, %v4212
    %v4217 = vshll.u32 %v4214, 16
    %v4218 = vshrl.u32 %v4214, 16
    %v4219 = vshll.u32 %v4215, 16
    %v4220 = vshrl.u32 %v4215, 16
    %vm4221 = vc.u32 %v4213, %v4217
    %v4222 = vsel %vm4221, 1, 0
    %v4223 = vadd.s32 %v4213, %v4217
    %v4224 = vadd.s32 %v4216, %v4222
    %vm4225 = vc.u32 %v4223, %v4219
    %v4226 = vsel %vm4225, 1, 0
    %v4227 = vadd.s32 %v4223, %v4219
    %v4228 = vadd.s32 %v4224, %v4226
    %v4229 = vadd.s32 %v4228, %v4218
    %v4230 = vadd.s32 %v4229, %v4220
    %v4231 = vand.u32 %v4208, 65535
    %v4232 = vshrl.u32 %v4208, 16
    %v4233 = vand.u32 %v4203, 65535
    %v4234 = vshrl.u32 %v4203, 16
    %v4235 = vmul.u32 %v4231, %v4233
    %v4236 = vmul.u32 %v4231, %v4234
    %v4237 = vmul.u32 %v4232, %v4233
    %v4238 = vmul.u32 %v4232, %v4234
    %v4239 = vshll.u32 %v4236, 16
    %v4240 = vshrl.u32 %v4236, 16
    %v4241 = vshll.u32 %v4237, 16
    %v4242 = vshrl.u32 %v4237, 16
    %vm4243 = vc.u32 %v4235, %v4239
    %v4244 = vsel %vm4243, 1, 0
    %v4245 = vadd.s32 %v4235, %v4239
    %v4246 = vadd.s32 %v4238, %v4244
    %vm4247 = vc.u32 %v4245, %v4241
    %v4248 = vsel %vm4247, 1, 0
    %v4249 = vadd.s32 %v4245, %v4241
    %v4250 = vadd.s32 %v4246, %v4248
    %v4251 = vadd.s32 %v4250, %v4240
    %v4252 = vadd.s32 %v4251, %v4242
    %v4253 = vmul.u32 %v4208, %v4199
    %v4254 = vadd.s32 %v4230, %v4249
    %vm4255 = vc.u32 %v4230, %v4249
    %v4256 = vadd.s32 %v4252, 1
    %v4257 = vsel %vm4255, %v4256, %v4252
    %v4258 = vadd.s32 %v4253, %v4257
    %v4259 = vadd.s32 %v4258, 536870912
    %v4260 = vshrl.u32 %v4259, 30
    %v4261 = vshll.u32 %v4260, 30
    %v4262 = vsub.s32 %v4258, %v4261
    %vm4263 = vcmp.lt.s32.totalorder %v4262, 0
    %v4264 = vsub.s32 0, %v4262
    %v4265 = vsel %vm4263, %v4264, %v4262
    %v4266 = vclz %v4265
    %v4267 = vsub.s32 %v4266, 2
    %vm4268 = vcmp.gt.s32.totalorder 0, %v4267
    %v4269 = vsel %vm4268, 0, %v4267
    %v4270 = vsub.s32 32, %v4269
    %v4271 = vshll.u32 %v4262, %v4269
    %v4272 = vshrl.u32 %v4254, %v4270
    %v4273 = vor.u32 %v4271, %v4272
    %v4274 = vsub.s32 4294967266, %v4269
    %v4275 = vadd.s32 %v4274, 127
    %v4276 = vshll.u32 %v4275, 23
    %v4277 = vor.u32 4788187, %v4276
    %v4278 = vand.u32 2147483647, %v4277
    %v4280 = vcvt.s32.f32 %v4273
    %v4281 = vmul.f32 %v4280, %v4278
    %v4282 = vxor.u32 %v4281, 2147483648
    %v4283 = vsel %vm4162, %v4282, %v4281
    %v4284 = vsub.s32 4, %v4260
    %v4285 = vsel %vm4162, %v4284, %v4260
    %v4286 = vsel %vm4161, %v862, %v4283
    %v4287 = vsel %vm4161, 0, %v4285
    %v4288 = vmul.f32 %v4286, %v4286
    %v4289 = vmul.f32 %v4288, -0.001358992
    %v4290 = vadd.f32 %v4289, 0.041655596
    %v4291 = vmul.f32 %v4288, %v4290
    %v4292 = vadd.f32 %v4291, -0.4999988
    %v4293 = vmul.f32 %v4288, %v4292
    %v4294 = vadd.f32 1.0, %v4293
    %v4295 = vmul.f32 %v4286, %v4286
    %v4296 = vmul.f32 %v4295, -0.00019511016
    %v4297 = vadd.f32 %v4296, 0.008332121
    %v4298 = vmul.f32 %v4295, %v4297
    %v4299 = vadd.f32 %v4298, -0.16666654
    %v4300 = vmul.f32 %v4295, %v4299
    %v4301 = vadd.f32 %v4300, 1.0
    %v4302 = vmul.f32 %v4301, %v4286
    %vm4303 = vweird.f32 %v862
    %v4304 = vadd.s32 %v4287, 3
    %v4305 = vand.u32 %v4304, 3
    %vm4306 = vcmp.lt.s32.totalorder %v4305, 2
    %vm4307 = vcmp.eq.s32.totalorder %v4305, 0
    %v4308 = vxor.u32 %v4302, 2147483648
    %v4309 = vsel %vm4307, %v4294, %v4308
    %vm4310 = vcmp.eq.s32.totalorder %v4305, 2
    %v4311 = vxor.u32 %v4294, 2147483648
    %v4312 = vsel %vm4310, %v4311, %v4302
    %v4313 = vsel %vm4306, %v4309, %v4312
    %v4314 = vsel %vm4303, nan, %v4313
    %v4315 = vand.u32 2147483647, %v863
    %vm4316 = vcmp.le.f32.partialorder %v4315, 0.7853982
    %vm4317 = vcmp.lt.s32.totalorder %v863, 0
    %v4318 = vand.u32 %v863, 2139095040
    %v4319 = vshrl.u32 %v4318, 23
    %v4320 = vsub.s32 %v4319, 127
    %v4321 = vand.u32 2147483647, %v863
    %v4322 = vand.u32 %v4321, 8388607
    %v4323 = vor.u32 %v4322, 8388608
    %v4324 = vsub.s32 0, %v4323
    %v4325 = vadd.s32 %v4320, 1
    %vm4326 = vcmp.gt.s32.totalorder %v4325, 0
    %v4327 = vsel %vm4326, %v4325, 0
    %v4328 = vshrl.u32 %v4327, 5
    %v4329 = vand.u32 %v4327, 31
    %v4330 = vsub.s32 32, %v4329
    %v4331 = vshrl.u32 683565275, %v4330
    %v4332 = vshll.u32 683565275, %v4329
    %v4333 = vshrl.u32 2475754826, %v4330
    %v4334 = vor.u32 %v4332, %v4333
    %v4335 = vshll.u32 2475754826, %v4329
    %v4336 = vshrl.u32 2131351028, %v4330
    %v4337 = vor.u32 %v4335, %v4336
    %v4338 = vshll.u32 2131351028, %v4329
    %v4339 = vshrl.u32 2102212464, %v4330
    %v4340 = vor.u32 %v4338, %v4339
    %v4341 = vshll.u32 2102212464, %v4329
    %v4342 = vshrl.u32 920167782, %v4330
    %v4343 = vor.u32 %v4341, %v4342
    %v4344 = vshll.u32 920167782, %v4329
    %v4345 = vshrl.u32 1326507024, %v4330
    %v4346 = vor.u32 %v4344, %v4345
    %vm4347 = vcmp.lt.s32.totalorder %v4328, 1
    %vm4348 = vcmp.lt.s32.totalorder %v4328, 2
    %vm4349 = vcmp.lt.s32.totalorder %v4328, 3
    %vm4350 = vcmp.lt.s32.totalorder %v4328, 4
    %v4351 = vsel %vm4347, %v4331, %v4334
    %v4352 = vsel %vm4350, %v4340, 2102212464
    %v4353 = vsel %vm4349, %v4337, %v4352
    %v4354 = vsel %vm4348, %v4351, %v4353
    %v4355 = vsel %vm4347, %v4334, %v4337
    %v4356 = vsel %vm4350, %v4343, 920167782
    %v4357 = vsel %vm4349, %v4340, %v4356
    %v4358 = vsel %vm4348, %v4355, %v4357
    %v4359 = vsel %vm4347, %v4337, %v4340
    %v4360 = vsel %vm4350, %v4346, 1326507024
    %v4361 = vsel %vm4349, %v4343, %v4360
    %v4362 = vsel %vm4348, %v4359, %v4361
    %v4363 = vshll.u32 %v4323, 8
    %v4364 = vand.u32 %v4363, 65535
    %v4365 = vshrl.u32 %v4363, 16
    %v4366 = vand.u32 %v4362, 65535
    %v4367 = vshrl.u32 %v4362, 16
    %v4368 = vmul.u32 %v4364, %v4366
    %v4369 = vmul.u32 %v4364, %v4367
    %v4370 = vmul.u32 %v4365, %v4366
    %v4371 = vmul.u32 %v4365, %v4367
    %v4372 = vshll.u32 %v4369, 16
    %v4373 = vshrl.u32 %v4369, 16
    %v4374 = vshll.u32 %v4370, 16
    %v4375 = vshrl.u32 %v4370, 16
    %vm4376 = vc.u32 %v4368, %v4372
    %v4377 = vsel %vm4376, 1, 0
    %v4378 = vadd.s32 %v4368, %v4372
    %v4379 = vadd.s32 %v4371, %v4377
    %vm4380 = vc.u32 %v4378, %v4374
    %v4381 = vsel %vm4380, 1, 0
    %v4382 = vadd.s32 %v4378, %v4374
    %v4383 = vadd.s32 %v4379, %v4381
    %v4384 = vadd.s32 %v4383, %v4373
    %v4385 = vadd.s32 %v4384, %v4375
    %v4386 = vand.u32 %v4363, 65535
    %v4387 = vshrl.u32 %v4363, 16
    %v4388 = vand.u32 %v4358, 65535
    %v4389 = vshrl.u32 %v4358, 16
    %v4390 = vmul.u32 %v4386, %v4388
    %v4391 = vmul.u32 %v4386, %v4389
    %v4392 = vmul.u32 %v4387, %v4388
    %v4393 = vmul.u32 %v4387, %v4389
    %v4394 = vshll.u32 %v4391, 16
    %v4395 = vshrl.u32 %v4391, 16
    %v4396 = vshll.u32 %v4392, 16
    %v4397 = vshrl.u32 %v4392, 16
    %vm4398 = vc.u32 %v4390, %v4394
    %v4399 = vsel %vm4398, 1, 0
    %v4400 = vadd.s32 %v4390, %v4394
    %v4401 = vadd.s32 %v4393, %v4399
    %vm4402 = vc.u32 %v4400, %v4396
    %v4403 = vsel %vm4402, 1, 0
    %v4404 = vadd.s32 %v4400, %v4396
    %v4405 = vadd.s32 %v4401, %v4403
    %v4406 = vadd.s32 %v4405, %v4395
    %v4407 = vadd.s32 %v4406, %v4397
    %v4408 = vmul.u32 %v4363, %v4354
    %v4409 = vadd.s32 %v4385, %v4404
    %vm4410 = vc.u32 %v4385, %v4404
    %v4411 = vadd.s32 %v4407, 1
    %v4412 = vsel %vm4410, %v4411, %v4407
    %v4413 = vadd.s32 %v4408, %v4412
    %v4414 = vadd.s32 %v4413, 536870912
    %v4415 = vshrl.u32 %v4414, 30
    %v4416 = vshll.u32 %v4415, 30
    %v4417 = vsub.s32 %v4413, %v4416
    %vm4418 = vcmp.lt.s32.totalorder %v4417, 0
    %v4419 = vsub.s32 0, %v4417
    %v4420 = vsel %vm4418, %v4419, %v4417
    %v4421 = vclz %v4420
    %v4422 = vsub.s32 %v4421, 2
    %vm4423 = vcmp.gt.s32.totalorder 0, %v4422
    %v4424 = vsel %vm4423, 0, %v4422
    %v4425 = vsub.s32 32, %v4424
    %v4426 = vshll.u32 %v4417, %v4424
    %v4427 = vshrl.u32 %v4409, %v4425
    %v4428 = vor.u32 %v4426, %v4427
    %v4429 = vsub.s32 4294967266, %v4424
    %v4430 = vadd.s32 %v4429, 127
    %v4431 = vshll.u32 %v4430, 23
    %v4432 = vor.u32 4788187, %v4431
    %v4433 = vand.u32 2147483647, %v4432
    %v4435 = vcvt.s32.f32 %v4428
    %v4436 = vmul.f32 %v4435, %v4433
    %v4437 = vxor.u32 %v4436, 2147483648
    %v4438 = vsel %vm4317, %v4437, %v4436
    %v4439 = vsub.s32 4, %v4415
    %v4440 = vsel %vm4317, %v4439, %v4415
    %v4441 = vsel %vm4316, %v863, %v4438
    %v4442 = vsel %vm4316, 0, %v4440
    %v4443 = vmul.f32 %v4441, %v4441
    %v4444 = vmul.f32 %v4443, -0.001358992
    %v4445 = vadd.f32 %v4444, 0.041655596
    %v4446 = vmul.f32 %v4443, %v4445
    %v4447 = vadd.f32 %v4446, -0.4999988
    %v4448 = vmul.f32 %v4443, %v4447
    %v4449 = vadd.f32 1.0, %v4448
    %v4450 = vmul.f32 %v4441, %v4441
    %v4451 = vmul.f32 %v4450, -0.00019511016
    %v4452 = vadd.f32 %v4451, 0.008332121
    %v4453 = vmul.f32 %v4450, %v4452
    %v4454 = vadd.f32 %v4453, -0.16666654
    %v4455 = vmul.f32 %v4450, %v4454
    %v4456 = vadd.f32 %v4455, 1.0
    %v4457 = vmul.f32 %v4456, %v4441
    %vm4458 = vweird.f32 %v863
    %v4459 = vadd.s32 %v4442, 3
    %v4460 = vand.u32 %v4459, 3
    %vm4461 = vcmp.lt.s32.totalorder %v4460, 2
    %vm4462 = vcmp.eq.s32.totalorder %v4460, 0
    %v4463 = vxor.u32 %v4457, 2147483648
    %v4464 = vsel %vm4462, %v4449, %v4463
    %vm4465 = vcmp.eq.s32.totalorder %v4460, 2
    %v4466 = vxor.u32 %v4449, 2147483648
    %v4467 = vsel %vm4465, %v4466, %v4457
    %v4468 = vsel %vm4461, %v4464, %v4467
    %v4469 = vsel %vm4458, nan, %v4468
    %v4470 = vand.u32 2147483647, %v864
    %vm4471 = vcmp.le.f32.partialorder %v4470, 0.7853982
    %vm4472 = vcmp.lt.s32.totalorder %v864, 0
    %v4473 = vand.u32 %v864, 2139095040
    %v4474 = vshrl.u32 %v4473, 23
    %v4475 = vsub.s32 %v4474, 127
    %v4476 = vand.u32 2147483647, %v864
    %v4477 = vand.u32 %v4476, 8388607
    %v4478 = vor.u32 %v4477, 8388608
    %v4479 = vsub.s32 0, %v4478
    %v4480 = vadd.s32 %v4475, 1
    %vm4481 = vcmp.gt.s32.totalorder %v4480, 0
    %v4482 = vsel %vm4481, %v4480, 0
    %v4483 = vshrl.u32 %v4482, 5
    %v4484 = vand.u32 %v4482, 31
    %v4485 = vsub.s32 32, %v4484
    %v4486 = vshrl.u32 683565275, %v4485
    %v4487 = vshll.u32 683565275, %v4484
    %v4488 = vshrl.u32 2475754826, %v4485
    %v4489 = vor.u32 %v4487, %v4488
    %v4490 = vshll.u32 2475754826, %v4484
    %v4491 = vshrl.u32 2131351028, %v4485
    %v4492 = vor.u32 %v4490, %v4491
    %v4493 = vshll.u32 2131351028, %v4484
    %v4494 = vshrl.u32 2102212464, %v4485
    %v4495 = vor.u32 %v4493, %v4494
    %v4496 = vshll.u32 2102212464, %v4484
    %v4497 = vshrl.u32 920167782, %v4485
    %v4498 = vor.u32 %v4496, %v4497
    %v4499 = vshll.u32 920167782, %v4484
    %v4500 = vshrl.u32 1326507024, %v4485
    %v4501 = vor.u32 %v4499, %v4500
    %vm4502 = vcmp.lt.s32.totalorder %v4483, 1
    %vm4503 = vcmp.lt.s32.totalorder %v4483, 2
    %vm4504 = vcmp.lt.s32.totalorder %v4483, 3
    %vm4505 = vcmp.lt.s32.totalorder %v4483, 4
    %v4506 = vsel %vm4502, %v4486, %v4489
    %v4507 = vsel %vm4505, %v4495, 2102212464
    %v4508 = vsel %vm4504, %v4492, %v4507
    %v4509 = vsel %vm4503, %v4506, %v4508
    %v4510 = vsel %vm4502, %v4489, %v4492
    %v4511 = vsel %vm4505, %v4498, 920167782
    %v4512 = vsel %vm4504, %v4495, %v4511
    %v4513 = vsel %vm4503, %v4510, %v4512
    %v4514 = vsel %vm4502, %v4492, %v4495
    %v4515 = vsel %vm4505, %v4501, 1326507024
    %v4516 = vsel %vm4504, %v4498, %v4515
    %v4517 = vsel %vm4503, %v4514, %v4516
    %v4518 = vshll.u32 %v4478, 8
    %v4519 = vand.u32 %v4518, 65535
    %v4520 = vshrl.u32 %v4518, 16
    %v4521 = vand.u32 %v4517, 65535
    %v4522 = vshrl.u32 %v4517, 16
    %v4523 = vmul.u32 %v4519, %v4521
    %v4524 = vmul.u32 %v4519, %v4522
    %v4525 = vmul.u32 %v4520, %v4521
    %v4526 = vmul.u32 %v4520, %v4522
    %v4527 = vshll.u32 %v4524, 16
    %v4528 = vshrl.u32 %v4524, 16
    %v4529 = vshll.u32 %v4525, 16
    %v4530 = vshrl.u32 %v4525, 16
    %vm4531 = vc.u32 %v4523, %v4527
    %v4532 = vsel %vm4531, 1, 0
    %v4533 = vadd.s32 %v4523, %v4527
    %v4534 = vadd.s32 %v4526, %v4532
    %vm4535 = vc.u32 %v4533, %v4529
    %v4536 = vsel %vm4535, 1, 0
    %v4537 = vadd.s32 %v4533, %v4529
    %v4538 = vadd.s32 %v4534, %v4536
    %v4539 = vadd.s32 %v4538, %v4528
    %v4540 = vadd.s32 %v4539, %v4530
    %v4541 = vand.u32 %v4518, 65535
    %v4542 = vshrl.u32 %v4518, 16
    %v4543 = vand.u32 %v4513, 65535
    %v4544 = vshrl.u32 %v4513, 16
    %v4545 = vmul.u32 %v4541, %v4543
    %v4546 = vmul.u32 %v4541, %v4544
    %v4547 = vmul.u32 %v4542, %v4543
    %v4548 = vmul.u32 %v4542, %v4544
    %v4549 = vshll.u32 %v4546, 16
    %v4550 = vshrl.u32 %v4546, 16
    %v4551 = vshll.u32 %v4547, 16
    %v4552 = vshrl.u32 %v4547, 16
    %vm4553 = vc.u32 %v4545, %v4549
    %v4554 = vsel %vm4553, 1, 0
    %v4555 = vadd.s32 %v4545, %v4549
    %v4556 = vadd.s32 %v4548, %v4554
    %vm4557 = vc.u32 %v4555, %v4551
    %v4558 = vsel %vm4557, 1, 0
    %v4559 = vadd.s32 %v4555, %v4551
    %v4560 = vadd.s32 %v4556, %v4558
    %v4561 = vadd.s32 %v4560, %v4550
    %v4562 = vadd.s32 %v4561, %v4552
    %v4563 = vmul.u32 %v4518, %v4509
    %v4564 = vadd.s32 %v4540, %v4559
    %vm4565 = vc.u32 %v4540, %v4559
    %v4566 = vadd.s32 %v4562, 1
    %v4567 = vsel %vm4565, %v4566, %v4562
    %v4568 = vadd.s32 %v4563, %v4567
    %v4569 = vadd.s32 %v4568, 536870912
    %v4570 = vshrl.u32 %v4569, 30
    %v4571 = vshll.u32 %v4570, 30
    %v4572 = vsub.s32 %v4568, %v4571
    %vm4573 = vcmp.lt.s32.totalorder %v4572, 0
    %v4574 = vsub.s32 0, %v4572
    %v4575 = vsel %vm4573, %v4574, %v4572
    %v4576 = vclz %v4575
    %v4577 = vsub.s32 %v4576, 2
    %vm4578 = vcmp.gt.s32.totalorder 0, %v4577
    %v4579 = vsel %vm4578, 0, %v4577
    %v4580 = vsub.s32 32, %v4579
    %v4581 = vshll.u32 %v4572, %v4579
    %v4582 = vshrl.u32 %v4564, %v4580
    %v4583 = vor.u32 %v4581, %v4582
    %v4584 = vsub.s32 4294967266, %v4579
    %v4585 = vadd.s32 %v4584, 127
    %v4586 = vshll.u32 %v4585, 23
    %v4587 = vor.u32 4788187, %v4586
    %v4588 = vand.u32 2147483647, %v4587
    %v4590 = vcvt.s32.f32 %v4583
    %v4591 = vmul.f32 %v4590, %v4588
    %v4592 = vxor.u32 %v4591, 2147483648
    %v4593 = vsel %vm4472, %v4592, %v4591
    %v4594 = vsub.s32 4, %v4570
    %v4595 = vsel %vm4472, %v4594, %v4570
    %v4596 = vsel %vm4471, %v864, %v4593
    %v4597 = vsel %vm4471, 0, %v4595
    %v4598 = vmul.f32 %v4596, %v4596
    %v4599 = vmul.f32 %v4598, -0.001358992
    %v4600 = vadd.f32 %v4599, 0.041655596
    %v4601 = vmul.f32 %v4598, %v4600
    %v4602 = vadd.f32 %v4601, -0.4999988
    %v4603 = vmul.f32 %v4598, %v4602
    %v4604 = vadd.f32 1.0, %v4603
    %v4605 = vmul.f32 %v4596, %v4596
    %v4606 = vmul.f32 %v4605, -0.00019511016
    %v4607 = vadd.f32 %v4606, 0.008332121
    %v4608 = vmul.f32 %v4605, %v4607
    %v4609 = vadd.f32 %v4608, -0.16666654
    %v4610 = vmul.f32 %v4605, %v4609
    %v4611 = vadd.f32 %v4610, 1.0
    %v4612 = vmul.f32 %v4611, %v4596
    %vm4613 = vweird.f32 %v864
    %v4614 = vadd.s32 %v4597, 3
    %v4615 = vand.u32 %v4614, 3
    %vm4616 = vcmp.lt.s32.totalorder %v4615, 2
    %vm4617 = vcmp.eq.s32.totalorder %v4615, 0
    %v4618 = vxor.u32 %v4612, 2147483648
    %v4619 = vsel %vm4617, %v4604, %v4618
    %vm4620 = vcmp.eq.s32.totalorder %v4615, 2
    %v4621 = vxor.u32 %v4604, 2147483648
    %v4622 = vsel %vm4620, %v4621, %v4612
    %v4623 = vsel %vm4616, %v4619, %v4622
    %v4624 = vsel %vm4613, nan, %v4623
    %v4625 = vand.u32 2147483647, %v865
    %vm4626 = vcmp.le.f32.partialorder %v4625, 0.7853982
    %vm4627 = vcmp.lt.s32.totalorder %v865, 0
    %v4628 = vand.u32 %v865, 2139095040
    %v4629 = vshrl.u32 %v4628, 23
    %v4630 = vsub.s32 %v4629, 127
    %v4631 = vand.u32 2147483647, %v865
    %v4632 = vand.u32 %v4631, 8388607
    %v4633 = vor.u32 %v4632, 8388608
    %v4634 = vsub.s32 0, %v4633
    %v4635 = vadd.s32 %v4630, 1
    %vm4636 = vcmp.gt.s32.totalorder %v4635, 0
    %v4637 = vsel %vm4636, %v4635, 0
    %v4638 = vshrl.u32 %v4637, 5
    %v4639 = vand.u32 %v4637, 31
    %v4640 = vsub.s32 32, %v4639
    %v4641 = vshrl.u32 683565275, %v4640
    %v4642 = vshll.u32 683565275, %v4639
    %v4643 = vshrl.u32 2475754826, %v4640
    %v4644 = vor.u32 %v4642, %v4643
    %v4645 = vshll.u32 2475754826, %v4639
    %v4646 = vshrl.u32 2131351028, %v4640
    %v4647 = vor.u32 %v4645, %v4646
    %v4648 = vshll.u32 2131351028, %v4639
    %v4649 = vshrl.u32 2102212464, %v4640
    %v4650 = vor.u32 %v4648, %v4649
    %v4651 = vshll.u32 2102212464, %v4639
    %v4652 = vshrl.u32 920167782, %v4640
    %v4653 = vor.u32 %v4651, %v4652
    %v4654 = vshll.u32 920167782, %v4639
    %v4655 = vshrl.u32 1326507024, %v4640
    %v4656 = vor.u32 %v4654, %v4655
    %vm4657 = vcmp.lt.s32.totalorder %v4638, 1
    %vm4658 = vcmp.lt.s32.totalorder %v4638, 2
    %vm4659 = vcmp.lt.s32.totalorder %v4638, 3
    %vm4660 = vcmp.lt.s32.totalorder %v4638, 4
    %v4661 = vsel %vm4657, %v4641, %v4644
    %v4662 = vsel %vm4660, %v4650, 2102212464
    %v4663 = vsel %vm4659, %v4647, %v4662
    %v4664 = vsel %vm4658, %v4661, %v4663
    %v4665 = vsel %vm4657, %v4644, %v4647
    %v4666 = vsel %vm4660, %v4653, 920167782
    %v4667 = vsel %vm4659, %v4650, %v4666
    %v4668 = vsel %vm4658, %v4665, %v4667
    %v4669 = vsel %vm4657, %v4647, %v4650
    %v4670 = vsel %vm4660, %v4656, 1326507024
    %v4671 = vsel %vm4659, %v4653, %v4670
    %v4672 = vsel %vm4658, %v4669, %v4671
    %v4673 = vshll.u32 %v4633, 8
    %v4674 = vand.u32 %v4673, 65535
    %v4675 = vshrl.u32 %v4673, 16
    %v4676 = vand.u32 %v4672, 65535
    %v4677 = vshrl.u32 %v4672, 16
    %v4678 = vmul.u32 %v4674, %v4676
    %v4679 = vmul.u32 %v4674, %v4677
    %v4680 = vmul.u32 %v4675, %v4676
    %v4681 = vmul.u32 %v4675, %v4677
    %v4682 = vshll.u32 %v4679, 16
    %v4683 = vshrl.u32 %v4679, 16
    %v4684 = vshll.u32 %v4680, 16
    %v4685 = vshrl.u32 %v4680, 16
    %vm4686 = vc.u32 %v4678, %v4682
    %v4687 = vsel %vm4686, 1, 0
    %v4688 = vadd.s32 %v4678, %v4682
    %v4689 = vadd.s32 %v4681, %v4687
    %vm4690 = vc.u32 %v4688, %v4684
    %v4691 = vsel %vm4690, 1, 0
    %v4692 = vadd.s32 %v4688, %v4684
    %v4693 = vadd.s32 %v4689, %v4691
    %v4694 = vadd.s32 %v4693, %v4683
    %v4695 = vadd.s32 %v4694, %v4685
    %v4696 = vand.u32 %v4673, 65535
    %v4697 = vshrl.u32 %v4673, 16
    %v4698 = vand.u32 %v4668, 65535
    %v4699 = vshrl.u32 %v4668, 16
    %v4700 = vmul.u32 %v4696, %v4698
    %v4701 = vmul.u32 %v4696, %v4699
    %v4702 = vmul.u32 %v4697, %v4698
    %v4703 = vmul.u32 %v4697, %v4699
    %v4704 = vshll.u32 %v4701, 16
    %v4705 = vshrl.u32 %v4701, 16
    %v4706 = vshll.u32 %v4702, 16
    %v4707 = vshrl.u32 %v4702, 16
    %vm4708 = vc.u32 %v4700, %v4704
    %v4709 = vsel %vm4708, 1, 0
    %v4710 = vadd.s32 %v4700, %v4704
    %v4711 = vadd.s32 %v4703, %v4709
    %vm4712 = vc.u32 %v4710, %v4706
    %v4713 = vsel %vm4712, 1, 0
    %v4714 = vadd.s32 %v4710, %v4706
    %v4715 = vadd.s32 %v4711, %v4713
    %v4716 = vadd.s32 %v4715, %v4705
    %v4717 = vadd.s32 %v4716, %v4707
    %v4718 = vmul.u32 %v4673, %v4664
    %v4719 = vadd.s32 %v4695, %v4714
    %vm4720 = vc.u32 %v4695, %v4714
    %v4721 = vadd.s32 %v4717, 1
    %v4722 = vsel %vm4720, %v4721, %v4717
    %v4723 = vadd.s32 %v4718, %v4722
    %v4724 = vadd.s32 %v4723, 536870912
    %v4725 = vshrl.u32 %v4724, 30
    %v4726 = vshll.u32 %v4725, 30
    %v4727 = vsub.s32 %v4723, %v4726
    %vm4728 = vcmp.lt.s32.totalorder %v4727, 0
    %v4729 = vsub.s32 0, %v4727
    %v4730 = vsel %vm4728, %v4729, %v4727
    %v4731 = vclz %v4730
    %v4732 = vsub.s32 %v4731, 2
    %vm4733 = vcmp.gt.s32.totalorder 0, %v4732
    %v4734 = vsel %vm4733, 0, %v4732
    %v4735 = vsub.s32 32, %v4734
    %v4736 = vshll.u32 %v4727, %v4734
    %v4737 = vshrl.u32 %v4719, %v4735
    %v4738 = vor.u32 %v4736, %v4737
    %v4739 = vsub.s32 4294967266, %v4734
    %v4740 = vadd.s32 %v4739, 127
    %v4741 = vshll.u32 %v4740, 23
    %v4742 = vor.u32 4788187, %v4741
    %v4743 = vand.u32 2147483647, %v4742
    %v4745 = vcvt.s32.f32 %v4738
    %v4746 = vmul.f32 %v4745, %v4743
    %v4747 = vxor.u32 %v4746, 2147483648
    %v4748 = vsel %vm4627, %v4747, %v4746
    %v4749 = vsub.s32 4, %v4725
    %v4750 = vsel %vm4627, %v4749, %v4725
    %v4751 = vsel %vm4626, %v865, %v4748
    %v4752 = vsel %vm4626, 0, %v4750
    %v4753 = vmul.f32 %v4751, %v4751
    %v4754 = vmul.f32 %v4753, -0.001358992
    %v4755 = vadd.f32 %v4754, 0.041655596
    %v4756 = vmul.f32 %v4753, %v4755
    %v4757 = vadd.f32 %v4756, -0.4999988
    %v4758 = vmul.f32 %v4753, %v4757
    %v4759 = vadd.f32 1.0, %v4758
    %v4760 = vmul.f32 %v4751, %v4751
    %v4761 = vmul.f32 %v4760, -0.00019511016
    %v4762 = vadd.f32 %v4761, 0.008332121
    %v4763 = vmul.f32 %v4760, %v4762
    %v4764 = vadd.f32 %v4763, -0.16666654
    %v4765 = vmul.f32 %v4760, %v4764
    %v4766 = vadd.f32 %v4765, 1.0
    %v4767 = vmul.f32 %v4766, %v4751
    %vm4768 = vweird.f32 %v865
    %v4769 = vadd.s32 %v4752, 3
    %v4770 = vand.u32 %v4769, 3
    %vm4771 = vcmp.lt.s32.totalorder %v4770, 2
    %vm4772 = vcmp.eq.s32.totalorder %v4770, 0
    %v4773 = vxor.u32 %v4767, 2147483648
    %v4774 = vsel %vm4772, %v4759, %v4773
    %vm4775 = vcmp.eq.s32.totalorder %v4770, 2
    %v4776 = vxor.u32 %v4759, 2147483648
    %v4777 = vsel %vm4775, %v4776, %v4767
    %v4778 = vsel %vm4771, %v4774, %v4777
    %v4779 = vsel %vm4768, nan, %v4778
    %v4780 = vand.u32 2147483647, %v866
    %vm4781 = vcmp.le.f32.partialorder %v4780, 0.7853982
    %vm4782 = vcmp.lt.s32.totalorder %v866, 0
    %v4783 = vand.u32 %v866, 2139095040
    %v4784 = vshrl.u32 %v4783, 23
    %v4785 = vsub.s32 %v4784, 127
    %v4786 = vand.u32 2147483647, %v866
    %v4787 = vand.u32 %v4786, 8388607
    %v4788 = vor.u32 %v4787, 8388608
    %v4789 = vsub.s32 0, %v4788
    %v4790 = vadd.s32 %v4785, 1
    %vm4791 = vcmp.gt.s32.totalorder %v4790, 0
    %v4792 = vsel %vm4791, %v4790, 0
    %v4793 = vshrl.u32 %v4792, 5
    %v4794 = vand.u32 %v4792, 31
    %v4795 = vsub.s32 32, %v4794
    %v4796 = vshrl.u32 683565275, %v4795
    %v4797 = vshll.u32 683565275, %v4794
    %v4798 = vshrl.u32 2475754826, %v4795
    %v4799 = vor.u32 %v4797, %v4798
    %v4800 = vshll.u32 2475754826, %v4794
    %v4801 = vshrl.u32 2131351028, %v4795
    %v4802 = vor.u32 %v4800, %v4801
    %v4803 = vshll.u32 2131351028, %v4794
    %v4804 = vshrl.u32 2102212464, %v4795
    %v4805 = vor.u32 %v4803, %v4804
    %v4806 = vshll.u32 2102212464, %v4794
    %v4807 = vshrl.u32 920167782, %v4795
    %v4808 = vor.u32 %v4806, %v4807
    %v4809 = vshll.u32 920167782, %v4794
    %v4810 = vshrl.u32 1326507024, %v4795
    %v4811 = vor.u32 %v4809, %v4810
    %vm4812 = vcmp.lt.s32.totalorder %v4793, 1
    %vm4813 = vcmp.lt.s32.totalorder %v4793, 2
    %vm4814 = vcmp.lt.s32.totalorder %v4793, 3
    %vm4815 = vcmp.lt.s32.totalorder %v4793, 4
    %v4816 = vsel %vm4812, %v4796, %v4799
    %v4817 = vsel %vm4815, %v4805, 2102212464
    %v4818 = vsel %vm4814, %v4802, %v4817
    %v4819 = vsel %vm4813, %v4816, %v4818
    %v4820 = vsel %vm4812, %v4799, %v4802
    %v4821 = vsel %vm4815, %v4808, 920167782
    %v4822 = vsel %vm4814, %v4805, %v4821
    %v4823 = vsel %vm4813, %v4820, %v4822
    %v4824 = vsel %vm4812, %v4802, %v4805
    %v4825 = vsel %vm4815, %v4811, 1326507024
    %v4826 = vsel %vm4814, %v4808, %v4825
    %v4827 = vsel %vm4813, %v4824, %v4826
    %v4828 = vshll.u32 %v4788, 8
    %v4829 = vand.u32 %v4828, 65535
    %v4830 = vshrl.u32 %v4828, 16
    %v4831 = vand.u32 %v4827, 65535
    %v4832 = vshrl.u32 %v4827, 16
    %v4833 = vmul.u32 %v4829, %v4831
    %v4834 = vmul.u32 %v4829, %v4832
    %v4835 = vmul.u32 %v4830, %v4831
    %v4836 = vmul.u32 %v4830, %v4832
    %v4837 = vshll.u32 %v4834, 16
    %v4838 = vshrl.u32 %v4834, 16
    %v4839 = vshll.u32 %v4835, 16
    %v4840 = vshrl.u32 %v4835, 16
    %vm4841 = vc.u32 %v4833, %v4837
    %v4842 = vsel %vm4841, 1, 0
    %v4843 = vadd.s32 %v4833, %v4837
    %v4844 = vadd.s32 %v4836, %v4842
    %vm4845 = vc.u32 %v4843, %v4839
    %v4846 = vsel %vm4845, 1, 0
    %v4847 = vadd.s32 %v4843, %v4839
    %v4848 = vadd.s32 %v4844, %v4846
    %v4849 = vadd.s32 %v4848, %v4838
    %v4850 = vadd.s32 %v4849, %v4840
    %v4851 = vand.u32 %v4828, 65535
    %v4852 = vshrl.u32 %v4828, 16
    %v4853 = vand.u32 %v4823, 65535
    %v4854 = vshrl.u32 %v4823, 16
    %v4855 = vmul.u32 %v4851, %v4853
    %v4856 = vmul.u32 %v4851, %v4854
    %v4857 = vmul.u32 %v4852, %v4853
    %v4858 = vmul.u32 %v4852, %v4854
    %v4859 = vshll.u32 %v4856, 16
    %v4860 = vshrl.u32 %v4856, 16
    %v4861 = vshll.u32 %v4857, 16
    %v4862 = vshrl.u32 %v4857, 16
    %vm4863 = vc.u32 %v4855, %v4859
    %v4864 = vsel %vm4863, 1, 0
    %v4865 = vadd.s32 %v4855, %v4859
    %v4866 = vadd.s32 %v4858, %v4864
    %vm4867 = vc.u32 %v4865, %v4861
    %v4868 = vsel %vm4867, 1, 0
    %v4869 = vadd.s32 %v4865, %v4861
    %v4870 = vadd.s32 %v4866, %v4868
    %v4871 = vadd.s32 %v4870, %v4860
    %v4872 = vadd.s32 %v4871, %v4862
    %v4873 = vmul.u32 %v4828, %v4819
    %v4874 = vadd.s32 %v4850, %v4869
    %vm4875 = vc.u32 %v4850, %v4869
    %v4876 = vadd.s32 %v4872, 1
    %v4877 = vsel %vm4875, %v4876, %v4872
    %v4878 = vadd.s32 %v4873, %v4877
    %v4879 = vadd.s32 %v4878, 536870912
    %v4880 = vshrl.u32 %v4879, 30
    %v4881 = vshll.u32 %v4880, 30
    %v4882 = vsub.s32 %v4878, %v4881
    %vm4883 = vcmp.lt.s32.totalorder %v4882, 0
    %v4884 = vsub.s32 0, %v4882
    %v4885 = vsel %vm4883, %v4884, %v4882
    %v4886 = vclz %v4885
    %v4887 = vsub.s32 %v4886, 2
    %vm4888 = vcmp.gt.s32.totalorder 0, %v4887
    %v4889 = vsel %vm4888, 0, %v4887
    %v4890 = vsub.s32 32, %v4889
    %v4891 = vshll.u32 %v4882, %v4889
    %v4892 = vshrl.u32 %v4874, %v4890
    %v4893 = vor.u32 %v4891, %v4892
    %v4894 = vsub.s32 4294967266, %v4889
    %v4895 = vadd.s32 %v4894, 127
    %v4896 = vshll.u32 %v4895, 23
    %v4897 = vor.u32 4788187, %v4896
    %v4898 = vand.u32 2147483647, %v4897
    %v4900 = vcvt.s32.f32 %v4893
    %v4901 = vmul.f32 %v4900, %v4898
    %v4902 = vxor.u32 %v4901, 2147483648
    %v4903 = vsel %vm4782, %v4902, %v4901
    %v4904 = vsub.s32 4, %v4880
    %v4905 = vsel %vm4782, %v4904, %v4880
    %v4906 = vsel %vm4781, %v866, %v4903
    %v4907 = vsel %vm4781, 0, %v4905
    %v4908 = vmul.f32 %v4906, %v4906
    %v4909 = vmul.f32 %v4908, -0.001358992
    %v4910 = vadd.f32 %v4909, 0.041655596
    %v4911 = vmul.f32 %v4908, %v4910
    %v4912 = vadd.f32 %v4911, -0.4999988
    %v4913 = vmul.f32 %v4908, %v4912
    %v4914 = vadd.f32 1.0, %v4913
    %v4915 = vmul.f32 %v4906, %v4906
    %v4916 = vmul.f32 %v4915, -0.00019511016
    %v4917 = vadd.f32 %v4916, 0.008332121
    %v4918 = vmul.f32 %v4915, %v4917
    %v4919 = vadd.f32 %v4918, -0.16666654
    %v4920 = vmul.f32 %v4915, %v4919
    %v4921 = vadd.f32 %v4920, 1.0
    %v4922 = vmul.f32 %v4921, %v4906
    %vm4923 = vweird.f32 %v866
    %v4924 = vadd.s32 %v4907, 3
    %v4925 = vand.u32 %v4924, 3
    %vm4926 = vcmp.lt.s32.totalorder %v4925, 2
    %vm4927 = vcmp.eq.s32.totalorder %v4925, 0
    %v4928 = vxor.u32 %v4922, 2147483648
    %v4929 = vsel %vm4927, %v4914, %v4928
    %vm4930 = vcmp.eq.s32.totalorder %v4925, 2
    %v4931 = vxor.u32 %v4914, 2147483648
    %v4932 = vsel %vm4930, %v4931, %v4922
    %v4933 = vsel %vm4926, %v4929, %v4932
    %v4934 = vsel %vm4923, nan, %v4933
    %v4935 = vand.u32 2147483647, %v867
    %vm4936 = vcmp.le.f32.partialorder %v4935, 0.7853982
    %vm4937 = vcmp.lt.s32.totalorder %v867, 0
    %v4938 = vand.u32 %v867, 2139095040
    %v4939 = vshrl.u32 %v4938, 23
    %v4940 = vsub.s32 %v4939, 127
    %v4941 = vand.u32 2147483647, %v867
    %v4942 = vand.u32 %v4941, 8388607
    %v4943 = vor.u32 %v4942, 8388608
    %v4944 = vsub.s32 0, %v4943
    %v4945 = vadd.s32 %v4940, 1
    %vm4946 = vcmp.gt.s32.totalorder %v4945, 0
    %v4947 = vsel %vm4946, %v4945, 0
    %v4948 = vshrl.u32 %v4947, 5
    %v4949 = vand.u32 %v4947, 31
    %v4950 = vsub.s32 32, %v4949
    %v4951 = vshrl.u32 683565275, %v4950
    %v4952 = vshll.u32 683565275, %v4949
    %v4953 = vshrl.u32 2475754826, %v4950
    %v4954 = vor.u32 %v4952, %v4953
    %v4955 = vshll.u32 2475754826, %v4949
    %v4956 = vshrl.u32 2131351028, %v4950
    %v4957 = vor.u32 %v4955, %v4956
    %v4958 = vshll.u32 2131351028, %v4949
    %v4959 = vshrl.u32 2102212464, %v4950
    %v4960 = vor.u32 %v4958, %v4959
    %v4961 = vshll.u32 2102212464, %v4949
    %v4962 = vshrl.u32 920167782, %v4950
    %v4963 = vor.u32 %v4961, %v4962
    %v4964 = vshll.u32 920167782, %v4949
    %v4965 = vshrl.u32 1326507024, %v4950
    %v4966 = vor.u32 %v4964, %v4965
    %vm4967 = vcmp.lt.s32.totalorder %v4948, 1
    %vm4968 = vcmp.lt.s32.totalorder %v4948, 2
    %vm4969 = vcmp.lt.s32.totalorder %v4948, 3
    %vm4970 = vcmp.lt.s32.totalorder %v4948, 4
    %v4971 = vsel %vm4967, %v4951, %v4954
    %v4972 = vsel %vm4970, %v4960, 2102212464
    %v4973 = vsel %vm4969, %v4957, %v4972
    %v4974 = vsel %vm4968, %v4971, %v4973
    %v4975 = vsel %vm4967, %v4954, %v4957
    %v4976 = vsel %vm4970, %v4963, 920167782
    %v4977 = vsel %vm4969, %v4960, %v4976
    %v4978 = vsel %vm4968, %v4975, %v4977
    %v4979 = vsel %vm4967, %v4957, %v4960
    %v4980 = vsel %vm4970, %v4966, 1326507024
    %v4981 = vsel %vm4969, %v4963, %v4980
    %v4982 = vsel %vm4968, %v4979, %v4981
    %v4983 = vshll.u32 %v4943, 8
    %v4984 = vand.u32 %v4983, 65535
    %v4985 = vshrl.u32 %v4983, 16
    %v4986 = vand.u32 %v4982, 65535
    %v4987 = vshrl.u32 %v4982, 16
    %v4988 = vmul.u32 %v4984, %v4986
    %v4989 = vmul.u32 %v4984, %v4987
    %v4990 = vmul.u32 %v4985, %v4986
    %v4991 = vmul.u32 %v4985, %v4987
    %v4992 = vshll.u32 %v4989, 16
    %v4993 = vshrl.u32 %v4989, 16
    %v4994 = vshll.u32 %v4990, 16
    %v4995 = vshrl.u32 %v4990, 16
    %vm4996 = vc.u32 %v4988, %v4992
    %v4997 = vsel %vm4996, 1, 0
    %v4998 = vadd.s32 %v4988, %v4992
    %v4999 = vadd.s32 %v4991, %v4997
    %vm5000 = vc.u32 %v4998, %v4994
    %v5001 = vsel %vm5000, 1, 0
    %v5002 = vadd.s32 %v4998, %v4994
    %v5003 = vadd.s32 %v4999, %v5001
    %v5004 = vadd.s32 %v5003, %v4993
    %v5005 = vadd.s32 %v5004, %v4995
    %v5006 = vand.u32 %v4983, 65535
    %v5007 = vshrl.u32 %v4983, 16
    %v5008 = vand.u32 %v4978, 65535
    %v5009 = vshrl.u32 %v4978, 16
    %v5010 = vmul.u32 %v5006, %v5008
    %v5011 = vmul.u32 %v5006, %v5009
    %v5012 = vmul.u32 %v5007, %v5008
    %v5013 = vmul.u32 %v5007, %v5009
    %v5014 = vshll.u32 %v5011, 16
    %v5015 = vshrl.u32 %v5011, 16
    %v5016 = vshll.u32 %v5012, 16
    %v5017 = vshrl.u32 %v5012, 16
    %vm5018 = vc.u32 %v5010, %v5014
    %v5019 = vsel %vm5018, 1, 0
    %v5020 = vadd.s32 %v5010, %v5014
    %v5021 = vadd.s32 %v5013, %v5019
    %vm5022 = vc.u32 %v5020, %v5016
    %v5023 = vsel %vm5022, 1, 0
    %v5024 = vadd.s32 %v5020, %v5016
    %v5025 = vadd.s32 %v5021, %v5023
    %v5026 = vadd.s32 %v5025, %v5015
    %v5027 = vadd.s32 %v5026, %v5017
    %v5028 = vmul.u32 %v4983, %v4974
    %v5029 = vadd.s32 %v5005, %v5024
    %vm5030 = vc.u32 %v5005, %v5024
    %v5031 = vadd.s32 %v5027, 1
    %v5032 = vsel %vm5030, %v5031, %v5027
    %v5033 = vadd.s32 %v5028, %v5032
    %v5034 = vadd.s32 %v5033, 536870912
    %v5035 = vshrl.u32 %v5034, 30
    %v5036 = vshll.u32 %v5035, 30
    %v5037 = vsub.s32 %v5033, %v5036
    %vm5038 = vcmp.lt.s32.totalorder %v5037, 0
    %v5039 = vsub.s32 0, %v5037
    %v5040 = vsel %vm5038, %v5039, %v5037
    %v5041 = vclz %v5040
    %v5042 = vsub.s32 %v5041, 2
    %vm5043 = vcmp.gt.s32.totalorder 0, %v5042
    %v5044 = vsel %vm5043, 0, %v5042
    %v5045 = vsub.s32 32, %v5044
    %v5046 = vshll.u32 %v5037, %v5044
    %v5047 = vshrl.u32 %v5029, %v5045
    %v5048 = vor.u32 %v5046, %v5047
    %v5049 = vsub.s32 4294967266, %v5044
    %v5050 = vadd.s32 %v5049, 127
    %v5051 = vshll.u32 %v5050, 23
    %v5052 = vor.u32 4788187, %v5051
    %v5053 = vand.u32 2147483647, %v5052
    %v5055 = vcvt.s32.f32 %v5048
    %v5056 = vmul.f32 %v5055, %v5053
    %v5057 = vxor.u32 %v5056, 2147483648
    %v5058 = vsel %vm4937, %v5057, %v5056
    %v5059 = vsub.s32 4, %v5035
    %v5060 = vsel %vm4937, %v5059, %v5035
    %v5061 = vsel %vm4936, %v867, %v5058
    %v5062 = vsel %vm4936, 0, %v5060
    %v5063 = vmul.f32 %v5061, %v5061
    %v5064 = vmul.f32 %v5063, -0.001358992
    %v5065 = vadd.f32 %v5064, 0.041655596
    %v5066 = vmul.f32 %v5063, %v5065
    %v5067 = vadd.f32 %v5066, -0.4999988
    %v5068 = vmul.f32 %v5063, %v5067
    %v5069 = vadd.f32 1.0, %v5068
    %v5070 = vmul.f32 %v5061, %v5061
    %v5071 = vmul.f32 %v5070, -0.00019511016
    %v5072 = vadd.f32 %v5071, 0.008332121
    %v5073 = vmul.f32 %v5070, %v5072
    %v5074 = vadd.f32 %v5073, -0.16666654
    %v5075 = vmul.f32 %v5070, %v5074
    %v5076 = vadd.f32 %v5075, 1.0
    %v5077 = vmul.f32 %v5076, %v5061
    %vm5078 = vweird.f32 %v867
    %v5079 = vadd.s32 %v5062, 3
    %v5080 = vand.u32 %v5079, 3
    %vm5081 = vcmp.lt.s32.totalorder %v5080, 2
    %vm5082 = vcmp.eq.s32.totalorder %v5080, 0
    %v5083 = vxor.u32 %v5077, 2147483648
    %v5084 = vsel %vm5082, %v5069, %v5083
    %vm5085 = vcmp.eq.s32.totalorder %v5080, 2
    %v5086 = vxor.u32 %v5069, 2147483648
    %v5087 = vsel %vm5085, %v5086, %v5077
    %v5088 = vsel %vm5081, %v5084, %v5087
    %v5089 = vsel %vm5078, nan, %v5088
    %v5090 = vand.u32 2147483647, %v868
    %vm5091 = vcmp.le.f32.partialorder %v5090, 0.7853982
    %vm5092 = vcmp.lt.s32.totalorder %v868, 0
    %v5093 = vand.u32 %v868, 2139095040
    %v5094 = vshrl.u32 %v5093, 23
    %v5095 = vsub.s32 %v5094, 127
    %v5096 = vand.u32 2147483647, %v868
    %v5097 = vand.u32 %v5096, 8388607
    %v5098 = vor.u32 %v5097, 8388608
    %v5099 = vsub.s32 0, %v5098
    %v5100 = vadd.s32 %v5095, 1
    %vm5101 = vcmp.gt.s32.totalorder %v5100, 0
    %v5102 = vsel %vm5101, %v5100, 0
    %v5103 = vshrl.u32 %v5102, 5
    %v5104 = vand.u32 %v5102, 31
    %v5105 = vsub.s32 32, %v5104
    %v5106 = vshrl.u32 683565275, %v5105
    %v5107 = vshll.u32 683565275, %v5104
    %v5108 = vshrl.u32 2475754826, %v5105
    %v5109 = vor.u32 %v5107, %v5108
    %v5110 = vshll.u32 2475754826, %v5104
    %v5111 = vshrl.u32 2131351028, %v5105
    %v5112 = vor.u32 %v5110, %v5111
    %v5113 = vshll.u32 2131351028, %v5104
    %v5114 = vshrl.u32 2102212464, %v5105
    %v5115 = vor.u32 %v5113, %v5114
    %v5116 = vshll.u32 2102212464, %v5104
    %v5117 = vshrl.u32 920167782, %v5105
    %v5118 = vor.u32 %v5116, %v5117
    %v5119 = vshll.u32 920167782, %v5104
    %v5120 = vshrl.u32 1326507024, %v5105
    %v5121 = vor.u32 %v5119, %v5120
    %vm5122 = vcmp.lt.s32.totalorder %v5103, 1
    %vm5123 = vcmp.lt.s32.totalorder %v5103, 2
    %vm5124 = vcmp.lt.s32.totalorder %v5103, 3
    %vm5125 = vcmp.lt.s32.totalorder %v5103, 4
    %v5126 = vsel %vm5122, %v5106, %v5109
    %v5127 = vsel %vm5125, %v5115, 2102212464
    %v5128 = vsel %vm5124, %v5112, %v5127
    %v5129 = vsel %vm5123, %v5126, %v5128
    %v5130 = vsel %vm5122, %v5109, %v5112
    %v5131 = vsel %vm5125, %v5118, 920167782
    %v5132 = vsel %vm5124, %v5115, %v5131
    %v5133 = vsel %vm5123, %v5130, %v5132
    %v5134 = vsel %vm5122, %v5112, %v5115
    %v5135 = vsel %vm5125, %v5121, 1326507024
    %v5136 = vsel %vm5124, %v5118, %v5135
    %v5137 = vsel %vm5123, %v5134, %v5136
    %v5138 = vshll.u32 %v5098, 8
    %v5139 = vand.u32 %v5138, 65535
    %v5140 = vshrl.u32 %v5138, 16
    %v5141 = vand.u32 %v5137, 65535
    %v5142 = vshrl.u32 %v5137, 16
    %v5143 = vmul.u32 %v5139, %v5141
    %v5144 = vmul.u32 %v5139, %v5142
    %v5145 = vmul.u32 %v5140, %v5141
    %v5146 = vmul.u32 %v5140, %v5142
    %v5147 = vshll.u32 %v5144, 16
    %v5148 = vshrl.u32 %v5144, 16
    %v5149 = vshll.u32 %v5145, 16
    %v5150 = vshrl.u32 %v5145, 16
    %vm5151 = vc.u32 %v5143, %v5147
    %v5152 = vsel %vm5151, 1, 0
    %v5153 = vadd.s32 %v5143, %v5147
    %v5154 = vadd.s32 %v5146, %v5152
    %vm5155 = vc.u32 %v5153, %v5149
    %v5156 = vsel %vm5155, 1, 0
    %v5157 = vadd.s32 %v5153, %v5149
    %v5158 = vadd.s32 %v5154, %v5156
    %v5159 = vadd.s32 %v5158, %v5148
    %v5160 = vadd.s32 %v5159, %v5150
    %v5161 = vand.u32 %v5138, 65535
    %v5162 = vshrl.u32 %v5138, 16
    %v5163 = vand.u32 %v5133, 65535
    %v5164 = vshrl.u32 %v5133, 16
    %v5165 = vmul.u32 %v5161, %v5163
    %v5166 = vmul.u32 %v5161, %v5164
    %v5167 = vmul.u32 %v5162, %v5163
    %v5168 = vmul.u32 %v5162, %v5164
    %v5169 = vshll.u32 %v5166, 16
    %v5170 = vshrl.u32 %v5166, 16
    %v5171 = vshll.u32 %v5167, 16
    %v5172 = vshrl.u32 %v5167, 16
    %vm5173 = vc.u32 %v5165, %v5169
    %v5174 = vsel %vm5173, 1, 0
    %v5175 = vadd.s32 %v5165, %v5169
    %v5176 = vadd.s32 %v5168, %v5174
    %vm5177 = vc.u32 %v5175, %v5171
    %v5178 = vsel %vm5177, 1, 0
    %v5179 = vadd.s32 %v5175, %v5171
    %v5180 = vadd.s32 %v5176, %v5178
    %v5181 = vadd.s32 %v5180, %v5170
    %v5182 = vadd.s32 %v5181, %v5172
    %v5183 = vmul.u32 %v5138, %v5129
    %v5184 = vadd.s32 %v5160, %v5179
    %vm5185 = vc.u32 %v5160, %v5179
    %v5186 = vadd.s32 %v5182, 1
    %v5187 = vsel %vm5185, %v5186, %v5182
    %v5188 = vadd.s32 %v5183, %v5187
    %v5189 = vadd.s32 %v5188, 536870912
    %v5190 = vshrl.u32 %v5189, 30
    %v5191 = vshll.u32 %v5190, 30
    %v5192 = vsub.s32 %v5188, %v5191
    %vm5193 = vcmp.lt.s32.totalorder %v5192, 0
    %v5194 = vsub.s32 0, %v5192
    %v5195 = vsel %vm5193, %v5194, %v5192
    %v5196 = vclz %v5195
    %v5197 = vsub.s32 %v5196, 2
    %vm5198 = vcmp.gt.s32.totalorder 0, %v5197
    %v5199 = vsel %vm5198, 0, %v5197
    %v5200 = vsub.s32 32, %v5199
    %v5201 = vshll.u32 %v5192, %v5199
    %v5202 = vshrl.u32 %v5184, %v5200
    %v5203 = vor.u32 %v5201, %v5202
    %v5204 = vsub.s32 4294967266, %v5199
    %v5205 = vadd.s32 %v5204, 127
    %v5206 = vshll.u32 %v5205, 23
    %v5207 = vor.u32 4788187, %v5206
    %v5208 = vand.u32 2147483647, %v5207
    %v5210 = vcvt.s32.f32 %v5203
    %v5211 = vmul.f32 %v5210, %v5208
    %v5212 = vxor.u32 %v5211, 2147483648
    %v5213 = vsel %vm5092, %v5212, %v5211
    %v5214 = vsub.s32 4, %v5190
    %v5215 = vsel %vm5092, %v5214, %v5190
    %v5216 = vsel %vm5091, %v868, %v5213
    %v5217 = vsel %vm5091, 0, %v5215
    %v5218 = vmul.f32 %v5216, %v5216
    %v5219 = vmul.f32 %v5218, -0.001358992
    %v5220 = vadd.f32 %v5219, 0.041655596
    %v5221 = vmul.f32 %v5218, %v5220
    %v5222 = vadd.f32 %v5221, -0.4999988
    %v5223 = vmul.f32 %v5218, %v5222
    %v5224 = vadd.f32 1.0, %v5223
    %v5225 = vmul.f32 %v5216, %v5216
    %v5226 = vmul.f32 %v5225, -0.00019511016
    %v5227 = vadd.f32 %v5226, 0.008332121
    %v5228 = vmul.f32 %v5225, %v5227
    %v5229 = vadd.f32 %v5228, -0.16666654
    %v5230 = vmul.f32 %v5225, %v5229
    %v5231 = vadd.f32 %v5230, 1.0
    %v5232 = vmul.f32 %v5231, %v5216
    %vm5233 = vweird.f32 %v868
    %v5234 = vadd.s32 %v5217, 3
    %v5235 = vand.u32 %v5234, 3
    %vm5236 = vcmp.lt.s32.totalorder %v5235, 2
    %vm5237 = vcmp.eq.s32.totalorder %v5235, 0
    %v5238 = vxor.u32 %v5232, 2147483648
    %v5239 = vsel %vm5237, %v5224, %v5238
    %vm5240 = vcmp.eq.s32.totalorder %v5235, 2
    %v5241 = vxor.u32 %v5224, 2147483648
    %v5242 = vsel %vm5240, %v5241, %v5232
    %v5243 = vsel %vm5236, %v5239, %v5242
    %v5244 = vsel %vm5233, nan, %v5243
    %v5245 = vand.u32 2147483647, %v869
    %vm5246 = vcmp.le.f32.partialorder %v5245, 0.7853982
    %vm5247 = vcmp.lt.s32.totalorder %v869, 0
    %v5248 = vand.u32 %v869, 2139095040
    %v5249 = vshrl.u32 %v5248, 23
    %v5250 = vsub.s32 %v5249, 127
    %v5251 = vand.u32 2147483647, %v869
    %v5252 = vand.u32 %v5251, 8388607
    %v5253 = vor.u32 %v5252, 8388608
    %v5254 = vsub.s32 0, %v5253
    %v5255 = vadd.s32 %v5250, 1
    %vm5256 = vcmp.gt.s32.totalorder %v5255, 0
    %v5257 = vsel %vm5256, %v5255, 0
    %v5258 = vshrl.u32 %v5257, 5
    %v5259 = vand.u32 %v5257, 31
    %v5260 = vsub.s32 32, %v5259
    %v5261 = vshrl.u32 683565275, %v5260
    %v5262 = vshll.u32 683565275, %v5259
    %v5263 = vshrl.u32 2475754826, %v5260
    %v5264 = vor.u32 %v5262, %v5263
    %v5265 = vshll.u32 2475754826, %v5259
    %v5266 = vshrl.u32 2131351028, %v5260
    %v5267 = vor.u32 %v5265, %v5266
    %v5268 = vshll.u32 2131351028, %v5259
    %v5269 = vshrl.u32 2102212464, %v5260
    %v5270 = vor.u32 %v5268, %v5269
    %v5271 = vshll.u32 2102212464, %v5259
    %v5272 = vshrl.u32 920167782, %v5260
    %v5273 = vor.u32 %v5271, %v5272
    %v5274 = vshll.u32 920167782, %v5259
    %v5275 = vshrl.u32 1326507024, %v5260
    %v5276 = vor.u32 %v5274, %v5275
    %vm5277 = vcmp.lt.s32.totalorder %v5258, 1
    %vm5278 = vcmp.lt.s32.totalorder %v5258, 2
    %vm5279 = vcmp.lt.s32.totalorder %v5258, 3
    %vm5280 = vcmp.lt.s32.totalorder %v5258, 4
    %v5281 = vsel %vm5277, %v5261, %v5264
    %v5282 = vsel %vm5280, %v5270, 2102212464
    %v5283 = vsel %vm5279, %v5267, %v5282
    %v5284 = vsel %vm5278, %v5281, %v5283
    %v5285 = vsel %vm5277, %v5264, %v5267
    %v5286 = vsel %vm5280, %v5273, 920167782
    %v5287 = vsel %vm5279, %v5270, %v5286
    %v5288 = vsel %vm5278, %v5285, %v5287
    %v5289 = vsel %vm5277, %v5267, %v5270
    %v5290 = vsel %vm5280, %v5276, 1326507024
    %v5291 = vsel %vm5279, %v5273, %v5290
    %v5292 = vsel %vm5278, %v5289, %v5291
    %v5293 = vshll.u32 %v5253, 8
    %v5294 = vand.u32 %v5293, 65535
    %v5295 = vshrl.u32 %v5293, 16
    %v5296 = vand.u32 %v5292, 65535
    %v5297 = vshrl.u32 %v5292, 16
    %v5298 = vmul.u32 %v5294, %v5296
    %v5299 = vmul.u32 %v5294, %v5297
    %v5300 = vmul.u32 %v5295, %v5296
    %v5301 = vmul.u32 %v5295, %v5297
    %v5302 = vshll.u32 %v5299, 16
    %v5303 = vshrl.u32 %v5299, 16
    %v5304 = vshll.u32 %v5300, 16
    %v5305 = vshrl.u32 %v5300, 16
    %vm5306 = vc.u32 %v5298, %v5302
    %v5307 = vsel %vm5306, 1, 0
    %v5308 = vadd.s32 %v5298, %v5302
    %v5309 = vadd.s32 %v5301, %v5307
    %vm5310 = vc.u32 %v5308, %v5304
    %v5311 = vsel %vm5310, 1, 0
    %v5312 = vadd.s32 %v5308, %v5304
    %v5313 = vadd.s32 %v5309, %v5311
    %v5314 = vadd.s32 %v5313, %v5303
    %v5315 = vadd.s32 %v5314, %v5305
    %v5316 = vand.u32 %v5293, 65535
    %v5317 = vshrl.u32 %v5293, 16
    %v5318 = vand.u32 %v5288, 65535
    %v5319 = vshrl.u32 %v5288, 16
    %v5320 = vmul.u32 %v5316, %v5318
    %v5321 = vmul.u32 %v5316, %v5319
    %v5322 = vmul.u32 %v5317, %v5318
    %v5323 = vmul.u32 %v5317, %v5319
    %v5324 = vshll.u32 %v5321, 16
    %v5325 = vshrl.u32 %v5321, 16
    %v5326 = vshll.u32 %v5322, 16
    %v5327 = vshrl.u32 %v5322, 16
    %vm5328 = vc.u32 %v5320, %v5324
    %v5329 = vsel %vm5328, 1, 0
    %v5330 = vadd.s32 %v5320, %v5324
    %v5331 = vadd.s32 %v5323, %v5329
    %vm5332 = vc.u32 %v5330, %v5326
    %v5333 = vsel %vm5332, 1, 0
    %v5334 = vadd.s32 %v5330, %v5326
    %v5335 = vadd.s32 %v5331, %v5333
    %v5336 = vadd.s32 %v5335, %v5325
    %v5337 = vadd.s32 %v5336, %v5327
    %v5338 = vmul.u32 %v5293, %v5284
    %v5339 = vadd.s32 %v5315, %v5334
    %vm5340 = vc.u32 %v5315, %v5334
    %v5341 = vadd.s32 %v5337, 1
    %v5342 = vsel %vm5340, %v5341, %v5337
    %v5343 = vadd.s32 %v5338, %v5342
    %v5344 = vadd.s32 %v5343, 536870912
    %v5345 = vshrl.u32 %v5344, 30
    %v5346 = vshll.u32 %v5345, 30
    %v5347 = vsub.s32 %v5343, %v5346
    %vm5348 = vcmp.lt.s32.totalorder %v5347, 0
    %v5349 = vsub.s32 0, %v5347
    %v5350 = vsel %vm5348, %v5349, %v5347
    %v5351 = vclz %v5350
    %v5352 = vsub.s32 %v5351, 2
    %vm5353 = vcmp.gt.s32.totalorder 0, %v5352
    %v5354 = vsel %vm5353, 0, %v5352
    %v5355 = vsub.s32 32, %v5354
    %v5356 = vshll.u32 %v5347, %v5354
    %v5357 = vshrl.u32 %v5339, %v5355
    %v5358 = vor.u32 %v5356, %v5357
    %v5359 = vsub.s32 4294967266, %v5354
    %v5360 = vadd.s32 %v5359, 127
    %v5361 = vshll.u32 %v5360, 23
    %v5362 = vor.u32 4788187, %v5361
    %v5363 = vand.u32 2147483647, %v5362
    %v5365 = vcvt.s32.f32 %v5358
    %v5366 = vmul.f32 %v5365, %v5363
    %v5367 = vxor.u32 %v5366, 2147483648
    %v5368 = vsel %vm5247, %v5367, %v5366
    %v5369 = vsub.s32 4, %v5345
    %v5370 = vsel %vm5247, %v5369, %v5345
    %v5371 = vsel %vm5246, %v869, %v5368
    %v5372 = vsel %vm5246, 0, %v5370
    %v5373 = vmul.f32 %v5371, %v5371
    %v5374 = vmul.f32 %v5373, -0.001358992
    %v5375 = vadd.f32 %v5374, 0.041655596
    %v5376 = vmul.f32 %v5373, %v5375
    %v5377 = vadd.f32 %v5376, -0.4999988
    %v5378 = vmul.f32 %v5373, %v5377
    %v5379 = vadd.f32 1.0, %v5378
    %v5380 = vmul.f32 %v5371, %v5371
    %v5381 = vmul.f32 %v5380, -0.00019511016
    %v5382 = vadd.f32 %v5381, 0.008332121
    %v5383 = vmul.f32 %v5380, %v5382
    %v5384 = vadd.f32 %v5383, -0.16666654
    %v5385 = vmul.f32 %v5380, %v5384
    %v5386 = vadd.f32 %v5385, 1.0
    %v5387 = vmul.f32 %v5386, %v5371
    %vm5388 = vweird.f32 %v869
    %v5389 = vadd.s32 %v5372, 3
    %v5390 = vand.u32 %v5389, 3
    %vm5391 = vcmp.lt.s32.totalorder %v5390, 2
    %vm5392 = vcmp.eq.s32.totalorder %v5390, 0
    %v5393 = vxor.u32 %v5387, 2147483648
    %v5394 = vsel %vm5392, %v5379, %v5393
    %vm5395 = vcmp.eq.s32.totalorder %v5390, 2
    %v5396 = vxor.u32 %v5379, 2147483648
    %v5397 = vsel %vm5395, %v5396, %v5387
    %v5398 = vsel %vm5391, %v5394, %v5397
    %v5399 = vsel %vm5388, nan, %v5398
    %v5400 = vand.u32 2147483647, %v870
    %vm5401 = vcmp.le.f32.partialorder %v5400, 0.7853982
    %vm5402 = vcmp.lt.s32.totalorder %v870, 0
    %v5403 = vand.u32 %v870, 2139095040
    %v5404 = vshrl.u32 %v5403, 23
    %v5405 = vsub.s32 %v5404, 127
    %v5406 = vand.u32 2147483647, %v870
    %v5407 = vand.u32 %v5406, 8388607
    %v5408 = vor.u32 %v5407, 8388608
    %v5409 = vsub.s32 0, %v5408
    %v5410 = vadd.s32 %v5405, 1
    %vm5411 = vcmp.gt.s32.totalorder %v5410, 0
    %v5412 = vsel %vm5411, %v5410, 0
    %v5413 = vshrl.u32 %v5412, 5
    %v5414 = vand.u32 %v5412, 31
    %v5415 = vsub.s32 32, %v5414
    %v5416 = vshrl.u32 683565275, %v5415
    %v5417 = vshll.u32 683565275, %v5414
    %v5418 = vshrl.u32 2475754826, %v5415
    %v5419 = vor.u32 %v5417, %v5418
    %v5420 = vshll.u32 2475754826, %v5414
    %v5421 = vshrl.u32 2131351028, %v5415
    %v5422 = vor.u32 %v5420, %v5421
    %v5423 = vshll.u32 2131351028, %v5414
    %v5424 = vshrl.u32 2102212464, %v5415
    %v5425 = vor.u32 %v5423, %v5424
    %v5426 = vshll.u32 2102212464, %v5414
    %v5427 = vshrl.u32 920167782, %v5415
    %v5428 = vor.u32 %v5426, %v5427
    %v5429 = vshll.u32 920167782, %v5414
    %v5430 = vshrl.u32 1326507024, %v5415
    %v5431 = vor.u32 %v5429, %v5430
    %vm5432 = vcmp.lt.s32.totalorder %v5413, 1
    %vm5433 = vcmp.lt.s32.totalorder %v5413, 2
    %vm5434 = vcmp.lt.s32.totalorder %v5413, 3
    %vm5435 = vcmp.lt.s32.totalorder %v5413, 4
    %v5436 = vsel %vm5432, %v5416, %v5419
    %v5437 = vsel %vm5435, %v5425, 2102212464
    %v5438 = vsel %vm5434, %v5422, %v5437
    %v5439 = vsel %vm5433, %v5436, %v5438
    %v5440 = vsel %vm5432, %v5419, %v5422
    %v5441 = vsel %vm5435, %v5428, 920167782
    %v5442 = vsel %vm5434, %v5425, %v5441
    %v5443 = vsel %vm5433, %v5440, %v5442
    %v5444 = vsel %vm5432, %v5422, %v5425
    %v5445 = vsel %vm5435, %v5431, 1326507024
    %v5446 = vsel %vm5434, %v5428, %v5445
    %v5447 = vsel %vm5433, %v5444, %v5446
    %v5448 = vshll.u32 %v5408, 8
    %v5449 = vand.u32 %v5448, 65535
    %v5450 = vshrl.u32 %v5448, 16
    %v5451 = vand.u32 %v5447, 65535
    %v5452 = vshrl.u32 %v5447, 16
    %v5453 = vmul.u32 %v5449, %v5451
    %v5454 = vmul.u32 %v5449, %v5452
    %v5455 = vmul.u32 %v5450, %v5451
    %v5456 = vmul.u32 %v5450, %v5452
    %v5457 = vshll.u32 %v5454, 16
    %v5458 = vshrl.u32 %v5454, 16
    %v5459 = vshll.u32 %v5455, 16
    %v5460 = vshrl.u32 %v5455, 16
    %vm5461 = vc.u32 %v5453, %v5457
    %v5462 = vsel %vm5461, 1, 0
    %v5463 = vadd.s32 %v5453, %v5457
    %v5464 = vadd.s32 %v5456, %v5462
    %vm5465 = vc.u32 %v5463, %v5459
    %v5466 = vsel %vm5465, 1, 0
    %v5467 = vadd.s32 %v5463, %v5459
    %v5468 = vadd.s32 %v5464, %v5466
    %v5469 = vadd.s32 %v5468, %v5458
    %v5470 = vadd.s32 %v5469, %v5460
    %v5471 = vand.u32 %v5448, 65535
    %v5472 = vshrl.u32 %v5448, 16
    %v5473 = vand.u32 %v5443, 65535
    %v5474 = vshrl.u32 %v5443, 16
    %v5475 = vmul.u32 %v5471, %v5473
    %v5476 = vmul.u32 %v5471, %v5474
    %v5477 = vmul.u32 %v5472, %v5473
    %v5478 = vmul.u32 %v5472, %v5474
    %v5479 = vshll.u32 %v5476, 16
    %v5480 = vshrl.u32 %v5476, 16
    %v5481 = vshll.u32 %v5477, 16
    %v5482 = vshrl.u32 %v5477, 16
    %vm5483 = vc.u32 %v5475, %v5479
    %v5484 = vsel %vm5483, 1, 0
    %v5485 = vadd.s32 %v5475, %v5479
    %v5486 = vadd.s32 %v5478, %v5484
    %vm5487 = vc.u32 %v5485, %v5481
    %v5488 = vsel %vm5487, 1, 0
    %v5489 = vadd.s32 %v5485, %v5481
    %v5490 = vadd.s32 %v5486, %v5488
    %v5491 = vadd.s32 %v5490, %v5480
    %v5492 = vadd.s32 %v5491, %v5482
    %v5493 = vmul.u32 %v5448, %v5439
    %v5494 = vadd.s32 %v5470, %v5489
    %vm5495 = vc.u32 %v5470, %v5489
    %v5496 = vadd.s32 %v5492, 1
    %v5497 = vsel %vm5495, %v5496, %v5492
    %v5498 = vadd.s32 %v5493, %v5497
    %v5499 = vadd.s32 %v5498, 536870912
    %v5500 = vshrl.u32 %v5499, 30
    %v5501 = vshll.u32 %v5500, 30
    %v5502 = vsub.s32 %v5498, %v5501
    %vm5503 = vcmp.lt.s32.totalorder %v5502, 0
    %v5504 = vsub.s32 0, %v5502
    %v5505 = vsel %vm5503, %v5504, %v5502
    %v5506 = vclz %v5505
    %v5507 = vsub.s32 %v5506, 2
    %vm5508 = vcmp.gt.s32.totalorder 0, %v5507
    %v5509 = vsel %vm5508, 0, %v5507
    %v5510 = vsub.s32 32, %v5509
    %v5511 = vshll.u32 %v5502, %v5509
    %v5512 = vshrl.u32 %v5494, %v5510
    %v5513 = vor.u32 %v5511, %v5512
    %v5514 = vsub.s32 4294967266, %v5509
    %v5515 = vadd.s32 %v5514, 127
    %v5516 = vshll.u32 %v5515, 23
    %v5517 = vor.u32 4788187, %v5516
    %v5518 = vand.u32 2147483647, %v5517
    %v5520 = vcvt.s32.f32 %v5513
    %v5521 = vmul.f32 %v5520, %v5518
    %v5522 = vxor.u32 %v5521, 2147483648
    %v5523 = vsel %vm5402, %v5522, %v5521
    %v5524 = vsub.s32 4, %v5500
    %v5525 = vsel %vm5402, %v5524, %v5500
    %v5526 = vsel %vm5401, %v870, %v5523
    %v5527 = vsel %vm5401, 0, %v5525
    %v5528 = vmul.f32 %v5526, %v5526
    %v5529 = vmul.f32 %v5528, -0.001358992
    %v5530 = vadd.f32 %v5529, 0.041655596
    %v5531 = vmul.f32 %v5528, %v5530
    %v5532 = vadd.f32 %v5531, -0.4999988
    %v5533 = vmul.f32 %v5528, %v5532
    %v5534 = vadd.f32 1.0, %v5533
    %v5535 = vmul.f32 %v5526, %v5526
    %v5536 = vmul.f32 %v5535, -0.00019511016
    %v5537 = vadd.f32 %v5536, 0.008332121
    %v5538 = vmul.f32 %v5535, %v5537
    %v5539 = vadd.f32 %v5538, -0.16666654
    %v5540 = vmul.f32 %v5535, %v5539
    %v5541 = vadd.f32 %v5540, 1.0
    %v5542 = vmul.f32 %v5541, %v5526
    %vm5543 = vweird.f32 %v870
    %v5544 = vadd.s32 %v5527, 3
    %v5545 = vand.u32 %v5544, 3
    %vm5546 = vcmp.lt.s32.totalorder %v5545, 2
    %vm5547 = vcmp.eq.s32.totalorder %v5545, 0
    %v5548 = vxor.u32 %v5542, 2147483648
    %v5549 = vsel %vm5547, %v5534, %v5548
    %vm5550 = vcmp.eq.s32.totalorder %v5545, 2
    %v5551 = vxor.u32 %v5534, 2147483648
    %v5552 = vsel %vm5550, %v5551, %v5542
    %v5553 = vsel %vm5546, %v5549, %v5552
    %v5554 = vsel %vm5543, nan, %v5553
    %v5555 = vand.u32 2147483647, %v871
    %vm5556 = vcmp.le.f32.partialorder %v5555, 0.7853982
    %vm5557 = vcmp.lt.s32.totalorder %v871, 0
    %v5558 = vand.u32 %v871, 2139095040
    %v5559 = vshrl.u32 %v5558, 23
    %v5560 = vsub.s32 %v5559, 127
    %v5561 = vand.u32 2147483647, %v871
    %v5562 = vand.u32 %v5561, 8388607
    %v5563 = vor.u32 %v5562, 8388608
    %v5564 = vsub.s32 0, %v5563
    %v5565 = vadd.s32 %v5560, 1
    %vm5566 = vcmp.gt.s32.totalorder %v5565, 0
    %v5567 = vsel %vm5566, %v5565, 0
    %v5568 = vshrl.u32 %v5567, 5
    %v5569 = vand.u32 %v5567, 31
    %v5570 = vsub.s32 32, %v5569
    %v5571 = vshrl.u32 683565275, %v5570
    %v5572 = vshll.u32 683565275, %v5569
    %v5573 = vshrl.u32 2475754826, %v5570
    %v5574 = vor.u32 %v5572, %v5573
    %v5575 = vshll.u32 2475754826, %v5569
    %v5576 = vshrl.u32 2131351028, %v5570
    %v5577 = vor.u32 %v5575, %v5576
    %v5578 = vshll.u32 2131351028, %v5569
    %v5579 = vshrl.u32 2102212464, %v5570
    %v5580 = vor.u32 %v5578, %v5579
    %v5581 = vshll.u32 2102212464, %v5569
    %v5582 = vshrl.u32 920167782, %v5570
    %v5583 = vor.u32 %v5581, %v5582
    %v5584 = vshll.u32 920167782, %v5569
    %v5585 = vshrl.u32 1326507024, %v5570
    %v5586 = vor.u32 %v5584, %v5585
    %vm5587 = vcmp.lt.s32.totalorder %v5568, 1
    %vm5588 = vcmp.lt.s32.totalorder %v5568, 2
    %vm5589 = vcmp.lt.s32.totalorder %v5568, 3
    %vm5590 = vcmp.lt.s32.totalorder %v5568, 4
    %v5591 = vsel %vm5587, %v5571, %v5574
    %v5592 = vsel %vm5590, %v5580, 2102212464
    %v5593 = vsel %vm5589, %v5577, %v5592
    %v5594 = vsel %vm5588, %v5591, %v5593
    %v5595 = vsel %vm5587, %v5574, %v5577
    %v5596 = vsel %vm5590, %v5583, 920167782
    %v5597 = vsel %vm5589, %v5580, %v5596
    %v5598 = vsel %vm5588, %v5595, %v5597
    %v5599 = vsel %vm5587, %v5577, %v5580
    %v5600 = vsel %vm5590, %v5586, 1326507024
    %v5601 = vsel %vm5589, %v5583, %v5600
    %v5602 = vsel %vm5588, %v5599, %v5601
    %v5603 = vshll.u32 %v5563, 8
    %v5604 = vand.u32 %v5603, 65535
    %v5605 = vshrl.u32 %v5603, 16
    %v5606 = vand.u32 %v5602, 65535
    %v5607 = vshrl.u32 %v5602, 16
    %v5608 = vmul.u32 %v5604, %v5606
    %v5609 = vmul.u32 %v5604, %v5607
    %v5610 = vmul.u32 %v5605, %v5606
    %v5611 = vmul.u32 %v5605, %v5607
    %v5612 = vshll.u32 %v5609, 16
    %v5613 = vshrl.u32 %v5609, 16
    %v5614 = vshll.u32 %v5610, 16
    %v5615 = vshrl.u32 %v5610, 16
    %vm5616 = vc.u32 %v5608, %v5612
    %v5617 = vsel %vm5616, 1, 0
    %v5618 = vadd.s32 %v5608, %v5612
    %v5619 = vadd.s32 %v5611, %v5617
    %vm5620 = vc.u32 %v5618, %v5614
    %v5621 = vsel %vm5620, 1, 0
    %v5622 = vadd.s32 %v5618, %v5614
    %v5623 = vadd.s32 %v5619, %v5621
    %v5624 = vadd.s32 %v5623, %v5613
    %v5625 = vadd.s32 %v5624, %v5615
    %v5626 = vand.u32 %v5603, 65535
    %v5627 = vshrl.u32 %v5603, 16
    %v5628 = vand.u32 %v5598, 65535
    %v5629 = vshrl.u32 %v5598, 16
    %v5630 = vmul.u32 %v5626, %v5628
    %v5631 = vmul.u32 %v5626, %v5629
    %v5632 = vmul.u32 %v5627, %v5628
    %v5633 = vmul.u32 %v5627, %v5629
    %v5634 = vshll.u32 %v5631, 16
    %v5635 = vshrl.u32 %v5631, 16
    %v5636 = vshll.u32 %v5632, 16
    %v5637 = vshrl.u32 %v5632, 16
    %vm5638 = vc.u32 %v5630, %v5634
    %v5639 = vsel %vm5638, 1, 0
    %v5640 = vadd.s32 %v5630, %v5634
    %v5641 = vadd.s32 %v5633, %v5639
    %vm5642 = vc.u32 %v5640, %v5636
    %v5643 = vsel %vm5642, 1, 0
    %v5644 = vadd.s32 %v5640, %v5636
    %v5645 = vadd.s32 %v5641, %v5643
    %v5646 = vadd.s32 %v5645, %v5635
    %v5647 = vadd.s32 %v5646, %v5637
    %v5648 = vmul.u32 %v5603, %v5594
    %v5649 = vadd.s32 %v5625, %v5644
    %vm5650 = vc.u32 %v5625, %v5644
    %v5651 = vadd.s32 %v5647, 1
    %v5652 = vsel %vm5650, %v5651, %v5647
    %v5653 = vadd.s32 %v5648, %v5652
    %v5654 = vadd.s32 %v5653, 536870912
    %v5655 = vshrl.u32 %v5654, 30
    %v5656 = vshll.u32 %v5655, 30
    %v5657 = vsub.s32 %v5653, %v5656
    %vm5658 = vcmp.lt.s32.totalorder %v5657, 0
    %v5659 = vsub.s32 0, %v5657
    %v5660 = vsel %vm5658, %v5659, %v5657
    %v5661 = vclz %v5660
    %v5662 = vsub.s32 %v5661, 2
    %vm5663 = vcmp.gt.s32.totalorder 0, %v5662
    %v5664 = vsel %vm5663, 0, %v5662
    %v5665 = vsub.s32 32, %v5664
    %v5666 = vshll.u32 %v5657, %v5664
    %v5667 = vshrl.u32 %v5649, %v5665
    %v5668 = vor.u32 %v5666, %v5667
    %v5669 = vsub.s32 4294967266, %v5664
    %v5670 = vadd.s32 %v5669, 127
    %v5671 = vshll.u32 %v5670, 23
    %v5672 = vor.u32 4788187, %v5671
    %v5673 = vand.u32 2147483647, %v5672
    %v5675 = vcvt.s32.f32 %v5668
    %v5676 = vmul.f32 %v5675, %v5673
    %v5677 = vxor.u32 %v5676, 2147483648
    %v5678 = vsel %vm5557, %v5677, %v5676
    %v5679 = vsub.s32 4, %v5655
    %v5680 = vsel %vm5557, %v5679, %v5655
    %v5681 = vsel %vm5556, %v871, %v5678
    %v5682 = vsel %vm5556, 0, %v5680
    %v5683 = vmul.f32 %v5681, %v5681
    %v5684 = vmul.f32 %v5683, -0.001358992
    %v5685 = vadd.f32 %v5684, 0.041655596
    %v5686 = vmul.f32 %v5683, %v5685
    %v5687 = vadd.f32 %v5686, -0.4999988
    %v5688 = vmul.f32 %v5683, %v5687
    %v5689 = vadd.f32 1.0, %v5688
    %v5690 = vmul.f32 %v5681, %v5681
    %v5691 = vmul.f32 %v5690, -0.00019511016
    %v5692 = vadd.f32 %v5691, 0.008332121
    %v5693 = vmul.f32 %v5690, %v5692
    %v5694 = vadd.f32 %v5693, -0.16666654
    %v5695 = vmul.f32 %v5690, %v5694
    %v5696 = vadd.f32 %v5695, 1.0
    %v5697 = vmul.f32 %v5696, %v5681
    %vm5698 = vweird.f32 %v871
    %v5699 = vadd.s32 %v5682, 3
    %v5700 = vand.u32 %v5699, 3
    %vm5701 = vcmp.lt.s32.totalorder %v5700, 2
    %vm5702 = vcmp.eq.s32.totalorder %v5700, 0
    %v5703 = vxor.u32 %v5697, 2147483648
    %v5704 = vsel %vm5702, %v5689, %v5703
    %vm5705 = vcmp.eq.s32.totalorder %v5700, 2
    %v5706 = vxor.u32 %v5689, 2147483648
    %v5707 = vsel %vm5705, %v5706, %v5697
    %v5708 = vsel %vm5701, %v5704, %v5707
    %v5709 = vsel %vm5698, nan, %v5708
    %v5710 = vand.u32 2147483647, %v872
    %vm5711 = vcmp.le.f32.partialorder %v5710, 0.7853982
    %vm5712 = vcmp.lt.s32.totalorder %v872, 0
    %v5713 = vand.u32 %v872, 2139095040
    %v5714 = vshrl.u32 %v5713, 23
    %v5715 = vsub.s32 %v5714, 127
    %v5716 = vand.u32 2147483647, %v872
    %v5717 = vand.u32 %v5716, 8388607
    %v5718 = vor.u32 %v5717, 8388608
    %v5719 = vsub.s32 0, %v5718
    %v5720 = vadd.s32 %v5715, 1
    %vm5721 = vcmp.gt.s32.totalorder %v5720, 0
    %v5722 = vsel %vm5721, %v5720, 0
    %v5723 = vshrl.u32 %v5722, 5
    %v5724 = vand.u32 %v5722, 31
    %v5725 = vsub.s32 32, %v5724
    %v5726 = vshrl.u32 683565275, %v5725
    %v5727 = vshll.u32 683565275, %v5724
    %v5728 = vshrl.u32 2475754826, %v5725
    %v5729 = vor.u32 %v5727, %v5728
    %v5730 = vshll.u32 2475754826, %v5724
    %v5731 = vshrl.u32 2131351028, %v5725
    %v5732 = vor.u32 %v5730, %v5731
    %v5733 = vshll.u32 2131351028, %v5724
    %v5734 = vshrl.u32 2102212464, %v5725
    %v5735 = vor.u32 %v5733, %v5734
    %v5736 = vshll.u32 2102212464, %v5724
    %v5737 = vshrl.u32 920167782, %v5725
    %v5738 = vor.u32 %v5736, %v5737
    %v5739 = vshll.u32 920167782, %v5724
    %v5740 = vshrl.u32 1326507024, %v5725
    %v5741 = vor.u32 %v5739, %v5740
    %vm5742 = vcmp.lt.s32.totalorder %v5723, 1
    %vm5743 = vcmp.lt.s32.totalorder %v5723, 2
    %vm5744 = vcmp.lt.s32.totalorder %v5723, 3
    %vm5745 = vcmp.lt.s32.totalorder %v5723, 4
    %v5746 = vsel %vm5742, %v5726, %v5729
    %v5747 = vsel %vm5745, %v5735, 2102212464
    %v5748 = vsel %vm5744, %v5732, %v5747
    %v5749 = vsel %vm5743, %v5746, %v5748
    %v5750 = vsel %vm5742, %v5729, %v5732
    %v5751 = vsel %vm5745, %v5738, 920167782
    %v5752 = vsel %vm5744, %v5735, %v5751
    %v5753 = vsel %vm5743, %v5750, %v5752
    %v5754 = vsel %vm5742, %v5732, %v5735
    %v5755 = vsel %vm5745, %v5741, 1326507024
    %v5756 = vsel %vm5744, %v5738, %v5755
    %v5757 = vsel %vm5743, %v5754, %v5756
    %v5758 = vshll.u32 %v5718, 8
    %v5759 = vand.u32 %v5758, 65535
    %v5760 = vshrl.u32 %v5758, 16
    %v5761 = vand.u32 %v5757, 65535
    %v5762 = vshrl.u32 %v5757, 16
    %v5763 = vmul.u32 %v5759, %v5761
    %v5764 = vmul.u32 %v5759, %v5762
    %v5765 = vmul.u32 %v5760, %v5761
    %v5766 = vmul.u32 %v5760, %v5762
    %v5767 = vshll.u32 %v5764, 16
    %v5768 = vshrl.u32 %v5764, 16
    %v5769 = vshll.u32 %v5765, 16
    %v5770 = vshrl.u32 %v5765, 16
    %vm5771 = vc.u32 %v5763, %v5767
    %v5772 = vsel %vm5771, 1, 0
    %v5773 = vadd.s32 %v5763, %v5767
    %v5774 = vadd.s32 %v5766, %v5772
    %vm5775 = vc.u32 %v5773, %v5769
    %v5776 = vsel %vm5775, 1, 0
    %v5777 = vadd.s32 %v5773, %v5769
    %v5778 = vadd.s32 %v5774, %v5776
    %v5779 = vadd.s32 %v5778, %v5768
    %v5780 = vadd.s32 %v5779, %v5770
    %v5781 = vand.u32 %v5758, 65535
    %v5782 = vshrl.u32 %v5758, 16
    %v5783 = vand.u32 %v5753, 65535
    %v5784 = vshrl.u32 %v5753, 16
    %v5785 = vmul.u32 %v5781, %v5783
    %v5786 = vmul.u32 %v5781, %v5784
    %v5787 = vmul.u32 %v5782, %v5783
    %v5788 = vmul.u32 %v5782, %v5784
    %v5789 = vshll.u32 %v5786, 16
    %v5790 = vshrl.u32 %v5786, 16
    %v5791 = vshll.u32 %v5787, 16
    %v5792 = vshrl.u32 %v5787, 16
    %vm5793 = vc.u32 %v5785, %v5789
    %v5794 = vsel %vm5793, 1, 0
    %v5795 = vadd.s32 %v5785, %v5789
    %v5796 = vadd.s32 %v5788, %v5794
    %vm5797 = vc.u32 %v5795, %v5791
    %v5798 = vsel %vm5797, 1, 0
    %v5799 = vadd.s32 %v5795, %v5791
    %v5800 = vadd.s32 %v5796, %v5798
    %v5801 = vadd.s32 %v5800, %v5790
    %v5802 = vadd.s32 %v5801, %v5792
    %v5803 = vmul.u32 %v5758, %v5749
    %v5804 = vadd.s32 %v5780, %v5799
    %vm5805 = vc.u32 %v5780, %v5799
    %v5806 = vadd.s32 %v5802, 1
    %v5807 = vsel %vm5805, %v5806, %v5802
    %v5808 = vadd.s32 %v5803, %v5807
    %v5809 = vadd.s32 %v5808, 536870912
    %v5810 = vshrl.u32 %v5809, 30
    %v5811 = vshll.u32 %v5810, 30
    %v5812 = vsub.s32 %v5808, %v5811
    %vm5813 = vcmp.lt.s32.totalorder %v5812, 0
    %v5814 = vsub.s32 0, %v5812
    %v5815 = vsel %vm5813, %v5814, %v5812
    %v5816 = vclz %v5815
    %v5817 = vsub.s32 %v5816, 2
    %vm5818 = vcmp.gt.s32.totalorder 0, %v5817
    %v5819 = vsel %vm5818, 0, %v5817
    %v5820 = vsub.s32 32, %v5819
    %v5821 = vshll.u32 %v5812, %v5819
    %v5822 = vshrl.u32 %v5804, %v5820
    %v5823 = vor.u32 %v5821, %v5822
    %v5824 = vsub.s32 4294967266, %v5819
    %v5825 = vadd.s32 %v5824, 127
    %v5826 = vshll.u32 %v5825, 23
    %v5827 = vor.u32 4788187, %v5826
    %v5828 = vand.u32 2147483647, %v5827
    %v5830 = vcvt.s32.f32 %v5823
    %v5831 = vmul.f32 %v5830, %v5828
    %v5832 = vxor.u32 %v5831, 2147483648
    %v5833 = vsel %vm5712, %v5832, %v5831
    %v5834 = vsub.s32 4, %v5810
    %v5835 = vsel %vm5712, %v5834, %v5810
    %v5836 = vsel %vm5711, %v872, %v5833
    %v5837 = vsel %vm5711, 0, %v5835
    %v5838 = vmul.f32 %v5836, %v5836
    %v5839 = vmul.f32 %v5838, -0.001358992
    %v5840 = vadd.f32 %v5839, 0.041655596
    %v5841 = vmul.f32 %v5838, %v5840
    %v5842 = vadd.f32 %v5841, -0.4999988
    %v5843 = vmul.f32 %v5838, %v5842
    %v5844 = vadd.f32 1.0, %v5843
    %v5845 = vmul.f32 %v5836, %v5836
    %v5846 = vmul.f32 %v5845, -0.00019511016
    %v5847 = vadd.f32 %v5846, 0.008332121
    %v5848 = vmul.f32 %v5845, %v5847
    %v5849 = vadd.f32 %v5848, -0.16666654
    %v5850 = vmul.f32 %v5845, %v5849
    %v5851 = vadd.f32 %v5850, 1.0
    %v5852 = vmul.f32 %v5851, %v5836
    %vm5853 = vweird.f32 %v872
    %v5854 = vadd.s32 %v5837, 3
    %v5855 = vand.u32 %v5854, 3
    %vm5856 = vcmp.lt.s32.totalorder %v5855, 2
    %vm5857 = vcmp.eq.s32.totalorder %v5855, 0
    %v5858 = vxor.u32 %v5852, 2147483648
    %v5859 = vsel %vm5857, %v5844, %v5858
    %vm5860 = vcmp.eq.s32.totalorder %v5855, 2
    %v5861 = vxor.u32 %v5844, 2147483648
    %v5862 = vsel %vm5860, %v5861, %v5852
    %v5863 = vsel %vm5856, %v5859, %v5862
    %v5864 = vsel %vm5853, nan, %v5863
    %v5865 = vand.u32 2147483647, %v841
    %vm5866 = vcmp.le.f32.partialorder %v5865, 0.7853982
    %vm5867 = vcmp.lt.s32.totalorder %v841, 0
    %v5868 = vand.u32 %v841, 2139095040
    %v5869 = vshrl.u32 %v5868, 23
    %v5870 = vsub.s32 %v5869, 127
    %v5871 = vand.u32 2147483647, %v841
    %v5872 = vand.u32 %v5871, 8388607
    %v5873 = vor.u32 %v5872, 8388608
    %v5874 = vsub.s32 0, %v5873
    %v5875 = vadd.s32 %v5870, 1
    %vm5876 = vcmp.gt.s32.totalorder %v5875, 0
    %v5877 = vsel %vm5876, %v5875, 0
    %v5878 = vshrl.u32 %v5877, 5
    %v5879 = vand.u32 %v5877, 31
    %v5880 = vsub.s32 32, %v5879
    %v5881 = vshrl.u32 683565275, %v5880
    %v5882 = vshll.u32 683565275, %v5879
    %v5883 = vshrl.u32 2475754826, %v5880
    %v5884 = vor.u32 %v5882, %v5883
    %v5885 = vshll.u32 2475754826, %v5879
    %v5886 = vshrl.u32 2131351028, %v5880
    %v5887 = vor.u32 %v5885, %v5886
    %v5888 = vshll.u32 2131351028, %v5879
    %v5889 = vshrl.u32 2102212464, %v5880
    %v5890 = vor.u32 %v5888, %v5889
    %v5891 = vshll.u32 2102212464, %v5879
    %v5892 = vshrl.u32 920167782, %v5880
    %v5893 = vor.u32 %v5891, %v5892
    %v5894 = vshll.u32 920167782, %v5879
    %v5895 = vshrl.u32 1326507024, %v5880
    %v5896 = vor.u32 %v5894, %v5895
    %vm5897 = vcmp.lt.s32.totalorder %v5878, 1
    %vm5898 = vcmp.lt.s32.totalorder %v5878, 2
    %vm5899 = vcmp.lt.s32.totalorder %v5878, 3
    %vm5900 = vcmp.lt.s32.totalorder %v5878, 4
    %v5901 = vsel %vm5897, %v5881, %v5884
    %v5902 = vsel %vm5900, %v5890, 2102212464
    %v5903 = vsel %vm5899, %v5887, %v5902
    %v5904 = vsel %vm5898, %v5901, %v5903
    %v5905 = vsel %vm5897, %v5884, %v5887
    %v5906 = vsel %vm5900, %v5893, 920167782
    %v5907 = vsel %vm5899, %v5890, %v5906
    %v5908 = vsel %vm5898, %v5905, %v5907
    %v5909 = vsel %vm5897, %v5887, %v5890
    %v5910 = vsel %vm5900, %v5896, 1326507024
    %v5911 = vsel %vm5899, %v5893, %v5910
    %v5912 = vsel %vm5898, %v5909, %v5911
    %v5913 = vshll.u32 %v5873, 8
    %v5914 = vand.u32 %v5913, 65535
    %v5915 = vshrl.u32 %v5913, 16
    %v5916 = vand.u32 %v5912, 65535
    %v5917 = vshrl.u32 %v5912, 16
    %v5918 = vmul.u32 %v5914, %v5916
    %v5919 = vmul.u32 %v5914, %v5917
    %v5920 = vmul.u32 %v5915, %v5916
    %v5921 = vmul.u32 %v5915, %v5917
    %v5922 = vshll.u32 %v5919, 16
    %v5923 = vshrl.u32 %v5919, 16
    %v5924 = vshll.u32 %v5920, 16
    %v5925 = vshrl.u32 %v5920, 16
    %vm5926 = vc.u32 %v5918, %v5922
    %v5927 = vsel %vm5926, 1, 0
    %v5928 = vadd.s32 %v5918, %v5922
    %v5929 = vadd.s32 %v5921, %v5927
    %vm5930 = vc.u32 %v5928, %v5924
    %v5931 = vsel %vm5930, 1, 0
    %v5932 = vadd.s32 %v5928, %v5924
    %v5933 = vadd.s32 %v5929, %v5931
    %v5934 = vadd.s32 %v5933, %v5923
    %v5935 = vadd.s32 %v5934, %v5925
    %v5936 = vand.u32 %v5913, 65535
    %v5937 = vshrl.u32 %v5913, 16
    %v5938 = vand.u32 %v5908, 65535
    %v5939 = vshrl.u32 %v5908, 16
    %v5940 = vmul.u32 %v5936, %v5938
    %v5941 = vmul.u32 %v5936, %v5939
    %v5942 = vmul.u32 %v5937, %v5938
    %v5943 = vmul.u32 %v5937, %v5939
    %v5944 = vshll.u32 %v5941, 16
    %v5945 = vshrl.u32 %v5941, 16
    %v5946 = vshll.u32 %v5942, 16
    %v5947 = vshrl.u32 %v5942, 16
    %vm5948 = vc.u32 %v5940, %v5944
    %v5949 = vsel %vm5948, 1, 0
    %v5950 = vadd.s32 %v5940, %v5944
    %v5951 = vadd.s32 %v5943, %v5949
    %vm5952 = vc.u32 %v5950, %v5946
    %v5953 = vsel %vm5952, 1, 0
    %v5954 = vadd.s32 %v5950, %v5946
    %v5955 = vadd.s32 %v5951, %v5953
    %v5956 = vadd.s32 %v5955, %v5945
    %v5957 = vadd.s32 %v5956, %v5947
    %v5958 = vmul.u32 %v5913, %v5904
    %v5959 = vadd.s32 %v5935, %v5954
    %vm5960 = vc.u32 %v5935, %v5954
    %v5961 = vadd.s32 %v5957, 1
    %v5962 = vsel %vm5960, %v5961, %v5957
    %v5963 = vadd.s32 %v5958, %v5962
    %v5964 = vadd.s32 %v5963, 536870912
    %v5965 = vshrl.u32 %v5964, 30
    %v5966 = vshll.u32 %v5965, 30
    %v5967 = vsub.s32 %v5963, %v5966
    %vm5968 = vcmp.lt.s32.totalorder %v5967, 0
    %v5969 = vsub.s32 0, %v5967
    %v5970 = vsel %vm5968, %v5969, %v5967
    %v5971 = vclz %v5970
    %v5972 = vsub.s32 %v5971, 2
    %vm5973 = vcmp.gt.s32.totalorder 0, %v5972
    %v5974 = vsel %vm5973, 0, %v5972
    %v5975 = vsub.s32 32, %v5974
    %v5976 = vshll.u32 %v5967, %v5974
    %v5977 = vshrl.u32 %v5959, %v5975
    %v5978 = vor.u32 %v5976, %v5977
    %v5979 = vsub.s32 4294967266, %v5974
    %v5980 = vadd.s32 %v5979, 127
    %v5981 = vshll.u32 %v5980, 23
    %v5982 = vor.u32 4788187, %v5981
    %v5983 = vand.u32 2147483647, %v5982
    %v5985 = vcvt.s32.f32 %v5978
    %v5986 = vmul.f32 %v5985, %v5983
    %v5987 = vxor.u32 %v5986, 2147483648
    %v5988 = vsel %vm5867, %v5987, %v5986
    %v5989 = vsub.s32 4, %v5965
    %v5990 = vsel %vm5867, %v5989, %v5965
    %v5991 = vsel %vm5866, %v841, %v5988
    %v5992 = vsel %vm5866, 0, %v5990
    %v5993 = vmul.f32 %v5991, %v5991
    %v5994 = vmul.f32 %v5993, -0.001358992
    %v5995 = vadd.f32 %v5994, 0.041655596
    %v5996 = vmul.f32 %v5993, %v5995
    %v5997 = vadd.f32 %v5996, -0.4999988
    %v5998 = vmul.f32 %v5993, %v5997
    %v5999 = vadd.f32 1.0, %v5998
    %v6000 = vmul.f32 %v5991, %v5991
    %v6001 = vmul.f32 %v6000, -0.00019511016
    %v6002 = vadd.f32 %v6001, 0.008332121
    %v6003 = vmul.f32 %v6000, %v6002
    %v6004 = vadd.f32 %v6003, -0.16666654
    %v6005 = vmul.f32 %v6000, %v6004
    %v6006 = vadd.f32 %v6005, 1.0
    %v6007 = vmul.f32 %v6006, %v5991
    %vm6008 = vweird.f32 %v841
    %v6009 = vand.u32 %v5992, 3
    %vm6010 = vcmp.lt.s32.totalorder %v6009, 2
    %vm6011 = vcmp.eq.s32.totalorder %v6009, 0
    %v6012 = vxor.u32 %v6007, 2147483648
    %v6013 = vsel %vm6011, %v5999, %v6012
    %vm6014 = vcmp.eq.s32.totalorder %v6009, 2
    %v6015 = vxor.u32 %v5999, 2147483648
    %v6016 = vsel %vm6014, %v6015, %v6007
    %v6017 = vsel %vm6010, %v6013, %v6016
    %v6018 = vsel %vm6008, nan, %v6017
    %v6019 = vand.u32 2147483647, %v842
    %vm6020 = vcmp.le.f32.partialorder %v6019, 0.7853982
    %vm6021 = vcmp.lt.s32.totalorder %v842, 0
    %v6022 = vand.u32 %v842, 2139095040
    %v6023 = vshrl.u32 %v6022, 23
    %v6024 = vsub.s32 %v6023, 127
    %v6025 = vand.u32 2147483647, %v842
    %v6026 = vand.u32 %v6025, 8388607
    %v6027 = vor.u32 %v6026, 8388608
    %v6028 = vsub.s32 0, %v6027
    %v6029 = vadd.s32 %v6024, 1
    %vm6030 = vcmp.gt.s32.totalorder %v6029, 0
    %v6031 = vsel %vm6030, %v6029, 0
    %v6032 = vshrl.u32 %v6031, 5
    %v6033 = vand.u32 %v6031, 31
    %v6034 = vsub.s32 32, %v6033
    %v6035 = vshrl.u32 683565275, %v6034
    %v6036 = vshll.u32 683565275, %v6033
    %v6037 = vshrl.u32 2475754826, %v6034
    %v6038 = vor.u32 %v6036, %v6037
    %v6039 = vshll.u32 2475754826, %v6033
    %v6040 = vshrl.u32 2131351028, %v6034
    %v6041 = vor.u32 %v6039, %v6040
    %v6042 = vshll.u32 2131351028, %v6033
    %v6043 = vshrl.u32 2102212464, %v6034
    %v6044 = vor.u32 %v6042, %v6043
    %v6045 = vshll.u32 2102212464, %v6033
    %v6046 = vshrl.u32 920167782, %v6034
    %v6047 = vor.u32 %v6045, %v6046
    %v6048 = vshll.u32 920167782, %v6033
    %v6049 = vshrl.u32 1326507024, %v6034
    %v6050 = vor.u32 %v6048, %v6049
    %vm6051 = vcmp.lt.s32.totalorder %v6032, 1
    %vm6052 = vcmp.lt.s32.totalorder %v6032, 2
    %vm6053 = vcmp.lt.s32.totalorder %v6032, 3
    %vm6054 = vcmp.lt.s32.totalorder %v6032, 4
    %v6055 = vsel %vm6051, %v6035, %v6038
    %v6056 = vsel %vm6054, %v6044, 2102212464
    %v6057 = vsel %vm6053, %v6041, %v6056
    %v6058 = vsel %vm6052, %v6055, %v6057
    %v6059 = vsel %vm6051, %v6038, %v6041
    %v6060 = vsel %vm6054, %v6047, 920167782
    %v6061 = vsel %vm6053, %v6044, %v6060
    %v6062 = vsel %vm6052, %v6059, %v6061
    %v6063 = vsel %vm6051, %v6041, %v6044
    %v6064 = vsel %vm6054, %v6050, 1326507024
    %v6065 = vsel %vm6053, %v6047, %v6064
    %v6066 = vsel %vm6052, %v6063, %v6065
    %v6067 = vshll.u32 %v6027, 8
    %v6068 = vand.u32 %v6067, 65535
    %v6069 = vshrl.u32 %v6067, 16
    %v6070 = vand.u32 %v6066, 65535
    %v6071 = vshrl.u32 %v6066, 16
    %v6072 = vmul.u32 %v6068, %v6070
    %v6073 = vmul.u32 %v6068, %v6071
    %v6074 = vmul.u32 %v6069, %v6070
    %v6075 = vmul.u32 %v6069, %v6071
    %v6076 = vshll.u32 %v6073, 16
    %v6077 = vshrl.u32 %v6073, 16
    %v6078 = vshll.u32 %v6074, 16
    %v6079 = vshrl.u32 %v6074, 16
    %vm6080 = vc.u32 %v6072, %v6076
    %v6081 = vsel %vm6080, 1, 0
    %v6082 = vadd.s32 %v6072, %v6076
    %v6083 = vadd.s32 %v6075, %v6081
    %vm6084 = vc.u32 %v6082, %v6078
    %v6085 = vsel %vm6084, 1, 0
    %v6086 = vadd.s32 %v6082, %v6078
    %v6087 = vadd.s32 %v6083, %v6085
    %v6088 = vadd.s32 %v6087, %v6077
    %v6089 = vadd.s32 %v6088, %v6079
    %v6090 = vand.u32 %v6067, 65535
    %v6091 = vshrl.u32 %v6067, 16
    %v6092 = vand.u32 %v6062, 65535
    %v6093 = vshrl.u32 %v6062, 16
    %v6094 = vmul.u32 %v6090, %v6092
    %v6095 = vmul.u32 %v6090, %v6093
    %v6096 = vmul.u32 %v6091, %v6092
    %v6097 = vmul.u32 %v6091, %v6093
    %v6098 = vshll.u32 %v6095, 16
    %v6099 = vshrl.u32 %v6095, 16
    %v6100 = vshll.u32 %v6096, 16
    %v6101 = vshrl.u32 %v6096, 16
    %vm6102 = vc.u32 %v6094, %v6098
    %v6103 = vsel %vm6102, 1, 0
    %v6104 = vadd.s32 %v6094, %v6098
    %v6105 = vadd.s32 %v6097, %v6103
    %vm6106 = vc.u32 %v6104, %v6100
    %v6107 = vsel %vm6106, 1, 0
    %v6108 = vadd.s32 %v6104, %v6100
    %v6109 = vadd.s32 %v6105, %v6107
    %v6110 = vadd.s32 %v6109, %v6099
    %v6111 = vadd.s32 %v6110, %v6101
    %v6112 = vmul.u32 %v6067, %v6058
    %v6113 = vadd.s32 %v6089, %v6108
    %vm6114 = vc.u32 %v6089, %v6108
    %v6115 = vadd.s32 %v6111, 1
    %v6116 = vsel %vm6114, %v6115, %v6111
    %v6117 = vadd.s32 %v6112, %v6116
    %v6118 = vadd.s32 %v6117, 536870912
    %v6119 = vshrl.u32 %v6118, 30
    %v6120 = vshll.u32 %v6119, 30
    %v6121 = vsub.s32 %v6117, %v6120
    %vm6122 = vcmp.lt.s32.totalorder %v6121, 0
    %v6123 = vsub.s32 0, %v6121
    %v6124 = vsel %vm6122, %v6123, %v6121
    %v6125 = vclz %v6124
    %v6126 = vsub.s32 %v6125, 2
    %vm6127 = vcmp.gt.s32.totalorder 0, %v6126
    %v6128 = vsel %vm6127, 0, %v6126
    %v6129 = vsub.s32 32, %v6128
    %v6130 = vshll.u32 %v6121, %v6128
    %v6131 = vshrl.u32 %v6113, %v6129
    %v6132 = vor.u32 %v6130, %v6131
    %v6133 = vsub.s32 4294967266, %v6128
    %v6134 = vadd.s32 %v6133, 127
    %v6135 = vshll.u32 %v6134, 23
    %v6136 = vor.u32 4788187, %v6135
    %v6137 = vand.u32 2147483647, %v6136
    %v6139 = vcvt.s32.f32 %v6132
    %v6140 = vmul.f32 %v6139, %v6137
    %v6141 = vxor.u32 %v6140, 2147483648
    %v6142 = vsel %vm6021, %v6141, %v6140
    %v6143 = vsub.s32 4, %v6119
    %v6144 = vsel %vm6021, %v6143, %v6119
    %v6145 = vsel %vm6020, %v842, %v6142
    %v6146 = vsel %vm6020, 0, %v6144
    %v6147 = vmul.f32 %v6145, %v6145
    %v6148 = vmul.f32 %v6147, -0.001358992
    %v6149 = vadd.f32 %v6148, 0.041655596
    %v6150 = vmul.f32 %v6147, %v6149
    %v6151 = vadd.f32 %v6150, -0.4999988
    %v6152 = vmul.f32 %v6147, %v6151
    %v6153 = vadd.f32 1.0, %v6152
    %v6154 = vmul.f32 %v6145, %v6145
    %v6155 = vmul.f32 %v6154, -0.00019511016
    %v6156 = vadd.f32 %v6155, 0.008332121
    %v6157 = vmul.f32 %v6154, %v6156
    %v6158 = vadd.f32 %v6157, -0.16666654
    %v6159 = vmul.f32 %v6154, %v6158
    %v6160 = vadd.f32 %v6159, 1.0
    %v6161 = vmul.f32 %v6160, %v6145
    %vm6162 = vweird.f32 %v842
    %v6163 = vand.u32 %v6146, 3
    %vm6164 = vcmp.lt.s32.totalorder %v6163, 2
    %vm6165 = vcmp.eq.s32.totalorder %v6163, 0
    %v6166 = vxor.u32 %v6161, 2147483648
    %v6167 = vsel %vm6165, %v6153, %v6166
    %vm6168 = vcmp.eq.s32.totalorder %v6163, 2
    %v6169 = vxor.u32 %v6153, 2147483648
    %v6170 = vsel %vm6168, %v6169, %v6161
    %v6171 = vsel %vm6164, %v6167, %v6170
    %v6172 = vsel %vm6162, nan, %v6171
    %v6173 = vand.u32 2147483647, %v843
    %vm6174 = vcmp.le.f32.partialorder %v6173, 0.7853982
    %vm6175 = vcmp.lt.s32.totalorder %v843, 0
    %v6176 = vand.u32 %v843, 2139095040
    %v6177 = vshrl.u32 %v6176, 23
    %v6178 = vsub.s32 %v6177, 127
    %v6179 = vand.u32 2147483647, %v843
    %v6180 = vand.u32 %v6179, 8388607
    %v6181 = vor.u32 %v6180, 8388608
    %v6182 = vsub.s32 0, %v6181
    %v6183 = vadd.s32 %v6178, 1
    %vm6184 = vcmp.gt.s32.totalorder %v6183, 0
    %v6185 = vsel %vm6184, %v6183, 0
    %v6186 = vshrl.u32 %v6185, 5
    %v6187 = vand.u32 %v6185, 31
    %v6188 = vsub.s32 32, %v6187
    %v6189 = vshrl.u32 683565275, %v6188
    %v6190 = vshll.u32 683565275, %v6187
    %v6191 = vshrl.u32 2475754826, %v6188
    %v6192 = vor.u32 %v6190, %v6191
    %v6193 = vshll.u32 2475754826, %v6187
    %v6194 = vshrl.u32 2131351028, %v6188
    %v6195 = vor.u32 %v6193, %v6194
    %v6196 = vshll.u32 2131351028, %v6187
    %v6197 = vshrl.u32 2102212464, %v6188
    %v6198 = vor.u32 %v6196, %v6197
    %v6199 = vshll.u32 2102212464, %v6187
    %v6200 = vshrl.u32 920167782, %v6188
    %v6201 = vor.u32 %v6199, %v6200
    %v6202 = vshll.u32 920167782, %v6187
    %v6203 = vshrl.u32 1326507024, %v6188
    %v6204 = vor.u32 %v6202, %v6203
    %vm6205 = vcmp.lt.s32.totalorder %v6186, 1
    %vm6206 = vcmp.lt.s32.totalorder %v6186, 2
    %vm6207 = vcmp.lt.s32.totalorder %v6186, 3
    %vm6208 = vcmp.lt.s32.totalorder %v6186, 4
    %v6209 = vsel %vm6205, %v6189, %v6192
    %v6210 = vsel %vm6208, %v6198, 2102212464
    %v6211 = vsel %vm6207, %v6195, %v6210
    %v6212 = vsel %vm6206, %v6209, %v6211
    %v6213 = vsel %vm6205, %v6192, %v6195
    %v6214 = vsel %vm6208, %v6201, 920167782
    %v6215 = vsel %vm6207, %v6198, %v6214
    %v6216 = vsel %vm6206, %v6213, %v6215
    %v6217 = vsel %vm6205, %v6195, %v6198
    %v6218 = vsel %vm6208, %v6204, 1326507024
    %v6219 = vsel %vm6207, %v6201, %v6218
    %v6220 = vsel %vm6206, %v6217, %v6219
    %v6221 = vshll.u32 %v6181, 8
    %v6222 = vand.u32 %v6221, 65535
    %v6223 = vshrl.u32 %v6221, 16
    %v6224 = vand.u32 %v6220, 65535
    %v6225 = vshrl.u32 %v6220, 16
    %v6226 = vmul.u32 %v6222, %v6224
    %v6227 = vmul.u32 %v6222, %v6225
    %v6228 = vmul.u32 %v6223, %v6224
    %v6229 = vmul.u32 %v6223, %v6225
    %v6230 = vshll.u32 %v6227, 16
    %v6231 = vshrl.u32 %v6227, 16
    %v6232 = vshll.u32 %v6228, 16
    %v6233 = vshrl.u32 %v6228, 16
    %vm6234 = vc.u32 %v6226, %v6230
    %v6235 = vsel %vm6234, 1, 0
    %v6236 = vadd.s32 %v6226, %v6230
    %v6237 = vadd.s32 %v6229, %v6235
    %vm6238 = vc.u32 %v6236, %v6232
    %v6239 = vsel %vm6238, 1, 0
    %v6240 = vadd.s32 %v6236, %v6232
    %v6241 = vadd.s32 %v6237, %v6239
    %v6242 = vadd.s32 %v6241, %v6231
    %v6243 = vadd.s32 %v6242, %v6233
    %v6244 = vand.u32 %v6221, 65535
    %v6245 = vshrl.u32 %v6221, 16
    %v6246 = vand.u32 %v6216, 65535
    %v6247 = vshrl.u32 %v6216, 16
    %v6248 = vmul.u32 %v6244, %v6246
    %v6249 = vmul.u32 %v6244, %v6247
    %v6250 = vmul.u32 %v6245, %v6246
    %v6251 = vmul.u32 %v6245, %v6247
    %v6252 = vshll.u32 %v6249, 16
    %v6253 = vshrl.u32 %v6249, 16
    %v6254 = vshll.u32 %v6250, 16
    %v6255 = vshrl.u32 %v6250, 16
    %vm6256 = vc.u32 %v6248, %v6252
    %v6257 = vsel %vm6256, 1, 0
    %v6258 = vadd.s32 %v6248, %v6252
    %v6259 = vadd.s32 %v6251, %v6257
    %vm6260 = vc.u32 %v6258, %v6254
    %v6261 = vsel %vm6260, 1, 0
    %v6262 = vadd.s32 %v6258, %v6254
    %v6263 = vadd.s32 %v6259, %v6261
    %v6264 = vadd.s32 %v6263, %v6253
    %v6265 = vadd.s32 %v6264, %v6255
    %v6266 = vmul.u32 %v6221, %v6212
    %v6267 = vadd.s32 %v6243, %v6262
    %vm6268 = vc.u32 %v6243, %v6262
    %v6269 = vadd.s32 %v6265, 1
    %v6270 = vsel %vm6268, %v6269, %v6265
    %v6271 = vadd.s32 %v6266, %v6270
    %v6272 = vadd.s32 %v6271, 536870912
    %v6273 = vshrl.u32 %v6272, 30
    %v6274 = vshll.u32 %v6273, 30
    %v6275 = vsub.s32 %v6271, %v6274
    %vm6276 = vcmp.lt.s32.totalorder %v6275, 0
    %v6277 = vsub.s32 0, %v6275
    %v6278 = vsel %vm6276, %v6277, %v6275
    %v6279 = vclz %v6278
    %v6280 = vsub.s32 %v6279, 2
    %vm6281 = vcmp.gt.s32.totalorder 0, %v6280
    %v6282 = vsel %vm6281, 0, %v6280
    %v6283 = vsub.s32 32, %v6282
    %v6284 = vshll.u32 %v6275, %v6282
    %v6285 = vshrl.u32 %v6267, %v6283
    %v6286 = vor.u32 %v6284, %v6285
    %v6287 = vsub.s32 4294967266, %v6282
    %v6288 = vadd.s32 %v6287, 127
    %v6289 = vshll.u32 %v6288, 23
    %v6290 = vor.u32 4788187, %v6289
    %v6291 = vand.u32 2147483647, %v6290
    %v6293 = vcvt.s32.f32 %v6286
    %v6294 = vmul.f32 %v6293, %v6291
    %v6295 = vxor.u32 %v6294, 2147483648
    %v6296 = vsel %vm6175, %v6295, %v6294
    %v6297 = vsub.s32 4, %v6273
    %v6298 = vsel %vm6175, %v6297, %v6273
    %v6299 = vsel %vm6174, %v843, %v6296
    %v6300 = vsel %vm6174, 0, %v6298
    %v6301 = vmul.f32 %v6299, %v6299
    %v6302 = vmul.f32 %v6301, -0.001358992
    %v6303 = vadd.f32 %v6302, 0.041655596
    %v6304 = vmul.f32 %v6301, %v6303
    %v6305 = vadd.f32 %v6304, -0.4999988
    %v6306 = vmul.f32 %v6301, %v6305
    %v6307 = vadd.f32 1.0, %v6306
    %v6308 = vmul.f32 %v6299, %v6299
    %v6309 = vmul.f32 %v6308, -0.00019511016
    %v6310 = vadd.f32 %v6309, 0.008332121
    %v6311 = vmul.f32 %v6308, %v6310
    %v6312 = vadd.f32 %v6311, -0.16666654
    %v6313 = vmul.f32 %v6308, %v6312
    %v6314 = vadd.f32 %v6313, 1.0
    %v6315 = vmul.f32 %v6314, %v6299
    %vm6316 = vweird.f32 %v843
    %v6317 = vand.u32 %v6300, 3
    %vm6318 = vcmp.lt.s32.totalorder %v6317, 2
    %vm6319 = vcmp.eq.s32.totalorder %v6317, 0
    %v6320 = vxor.u32 %v6315, 2147483648
    %v6321 = vsel %vm6319, %v6307, %v6320
    %vm6322 = vcmp.eq.s32.totalorder %v6317, 2
    %v6323 = vxor.u32 %v6307, 2147483648
    %v6324 = vsel %vm6322, %v6323, %v6315
    %v6325 = vsel %vm6318, %v6321, %v6324
    %v6326 = vsel %vm6316, nan, %v6325
    %v6327 = vand.u32 2147483647, %v844
    %vm6328 = vcmp.le.f32.partialorder %v6327, 0.7853982
    %vm6329 = vcmp.lt.s32.totalorder %v844, 0
    %v6330 = vand.u32 %v844, 2139095040
    %v6331 = vshrl.u32 %v6330, 23
    %v6332 = vsub.s32 %v6331, 127
    %v6333 = vand.u32 2147483647, %v844
    %v6334 = vand.u32 %v6333, 8388607
    %v6335 = vor.u32 %v6334, 8388608
    %v6336 = vsub.s32 0, %v6335
    %v6337 = vadd.s32 %v6332, 1
    %vm6338 = vcmp.gt.s32.totalorder %v6337, 0
    %v6339 = vsel %vm6338, %v6337, 0
    %v6340 = vshrl.u32 %v6339, 5
    %v6341 = vand.u32 %v6339, 31
    %v6342 = vsub.s32 32, %v6341
    %v6343 = vshrl.u32 683565275, %v6342
    %v6344 = vshll.u32 683565275, %v6341
    %v6345 = vshrl.u32 2475754826, %v6342
    %v6346 = vor.u32 %v6344, %v6345
    %v6347 = vshll.u32 2475754826, %v6341
    %v6348 = vshrl.u32 2131351028, %v6342
    %v6349 = vor.u32 %v6347, %v6348
    %v6350 = vshll.u32 2131351028, %v6341
    %v6351 = vshrl.u32 2102212464, %v6342
    %v6352 = vor.u32 %v6350, %v6351
    %v6353 = vshll.u32 2102212464, %v6341
    %v6354 = vshrl.u32 920167782, %v6342
    %v6355 = vor.u32 %v6353, %v6354
    %v6356 = vshll.u32 920167782, %v6341
    %v6357 = vshrl.u32 1326507024, %v6342
    %v6358 = vor.u32 %v6356, %v6357
    %vm6359 = vcmp.lt.s32.totalorder %v6340, 1
    %vm6360 = vcmp.lt.s32.totalorder %v6340, 2
    %vm6361 = vcmp.lt.s32.totalorder %v6340, 3
    %vm6362 = vcmp.lt.s32.totalorder %v6340, 4
    %v6363 = vsel %vm6359, %v6343, %v6346
    %v6364 = vsel %vm6362, %v6352, 2102212464
    %v6365 = vsel %vm6361, %v6349, %v6364
    %v6366 = vsel %vm6360, %v6363, %v6365
    %v6367 = vsel %vm6359, %v6346, %v6349
    %v6368 = vsel %vm6362, %v6355, 920167782
    %v6369 = vsel %vm6361, %v6352, %v6368
    %v6370 = vsel %vm6360, %v6367, %v6369
    %v6371 = vsel %vm6359, %v6349, %v6352
    %v6372 = vsel %vm6362, %v6358, 1326507024
    %v6373 = vsel %vm6361, %v6355, %v6372
    %v6374 = vsel %vm6360, %v6371, %v6373
    %v6375 = vshll.u32 %v6335, 8
    %v6376 = vand.u32 %v6375, 65535
    %v6377 = vshrl.u32 %v6375, 16
    %v6378 = vand.u32 %v6374, 65535
    %v6379 = vshrl.u32 %v6374, 16
    %v6380 = vmul.u32 %v6376, %v6378
    %v6381 = vmul.u32 %v6376, %v6379
    %v6382 = vmul.u32 %v6377, %v6378
    %v6383 = vmul.u32 %v6377, %v6379
    %v6384 = vshll.u32 %v6381, 16
    %v6385 = vshrl.u32 %v6381, 16
    %v6386 = vshll.u32 %v6382, 16
    %v6387 = vshrl.u32 %v6382, 16
    %vm6388 = vc.u32 %v6380, %v6384
    %v6389 = vsel %vm6388, 1, 0
    %v6390 = vadd.s32 %v6380, %v6384
    %v6391 = vadd.s32 %v6383, %v6389
    %vm6392 = vc.u32 %v6390, %v6386
    %v6393 = vsel %vm6392, 1, 0
    %v6394 = vadd.s32 %v6390, %v6386
    %v6395 = vadd.s32 %v6391, %v6393
    %v6396 = vadd.s32 %v6395, %v6385
    %v6397 = vadd.s32 %v6396, %v6387
    %v6398 = vand.u32 %v6375, 65535
    %v6399 = vshrl.u32 %v6375, 16
    %v6400 = vand.u32 %v6370, 65535
    %v6401 = vshrl.u32 %v6370, 16
    %v6402 = vmul.u32 %v6398, %v6400
    %v6403 = vmul.u32 %v6398, %v6401
    %v6404 = vmul.u32 %v6399, %v6400
    %v6405 = vmul.u32 %v6399, %v6401
    %v6406 = vshll.u32 %v6403, 16
    %v6407 = vshrl.u32 %v6403, 16
    %v6408 = vshll.u32 %v6404, 16
    %v6409 = vshrl.u32 %v6404, 16
    %vm6410 = vc.u32 %v6402, %v6406
    %v6411 = vsel %vm6410, 1, 0
    %v6412 = vadd.s32 %v6402, %v6406
    %v6413 = vadd.s32 %v6405, %v6411
    %vm6414 = vc.u32 %v6412, %v6408
    %v6415 = vsel %vm6414, 1, 0
    %v6416 = vadd.s32 %v6412, %v6408
    %v6417 = vadd.s32 %v6413, %v6415
    %v6418 = vadd.s32 %v6417, %v6407
    %v6419 = vadd.s32 %v6418, %v6409
    %v6420 = vmul.u32 %v6375, %v6366
    %v6421 = vadd.s32 %v6397, %v6416
    %vm6422 = vc.u32 %v6397, %v6416
    %v6423 = vadd.s32 %v6419, 1
    %v6424 = vsel %vm6422, %v6423, %v6419
    %v6425 = vadd.s32 %v6420, %v6424
    %v6426 = vadd.s32 %v6425, 536870912
    %v6427 = vshrl.u32 %v6426, 30
    %v6428 = vshll.u32 %v6427, 30
    %v6429 = vsub.s32 %v6425, %v6428
    %vm6430 = vcmp.lt.s32.totalorder %v6429, 0
    %v6431 = vsub.s32 0, %v6429
    %v6432 = vsel %vm6430, %v6431, %v6429
    %v6433 = vclz %v6432
    %v6434 = vsub.s32 %v6433, 2
    %vm6435 = vcmp.gt.s32.totalorder 0, %v6434
    %v6436 = vsel %vm6435, 0, %v6434
    %v6437 = vsub.s32 32, %v6436
    %v6438 = vshll.u32 %v6429, %v6436
    %v6439 = vshrl.u32 %v6421, %v6437
    %v6440 = vor.u32 %v6438, %v6439
    %v6441 = vsub.s32 4294967266, %v6436
    %v6442 = vadd.s32 %v6441, 127
    %v6443 = vshll.u32 %v6442, 23
    %v6444 = vor.u32 4788187, %v6443
    %v6445 = vand.u32 2147483647, %v6444
    %v6447 = vcvt.s32.f32 %v6440
    %v6448 = vmul.f32 %v6447, %v6445
    %v6449 = vxor.u32 %v6448, 2147483648
    %v6450 = vsel %vm6329, %v6449, %v6448
    %v6451 = vsub.s32 4, %v6427
    %v6452 = vsel %vm6329, %v6451, %v6427
    %v6453 = vsel %vm6328, %v844, %v6450
    %v6454 = vsel %vm6328, 0, %v6452
    %v6455 = vmul.f32 %v6453, %v6453
    %v6456 = vmul.f32 %v6455, -0.001358992
    %v6457 = vadd.f32 %v6456, 0.041655596
    %v6458 = vmul.f32 %v6455, %v6457
    %v6459 = vadd.f32 %v6458, -0.4999988
    %v6460 = vmul.f32 %v6455, %v6459
    %v6461 = vadd.f32 1.0, %v6460
    %v6462 = vmul.f32 %v6453, %v6453
    %v6463 = vmul.f32 %v6462, -0.00019511016
    %v6464 = vadd.f32 %v6463, 0.008332121
    %v6465 = vmul.f32 %v6462, %v6464
    %v6466 = vadd.f32 %v6465, -0.16666654
    %v6467 = vmul.f32 %v6462, %v6466
    %v6468 = vadd.f32 %v6467, 1.0
    %v6469 = vmul.f32 %v6468, %v6453
    %vm6470 = vweird.f32 %v844
    %v6471 = vand.u32 %v6454, 3
    %vm6472 = vcmp.lt.s32.totalorder %v6471, 2
    %vm6473 = vcmp.eq.s32.totalorder %v6471, 0
    %v6474 = vxor.u32 %v6469, 2147483648
    %v6475 = vsel %vm6473, %v6461, %v6474
    %vm6476 = vcmp.eq.s32.totalorder %v6471, 2
    %v6477 = vxor.u32 %v6461, 2147483648
    %v6478 = vsel %vm6476, %v6477, %v6469
    %v6479 = vsel %vm6472, %v6475, %v6478
    %v6480 = vsel %vm6470, nan, %v6479
    %v6481 = vand.u32 2147483647, %v845
    %vm6482 = vcmp.le.f32.partialorder %v6481, 0.7853982
    %vm6483 = vcmp.lt.s32.totalorder %v845, 0
    %v6484 = vand.u32 %v845, 2139095040
    %v6485 = vshrl.u32 %v6484, 23
    %v6486 = vsub.s32 %v6485, 127
    %v6487 = vand.u32 2147483647, %v845
    %v6488 = vand.u32 %v6487, 8388607
    %v6489 = vor.u32 %v6488, 8388608
    %v6490 = vsub.s32 0, %v6489
    %v6491 = vadd.s32 %v6486, 1
    %vm6492 = vcmp.gt.s32.totalorder %v6491, 0
    %v6493 = vsel %vm6492, %v6491, 0
    %v6494 = vshrl.u32 %v6493, 5
    %v6495 = vand.u32 %v6493, 31
    %v6496 = vsub.s32 32, %v6495
    %v6497 = vshrl.u32 683565275, %v6496
    %v6498 = vshll.u32 683565275, %v6495
    %v6499 = vshrl.u32 2475754826, %v6496
    %v6500 = vor.u32 %v6498, %v6499
    %v6501 = vshll.u32 2475754826, %v6495
    %v6502 = vshrl.u32 2131351028, %v6496
    %v6503 = vor.u32 %v6501, %v6502
    %v6504 = vshll.u32 2131351028, %v6495
    %v6505 = vshrl.u32 2102212464, %v6496
    %v6506 = vor.u32 %v6504, %v6505
    %v6507 = vshll.u32 2102212464, %v6495
    %v6508 = vshrl.u32 920167782, %v6496
    %v6509 = vor.u32 %v6507, %v6508
    %v6510 = vshll.u32 920167782, %v6495
    %v6511 = vshrl.u32 1326507024, %v6496
    %v6512 = vor.u32 %v6510, %v6511
    %vm6513 = vcmp.lt.s32.totalorder %v6494, 1
    %vm6514 = vcmp.lt.s32.totalorder %v6494, 2
    %vm6515 = vcmp.lt.s32.totalorder %v6494, 3
    %vm6516 = vcmp.lt.s32.totalorder %v6494, 4
    %v6517 = vsel %vm6513, %v6497, %v6500
    %v6518 = vsel %vm6516, %v6506, 2102212464
    %v6519 = vsel %vm6515, %v6503, %v6518
    %v6520 = vsel %vm6514, %v6517, %v6519
    %v6521 = vsel %vm6513, %v6500, %v6503
    %v6522 = vsel %vm6516, %v6509, 920167782
    %v6523 = vsel %vm6515, %v6506, %v6522
    %v6524 = vsel %vm6514, %v6521, %v6523
    %v6525 = vsel %vm6513, %v6503, %v6506
    %v6526 = vsel %vm6516, %v6512, 1326507024
    %v6527 = vsel %vm6515, %v6509, %v6526
    %v6528 = vsel %vm6514, %v6525, %v6527
    %v6529 = vshll.u32 %v6489, 8
    %v6530 = vand.u32 %v6529, 65535
    %v6531 = vshrl.u32 %v6529, 16
    %v6532 = vand.u32 %v6528, 65535
    %v6533 = vshrl.u32 %v6528, 16
    %v6534 = vmul.u32 %v6530, %v6532
    %v6535 = vmul.u32 %v6530, %v6533
    %v6536 = vmul.u32 %v6531, %v6532
    %v6537 = vmul.u32 %v6531, %v6533
    %v6538 = vshll.u32 %v6535, 16
    %v6539 = vshrl.u32 %v6535, 16
    %v6540 = vshll.u32 %v6536, 16
    %v6541 = vshrl.u32 %v6536, 16
    %vm6542 = vc.u32 %v6534, %v6538
    %v6543 = vsel %vm6542, 1, 0
    %v6544 = vadd.s32 %v6534, %v6538
    %v6545 = vadd.s32 %v6537, %v6543
    %vm6546 = vc.u32 %v6544, %v6540
    %v6547 = vsel %vm6546, 1, 0
    %v6548 = vadd.s32 %v6544, %v6540
    %v6549 = vadd.s32 %v6545, %v6547
    %v6550 = vadd.s32 %v6549, %v6539
    %v6551 = vadd.s32 %v6550, %v6541
    %v6552 = vand.u32 %v6529, 65535
    %v6553 = vshrl.u32 %v6529, 16
    %v6554 = vand.u32 %v6524, 65535
    %v6555 = vshrl.u32 %v6524, 16
    %v6556 = vmul.u32 %v6552, %v6554
    %v6557 = vmul.u32 %v6552, %v6555
    %v6558 = vmul.u32 %v6553, %v6554
    %v6559 = vmul.u32 %v6553, %v6555
    %v6560 = vshll.u32 %v6557, 16
    %v6561 = vshrl.u32 %v6557, 16
    %v6562 = vshll.u32 %v6558, 16
    %v6563 = vshrl.u32 %v6558, 16
    %vm6564 = vc.u32 %v6556, %v6560
    %v6565 = vsel %vm6564, 1, 0
    %v6566 = vadd.s32 %v6556, %v6560
    %v6567 = vadd.s32 %v6559, %v6565
    %vm6568 = vc.u32 %v6566, %v6562
    %v6569 = vsel %vm6568, 1, 0
    %v6570 = vadd.s32 %v6566, %v6562
    %v6571 = vadd.s32 %v6567, %v6569
    %v6572 = vadd.s32 %v6571, %v6561
    %v6573 = vadd.s32 %v6572, %v6563
    %v6574 = vmul.u32 %v6529, %v6520
    %v6575 = vadd.s32 %v6551, %v6570
    %vm6576 = vc.u32 %v6551, %v6570
    %v6577 = vadd.s32 %v6573, 1
    %v6578 = vsel %vm6576, %v6577, %v6573
    %v6579 = vadd.s32 %v6574, %v6578
    %v6580 = vadd.s32 %v6579, 536870912
    %v6581 = vshrl.u32 %v6580, 30
    %v6582 = vshll.u32 %v6581, 30
    %v6583 = vsub.s32 %v6579, %v6582
    %vm6584 = vcmp.lt.s32.totalorder %v6583, 0
    %v6585 = vsub.s32 0, %v6583
    %v6586 = vsel %vm6584, %v6585, %v6583
    %v6587 = vclz %v6586
    %v6588 = vsub.s32 %v6587, 2
    %vm6589 = vcmp.gt.s32.totalorder 0, %v6588
    %v6590 = vsel %vm6589, 0, %v6588
    %v6591 = vsub.s32 32, %v6590
    %v6592 = vshll.u32 %v6583, %v6590
    %v6593 = vshrl.u32 %v6575, %v6591
    %v6594 = vor.u32 %v6592, %v6593
    %v6595 = vsub.s32 4294967266, %v6590
    %v6596 = vadd.s32 %v6595, 127
    %v6597 = vshll.u32 %v6596, 23
    %v6598 = vor.u32 4788187, %v6597
    %v6599 = vand.u32 2147483647, %v6598
    %v6601 = vcvt.s32.f32 %v6594
    %v6602 = vmul.f32 %v6601, %v6599
    %v6603 = vxor.u32 %v6602, 2147483648
    %v6604 = vsel %vm6483, %v6603, %v6602
    %v6605 = vsub.s32 4, %v6581
    %v6606 = vsel %vm6483, %v6605, %v6581
    %v6607 = vsel %vm6482, %v845, %v6604
    %v6608 = vsel %vm6482, 0, %v6606
    %v6609 = vmul.f32 %v6607, %v6607
    %v6610 = vmul.f32 %v6609, -0.001358992
    %v6611 = vadd.f32 %v6610, 0.041655596
    %v6612 = vmul.f32 %v6609, %v6611
    %v6613 = vadd.f32 %v6612, -0.4999988
    %v6614 = vmul.f32 %v6609, %v6613
    %v6615 = vadd.f32 1.0, %v6614
    %v6616 = vmul.f32 %v6607, %v6607
    %v6617 = vmul.f32 %v6616, -0.00019511016
    %v6618 = vadd.f32 %v6617, 0.008332121
    %v6619 = vmul.f32 %v6616, %v6618
    %v6620 = vadd.f32 %v6619, -0.16666654
    %v6621 = vmul.f32 %v6616, %v6620
    %v6622 = vadd.f32 %v6621, 1.0
    %v6623 = vmul.f32 %v6622, %v6607
    %vm6624 = vweird.f32 %v845
    %v6625 = vand.u32 %v6608, 3
    %vm6626 = vcmp.lt.s32.totalorder %v6625, 2
    %vm6627 = vcmp.eq.s32.totalorder %v6625, 0
    %v6628 = vxor.u32 %v6623, 2147483648
    %v6629 = vsel %vm6627, %v6615, %v6628
    %vm6630 = vcmp.eq.s32.totalorder %v6625, 2
    %v6631 = vxor.u32 %v6615, 2147483648
    %v6632 = vsel %vm6630, %v6631, %v6623
    %v6633 = vsel %vm6626, %v6629, %v6632
    %v6634 = vsel %vm6624, nan, %v6633
    %v6635 = vand.u32 2147483647, %v846
    %vm6636 = vcmp.le.f32.partialorder %v6635, 0.7853982
    %vm6637 = vcmp.lt.s32.totalorder %v846, 0
    %v6638 = vand.u32 %v846, 2139095040
    %v6639 = vshrl.u32 %v6638, 23
    %v6640 = vsub.s32 %v6639, 127
    %v6641 = vand.u32 2147483647, %v846
    %v6642 = vand.u32 %v6641, 8388607
    %v6643 = vor.u32 %v6642, 8388608
    %v6644 = vsub.s32 0, %v6643
    %v6645 = vadd.s32 %v6640, 1
    %vm6646 = vcmp.gt.s32.totalorder %v6645, 0
    %v6647 = vsel %vm6646, %v6645, 0
    %v6648 = vshrl.u32 %v6647, 5
    %v6649 = vand.u32 %v6647, 31
    %v6650 = vsub.s32 32, %v6649
    %v6651 = vshrl.u32 683565275, %v6650
    %v6652 = vshll.u32 683565275, %v6649
    %v6653 = vshrl.u32 2475754826, %v6650
    %v6654 = vor.u32 %v6652, %v6653
    %v6655 = vshll.u32 2475754826, %v6649
    %v6656 = vshrl.u32 2131351028, %v6650
    %v6657 = vor.u32 %v6655, %v6656
    %v6658 = vshll.u32 2131351028, %v6649
    %v6659 = vshrl.u32 2102212464, %v6650
    %v6660 = vor.u32 %v6658, %v6659
    %v6661 = vshll.u32 2102212464, %v6649
    %v6662 = vshrl.u32 920167782, %v6650
    %v6663 = vor.u32 %v6661, %v6662
    %v6664 = vshll.u32 920167782, %v6649
    %v6665 = vshrl.u32 1326507024, %v6650
    %v6666 = vor.u32 %v6664, %v6665
    %vm6667 = vcmp.lt.s32.totalorder %v6648, 1
    %vm6668 = vcmp.lt.s32.totalorder %v6648, 2
    %vm6669 = vcmp.lt.s32.totalorder %v6648, 3
    %vm6670 = vcmp.lt.s32.totalorder %v6648, 4
    %v6671 = vsel %vm6667, %v6651, %v6654
    %v6672 = vsel %vm6670, %v6660, 2102212464
    %v6673 = vsel %vm6669, %v6657, %v6672
    %v6674 = vsel %vm6668, %v6671, %v6673
    %v6675 = vsel %vm6667, %v6654, %v6657
    %v6676 = vsel %vm6670, %v6663, 920167782
    %v6677 = vsel %vm6669, %v6660, %v6676
    %v6678 = vsel %vm6668, %v6675, %v6677
    %v6679 = vsel %vm6667, %v6657, %v6660
    %v6680 = vsel %vm6670, %v6666, 1326507024
    %v6681 = vsel %vm6669, %v6663, %v6680
    %v6682 = vsel %vm6668, %v6679, %v6681
    %v6683 = vshll.u32 %v6643, 8
    %v6684 = vand.u32 %v6683, 65535
    %v6685 = vshrl.u32 %v6683, 16
    %v6686 = vand.u32 %v6682, 65535
    %v6687 = vshrl.u32 %v6682, 16
    %v6688 = vmul.u32 %v6684, %v6686
    %v6689 = vmul.u32 %v6684, %v6687
    %v6690 = vmul.u32 %v6685, %v6686
    %v6691 = vmul.u32 %v6685, %v6687
    %v6692 = vshll.u32 %v6689, 16
    %v6693 = vshrl.u32 %v6689, 16
    %v6694 = vshll.u32 %v6690, 16
    %v6695 = vshrl.u32 %v6690, 16
    %vm6696 = vc.u32 %v6688, %v6692
    %v6697 = vsel %vm6696, 1, 0
    %v6698 = vadd.s32 %v6688, %v6692
    %v6699 = vadd.s32 %v6691, %v6697
    %vm6700 = vc.u32 %v6698, %v6694
    %v6701 = vsel %vm6700, 1, 0
    %v6702 = vadd.s32 %v6698, %v6694
    %v6703 = vadd.s32 %v6699, %v6701
    %v6704 = vadd.s32 %v6703, %v6693
    %v6705 = vadd.s32 %v6704, %v6695
    %v6706 = vand.u32 %v6683, 65535
    %v6707 = vshrl.u32 %v6683, 16
    %v6708 = vand.u32 %v6678, 65535
    %v6709 = vshrl.u32 %v6678, 16
    %v6710 = vmul.u32 %v6706, %v6708
    %v6711 = vmul.u32 %v6706, %v6709
    %v6712 = vmul.u32 %v6707, %v6708
    %v6713 = vmul.u32 %v6707, %v6709
    %v6714 = vshll.u32 %v6711, 16
    %v6715 = vshrl.u32 %v6711, 16
    %v6716 = vshll.u32 %v6712, 16
    %v6717 = vshrl.u32 %v6712, 16
    %vm6718 = vc.u32 %v6710, %v6714
    %v6719 = vsel %vm6718, 1, 0
    %v6720 = vadd.s32 %v6710, %v6714
    %v6721 = vadd.s32 %v6713, %v6719
    %vm6722 = vc.u32 %v6720, %v6716
    %v6723 = vsel %vm6722, 1, 0
    %v6724 = vadd.s32 %v6720, %v6716
    %v6725 = vadd.s32 %v6721, %v6723
    %v6726 = vadd.s32 %v6725, %v6715
    %v6727 = vadd.s32 %v6726, %v6717
    %v6728 = vmul.u32 %v6683, %v6674
    %v6729 = vadd.s32 %v6705, %v6724
    %vm6730 = vc.u32 %v6705, %v6724
    %v6731 = vadd.s32 %v6727, 1
    %v6732 = vsel %vm6730, %v6731, %v6727
    %v6733 = vadd.s32 %v6728, %v6732
    %v6734 = vadd.s32 %v6733, 536870912
    %v6735 = vshrl.u32 %v6734, 30
    %v6736 = vshll.u32 %v6735, 30
    %v6737 = vsub.s32 %v6733, %v6736
    %vm6738 = vcmp.lt.s32.totalorder %v6737, 0
    %v6739 = vsub.s32 0, %v6737
    %v6740 = vsel %vm6738, %v6739, %v6737
    %v6741 = vclz %v6740
    %v6742 = vsub.s32 %v6741, 2
    %vm6743 = vcmp.gt.s32.totalorder 0, %v6742
    %v6744 = vsel %vm6743, 0, %v6742
    %v6745 = vsub.s32 32, %v6744
    %v6746 = vshll.u32 %v6737, %v6744
    %v6747 = vshrl.u32 %v6729, %v6745
    %v6748 = vor.u32 %v6746, %v6747
    %v6749 = vsub.s32 4294967266, %v6744
    %v6750 = vadd.s32 %v6749, 127
    %v6751 = vshll.u32 %v6750, 23
    %v6752 = vor.u32 4788187, %v6751
    %v6753 = vand.u32 2147483647, %v6752
    %v6755 = vcvt.s32.f32 %v6748
    %v6756 = vmul.f32 %v6755, %v6753
    %v6757 = vxor.u32 %v6756, 2147483648
    %v6758 = vsel %vm6637, %v6757, %v6756
    %v6759 = vsub.s32 4, %v6735
    %v6760 = vsel %vm6637, %v6759, %v6735
    %v6761 = vsel %vm6636, %v846, %v6758
    %v6762 = vsel %vm6636, 0, %v6760
    %v6763 = vmul.f32 %v6761, %v6761
    %v6764 = vmul.f32 %v6763, -0.001358992
    %v6765 = vadd.f32 %v6764, 0.041655596
    %v6766 = vmul.f32 %v6763, %v6765
    %v6767 = vadd.f32 %v6766, -0.4999988
    %v6768 = vmul.f32 %v6763, %v6767
    %v6769 = vadd.f32 1.0, %v6768
    %v6770 = vmul.f32 %v6761, %v6761
    %v6771 = vmul.f32 %v6770, -0.00019511016
    %v6772 = vadd.f32 %v6771, 0.008332121
    %v6773 = vmul.f32 %v6770, %v6772
    %v6774 = vadd.f32 %v6773, -0.16666654
    %v6775 = vmul.f32 %v6770, %v6774
    %v6776 = vadd.f32 %v6775, 1.0
    %v6777 = vmul.f32 %v6776, %v6761
    %vm6778 = vweird.f32 %v846
    %v6779 = vand.u32 %v6762, 3
    %vm6780 = vcmp.lt.s32.totalorder %v6779, 2
    %vm6781 = vcmp.eq.s32.totalorder %v6779, 0
    %v6782 = vxor.u32 %v6777, 2147483648
    %v6783 = vsel %vm6781, %v6769, %v6782
    %vm6784 = vcmp.eq.s32.totalorder %v6779, 2
    %v6785 = vxor.u32 %v6769, 2147483648
    %v6786 = vsel %vm6784, %v6785, %v6777
    %v6787 = vsel %vm6780, %v6783, %v6786
    %v6788 = vsel %vm6778, nan, %v6787
    %v6789 = vand.u32 2147483647, %v847
    %vm6790 = vcmp.le.f32.partialorder %v6789, 0.7853982
    %vm6791 = vcmp.lt.s32.totalorder %v847, 0
    %v6792 = vand.u32 %v847, 2139095040
    %v6793 = vshrl.u32 %v6792, 23
    %v6794 = vsub.s32 %v6793, 127
    %v6795 = vand.u32 2147483647, %v847
    %v6796 = vand.u32 %v6795, 8388607
    %v6797 = vor.u32 %v6796, 8388608
    %v6798 = vsub.s32 0, %v6797
    %v6799 = vadd.s32 %v6794, 1
    %vm6800 = vcmp.gt.s32.totalorder %v6799, 0
    %v6801 = vsel %vm6800, %v6799, 0
    %v6802 = vshrl.u32 %v6801, 5
    %v6803 = vand.u32 %v6801, 31
    %v6804 = vsub.s32 32, %v6803
    %v6805 = vshrl.u32 683565275, %v6804
    %v6806 = vshll.u32 683565275, %v6803
    %v6807 = vshrl.u32 2475754826, %v6804
    %v6808 = vor.u32 %v6806, %v6807
    %v6809 = vshll.u32 2475754826, %v6803
    %v6810 = vshrl.u32 2131351028, %v6804
    %v6811 = vor.u32 %v6809, %v6810
    %v6812 = vshll.u32 2131351028, %v6803
    %v6813 = vshrl.u32 2102212464, %v6804
    %v6814 = vor.u32 %v6812, %v6813
    %v6815 = vshll.u32 2102212464, %v6803
    %v6816 = vshrl.u32 920167782, %v6804
    %v6817 = vor.u32 %v6815, %v6816
    %v6818 = vshll.u32 920167782, %v6803
    %v6819 = vshrl.u32 1326507024, %v6804
    %v6820 = vor.u32 %v6818, %v6819
    %vm6821 = vcmp.lt.s32.totalorder %v6802, 1
    %vm6822 = vcmp.lt.s32.totalorder %v6802, 2
    %vm6823 = vcmp.lt.s32.totalorder %v6802, 3
    %vm6824 = vcmp.lt.s32.totalorder %v6802, 4
    %v6825 = vsel %vm6821, %v6805, %v6808
    %v6826 = vsel %vm6824, %v6814, 2102212464
    %v6827 = vsel %vm6823, %v6811, %v6826
    %v6828 = vsel %vm6822, %v6825, %v6827
    %v6829 = vsel %vm6821, %v6808, %v6811
    %v6830 = vsel %vm6824, %v6817, 920167782
    %v6831 = vsel %vm6823, %v6814, %v6830
    %v6832 = vsel %vm6822, %v6829, %v6831
    %v6833 = vsel %vm6821, %v6811, %v6814
    %v6834 = vsel %vm6824, %v6820, 1326507024
    %v6835 = vsel %vm6823, %v6817, %v6834
    %v6836 = vsel %vm6822, %v6833, %v6835
    %v6837 = vshll.u32 %v6797, 8
    %v6838 = vand.u32 %v6837, 65535
    %v6839 = vshrl.u32 %v6837, 16
    %v6840 = vand.u32 %v6836, 65535
    %v6841 = vshrl.u32 %v6836, 16
    %v6842 = vmul.u32 %v6838, %v6840
    %v6843 = vmul.u32 %v6838, %v6841
    %v6844 = vmul.u32 %v6839, %v6840
    %v6845 = vmul.u32 %v6839, %v6841
    %v6846 = vshll.u32 %v6843, 16
    %v6847 = vshrl.u32 %v6843, 16
    %v6848 = vshll.u32 %v6844, 16
    %v6849 = vshrl.u32 %v6844, 16
    %vm6850 = vc.u32 %v6842, %v6846
    %v6851 = vsel %vm6850, 1, 0
    %v6852 = vadd.s32 %v6842, %v6846
    %v6853 = vadd.s32 %v6845, %v6851
    %vm6854 = vc.u32 %v6852, %v6848
    %v6855 = vsel %vm6854, 1, 0
    %v6856 = vadd.s32 %v6852, %v6848
    %v6857 = vadd.s32 %v6853, %v6855
    %v6858 = vadd.s32 %v6857, %v6847
    %v6859 = vadd.s32 %v6858, %v6849
    %v6860 = vand.u32 %v6837, 65535
    %v6861 = vshrl.u32 %v6837, 16
    %v6862 = vand.u32 %v6832, 65535
    %v6863 = vshrl.u32 %v6832, 16
    %v6864 = vmul.u32 %v6860, %v6862
    %v6865 = vmul.u32 %v6860, %v6863
    %v6866 = vmul.u32 %v6861, %v6862
    %v6867 = vmul.u32 %v6861, %v6863
    %v6868 = vshll.u32 %v6865, 16
    %v6869 = vshrl.u32 %v6865, 16
    %v6870 = vshll.u32 %v6866, 16
    %v6871 = vshrl.u32 %v6866, 16
    %vm6872 = vc.u32 %v6864, %v6868
    %v6873 = vsel %vm6872, 1, 0
    %v6874 = vadd.s32 %v6864, %v6868
    %v6875 = vadd.s32 %v6867, %v6873
    %vm6876 = vc.u32 %v6874, %v6870
    %v6877 = vsel %vm6876, 1, 0
    %v6878 = vadd.s32 %v6874, %v6870
    %v6879 = vadd.s32 %v6875, %v6877
    %v6880 = vadd.s32 %v6879, %v6869
    %v6881 = vadd.s32 %v6880, %v6871
    %v6882 = vmul.u32 %v6837, %v6828
    %v6883 = vadd.s32 %v6859, %v6878
    %vm6884 = vc.u32 %v6859, %v6878
    %v6885 = vadd.s32 %v6881, 1
    %v6886 = vsel %vm6884, %v6885, %v6881
    %v6887 = vadd.s32 %v6882, %v6886
    %v6888 = vadd.s32 %v6887, 536870912
    %v6889 = vshrl.u32 %v6888, 30
    %v6890 = vshll.u32 %v6889, 30
    %v6891 = vsub.s32 %v6887, %v6890
    %vm6892 = vcmp.lt.s32.totalorder %v6891, 0
    %v6893 = vsub.s32 0, %v6891
    %v6894 = vsel %vm6892, %v6893, %v6891
    %v6895 = vclz %v6894
    %v6896 = vsub.s32 %v6895, 2
    %vm6897 = vcmp.gt.s32.totalorder 0, %v6896
    %v6898 = vsel %vm6897, 0, %v6896
    %v6899 = vsub.s32 32, %v6898
    %v6900 = vshll.u32 %v6891, %v6898
    %v6901 = vshrl.u32 %v6883, %v6899
    %v6902 = vor.u32 %v6900, %v6901
    %v6903 = vsub.s32 4294967266, %v6898
    %v6904 = vadd.s32 %v6903, 127
    %v6905 = vshll.u32 %v6904, 23
    %v6906 = vor.u32 4788187, %v6905
    %v6907 = vand.u32 2147483647, %v6906
    %v6909 = vcvt.s32.f32 %v6902
    %v6910 = vmul.f32 %v6909, %v6907
    %v6911 = vxor.u32 %v6910, 2147483648
    %v6912 = vsel %vm6791, %v6911, %v6910
    %v6913 = vsub.s32 4, %v6889
    %v6914 = vsel %vm6791, %v6913, %v6889
    %v6915 = vsel %vm6790, %v847, %v6912
    %v6916 = vsel %vm6790, 0, %v6914
    %v6917 = vmul.f32 %v6915, %v6915
    %v6918 = vmul.f32 %v6917, -0.001358992
    %v6919 = vadd.f32 %v6918, 0.041655596
    %v6920 = vmul.f32 %v6917, %v6919
    %v6921 = vadd.f32 %v6920, -0.4999988
    %v6922 = vmul.f32 %v6917, %v6921
    %v6923 = vadd.f32 1.0, %v6922
    %v6924 = vmul.f32 %v6915, %v6915
    %v6925 = vmul.f32 %v6924, -0.00019511016
    %v6926 = vadd.f32 %v6925, 0.008332121
    %v6927 = vmul.f32 %v6924, %v6926
    %v6928 = vadd.f32 %v6927, -0.16666654
    %v6929 = vmul.f32 %v6924, %v6928
    %v6930 = vadd.f32 %v6929, 1.0
    %v6931 = vmul.f32 %v6930, %v6915
    %vm6932 = vweird.f32 %v847
    %v6933 = vand.u32 %v6916, 3
    %vm6934 = vcmp.lt.s32.totalorder %v6933, 2
    %vm6935 = vcmp.eq.s32.totalorder %v6933, 0
    %v6936 = vxor.u32 %v6931, 2147483648
    %v6937 = vsel %vm6935, %v6923, %v6936
    %vm6938 = vcmp.eq.s32.totalorder %v6933, 2
    %v6939 = vxor.u32 %v6923, 2147483648
    %v6940 = vsel %vm6938, %v6939, %v6931
    %v6941 = vsel %vm6934, %v6937, %v6940
    %v6942 = vsel %vm6932, nan, %v6941
    %v6943 = vand.u32 2147483647, %v848
    %vm6944 = vcmp.le.f32.partialorder %v6943, 0.7853982
    %vm6945 = vcmp.lt.s32.totalorder %v848, 0
    %v6946 = vand.u32 %v848, 2139095040
    %v6947 = vshrl.u32 %v6946, 23
    %v6948 = vsub.s32 %v6947, 127
    %v6949 = vand.u32 2147483647, %v848
    %v6950 = vand.u32 %v6949, 8388607
    %v6951 = vor.u32 %v6950, 8388608
    %v6952 = vsub.s32 0, %v6951
    %v6953 = vadd.s32 %v6948, 1
    %vm6954 = vcmp.gt.s32.totalorder %v6953, 0
    %v6955 = vsel %vm6954, %v6953, 0
    %v6956 = vshrl.u32 %v6955, 5
    %v6957 = vand.u32 %v6955, 31
    %v6958 = vsub.s32 32, %v6957
    %v6959 = vshrl.u32 683565275, %v6958
    %v6960 = vshll.u32 683565275, %v6957
    %v6961 = vshrl.u32 2475754826, %v6958
    %v6962 = vor.u32 %v6960, %v6961
    %v6963 = vshll.u32 2475754826, %v6957
    %v6964 = vshrl.u32 2131351028, %v6958
    %v6965 = vor.u32 %v6963, %v6964
    %v6966 = vshll.u32 2131351028, %v6957
    %v6967 = vshrl.u32 2102212464, %v6958
    %v6968 = vor.u32 %v6966, %v6967
    %v6969 = vshll.u32 2102212464, %v6957
    %v6970 = vshrl.u32 920167782, %v6958
    %v6971 = vor.u32 %v6969, %v6970
    %v6972 = vshll.u32 920167782, %v6957
    %v6973 = vshrl.u32 1326507024, %v6958
    %v6974 = vor.u32 %v6972, %v6973
    %vm6975 = vcmp.lt.s32.totalorder %v6956, 1
    %vm6976 = vcmp.lt.s32.totalorder %v6956, 2
    %vm6977 = vcmp.lt.s32.totalorder %v6956, 3
    %vm6978 = vcmp.lt.s32.totalorder %v6956, 4
    %v6979 = vsel %vm6975, %v6959, %v6962
    %v6980 = vsel %vm6978, %v6968, 2102212464
    %v6981 = vsel %vm6977, %v6965, %v6980
    %v6982 = vsel %vm6976, %v6979, %v6981
    %v6983 = vsel %vm6975, %v6962, %v6965
    %v6984 = vsel %vm6978, %v6971, 920167782
    %v6985 = vsel %vm6977, %v6968, %v6984
    %v6986 = vsel %vm6976, %v6983, %v6985
    %v6987 = vsel %vm6975, %v6965, %v6968
    %v6988 = vsel %vm6978, %v6974, 1326507024
    %v6989 = vsel %vm6977, %v6971, %v6988
    %v6990 = vsel %vm6976, %v6987, %v6989
    %v6991 = vshll.u32 %v6951, 8
    %v6992 = vand.u32 %v6991, 65535
    %v6993 = vshrl.u32 %v6991, 16
    %v6994 = vand.u32 %v6990, 65535
    %v6995 = vshrl.u32 %v6990, 16
    %v6996 = vmul.u32 %v6992, %v6994
    %v6997 = vmul.u32 %v6992, %v6995
    %v6998 = vmul.u32 %v6993, %v6994
    %v6999 = vmul.u32 %v6993, %v6995
    %v7000 = vshll.u32 %v6997, 16
    %v7001 = vshrl.u32 %v6997, 16
    %v7002 = vshll.u32 %v6998, 16
    %v7003 = vshrl.u32 %v6998, 16
    %vm7004 = vc.u32 %v6996, %v7000
    %v7005 = vsel %vm7004, 1, 0
    %v7006 = vadd.s32 %v6996, %v7000
    %v7007 = vadd.s32 %v6999, %v7005
    %vm7008 = vc.u32 %v7006, %v7002
    %v7009 = vsel %vm7008, 1, 0
    %v7010 = vadd.s32 %v7006, %v7002
    %v7011 = vadd.s32 %v7007, %v7009
    %v7012 = vadd.s32 %v7011, %v7001
    %v7013 = vadd.s32 %v7012, %v7003
    %v7014 = vand.u32 %v6991, 65535
    %v7015 = vshrl.u32 %v6991, 16
    %v7016 = vand.u32 %v6986, 65535
    %v7017 = vshrl.u32 %v6986, 16
    %v7018 = vmul.u32 %v7014, %v7016
    %v7019 = vmul.u32 %v7014, %v7017
    %v7020 = vmul.u32 %v7015, %v7016
    %v7021 = vmul.u32 %v7015, %v7017
    %v7022 = vshll.u32 %v7019, 16
    %v7023 = vshrl.u32 %v7019, 16
    %v7024 = vshll.u32 %v7020, 16
    %v7025 = vshrl.u32 %v7020, 16
    %vm7026 = vc.u32 %v7018, %v7022
    %v7027 = vsel %vm7026, 1, 0
    %v7028 = vadd.s32 %v7018, %v7022
    %v7029 = vadd.s32 %v7021, %v7027
    %vm7030 = vc.u32 %v7028, %v7024
    %v7031 = vsel %vm7030, 1, 0
    %v7032 = vadd.s32 %v7028, %v7024
    %v7033 = vadd.s32 %v7029, %v7031
    %v7034 = vadd.s32 %v7033, %v7023
    %v7035 = vadd.s32 %v7034, %v7025
    %v7036 = vmul.u32 %v6991, %v6982
    %v7037 = vadd.s32 %v7013, %v7032
    %vm7038 = vc.u32 %v7013, %v7032
    %v7039 = vadd.s32 %v7035, 1
    %v7040 = vsel %vm7038, %v7039, %v7035
    %v7041 = vadd.s32 %v7036, %v7040
    %v7042 = vadd.s32 %v7041, 536870912
    %v7043 = vshrl.u32 %v7042, 30
    %v7044 = vshll.u32 %v7043, 30
    %v7045 = vsub.s32 %v7041, %v7044
    %vm7046 = vcmp.lt.s32.totalorder %v7045, 0
    %v7047 = vsub.s32 0, %v7045
    %v7048 = vsel %vm7046, %v7047, %v7045
    %v7049 = vclz %v7048
    %v7050 = vsub.s32 %v7049, 2
    %vm7051 = vcmp.gt.s32.totalorder 0, %v7050
    %v7052 = vsel %vm7051, 0, %v7050
    %v7053 = vsub.s32 32, %v7052
    %v7054 = vshll.u32 %v7045, %v7052
    %v7055 = vshrl.u32 %v7037, %v7053
    %v7056 = vor.u32 %v7054, %v7055
    %v7057 = vsub.s32 4294967266, %v7052
    %v7058 = vadd.s32 %v7057, 127
    %v7059 = vshll.u32 %v7058, 23
    %v7060 = vor.u32 4788187, %v7059
    %v7061 = vand.u32 2147483647, %v7060
    %v7063 = vcvt.s32.f32 %v7056
    %v7064 = vmul.f32 %v7063, %v7061
    %v7065 = vxor.u32 %v7064, 2147483648
    %v7066 = vsel %vm6945, %v7065, %v7064
    %v7067 = vsub.s32 4, %v7043
    %v7068 = vsel %vm6945, %v7067, %v7043
    %v7069 = vsel %vm6944, %v848, %v7066
    %v7070 = vsel %vm6944, 0, %v7068
    %v7071 = vmul.f32 %v7069, %v7069
    %v7072 = vmul.f32 %v7071, -0.001358992
    %v7073 = vadd.f32 %v7072, 0.041655596
    %v7074 = vmul.f32 %v7071, %v7073
    %v7075 = vadd.f32 %v7074, -0.4999988
    %v7076 = vmul.f32 %v7071, %v7075
    %v7077 = vadd.f32 1.0, %v7076
    %v7078 = vmul.f32 %v7069, %v7069
    %v7079 = vmul.f32 %v7078, -0.00019511016
    %v7080 = vadd.f32 %v7079, 0.008332121
    %v7081 = vmul.f32 %v7078, %v7080
    %v7082 = vadd.f32 %v7081, -0.16666654
    %v7083 = vmul.f32 %v7078, %v7082
    %v7084 = vadd.f32 %v7083, 1.0
    %v7085 = vmul.f32 %v7084, %v7069
    %vm7086 = vweird.f32 %v848
    %v7087 = vand.u32 %v7070, 3
    %vm7088 = vcmp.lt.s32.totalorder %v7087, 2
    %vm7089 = vcmp.eq.s32.totalorder %v7087, 0
    %v7090 = vxor.u32 %v7085, 2147483648
    %v7091 = vsel %vm7089, %v7077, %v7090
    %vm7092 = vcmp.eq.s32.totalorder %v7087, 2
    %v7093 = vxor.u32 %v7077, 2147483648
    %v7094 = vsel %vm7092, %v7093, %v7085
    %v7095 = vsel %vm7088, %v7091, %v7094
    %v7096 = vsel %vm7086, nan, %v7095
    %v7097 = vand.u32 2147483647, %v849
    %vm7098 = vcmp.le.f32.partialorder %v7097, 0.7853982
    %vm7099 = vcmp.lt.s32.totalorder %v849, 0
    %v7100 = vand.u32 %v849, 2139095040
    %v7101 = vshrl.u32 %v7100, 23
    %v7102 = vsub.s32 %v7101, 127
    %v7103 = vand.u32 2147483647, %v849
    %v7104 = vand.u32 %v7103, 8388607
    %v7105 = vor.u32 %v7104, 8388608
    %v7106 = vsub.s32 0, %v7105
    %v7107 = vadd.s32 %v7102, 1
    %vm7108 = vcmp.gt.s32.totalorder %v7107, 0
    %v7109 = vsel %vm7108, %v7107, 0
    %v7110 = vshrl.u32 %v7109, 5
    %v7111 = vand.u32 %v7109, 31
    %v7112 = vsub.s32 32, %v7111
    %v7113 = vshrl.u32 683565275, %v7112
    %v7114 = vshll.u32 683565275, %v7111
    %v7115 = vshrl.u32 2475754826, %v7112
    %v7116 = vor.u32 %v7114, %v7115
    %v7117 = vshll.u32 2475754826, %v7111
    %v7118 = vshrl.u32 2131351028, %v7112
    %v7119 = vor.u32 %v7117, %v7118
    %v7120 = vshll.u32 2131351028, %v7111
    %v7121 = vshrl.u32 2102212464, %v7112
    %v7122 = vor.u32 %v7120, %v7121
    %v7123 = vshll.u32 2102212464, %v7111
    %v7124 = vshrl.u32 920167782, %v7112
    %v7125 = vor.u32 %v7123, %v7124
    %v7126 = vshll.u32 920167782, %v7111
    %v7127 = vshrl.u32 1326507024, %v7112
    %v7128 = vor.u32 %v7126, %v7127
    %vm7129 = vcmp.lt.s32.totalorder %v7110, 1
    %vm7130 = vcmp.lt.s32.totalorder %v7110, 2
    %vm7131 = vcmp.lt.s32.totalorder %v7110, 3
    %vm7132 = vcmp.lt.s32.totalorder %v7110, 4
    %v7133 = vsel %vm7129, %v7113, %v7116
    %v7134 = vsel %vm7132, %v7122, 2102212464
    %v7135 = vsel %vm7131, %v7119, %v7134
    %v7136 = vsel %vm7130, %v7133, %v7135
    %v7137 = vsel %vm7129, %v7116, %v7119
    %v7138 = vsel %vm7132, %v7125, 920167782
    %v7139 = vsel %vm7131, %v7122, %v7138
    %v7140 = vsel %vm7130, %v7137, %v7139
    %v7141 = vsel %vm7129, %v7119, %v7122
    %v7142 = vsel %vm7132, %v7128, 1326507024
    %v7143 = vsel %vm7131, %v7125, %v7142
    %v7144 = vsel %vm7130, %v7141, %v7143
    %v7145 = vshll.u32 %v7105, 8
    %v7146 = vand.u32 %v7145, 65535
    %v7147 = vshrl.u32 %v7145, 16
    %v7148 = vand.u32 %v7144, 65535
    %v7149 = vshrl.u32 %v7144, 16
    %v7150 = vmul.u32 %v7146, %v7148
    %v7151 = vmul.u32 %v7146, %v7149
    %v7152 = vmul.u32 %v7147, %v7148
    %v7153 = vmul.u32 %v7147, %v7149
    %v7154 = vshll.u32 %v7151, 16
    %v7155 = vshrl.u32 %v7151, 16
    %v7156 = vshll.u32 %v7152, 16
    %v7157 = vshrl.u32 %v7152, 16
    %vm7158 = vc.u32 %v7150, %v7154
    %v7159 = vsel %vm7158, 1, 0
    %v7160 = vadd.s32 %v7150, %v7154
    %v7161 = vadd.s32 %v7153, %v7159
    %vm7162 = vc.u32 %v7160, %v7156
    %v7163 = vsel %vm7162, 1, 0
    %v7164 = vadd.s32 %v7160, %v7156
    %v7165 = vadd.s32 %v7161, %v7163
    %v7166 = vadd.s32 %v7165, %v7155
    %v7167 = vadd.s32 %v7166, %v7157
    %v7168 = vand.u32 %v7145, 65535
    %v7169 = vshrl.u32 %v7145, 16
    %v7170 = vand.u32 %v7140, 65535
    %v7171 = vshrl.u32 %v7140, 16
    %v7172 = vmul.u32 %v7168, %v7170
    %v7173 = vmul.u32 %v7168, %v7171
    %v7174 = vmul.u32 %v7169, %v7170
    %v7175 = vmul.u32 %v7169, %v7171
    %v7176 = vshll.u32 %v7173, 16
    %v7177 = vshrl.u32 %v7173, 16
    %v7178 = vshll.u32 %v7174, 16
    %v7179 = vshrl.u32 %v7174, 16
    %vm7180 = vc.u32 %v7172, %v7176
    %v7181 = vsel %vm7180, 1, 0
    %v7182 = vadd.s32 %v7172, %v7176
    %v7183 = vadd.s32 %v7175, %v7181
    %vm7184 = vc.u32 %v7182, %v7178
    %v7185 = vsel %vm7184, 1, 0
    %v7186 = vadd.s32 %v7182, %v7178
    %v7187 = vadd.s32 %v7183, %v7185
    %v7188 = vadd.s32 %v7187, %v7177
    %v7189 = vadd.s32 %v7188, %v7179
    %v7190 = vmul.u32 %v7145, %v7136
    %v7191 = vadd.s32 %v7167, %v7186
    %vm7192 = vc.u32 %v7167, %v7186
    %v7193 = vadd.s32 %v7189, 1
    %v7194 = vsel %vm7192, %v7193, %v7189
    %v7195 = vadd.s32 %v7190, %v7194
    %v7196 = vadd.s32 %v7195, 536870912
    %v7197 = vshrl.u32 %v7196, 30
    %v7198 = vshll.u32 %v7197, 30
    %v7199 = vsub.s32 %v7195, %v7198
    %vm7200 = vcmp.lt.s32.totalorder %v7199, 0
    %v7201 = vsub.s32 0, %v7199
    %v7202 = vsel %vm7200, %v7201, %v7199
    %v7203 = vclz %v7202
    %v7204 = vsub.s32 %v7203, 2
    %vm7205 = vcmp.gt.s32.totalorder 0, %v7204
    %v7206 = vsel %vm7205, 0, %v7204
    %v7207 = vsub.s32 32, %v7206
    %v7208 = vshll.u32 %v7199, %v7206
    %v7209 = vshrl.u32 %v7191, %v7207
    %v7210 = vor.u32 %v7208, %v7209
    %v7211 = vsub.s32 4294967266, %v7206
    %v7212 = vadd.s32 %v7211, 127
    %v7213 = vshll.u32 %v7212, 23
    %v7214 = vor.u32 4788187, %v7213
    %v7215 = vand.u32 2147483647, %v7214
    %v7217 = vcvt.s32.f32 %v7210
    %v7218 = vmul.f32 %v7217, %v7215
    %v7219 = vxor.u32 %v7218, 2147483648
    %v7220 = vsel %vm7099, %v7219, %v7218
    %v7221 = vsub.s32 4, %v7197
    %v7222 = vsel %vm7099, %v7221, %v7197
    %v7223 = vsel %vm7098, %v849, %v7220
    %v7224 = vsel %vm7098, 0, %v7222
    %v7225 = vmul.f32 %v7223, %v7223
    %v7226 = vmul.f32 %v7225, -0.001358992
    %v7227 = vadd.f32 %v7226, 0.041655596
    %v7228 = vmul.f32 %v7225, %v7227
    %v7229 = vadd.f32 %v7228, -0.4999988
    %v7230 = vmul.f32 %v7225, %v7229
    %v7231 = vadd.f32 1.0, %v7230
    %v7232 = vmul.f32 %v7223, %v7223
    %v7233 = vmul.f32 %v7232, -0.00019511016
    %v7234 = vadd.f32 %v7233, 0.008332121
    %v7235 = vmul.f32 %v7232, %v7234
    %v7236 = vadd.f32 %v7235, -0.16666654
    %v7237 = vmul.f32 %v7232, %v7236
    %v7238 = vadd.f32 %v7237, 1.0
    %v7239 = vmul.f32 %v7238, %v7223
    %vm7240 = vweird.f32 %v849
    %v7241 = vand.u32 %v7224, 3
    %vm7242 = vcmp.lt.s32.totalorder %v7241, 2
    %vm7243 = vcmp.eq.s32.totalorder %v7241, 0
    %v7244 = vxor.u32 %v7239, 2147483648
    %v7245 = vsel %vm7243, %v7231, %v7244
    %vm7246 = vcmp.eq.s32.totalorder %v7241, 2
    %v7247 = vxor.u32 %v7231, 2147483648
    %v7248 = vsel %vm7246, %v7247, %v7239
    %v7249 = vsel %vm7242, %v7245, %v7248
    %v7250 = vsel %vm7240, nan, %v7249
    %v7251 = vand.u32 2147483647, %v850
    %vm7252 = vcmp.le.f32.partialorder %v7251, 0.7853982
    %vm7253 = vcmp.lt.s32.totalorder %v850, 0
    %v7254 = vand.u32 %v850, 2139095040
    %v7255 = vshrl.u32 %v7254, 23
    %v7256 = vsub.s32 %v7255, 127
    %v7257 = vand.u32 2147483647, %v850
    %v7258 = vand.u32 %v7257, 8388607
    %v7259 = vor.u32 %v7258, 8388608
    %v7260 = vsub.s32 0, %v7259
    %v7261 = vadd.s32 %v7256, 1
    %vm7262 = vcmp.gt.s32.totalorder %v7261, 0
    %v7263 = vsel %vm7262, %v7261, 0
    %v7264 = vshrl.u32 %v7263, 5
    %v7265 = vand.u32 %v7263, 31
    %v7266 = vsub.s32 32, %v7265
    %v7267 = vshrl.u32 683565275, %v7266
    %v7268 = vshll.u32 683565275, %v7265
    %v7269 = vshrl.u32 2475754826, %v7266
    %v7270 = vor.u32 %v7268, %v7269
    %v7271 = vshll.u32 2475754826, %v7265
    %v7272 = vshrl.u32 2131351028, %v7266
    %v7273 = vor.u32 %v7271, %v7272
    %v7274 = vshll.u32 2131351028, %v7265
    %v7275 = vshrl.u32 2102212464, %v7266
    %v7276 = vor.u32 %v7274, %v7275
    %v7277 = vshll.u32 2102212464, %v7265
    %v7278 = vshrl.u32 920167782, %v7266
    %v7279 = vor.u32 %v7277, %v7278
    %v7280 = vshll.u32 920167782, %v7265
    %v7281 = vshrl.u32 1326507024, %v7266
    %v7282 = vor.u32 %v7280, %v7281
    %vm7283 = vcmp.lt.s32.totalorder %v7264, 1
    %vm7284 = vcmp.lt.s32.totalorder %v7264, 2
    %vm7285 = vcmp.lt.s32.totalorder %v7264, 3
    %vm7286 = vcmp.lt.s32.totalorder %v7264, 4
    %v7287 = vsel %vm7283, %v7267, %v7270
    %v7288 = vsel %vm7286, %v7276, 2102212464
    %v7289 = vsel %vm7285, %v7273, %v7288
    %v7290 = vsel %vm7284, %v7287, %v7289
    %v7291 = vsel %vm7283, %v7270, %v7273
    %v7292 = vsel %vm7286, %v7279, 920167782
    %v7293 = vsel %vm7285, %v7276, %v7292
    %v7294 = vsel %vm7284, %v7291, %v7293
    %v7295 = vsel %vm7283, %v7273, %v7276
    %v7296 = vsel %vm7286, %v7282, 1326507024
    %v7297 = vsel %vm7285, %v7279, %v7296
    %v7298 = vsel %vm7284, %v7295, %v7297
    %v7299 = vshll.u32 %v7259, 8
    %v7300 = vand.u32 %v7299, 65535
    %v7301 = vshrl.u32 %v7299, 16
    %v7302 = vand.u32 %v7298, 65535
    %v7303 = vshrl.u32 %v7298, 16
    %v7304 = vmul.u32 %v7300, %v7302
    %v7305 = vmul.u32 %v7300, %v7303
    %v7306 = vmul.u32 %v7301, %v7302
    %v7307 = vmul.u32 %v7301, %v7303
    %v7308 = vshll.u32 %v7305, 16
    %v7309 = vshrl.u32 %v7305, 16
    %v7310 = vshll.u32 %v7306, 16
    %v7311 = vshrl.u32 %v7306, 16
    %vm7312 = vc.u32 %v7304, %v7308
    %v7313 = vsel %vm7312, 1, 0
    %v7314 = vadd.s32 %v7304, %v7308
    %v7315 = vadd.s32 %v7307, %v7313
    %vm7316 = vc.u32 %v7314, %v7310
    %v7317 = vsel %vm7316, 1, 0
    %v7318 = vadd.s32 %v7314, %v7310
    %v7319 = vadd.s32 %v7315, %v7317
    %v7320 = vadd.s32 %v7319, %v7309
    %v7321 = vadd.s32 %v7320, %v7311
    %v7322 = vand.u32 %v7299, 65535
    %v7323 = vshrl.u32 %v7299, 16
    %v7324 = vand.u32 %v7294, 65535
    %v7325 = vshrl.u32 %v7294, 16
    %v7326 = vmul.u32 %v7322, %v7324
    %v7327 = vmul.u32 %v7322, %v7325
    %v7328 = vmul.u32 %v7323, %v7324
    %v7329 = vmul.u32 %v7323, %v7325
    %v7330 = vshll.u32 %v7327, 16
    %v7331 = vshrl.u32 %v7327, 16
    %v7332 = vshll.u32 %v7328, 16
    %v7333 = vshrl.u32 %v7328, 16
    %vm7334 = vc.u32 %v7326, %v7330
    %v7335 = vsel %vm7334, 1, 0
    %v7336 = vadd.s32 %v7326, %v7330
    %v7337 = vadd.s32 %v7329, %v7335
    %vm7338 = vc.u32 %v7336, %v7332
    %v7339 = vsel %vm7338, 1, 0
    %v7340 = vadd.s32 %v7336, %v7332
    %v7341 = vadd.s32 %v7337, %v7339
    %v7342 = vadd.s32 %v7341, %v7331
    %v7343 = vadd.s32 %v7342, %v7333
    %v7344 = vmul.u32 %v7299, %v7290
    %v7345 = vadd.s32 %v7321, %v7340
    %vm7346 = vc.u32 %v7321, %v7340
    %v7347 = vadd.s32 %v7343, 1
    %v7348 = vsel %vm7346, %v7347, %v7343
    %v7349 = vadd.s32 %v7344, %v7348
    %v7350 = vadd.s32 %v7349, 536870912
    %v7351 = vshrl.u32 %v7350, 30
    %v7352 = vshll.u32 %v7351, 30
    %v7353 = vsub.s32 %v7349, %v7352
    %vm7354 = vcmp.lt.s32.totalorder %v7353, 0
    %v7355 = vsub.s32 0, %v7353
    %v7356 = vsel %vm7354, %v7355, %v7353
    %v7357 = vclz %v7356
    %v7358 = vsub.s32 %v7357, 2
    %vm7359 = vcmp.gt.s32.totalorder 0, %v7358
    %v7360 = vsel %vm7359, 0, %v7358
    %v7361 = vsub.s32 32, %v7360
    %v7362 = vshll.u32 %v7353, %v7360
    %v7363 = vshrl.u32 %v7345, %v7361
    %v7364 = vor.u32 %v7362, %v7363
    %v7365 = vsub.s32 4294967266, %v7360
    %v7366 = vadd.s32 %v7365, 127
    %v7367 = vshll.u32 %v7366, 23
    %v7368 = vor.u32 4788187, %v7367
    %v7369 = vand.u32 2147483647, %v7368
    %v7371 = vcvt.s32.f32 %v7364
    %v7372 = vmul.f32 %v7371, %v7369
    %v7373 = vxor.u32 %v7372, 2147483648
    %v7374 = vsel %vm7253, %v7373, %v7372
    %v7375 = vsub.s32 4, %v7351
    %v7376 = vsel %vm7253, %v7375, %v7351
    %v7377 = vsel %vm7252, %v850, %v7374
    %v7378 = vsel %vm7252, 0, %v7376
    %v7379 = vmul.f32 %v7377, %v7377
    %v7380 = vmul.f32 %v7379, -0.001358992
    %v7381 = vadd.f32 %v7380, 0.041655596
    %v7382 = vmul.f32 %v7379, %v7381
    %v7383 = vadd.f32 %v7382, -0.4999988
    %v7384 = vmul.f32 %v7379, %v7383
    %v7385 = vadd.f32 1.0, %v7384
    %v7386 = vmul.f32 %v7377, %v7377
    %v7387 = vmul.f32 %v7386, -0.00019511016
    %v7388 = vadd.f32 %v7387, 0.008332121
    %v7389 = vmul.f32 %v7386, %v7388
    %v7390 = vadd.f32 %v7389, -0.16666654
    %v7391 = vmul.f32 %v7386, %v7390
    %v7392 = vadd.f32 %v7391, 1.0
    %v7393 = vmul.f32 %v7392, %v7377
    %vm7394 = vweird.f32 %v850
    %v7395 = vand.u32 %v7378, 3
    %vm7396 = vcmp.lt.s32.totalorder %v7395, 2
    %vm7397 = vcmp.eq.s32.totalorder %v7395, 0
    %v7398 = vxor.u32 %v7393, 2147483648
    %v7399 = vsel %vm7397, %v7385, %v7398
    %vm7400 = vcmp.eq.s32.totalorder %v7395, 2
    %v7401 = vxor.u32 %v7385, 2147483648
    %v7402 = vsel %vm7400, %v7401, %v7393
    %v7403 = vsel %vm7396, %v7399, %v7402
    %v7404 = vsel %vm7394, nan, %v7403
    %v7405 = vand.u32 2147483647, %v851
    %vm7406 = vcmp.le.f32.partialorder %v7405, 0.7853982
    %vm7407 = vcmp.lt.s32.totalorder %v851, 0
    %v7408 = vand.u32 %v851, 2139095040
    %v7409 = vshrl.u32 %v7408, 23
    %v7410 = vsub.s32 %v7409, 127
    %v7411 = vand.u32 2147483647, %v851
    %v7412 = vand.u32 %v7411, 8388607
    %v7413 = vor.u32 %v7412, 8388608
    %v7414 = vsub.s32 0, %v7413
    %v7415 = vadd.s32 %v7410, 1
    %vm7416 = vcmp.gt.s32.totalorder %v7415, 0
    %v7417 = vsel %vm7416, %v7415, 0
    %v7418 = vshrl.u32 %v7417, 5
    %v7419 = vand.u32 %v7417, 31
    %v7420 = vsub.s32 32, %v7419
    %v7421 = vshrl.u32 683565275, %v7420
    %v7422 = vshll.u32 683565275, %v7419
    %v7423 = vshrl.u32 2475754826, %v7420
    %v7424 = vor.u32 %v7422, %v7423
    %v7425 = vshll.u32 2475754826, %v7419
    %v7426 = vshrl.u32 2131351028, %v7420
    %v7427 = vor.u32 %v7425, %v7426
    %v7428 = vshll.u32 2131351028, %v7419
    %v7429 = vshrl.u32 2102212464, %v7420
    %v7430 = vor.u32 %v7428, %v7429
    %v7431 = vshll.u32 2102212464, %v7419
    %v7432 = vshrl.u32 920167782, %v7420
    %v7433 = vor.u32 %v7431, %v7432
    %v7434 = vshll.u32 920167782, %v7419
    %v7435 = vshrl.u32 1326507024, %v7420
    %v7436 = vor.u32 %v7434, %v7435
    %vm7437 = vcmp.lt.s32.totalorder %v7418, 1
    %vm7438 = vcmp.lt.s32.totalorder %v7418, 2
    %vm7439 = vcmp.lt.s32.totalorder %v7418, 3
    %vm7440 = vcmp.lt.s32.totalorder %v7418, 4
    %v7441 = vsel %vm7437, %v7421, %v7424
    %v7442 = vsel %vm7440, %v7430, 2102212464
    %v7443 = vsel %vm7439, %v7427, %v7442
    %v7444 = vsel %vm7438, %v7441, %v7443
    %v7445 = vsel %vm7437, %v7424, %v7427
    %v7446 = vsel %vm7440, %v7433, 920167782
    %v7447 = vsel %vm7439, %v7430, %v7446
    %v7448 = vsel %vm7438, %v7445, %v7447
    %v7449 = vsel %vm7437, %v7427, %v7430
    %v7450 = vsel %vm7440, %v7436, 1326507024
    %v7451 = vsel %vm7439, %v7433, %v7450
    %v7452 = vsel %vm7438, %v7449, %v7451
    %v7453 = vshll.u32 %v7413, 8
    %v7454 = vand.u32 %v7453, 65535
    %v7455 = vshrl.u32 %v7453, 16
    %v7456 = vand.u32 %v7452, 65535
    %v7457 = vshrl.u32 %v7452, 16
    %v7458 = vmul.u32 %v7454, %v7456
    %v7459 = vmul.u32 %v7454, %v7457
    %v7460 = vmul.u32 %v7455, %v7456
    %v7461 = vmul.u32 %v7455, %v7457
    %v7462 = vshll.u32 %v7459, 16
    %v7463 = vshrl.u32 %v7459, 16
    %v7464 = vshll.u32 %v7460, 16
    %v7465 = vshrl.u32 %v7460, 16
    %vm7466 = vc.u32 %v7458, %v7462
    %v7467 = vsel %vm7466, 1, 0
    %v7468 = vadd.s32 %v7458, %v7462
    %v7469 = vadd.s32 %v7461, %v7467
    %vm7470 = vc.u32 %v7468, %v7464
    %v7471 = vsel %vm7470, 1, 0
    %v7472 = vadd.s32 %v7468, %v7464
    %v7473 = vadd.s32 %v7469, %v7471
    %v7474 = vadd.s32 %v7473, %v7463
    %v7475 = vadd.s32 %v7474, %v7465
    %v7476 = vand.u32 %v7453, 65535
    %v7477 = vshrl.u32 %v7453, 16
    %v7478 = vand.u32 %v7448, 65535
    %v7479 = vshrl.u32 %v7448, 16
    %v7480 = vmul.u32 %v7476, %v7478
    %v7481 = vmul.u32 %v7476, %v7479
    %v7482 = vmul.u32 %v7477, %v7478
    %v7483 = vmul.u32 %v7477, %v7479
    %v7484 = vshll.u32 %v7481, 16
    %v7485 = vshrl.u32 %v7481, 16
    %v7486 = vshll.u32 %v7482, 16
    %v7487 = vshrl.u32 %v7482, 16
    %vm7488 = vc.u32 %v7480, %v7484
    %v7489 = vsel %vm7488, 1, 0
    %v7490 = vadd.s32 %v7480, %v7484
    %v7491 = vadd.s32 %v7483, %v7489
    %vm7492 = vc.u32 %v7490, %v7486
    %v7493 = vsel %vm7492, 1, 0
    %v7494 = vadd.s32 %v7490, %v7486
    %v7495 = vadd.s32 %v7491, %v7493
    %v7496 = vadd.s32 %v7495, %v7485
    %v7497 = vadd.s32 %v7496, %v7487
    %v7498 = vmul.u32 %v7453, %v7444
    %v7499 = vadd.s32 %v7475, %v7494
    %vm7500 = vc.u32 %v7475, %v7494
    %v7501 = vadd.s32 %v7497, 1
    %v7502 = vsel %vm7500, %v7501, %v7497
    %v7503 = vadd.s32 %v7498, %v7502
    %v7504 = vadd.s32 %v7503, 536870912
    %v7505 = vshrl.u32 %v7504, 30
    %v7506 = vshll.u32 %v7505, 30
    %v7507 = vsub.s32 %v7503, %v7506
    %vm7508 = vcmp.lt.s32.totalorder %v7507, 0
    %v7509 = vsub.s32 0, %v7507
    %v7510 = vsel %vm7508, %v7509, %v7507
    %v7511 = vclz %v7510
    %v7512 = vsub.s32 %v7511, 2
    %vm7513 = vcmp.gt.s32.totalorder 0, %v7512
    %v7514 = vsel %vm7513, 0, %v7512
    %v7515 = vsub.s32 32, %v7514
    %v7516 = vshll.u32 %v7507, %v7514
    %v7517 = vshrl.u32 %v7499, %v7515
    %v7518 = vor.u32 %v7516, %v7517
    %v7519 = vsub.s32 4294967266, %v7514
    %v7520 = vadd.s32 %v7519, 127
    %v7521 = vshll.u32 %v7520, 23
    %v7522 = vor.u32 4788187, %v7521
    %v7523 = vand.u32 2147483647, %v7522
    %v7525 = vcvt.s32.f32 %v7518
    %v7526 = vmul.f32 %v7525, %v7523
    %v7527 = vxor.u32 %v7526, 2147483648
    %v7528 = vsel %vm7407, %v7527, %v7526
    %v7529 = vsub.s32 4, %v7505
    %v7530 = vsel %vm7407, %v7529, %v7505
    %v7531 = vsel %vm7406, %v851, %v7528
    %v7532 = vsel %vm7406, 0, %v7530
    %v7533 = vmul.f32 %v7531, %v7531
    %v7534 = vmul.f32 %v7533, -0.001358992
    %v7535 = vadd.f32 %v7534, 0.041655596
    %v7536 = vmul.f32 %v7533, %v7535
    %v7537 = vadd.f32 %v7536, -0.4999988
    %v7538 = vmul.f32 %v7533, %v7537
    %v7539 = vadd.f32 1.0, %v7538
    %v7540 = vmul.f32 %v7531, %v7531
    %v7541 = vmul.f32 %v7540, -0.00019511016
    %v7542 = vadd.f32 %v7541, 0.008332121
    %v7543 = vmul.f32 %v7540, %v7542
    %v7544 = vadd.f32 %v7543, -0.16666654
    %v7545 = vmul.f32 %v7540, %v7544
    %v7546 = vadd.f32 %v7545, 1.0
    %v7547 = vmul.f32 %v7546, %v7531
    %vm7548 = vweird.f32 %v851
    %v7549 = vand.u32 %v7532, 3
    %vm7550 = vcmp.lt.s32.totalorder %v7549, 2
    %vm7551 = vcmp.eq.s32.totalorder %v7549, 0
    %v7552 = vxor.u32 %v7547, 2147483648
    %v7553 = vsel %vm7551, %v7539, %v7552
    %vm7554 = vcmp.eq.s32.totalorder %v7549, 2
    %v7555 = vxor.u32 %v7539, 2147483648
    %v7556 = vsel %vm7554, %v7555, %v7547
    %v7557 = vsel %vm7550, %v7553, %v7556
    %v7558 = vsel %vm7548, nan, %v7557
    %v7559 = vand.u32 2147483647, %v852
    %vm7560 = vcmp.le.f32.partialorder %v7559, 0.7853982
    %vm7561 = vcmp.lt.s32.totalorder %v852, 0
    %v7562 = vand.u32 %v852, 2139095040
    %v7563 = vshrl.u32 %v7562, 23
    %v7564 = vsub.s32 %v7563, 127
    %v7565 = vand.u32 2147483647, %v852
    %v7566 = vand.u32 %v7565, 8388607
    %v7567 = vor.u32 %v7566, 8388608
    %v7568 = vsub.s32 0, %v7567
    %v7569 = vadd.s32 %v7564, 1
    %vm7570 = vcmp.gt.s32.totalorder %v7569, 0
    %v7571 = vsel %vm7570, %v7569, 0
    %v7572 = vshrl.u32 %v7571, 5
    %v7573 = vand.u32 %v7571, 31
    %v7574 = vsub.s32 32, %v7573
    %v7575 = vshrl.u32 683565275, %v7574
    %v7576 = vshll.u32 683565275, %v7573
    %v7577 = vshrl.u32 2475754826, %v7574
    %v7578 = vor.u32 %v7576, %v7577
    %v7579 = vshll.u32 2475754826, %v7573
    %v7580 = vshrl.u32 2131351028, %v7574
    %v7581 = vor.u32 %v7579, %v7580
    %v7582 = vshll.u32 2131351028, %v7573
    %v7583 = vshrl.u32 2102212464, %v7574
    %v7584 = vor.u32 %v7582, %v7583
    %v7585 = vshll.u32 2102212464, %v7573
    %v7586 = vshrl.u32 920167782, %v7574
    %v7587 = vor.u32 %v7585, %v7586
    %v7588 = vshll.u32 920167782, %v7573
    %v7589 = vshrl.u32 1326507024, %v7574
    %v7590 = vor.u32 %v7588, %v7589
    %vm7591 = vcmp.lt.s32.totalorder %v7572, 1
    %vm7592 = vcmp.lt.s32.totalorder %v7572, 2
    %vm7593 = vcmp.lt.s32.totalorder %v7572, 3
    %vm7594 = vcmp.lt.s32.totalorder %v7572, 4
    %v7595 = vsel %vm7591, %v7575, %v7578
    %v7596 = vsel %vm7594, %v7584, 2102212464
    %v7597 = vsel %vm7593, %v7581, %v7596
    %v7598 = vsel %vm7592, %v7595, %v7597
    %v7599 = vsel %vm7591, %v7578, %v7581
    %v7600 = vsel %vm7594, %v7587, 920167782
    %v7601 = vsel %vm7593, %v7584, %v7600
    %v7602 = vsel %vm7592, %v7599, %v7601
    %v7603 = vsel %vm7591, %v7581, %v7584
    %v7604 = vsel %vm7594, %v7590, 1326507024
    %v7605 = vsel %vm7593, %v7587, %v7604
    %v7606 = vsel %vm7592, %v7603, %v7605
    %v7607 = vshll.u32 %v7567, 8
    %v7608 = vand.u32 %v7607, 65535
    %v7609 = vshrl.u32 %v7607, 16
    %v7610 = vand.u32 %v7606, 65535
    %v7611 = vshrl.u32 %v7606, 16
    %v7612 = vmul.u32 %v7608, %v7610
    %v7613 = vmul.u32 %v7608, %v7611
    %v7614 = vmul.u32 %v7609, %v7610
    %v7615 = vmul.u32 %v7609, %v7611
    %v7616 = vshll.u32 %v7613, 16
    %v7617 = vshrl.u32 %v7613, 16
    %v7618 = vshll.u32 %v7614, 16
    %v7619 = vshrl.u32 %v7614, 16
    %vm7620 = vc.u32 %v7612, %v7616
    %v7621 = vsel %vm7620, 1, 0
    %v7622 = vadd.s32 %v7612, %v7616
    %v7623 = vadd.s32 %v7615, %v7621
    %vm7624 = vc.u32 %v7622, %v7618
    %v7625 = vsel %vm7624, 1, 0
    %v7626 = vadd.s32 %v7622, %v7618
    %v7627 = vadd.s32 %v7623, %v7625
    %v7628 = vadd.s32 %v7627, %v7617
    %v7629 = vadd.s32 %v7628, %v7619
    %v7630 = vand.u32 %v7607, 65535
    %v7631 = vshrl.u32 %v7607, 16
    %v7632 = vand.u32 %v7602, 65535
    %v7633 = vshrl.u32 %v7602, 16
    %v7634 = vmul.u32 %v7630, %v7632
    %v7635 = vmul.u32 %v7630, %v7633
    %v7636 = vmul.u32 %v7631, %v7632
    %v7637 = vmul.u32 %v7631, %v7633
    %v7638 = vshll.u32 %v7635, 16
    %v7639 = vshrl.u32 %v7635, 16
    %v7640 = vshll.u32 %v7636, 16
    %v7641 = vshrl.u32 %v7636, 16
    %vm7642 = vc.u32 %v7634, %v7638
    %v7643 = vsel %vm7642, 1, 0
    %v7644 = vadd.s32 %v7634, %v7638
    %v7645 = vadd.s32 %v7637, %v7643
    %vm7646 = vc.u32 %v7644, %v7640
    %v7647 = vsel %vm7646, 1, 0
    %v7648 = vadd.s32 %v7644, %v7640
    %v7649 = vadd.s32 %v7645, %v7647
    %v7650 = vadd.s32 %v7649, %v7639
    %v7651 = vadd.s32 %v7650, %v7641
    %v7652 = vmul.u32 %v7607, %v7598
    %v7653 = vadd.s32 %v7629, %v7648
    %vm7654 = vc.u32 %v7629, %v7648
    %v7655 = vadd.s32 %v7651, 1
    %v7656 = vsel %vm7654, %v7655, %v7651
    %v7657 = vadd.s32 %v7652, %v7656
    %v7658 = vadd.s32 %v7657, 536870912
    %v7659 = vshrl.u32 %v7658, 30
    %v7660 = vshll.u32 %v7659, 30
    %v7661 = vsub.s32 %v7657, %v7660
    %vm7662 = vcmp.lt.s32.totalorder %v7661, 0
    %v7663 = vsub.s32 0, %v7661
    %v7664 = vsel %vm7662, %v7663, %v7661
    %v7665 = vclz %v7664
    %v7666 = vsub.s32 %v7665, 2
    %vm7667 = vcmp.gt.s32.totalorder 0, %v7666
    %v7668 = vsel %vm7667, 0, %v7666
    %v7669 = vsub.s32 32, %v7668
    %v7670 = vshll.u32 %v7661, %v7668
    %v7671 = vshrl.u32 %v7653, %v7669
    %v7672 = vor.u32 %v7670, %v7671
    %v7673 = vsub.s32 4294967266, %v7668
    %v7674 = vadd.s32 %v7673, 127
    %v7675 = vshll.u32 %v7674, 23
    %v7676 = vor.u32 4788187, %v7675
    %v7677 = vand.u32 2147483647, %v7676
    %v7679 = vcvt.s32.f32 %v7672
    %v7680 = vmul.f32 %v7679, %v7677
    %v7681 = vxor.u32 %v7680, 2147483648
    %v7682 = vsel %vm7561, %v7681, %v7680
    %v7683 = vsub.s32 4, %v7659
    %v7684 = vsel %vm7561, %v7683, %v7659
    %v7685 = vsel %vm7560, %v852, %v7682
    %v7686 = vsel %vm7560, 0, %v7684
    %v7687 = vmul.f32 %v7685, %v7685
    %v7688 = vmul.f32 %v7687, -0.001358992
    %v7689 = vadd.f32 %v7688, 0.041655596
    %v7690 = vmul.f32 %v7687, %v7689
    %v7691 = vadd.f32 %v7690, -0.4999988
    %v7692 = vmul.f32 %v7687, %v7691
    %v7693 = vadd.f32 1.0, %v7692
    %v7694 = vmul.f32 %v7685, %v7685
    %v7695 = vmul.f32 %v7694, -0.00019511016
    %v7696 = vadd.f32 %v7695, 0.008332121
    %v7697 = vmul.f32 %v7694, %v7696
    %v7698 = vadd.f32 %v7697, -0.16666654
    %v7699 = vmul.f32 %v7694, %v7698
    %v7700 = vadd.f32 %v7699, 1.0
    %v7701 = vmul.f32 %v7700, %v7685
    %vm7702 = vweird.f32 %v852
    %v7703 = vand.u32 %v7686, 3
    %vm7704 = vcmp.lt.s32.totalorder %v7703, 2
    %vm7705 = vcmp.eq.s32.totalorder %v7703, 0
    %v7706 = vxor.u32 %v7701, 2147483648
    %v7707 = vsel %vm7705, %v7693, %v7706
    %vm7708 = vcmp.eq.s32.totalorder %v7703, 2
    %v7709 = vxor.u32 %v7693, 2147483648
    %v7710 = vsel %vm7708, %v7709, %v7701
    %v7711 = vsel %vm7704, %v7707, %v7710
    %v7712 = vsel %vm7702, nan, %v7711
    %v7713 = vand.u32 2147483647, %v853
    %vm7714 = vcmp.le.f32.partialorder %v7713, 0.7853982
    %vm7715 = vcmp.lt.s32.totalorder %v853, 0
    %v7716 = vand.u32 %v853, 2139095040
    %v7717 = vshrl.u32 %v7716, 23
    %v7718 = vsub.s32 %v7717, 127
    %v7719 = vand.u32 2147483647, %v853
    %v7720 = vand.u32 %v7719, 8388607
    %v7721 = vor.u32 %v7720, 8388608
    %v7722 = vsub.s32 0, %v7721
    %v7723 = vadd.s32 %v7718, 1
    %vm7724 = vcmp.gt.s32.totalorder %v7723, 0
    %v7725 = vsel %vm7724, %v7723, 0
    %v7726 = vshrl.u32 %v7725, 5
    %v7727 = vand.u32 %v7725, 31
    %v7728 = vsub.s32 32, %v7727
    %v7729 = vshrl.u32 683565275, %v7728
    %v7730 = vshll.u32 683565275, %v7727
    %v7731 = vshrl.u32 2475754826, %v7728
    %v7732 = vor.u32 %v7730, %v7731
    %v7733 = vshll.u32 2475754826, %v7727
    %v7734 = vshrl.u32 2131351028, %v7728
    %v7735 = vor.u32 %v7733, %v7734
    %v7736 = vshll.u32 2131351028, %v7727
    %v7737 = vshrl.u32 2102212464, %v7728
    %v7738 = vor.u32 %v7736, %v7737
    %v7739 = vshll.u32 2102212464, %v7727
    %v7740 = vshrl.u32 920167782, %v7728
    %v7741 = vor.u32 %v7739, %v7740
    %v7742 = vshll.u32 920167782, %v7727
    %v7743 = vshrl.u32 1326507024, %v7728
    %v7744 = vor.u32 %v7742, %v7743
    %vm7745 = vcmp.lt.s32.totalorder %v7726, 1
    %vm7746 = vcmp.lt.s32.totalorder %v7726, 2
    %vm7747 = vcmp.lt.s32.totalorder %v7726, 3
    %vm7748 = vcmp.lt.s32.totalorder %v7726, 4
    %v7749 = vsel %vm7745, %v7729, %v7732
    %v7750 = vsel %vm7748, %v7738, 2102212464
    %v7751 = vsel %vm7747, %v7735, %v7750
    %v7752 = vsel %vm7746, %v7749, %v7751
    %v7753 = vsel %vm7745, %v7732, %v7735
    %v7754 = vsel %vm7748, %v7741, 920167782
    %v7755 = vsel %vm7747, %v7738, %v7754
    %v7756 = vsel %vm7746, %v7753, %v7755
    %v7757 = vsel %vm7745, %v7735, %v7738
    %v7758 = vsel %vm7748, %v7744, 1326507024
    %v7759 = vsel %vm7747, %v7741, %v7758
    %v7760 = vsel %vm7746, %v7757, %v7759
    %v7761 = vshll.u32 %v7721, 8
    %v7762 = vand.u32 %v7761, 65535
    %v7763 = vshrl.u32 %v7761, 16
    %v7764 = vand.u32 %v7760, 65535
    %v7765 = vshrl.u32 %v7760, 16
    %v7766 = vmul.u32 %v7762, %v7764
    %v7767 = vmul.u32 %v7762, %v7765
    %v7768 = vmul.u32 %v7763, %v7764
    %v7769 = vmul.u32 %v7763, %v7765
    %v7770 = vshll.u32 %v7767, 16
    %v7771 = vshrl.u32 %v7767, 16
    %v7772 = vshll.u32 %v7768, 16
    %v7773 = vshrl.u32 %v7768, 16
    %vm7774 = vc.u32 %v7766, %v7770
    %v7775 = vsel %vm7774, 1, 0
    %v7776 = vadd.s32 %v7766, %v7770
    %v7777 = vadd.s32 %v7769, %v7775
    %vm7778 = vc.u32 %v7776, %v7772
    %v7779 = vsel %vm7778, 1, 0
    %v7780 = vadd.s32 %v7776, %v7772
    %v7781 = vadd.s32 %v7777, %v7779
    %v7782 = vadd.s32 %v7781, %v7771
    %v7783 = vadd.s32 %v7782, %v7773
    %v7784 = vand.u32 %v7761, 65535
    %v7785 = vshrl.u32 %v7761, 16
    %v7786 = vand.u32 %v7756, 65535
    %v7787 = vshrl.u32 %v7756, 16
    %v7788 = vmul.u32 %v7784, %v7786
    %v7789 = vmul.u32 %v7784, %v7787
    %v7790 = vmul.u32 %v7785, %v7786
    %v7791 = vmul.u32 %v7785, %v7787
    %v7792 = vshll.u32 %v7789, 16
    %v7793 = vshrl.u32 %v7789, 16
    %v7794 = vshll.u32 %v7790, 16
    %v7795 = vshrl.u32 %v7790, 16
    %vm7796 = vc.u32 %v7788, %v7792
    %v7797 = vsel %vm7796, 1, 0
    %v7798 = vadd.s32 %v7788, %v7792
    %v7799 = vadd.s32 %v7791, %v7797
    %vm7800 = vc.u32 %v7798, %v7794
    %v7801 = vsel %vm7800, 1, 0
    %v7802 = vadd.s32 %v7798, %v7794
    %v7803 = vadd.s32 %v7799, %v7801
    %v7804 = vadd.s32 %v7803, %v7793
    %v7805 = vadd.s32 %v7804, %v7795
    %v7806 = vmul.u32 %v7761, %v7752
    %v7807 = vadd.s32 %v7783, %v7802
    %vm7808 = vc.u32 %v7783, %v7802
    %v7809 = vadd.s32 %v7805, 1
    %v7810 = vsel %vm7808, %v7809, %v7805
    %v7811 = vadd.s32 %v7806, %v7810
    %v7812 = vadd.s32 %v7811, 536870912
    %v7813 = vshrl.u32 %v7812, 30
    %v7814 = vshll.u32 %v7813, 30
    %v7815 = vsub.s32 %v7811, %v7814
    %vm7816 = vcmp.lt.s32.totalorder %v7815, 0
    %v7817 = vsub.s32 0, %v7815
    %v7818 = vsel %vm7816, %v7817, %v7815
    %v7819 = vclz %v7818
    %v7820 = vsub.s32 %v7819, 2
    %vm7821 = vcmp.gt.s32.totalorder 0, %v7820
    %v7822 = vsel %vm7821, 0, %v7820
    %v7823 = vsub.s32 32, %v7822
    %v7824 = vshll.u32 %v7815, %v7822
    %v7825 = vshrl.u32 %v7807, %v7823
    %v7826 = vor.u32 %v7824, %v7825
    %v7827 = vsub.s32 4294967266, %v7822
    %v7828 = vadd.s32 %v7827, 127
    %v7829 = vshll.u32 %v7828, 23
    %v7830 = vor.u32 4788187, %v7829
    %v7831 = vand.u32 2147483647, %v7830
    %v7833 = vcvt.s32.f32 %v7826
    %v7834 = vmul.f32 %v7833, %v7831
    %v7835 = vxor.u32 %v7834, 2147483648
    %v7836 = vsel %vm7715, %v7835, %v7834
    %v7837 = vsub.s32 4, %v7813
    %v7838 = vsel %vm7715, %v7837, %v7813
    %v7839 = vsel %vm7714, %v853, %v7836
    %v7840 = vsel %vm7714, 0, %v7838
    %v7841 = vmul.f32 %v7839, %v7839
    %v7842 = vmul.f32 %v7841, -0.001358992
    %v7843 = vadd.f32 %v7842, 0.041655596
    %v7844 = vmul.f32 %v7841, %v7843
    %v7845 = vadd.f32 %v7844, -0.4999988
    %v7846 = vmul.f32 %v7841, %v7845
    %v7847 = vadd.f32 1.0, %v7846
    %v7848 = vmul.f32 %v7839, %v7839
    %v7849 = vmul.f32 %v7848, -0.00019511016
    %v7850 = vadd.f32 %v7849, 0.008332121
    %v7851 = vmul.f32 %v7848, %v7850
    %v7852 = vadd.f32 %v7851, -0.16666654
    %v7853 = vmul.f32 %v7848, %v7852
    %v7854 = vadd.f32 %v7853, 1.0
    %v7855 = vmul.f32 %v7854, %v7839
    %vm7856 = vweird.f32 %v853
    %v7857 = vand.u32 %v7840, 3
    %vm7858 = vcmp.lt.s32.totalorder %v7857, 2
    %vm7859 = vcmp.eq.s32.totalorder %v7857, 0
    %v7860 = vxor.u32 %v7855, 2147483648
    %v7861 = vsel %vm7859, %v7847, %v7860
    %vm7862 = vcmp.eq.s32.totalorder %v7857, 2
    %v7863 = vxor.u32 %v7847, 2147483648
    %v7864 = vsel %vm7862, %v7863, %v7855
    %v7865 = vsel %vm7858, %v7861, %v7864
    %v7866 = vsel %vm7856, nan, %v7865
    %v7867 = vand.u32 2147483647, %v854
    %vm7868 = vcmp.le.f32.partialorder %v7867, 0.7853982
    %vm7869 = vcmp.lt.s32.totalorder %v854, 0
    %v7870 = vand.u32 %v854, 2139095040
    %v7871 = vshrl.u32 %v7870, 23
    %v7872 = vsub.s32 %v7871, 127
    %v7873 = vand.u32 2147483647, %v854
    %v7874 = vand.u32 %v7873, 8388607
    %v7875 = vor.u32 %v7874, 8388608
    %v7876 = vsub.s32 0, %v7875
    %v7877 = vadd.s32 %v7872, 1
    %vm7878 = vcmp.gt.s32.totalorder %v7877, 0
    %v7879 = vsel %vm7878, %v7877, 0
    %v7880 = vshrl.u32 %v7879, 5
    %v7881 = vand.u32 %v7879, 31
    %v7882 = vsub.s32 32, %v7881
    %v7883 = vshrl.u32 683565275, %v7882
    %v7884 = vshll.u32 683565275, %v7881
    %v7885 = vshrl.u32 2475754826, %v7882
    %v7886 = vor.u32 %v7884, %v7885
    %v7887 = vshll.u32 2475754826, %v7881
    %v7888 = vshrl.u32 2131351028, %v7882
    %v7889 = vor.u32 %v7887, %v7888
    %v7890 = vshll.u32 2131351028, %v7881
    %v7891 = vshrl.u32 2102212464, %v7882
    %v7892 = vor.u32 %v7890, %v7891
    %v7893 = vshll.u32 2102212464, %v7881
    %v7894 = vshrl.u32 920167782, %v7882
    %v7895 = vor.u32 %v7893, %v7894
    %v7896 = vshll.u32 920167782, %v7881
    %v7897 = vshrl.u32 1326507024, %v7882
    %v7898 = vor.u32 %v7896, %v7897
    %vm7899 = vcmp.lt.s32.totalorder %v7880, 1
    %vm7900 = vcmp.lt.s32.totalorder %v7880, 2
    %vm7901 = vcmp.lt.s32.totalorder %v7880, 3
    %vm7902 = vcmp.lt.s32.totalorder %v7880, 4
    %v7903 = vsel %vm7899, %v7883, %v7886
    %v7904 = vsel %vm7902, %v7892, 2102212464
    %v7905 = vsel %vm7901, %v7889, %v7904
    %v7906 = vsel %vm7900, %v7903, %v7905
    %v7907 = vsel %vm7899, %v7886, %v7889
    %v7908 = vsel %vm7902, %v7895, 920167782
    %v7909 = vsel %vm7901, %v7892, %v7908
    %v7910 = vsel %vm7900, %v7907, %v7909
    %v7911 = vsel %vm7899, %v7889, %v7892
    %v7912 = vsel %vm7902, %v7898, 1326507024
    %v7913 = vsel %vm7901, %v7895, %v7912
    %v7914 = vsel %vm7900, %v7911, %v7913
    %v7915 = vshll.u32 %v7875, 8
    %v7916 = vand.u32 %v7915, 65535
    %v7917 = vshrl.u32 %v7915, 16
    %v7918 = vand.u32 %v7914, 65535
    %v7919 = vshrl.u32 %v7914, 16
    %v7920 = vmul.u32 %v7916, %v7918
    %v7921 = vmul.u32 %v7916, %v7919
    %v7922 = vmul.u32 %v7917, %v7918
    %v7923 = vmul.u32 %v7917, %v7919
    %v7924 = vshll.u32 %v7921, 16
    %v7925 = vshrl.u32 %v7921, 16
    %v7926 = vshll.u32 %v7922, 16
    %v7927 = vshrl.u32 %v7922, 16
    %vm7928 = vc.u32 %v7920, %v7924
    %v7929 = vsel %vm7928, 1, 0
    %v7930 = vadd.s32 %v7920, %v7924
    %v7931 = vadd.s32 %v7923, %v7929
    %vm7932 = vc.u32 %v7930, %v7926
    %v7933 = vsel %vm7932, 1, 0
    %v7934 = vadd.s32 %v7930, %v7926
    %v7935 = vadd.s32 %v7931, %v7933
    %v7936 = vadd.s32 %v7935, %v7925
    %v7937 = vadd.s32 %v7936, %v7927
    %v7938 = vand.u32 %v7915, 65535
    %v7939 = vshrl.u32 %v7915, 16
    %v7940 = vand.u32 %v7910, 65535
    %v7941 = vshrl.u32 %v7910, 16
    %v7942 = vmul.u32 %v7938, %v7940
    %v7943 = vmul.u32 %v7938, %v7941
    %v7944 = vmul.u32 %v7939, %v7940
    %v7945 = vmul.u32 %v7939, %v7941
    %v7946 = vshll.u32 %v7943, 16
    %v7947 = vshrl.u32 %v7943, 16
    %v7948 = vshll.u32 %v7944, 16
    %v7949 = vshrl.u32 %v7944, 16
    %vm7950 = vc.u32 %v7942, %v7946
    %v7951 = vsel %vm7950, 1, 0
    %v7952 = vadd.s32 %v7942, %v7946
    %v7953 = vadd.s32 %v7945, %v7951
    %vm7954 = vc.u32 %v7952, %v7948
    %v7955 = vsel %vm7954, 1, 0
    %v7956 = vadd.s32 %v7952, %v7948
    %v7957 = vadd.s32 %v7953, %v7955
    %v7958 = vadd.s32 %v7957, %v7947
    %v7959 = vadd.s32 %v7958, %v7949
    %v7960 = vmul.u32 %v7915, %v7906
    %v7961 = vadd.s32 %v7937, %v7956
    %vm7962 = vc.u32 %v7937, %v7956
    %v7963 = vadd.s32 %v7959, 1
    %v7964 = vsel %vm7962, %v7963, %v7959
    %v7965 = vadd.s32 %v7960, %v7964
    %v7966 = vadd.s32 %v7965, 536870912
    %v7967 = vshrl.u32 %v7966, 30
    %v7968 = vshll.u32 %v7967, 30
    %v7969 = vsub.s32 %v7965, %v7968
    %vm7970 = vcmp.lt.s32.totalorder %v7969, 0
    %v7971 = vsub.s32 0, %v7969
    %v7972 = vsel %vm7970, %v7971, %v7969
    %v7973 = vclz %v7972
    %v7974 = vsub.s32 %v7973, 2
    %vm7975 = vcmp.gt.s32.totalorder 0, %v7974
    %v7976 = vsel %vm7975, 0, %v7974
    %v7977 = vsub.s32 32, %v7976
    %v7978 = vshll.u32 %v7969, %v7976
    %v7979 = vshrl.u32 %v7961, %v7977
    %v7980 = vor.u32 %v7978, %v7979
    %v7981 = vsub.s32 4294967266, %v7976
    %v7982 = vadd.s32 %v7981, 127
    %v7983 = vshll.u32 %v7982, 23
    %v7984 = vor.u32 4788187, %v7983
    %v7985 = vand.u32 2147483647, %v7984
    %v7987 = vcvt.s32.f32 %v7980
    %v7988 = vmul.f32 %v7987, %v7985
    %v7989 = vxor.u32 %v7988, 2147483648
    %v7990 = vsel %vm7869, %v7989, %v7988
    %v7991 = vsub.s32 4, %v7967
    %v7992 = vsel %vm7869, %v7991, %v7967
    %v7993 = vsel %vm7868, %v854, %v7990
    %v7994 = vsel %vm7868, 0, %v7992
    %v7995 = vmul.f32 %v7993, %v7993
    %v7996 = vmul.f32 %v7995, -0.001358992
    %v7997 = vadd.f32 %v7996, 0.041655596
    %v7998 = vmul.f32 %v7995, %v7997
    %v7999 = vadd.f32 %v7998, -0.4999988
    %v8000 = vmul.f32 %v7995, %v7999
    %v8001 = vadd.f32 1.0, %v8000
    %v8002 = vmul.f32 %v7993, %v7993
    %v8003 = vmul.f32 %v8002, -0.00019511016
    %v8004 = vadd.f32 %v8003, 0.008332121
    %v8005 = vmul.f32 %v8002, %v8004
    %v8006 = vadd.f32 %v8005, -0.16666654
    %v8007 = vmul.f32 %v8002, %v8006
    %v8008 = vadd.f32 %v8007, 1.0
    %v8009 = vmul.f32 %v8008, %v7993
    %vm8010 = vweird.f32 %v854
    %v8011 = vand.u32 %v7994, 3
    %vm8012 = vcmp.lt.s32.totalorder %v8011, 2
    %vm8013 = vcmp.eq.s32.totalorder %v8011, 0
    %v8014 = vxor.u32 %v8009, 2147483648
    %v8015 = vsel %vm8013, %v8001, %v8014
    %vm8016 = vcmp.eq.s32.totalorder %v8011, 2
    %v8017 = vxor.u32 %v8001, 2147483648
    %v8018 = vsel %vm8016, %v8017, %v8009
    %v8019 = vsel %vm8012, %v8015, %v8018
    %v8020 = vsel %vm8010, nan, %v8019
    %v8021 = vand.u32 2147483647, %v855
    %vm8022 = vcmp.le.f32.partialorder %v8021, 0.7853982
    %vm8023 = vcmp.lt.s32.totalorder %v855, 0
    %v8024 = vand.u32 %v855, 2139095040
    %v8025 = vshrl.u32 %v8024, 23
    %v8026 = vsub.s32 %v8025, 127
    %v8027 = vand.u32 2147483647, %v855
    %v8028 = vand.u32 %v8027, 8388607
    %v8029 = vor.u32 %v8028, 8388608
    %v8030 = vsub.s32 0, %v8029
    %v8031 = vadd.s32 %v8026, 1
    %vm8032 = vcmp.gt.s32.totalorder %v8031, 0
    %v8033 = vsel %vm8032, %v8031, 0
    %v8034 = vshrl.u32 %v8033, 5
    %v8035 = vand.u32 %v8033, 31
    %v8036 = vsub.s32 32, %v8035
    %v8037 = vshrl.u32 683565275, %v8036
    %v8038 = vshll.u32 683565275, %v8035
    %v8039 = vshrl.u32 2475754826, %v8036
    %v8040 = vor.u32 %v8038, %v8039
    %v8041 = vshll.u32 2475754826, %v8035
    %v8042 = vshrl.u32 2131351028, %v8036
    %v8043 = vor.u32 %v8041, %v8042
    %v8044 = vshll.u32 2131351028, %v8035
    %v8045 = vshrl.u32 2102212464, %v8036
    %v8046 = vor.u32 %v8044, %v8045
    %v8047 = vshll.u32 2102212464, %v8035
    %v8048 = vshrl.u32 920167782, %v8036
    %v8049 = vor.u32 %v8047, %v8048
    %v8050 = vshll.u32 920167782, %v8035
    %v8051 = vshrl.u32 1326507024, %v8036
    %v8052 = vor.u32 %v8050, %v8051
    %vm8053 = vcmp.lt.s32.totalorder %v8034, 1
    %vm8054 = vcmp.lt.s32.totalorder %v8034, 2
    %vm8055 = vcmp.lt.s32.totalorder %v8034, 3
    %vm8056 = vcmp.lt.s32.totalorder %v8034, 4
    %v8057 = vsel %vm8053, %v8037, %v8040
    %v8058 = vsel %vm8056, %v8046, 2102212464
    %v8059 = vsel %vm8055, %v8043, %v8058
    %v8060 = vsel %vm8054, %v8057, %v8059
    %v8061 = vsel %vm8053, %v8040, %v8043
    %v8062 = vsel %vm8056, %v8049, 920167782
    %v8063 = vsel %vm8055, %v8046, %v8062
    %v8064 = vsel %vm8054, %v8061, %v8063
    %v8065 = vsel %vm8053, %v8043, %v8046
    %v8066 = vsel %vm8056, %v8052, 1326507024
    %v8067 = vsel %vm8055, %v8049, %v8066
    %v8068 = vsel %vm8054, %v8065, %v8067
    %v8069 = vshll.u32 %v8029, 8
    %v8070 = vand.u32 %v8069, 65535
    %v8071 = vshrl.u32 %v8069, 16
    %v8072 = vand.u32 %v8068, 65535
    %v8073 = vshrl.u32 %v8068, 16
    %v8074 = vmul.u32 %v8070, %v8072
    %v8075 = vmul.u32 %v8070, %v8073
    %v8076 = vmul.u32 %v8071, %v8072
    %v8077 = vmul.u32 %v8071, %v8073
    %v8078 = vshll.u32 %v8075, 16
    %v8079 = vshrl.u32 %v8075, 16
    %v8080 = vshll.u32 %v8076, 16
    %v8081 = vshrl.u32 %v8076, 16
    %vm8082 = vc.u32 %v8074, %v8078
    %v8083 = vsel %vm8082, 1, 0
    %v8084 = vadd.s32 %v8074, %v8078
    %v8085 = vadd.s32 %v8077, %v8083
    %vm8086 = vc.u32 %v8084, %v8080
    %v8087 = vsel %vm8086, 1, 0
    %v8088 = vadd.s32 %v8084, %v8080
    %v8089 = vadd.s32 %v8085, %v8087
    %v8090 = vadd.s32 %v8089, %v8079
    %v8091 = vadd.s32 %v8090, %v8081
    %v8092 = vand.u32 %v8069, 65535
    %v8093 = vshrl.u32 %v8069, 16
    %v8094 = vand.u32 %v8064, 65535
    %v8095 = vshrl.u32 %v8064, 16
    %v8096 = vmul.u32 %v8092, %v8094
    %v8097 = vmul.u32 %v8092, %v8095
    %v8098 = vmul.u32 %v8093, %v8094
    %v8099 = vmul.u32 %v8093, %v8095
    %v8100 = vshll.u32 %v8097, 16
    %v8101 = vshrl.u32 %v8097, 16
    %v8102 = vshll.u32 %v8098, 16
    %v8103 = vshrl.u32 %v8098, 16
    %vm8104 = vc.u32 %v8096, %v8100
    %v8105 = vsel %vm8104, 1, 0
    %v8106 = vadd.s32 %v8096, %v8100
    %v8107 = vadd.s32 %v8099, %v8105
    %vm8108 = vc.u32 %v8106, %v8102
    %v8109 = vsel %vm8108, 1, 0
    %v8110 = vadd.s32 %v8106, %v8102
    %v8111 = vadd.s32 %v8107, %v8109
    %v8112 = vadd.s32 %v8111, %v8101
    %v8113 = vadd.s32 %v8112, %v8103
    %v8114 = vmul.u32 %v8069, %v8060
    %v8115 = vadd.s32 %v8091, %v8110
    %vm8116 = vc.u32 %v8091, %v8110
    %v8117 = vadd.s32 %v8113, 1
    %v8118 = vsel %vm8116, %v8117, %v8113
    %v8119 = vadd.s32 %v8114, %v8118
    %v8120 = vadd.s32 %v8119, 536870912
    %v8121 = vshrl.u32 %v8120, 30
    %v8122 = vshll.u32 %v8121, 30
    %v8123 = vsub.s32 %v8119, %v8122
    %vm8124 = vcmp.lt.s32.totalorder %v8123, 0
    %v8125 = vsub.s32 0, %v8123
    %v8126 = vsel %vm8124, %v8125, %v8123
    %v8127 = vclz %v8126
    %v8128 = vsub.s32 %v8127, 2
    %vm8129 = vcmp.gt.s32.totalorder 0, %v8128
    %v8130 = vsel %vm8129, 0, %v8128
    %v8131 = vsub.s32 32, %v8130
    %v8132 = vshll.u32 %v8123, %v8130
    %v8133 = vshrl.u32 %v8115, %v8131
    %v8134 = vor.u32 %v8132, %v8133
    %v8135 = vsub.s32 4294967266, %v8130
    %v8136 = vadd.s32 %v8135, 127
    %v8137 = vshll.u32 %v8136, 23
    %v8138 = vor.u32 4788187, %v8137
    %v8139 = vand.u32 2147483647, %v8138
    %v8141 = vcvt.s32.f32 %v8134
    %v8142 = vmul.f32 %v8141, %v8139
    %v8143 = vxor.u32 %v8142, 2147483648
    %v8144 = vsel %vm8023, %v8143, %v8142
    %v8145 = vsub.s32 4, %v8121
    %v8146 = vsel %vm8023, %v8145, %v8121
    %v8147 = vsel %vm8022, %v855, %v8144
    %v8148 = vsel %vm8022, 0, %v8146
    %v8149 = vmul.f32 %v8147, %v8147
    %v8150 = vmul.f32 %v8149, -0.001358992
    %v8151 = vadd.f32 %v8150, 0.041655596
    %v8152 = vmul.f32 %v8149, %v8151
    %v8153 = vadd.f32 %v8152, -0.4999988
    %v8154 = vmul.f32 %v8149, %v8153
    %v8155 = vadd.f32 1.0, %v8154
    %v8156 = vmul.f32 %v8147, %v8147
    %v8157 = vmul.f32 %v8156, -0.00019511016
    %v8158 = vadd.f32 %v8157, 0.008332121
    %v8159 = vmul.f32 %v8156, %v8158
    %v8160 = vadd.f32 %v8159, -0.16666654
    %v8161 = vmul.f32 %v8156, %v8160
    %v8162 = vadd.f32 %v8161, 1.0
    %v8163 = vmul.f32 %v8162, %v8147
    %vm8164 = vweird.f32 %v855
    %v8165 = vand.u32 %v8148, 3
    %vm8166 = vcmp.lt.s32.totalorder %v8165, 2
    %vm8167 = vcmp.eq.s32.totalorder %v8165, 0
    %v8168 = vxor.u32 %v8163, 2147483648
    %v8169 = vsel %vm8167, %v8155, %v8168
    %vm8170 = vcmp.eq.s32.totalorder %v8165, 2
    %v8171 = vxor.u32 %v8155, 2147483648
    %v8172 = vsel %vm8170, %v8171, %v8163
    %v8173 = vsel %vm8166, %v8169, %v8172
    %v8174 = vsel %vm8164, nan, %v8173
    %v8175 = vand.u32 2147483647, %v856
    %vm8176 = vcmp.le.f32.partialorder %v8175, 0.7853982
    %vm8177 = vcmp.lt.s32.totalorder %v856, 0
    %v8178 = vand.u32 %v856, 2139095040
    %v8179 = vshrl.u32 %v8178, 23
    %v8180 = vsub.s32 %v8179, 127
    %v8181 = vand.u32 2147483647, %v856
    %v8182 = vand.u32 %v8181, 8388607
    %v8183 = vor.u32 %v8182, 8388608
    %v8184 = vsub.s32 0, %v8183
    %v8185 = vadd.s32 %v8180, 1
    %vm8186 = vcmp.gt.s32.totalorder %v8185, 0
    %v8187 = vsel %vm8186, %v8185, 0
    %v8188 = vshrl.u32 %v8187, 5
    %v8189 = vand.u32 %v8187, 31
    %v8190 = vsub.s32 32, %v8189
    %v8191 = vshrl.u32 683565275, %v8190
    %v8192 = vshll.u32 683565275, %v8189
    %v8193 = vshrl.u32 2475754826, %v8190
    %v8194 = vor.u32 %v8192, %v8193
    %v8195 = vshll.u32 2475754826, %v8189
    %v8196 = vshrl.u32 2131351028, %v8190
    %v8197 = vor.u32 %v8195, %v8196
    %v8198 = vshll.u32 2131351028, %v8189
    %v8199 = vshrl.u32 2102212464, %v8190
    %v8200 = vor.u32 %v8198, %v8199
    %v8201 = vshll.u32 2102212464, %v8189
    %v8202 = vshrl.u32 920167782, %v8190
    %v8203 = vor.u32 %v8201, %v8202
    %v8204 = vshll.u32 920167782, %v8189
    %v8205 = vshrl.u32 1326507024, %v8190
    %v8206 = vor.u32 %v8204, %v8205
    %vm8207 = vcmp.lt.s32.totalorder %v8188, 1
    %vm8208 = vcmp.lt.s32.totalorder %v8188, 2
    %vm8209 = vcmp.lt.s32.totalorder %v8188, 3
    %vm8210 = vcmp.lt.s32.totalorder %v8188, 4
    %v8211 = vsel %vm8207, %v8191, %v8194
    %v8212 = vsel %vm8210, %v8200, 2102212464
    %v8213 = vsel %vm8209, %v8197, %v8212
    %v8214 = vsel %vm8208, %v8211, %v8213
    %v8215 = vsel %vm8207, %v8194, %v8197
    %v8216 = vsel %vm8210, %v8203, 920167782
    %v8217 = vsel %vm8209, %v8200, %v8216
    %v8218 = vsel %vm8208, %v8215, %v8217
    %v8219 = vsel %vm8207, %v8197, %v8200
    %v8220 = vsel %vm8210, %v8206, 1326507024
    %v8221 = vsel %vm8209, %v8203, %v8220
    %v8222 = vsel %vm8208, %v8219, %v8221
    %v8223 = vshll.u32 %v8183, 8
    %v8224 = vand.u32 %v8223, 65535
    %v8225 = vshrl.u32 %v8223, 16
    %v8226 = vand.u32 %v8222, 65535
    %v8227 = vshrl.u32 %v8222, 16
    %v8228 = vmul.u32 %v8224, %v8226
    %v8229 = vmul.u32 %v8224, %v8227
    %v8230 = vmul.u32 %v8225, %v8226
    %v8231 = vmul.u32 %v8225, %v8227
    %v8232 = vshll.u32 %v8229, 16
    %v8233 = vshrl.u32 %v8229, 16
    %v8234 = vshll.u32 %v8230, 16
    %v8235 = vshrl.u32 %v8230, 16
    %vm8236 = vc.u32 %v8228, %v8232
    %v8237 = vsel %vm8236, 1, 0
    %v8238 = vadd.s32 %v8228, %v8232
    %v8239 = vadd.s32 %v8231, %v8237
    %vm8240 = vc.u32 %v8238, %v8234
    %v8241 = vsel %vm8240, 1, 0
    %v8242 = vadd.s32 %v8238, %v8234
    %v8243 = vadd.s32 %v8239, %v8241
    %v8244 = vadd.s32 %v8243, %v8233
    %v8245 = vadd.s32 %v8244, %v8235
    %v8246 = vand.u32 %v8223, 65535
    %v8247 = vshrl.u32 %v8223, 16
    %v8248 = vand.u32 %v8218, 65535
    %v8249 = vshrl.u32 %v8218, 16
    %v8250 = vmul.u32 %v8246, %v8248
    %v8251 = vmul.u32 %v8246, %v8249
    %v8252 = vmul.u32 %v8247, %v8248
    %v8253 = vmul.u32 %v8247, %v8249
    %v8254 = vshll.u32 %v8251, 16
    %v8255 = vshrl.u32 %v8251, 16
    %v8256 = vshll.u32 %v8252, 16
    %v8257 = vshrl.u32 %v8252, 16
    %vm8258 = vc.u32 %v8250, %v8254
    %v8259 = vsel %vm8258, 1, 0
    %v8260 = vadd.s32 %v8250, %v8254
    %v8261 = vadd.s32 %v8253, %v8259
    %vm8262 = vc.u32 %v8260, %v8256
    %v8263 = vsel %vm8262, 1, 0
    %v8264 = vadd.s32 %v8260, %v8256
    %v8265 = vadd.s32 %v8261, %v8263
    %v8266 = vadd.s32 %v8265, %v8255
    %v8267 = vadd.s32 %v8266, %v8257
    %v8268 = vmul.u32 %v8223, %v8214
    %v8269 = vadd.s32 %v8245, %v8264
    %vm8270 = vc.u32 %v8245, %v8264
    %v8271 = vadd.s32 %v8267, 1
    %v8272 = vsel %vm8270, %v8271, %v8267
    %v8273 = vadd.s32 %v8268, %v8272
    %v8274 = vadd.s32 %v8273, 536870912
    %v8275 = vshrl.u32 %v8274, 30
    %v8276 = vshll.u32 %v8275, 30
    %v8277 = vsub.s32 %v8273, %v8276
    %vm8278 = vcmp.lt.s32.totalorder %v8277, 0
    %v8279 = vsub.s32 0, %v8277
    %v8280 = vsel %vm8278, %v8279, %v8277
    %v8281 = vclz %v8280
    %v8282 = vsub.s32 %v8281, 2
    %vm8283 = vcmp.gt.s32.totalorder 0, %v8282
    %v8284 = vsel %vm8283, 0, %v8282
    %v8285 = vsub.s32 32, %v8284
    %v8286 = vshll.u32 %v8277, %v8284
    %v8287 = vshrl.u32 %v8269, %v8285
    %v8288 = vor.u32 %v8286, %v8287
    %v8289 = vsub.s32 4294967266, %v8284
    %v8290 = vadd.s32 %v8289, 127
    %v8291 = vshll.u32 %v8290, 23
    %v8292 = vor.u32 4788187, %v8291
    %v8293 = vand.u32 2147483647, %v8292
    %v8295 = vcvt.s32.f32 %v8288
    %v8296 = vmul.f32 %v8295, %v8293
    %v8297 = vxor.u32 %v8296, 2147483648
    %v8298 = vsel %vm8177, %v8297, %v8296
    %v8299 = vsub.s32 4, %v8275
    %v8300 = vsel %vm8177, %v8299, %v8275
    %v8301 = vsel %vm8176, %v856, %v8298
    %v8302 = vsel %vm8176, 0, %v8300
    %v8303 = vmul.f32 %v8301, %v8301
    %v8304 = vmul.f32 %v8303, -0.001358992
    %v8305 = vadd.f32 %v8304, 0.041655596
    %v8306 = vmul.f32 %v8303, %v8305
    %v8307 = vadd.f32 %v8306, -0.4999988
    %v8308 = vmul.f32 %v8303, %v8307
    %v8309 = vadd.f32 1.0, %v8308
    %v8310 = vmul.f32 %v8301, %v8301
    %v8311 = vmul.f32 %v8310, -0.00019511016
    %v8312 = vadd.f32 %v8311, 0.008332121
    %v8313 = vmul.f32 %v8310, %v8312
    %v8314 = vadd.f32 %v8313, -0.16666654
    %v8315 = vmul.f32 %v8310, %v8314
    %v8316 = vadd.f32 %v8315, 1.0
    %v8317 = vmul.f32 %v8316, %v8301
    %vm8318 = vweird.f32 %v856
    %v8319 = vand.u32 %v8302, 3
    %vm8320 = vcmp.lt.s32.totalorder %v8319, 2
    %vm8321 = vcmp.eq.s32.totalorder %v8319, 0
    %v8322 = vxor.u32 %v8317, 2147483648
    %v8323 = vsel %vm8321, %v8309, %v8322
    %vm8324 = vcmp.eq.s32.totalorder %v8319, 2
    %v8325 = vxor.u32 %v8309, 2147483648
    %v8326 = vsel %vm8324, %v8325, %v8317
    %v8327 = vsel %vm8320, %v8323, %v8326
    %v8328 = vsel %vm8318, nan, %v8327
    %v8329 = vand.u32 2147483647, %v857
    %vm8330 = vcmp.le.f32.partialorder %v8329, 0.7853982
    %vm8331 = vcmp.lt.s32.totalorder %v857, 0
    %v8332 = vand.u32 %v857, 2139095040
    %v8333 = vshrl.u32 %v8332, 23
    %v8334 = vsub.s32 %v8333, 127
    %v8335 = vand.u32 2147483647, %v857
    %v8336 = vand.u32 %v8335, 8388607
    %v8337 = vor.u32 %v8336, 8388608
    %v8338 = vsub.s32 0, %v8337
    %v8339 = vadd.s32 %v8334, 1
    %vm8340 = vcmp.gt.s32.totalorder %v8339, 0
    %v8341 = vsel %vm8340, %v8339, 0
    %v8342 = vshrl.u32 %v8341, 5
    %v8343 = vand.u32 %v8341, 31
    %v8344 = vsub.s32 32, %v8343
    %v8345 = vshrl.u32 683565275, %v8344
    %v8346 = vshll.u32 683565275, %v8343
    %v8347 = vshrl.u32 2475754826, %v8344
    %v8348 = vor.u32 %v8346, %v8347
    %v8349 = vshll.u32 2475754826, %v8343
    %v8350 = vshrl.u32 2131351028, %v8344
    %v8351 = vor.u32 %v8349, %v8350
    %v8352 = vshll.u32 2131351028, %v8343
    %v8353 = vshrl.u32 2102212464, %v8344
    %v8354 = vor.u32 %v8352, %v8353
    %v8355 = vshll.u32 2102212464, %v8343
    %v8356 = vshrl.u32 920167782, %v8344
    %v8357 = vor.u32 %v8355, %v8356
    %v8358 = vshll.u32 920167782, %v8343
    %v8359 = vshrl.u32 1326507024, %v8344
    %v8360 = vor.u32 %v8358, %v8359
    %vm8361 = vcmp.lt.s32.totalorder %v8342, 1
    %vm8362 = vcmp.lt.s32.totalorder %v8342, 2
    %vm8363 = vcmp.lt.s32.totalorder %v8342, 3
    %vm8364 = vcmp.lt.s32.totalorder %v8342, 4
    %v8365 = vsel %vm8361, %v8345, %v8348
    %v8366 = vsel %vm8364, %v8354, 2102212464
    %v8367 = vsel %vm8363, %v8351, %v8366
    %v8368 = vsel %vm8362, %v8365, %v8367
    %v8369 = vsel %vm8361, %v8348, %v8351
    %v8370 = vsel %vm8364, %v8357, 920167782
    %v8371 = vsel %vm8363, %v8354, %v8370
    %v8372 = vsel %vm8362, %v8369, %v8371
    %v8373 = vsel %vm8361, %v8351, %v8354
    %v8374 = vsel %vm8364, %v8360, 1326507024
    %v8375 = vsel %vm8363, %v8357, %v8374
    %v8376 = vsel %vm8362, %v8373, %v8375
    %v8377 = vshll.u32 %v8337, 8
    %v8378 = vand.u32 %v8377, 65535
    %v8379 = vshrl.u32 %v8377, 16
    %v8380 = vand.u32 %v8376, 65535
    %v8381 = vshrl.u32 %v8376, 16
    %v8382 = vmul.u32 %v8378, %v8380
    %v8383 = vmul.u32 %v8378, %v8381
    %v8384 = vmul.u32 %v8379, %v8380
    %v8385 = vmul.u32 %v8379, %v8381
    %v8386 = vshll.u32 %v8383, 16
    %v8387 = vshrl.u32 %v8383, 16
    %v8388 = vshll.u32 %v8384, 16
    %v8389 = vshrl.u32 %v8384, 16
    %vm8390 = vc.u32 %v8382, %v8386
    %v8391 = vsel %vm8390, 1, 0
    %v8392 = vadd.s32 %v8382, %v8386
    %v8393 = vadd.s32 %v8385, %v8391
    %vm8394 = vc.u32 %v8392, %v8388
    %v8395 = vsel %vm8394, 1, 0
    %v8396 = vadd.s32 %v8392, %v8388
    %v8397 = vadd.s32 %v8393, %v8395
    %v8398 = vadd.s32 %v8397, %v8387
    %v8399 = vadd.s32 %v8398, %v8389
    %v8400 = vand.u32 %v8377, 65535
    %v8401 = vshrl.u32 %v8377, 16
    %v8402 = vand.u32 %v8372, 65535
    %v8403 = vshrl.u32 %v8372, 16
    %v8404 = vmul.u32 %v8400, %v8402
    %v8405 = vmul.u32 %v8400, %v8403
    %v8406 = vmul.u32 %v8401, %v8402
    %v8407 = vmul.u32 %v8401, %v8403
    %v8408 = vshll.u32 %v8405, 16
    %v8409 = vshrl.u32 %v8405, 16
    %v8410 = vshll.u32 %v8406, 16
    %v8411 = vshrl.u32 %v8406, 16
    %vm8412 = vc.u32 %v8404, %v8408
    %v8413 = vsel %vm8412, 1, 0
    %v8414 = vadd.s32 %v8404, %v8408
    %v8415 = vadd.s32 %v8407, %v8413
    %vm8416 = vc.u32 %v8414, %v8410
    %v8417 = vsel %vm8416, 1, 0
    %v8418 = vadd.s32 %v8414, %v8410
    %v8419 = vadd.s32 %v8415, %v8417
    %v8420 = vadd.s32 %v8419, %v8409
    %v8421 = vadd.s32 %v8420, %v8411
    %v8422 = vmul.u32 %v8377, %v8368
    %v8423 = vadd.s32 %v8399, %v8418
    %vm8424 = vc.u32 %v8399, %v8418
    %v8425 = vadd.s32 %v8421, 1
    %v8426 = vsel %vm8424, %v8425, %v8421
    %v8427 = vadd.s32 %v8422, %v8426
    %v8428 = vadd.s32 %v8427, 536870912
    %v8429 = vshrl.u32 %v8428, 30
    %v8430 = vshll.u32 %v8429, 30
    %v8431 = vsub.s32 %v8427, %v8430
    %vm8432 = vcmp.lt.s32.totalorder %v8431, 0
    %v8433 = vsub.s32 0, %v8431
    %v8434 = vsel %vm8432, %v8433, %v8431
    %v8435 = vclz %v8434
    %v8436 = vsub.s32 %v8435, 2
    %vm8437 = vcmp.gt.s32.totalorder 0, %v8436
    %v8438 = vsel %vm8437, 0, %v8436
    %v8439 = vsub.s32 32, %v8438
    %v8440 = vshll.u32 %v8431, %v8438
    %v8441 = vshrl.u32 %v8423, %v8439
    %v8442 = vor.u32 %v8440, %v8441
    %v8443 = vsub.s32 4294967266, %v8438
    %v8444 = vadd.s32 %v8443, 127
    %v8445 = vshll.u32 %v8444, 23
    %v8446 = vor.u32 4788187, %v8445
    %v8447 = vand.u32 2147483647, %v8446
    %v8449 = vcvt.s32.f32 %v8442
    %v8450 = vmul.f32 %v8449, %v8447
    %v8451 = vxor.u32 %v8450, 2147483648
    %v8452 = vsel %vm8331, %v8451, %v8450
    %v8453 = vsub.s32 4, %v8429
    %v8454 = vsel %vm8331, %v8453, %v8429
    %v8455 = vsel %vm8330, %v857, %v8452
    %v8456 = vsel %vm8330, 0, %v8454
    %v8457 = vmul.f32 %v8455, %v8455
    %v8458 = vmul.f32 %v8457, -0.001358992
    %v8459 = vadd.f32 %v8458, 0.041655596
    %v8460 = vmul.f32 %v8457, %v8459
    %v8461 = vadd.f32 %v8460, -0.4999988
    %v8462 = vmul.f32 %v8457, %v8461
    %v8463 = vadd.f32 1.0, %v8462
    %v8464 = vmul.f32 %v8455, %v8455
    %v8465 = vmul.f32 %v8464, -0.00019511016
    %v8466 = vadd.f32 %v8465, 0.008332121
    %v8467 = vmul.f32 %v8464, %v8466
    %v8468 = vadd.f32 %v8467, -0.16666654
    %v8469 = vmul.f32 %v8464, %v8468
    %v8470 = vadd.f32 %v8469, 1.0
    %v8471 = vmul.f32 %v8470, %v8455
    %vm8472 = vweird.f32 %v857
    %v8473 = vand.u32 %v8456, 3
    %vm8474 = vcmp.lt.s32.totalorder %v8473, 2
    %vm8475 = vcmp.eq.s32.totalorder %v8473, 0
    %v8476 = vxor.u32 %v8471, 2147483648
    %v8477 = vsel %vm8475, %v8463, %v8476
    %vm8478 = vcmp.eq.s32.totalorder %v8473, 2
    %v8479 = vxor.u32 %v8463, 2147483648
    %v8480 = vsel %vm8478, %v8479, %v8471
    %v8481 = vsel %vm8474, %v8477, %v8480
    %v8482 = vsel %vm8472, nan, %v8481
    %v8483 = vand.u32 2147483647, %v858
    %vm8484 = vcmp.le.f32.partialorder %v8483, 0.7853982
    %vm8485 = vcmp.lt.s32.totalorder %v858, 0
    %v8486 = vand.u32 %v858, 2139095040
    %v8487 = vshrl.u32 %v8486, 23
    %v8488 = vsub.s32 %v8487, 127
    %v8489 = vand.u32 2147483647, %v858
    %v8490 = vand.u32 %v8489, 8388607
    %v8491 = vor.u32 %v8490, 8388608
    %v8492 = vsub.s32 0, %v8491
    %v8493 = vadd.s32 %v8488, 1
    %vm8494 = vcmp.gt.s32.totalorder %v8493, 0
    %v8495 = vsel %vm8494, %v8493, 0
    %v8496 = vshrl.u32 %v8495, 5
    %v8497 = vand.u32 %v8495, 31
    %v8498 = vsub.s32 32, %v8497
    %v8499 = vshrl.u32 683565275, %v8498
    %v8500 = vshll.u32 683565275, %v8497
    %v8501 = vshrl.u32 2475754826, %v8498
    %v8502 = vor.u32 %v8500, %v8501
    %v8503 = vshll.u32 2475754826, %v8497
    %v8504 = vshrl.u32 2131351028, %v8498
    %v8505 = vor.u32 %v8503, %v8504
    %v8506 = vshll.u32 2131351028, %v8497
    %v8507 = vshrl.u32 2102212464, %v8498
    %v8508 = vor.u32 %v8506, %v8507
    %v8509 = vshll.u32 2102212464, %v8497
    %v8510 = vshrl.u32 920167782, %v8498
    %v8511 = vor.u32 %v8509, %v8510
    %v8512 = vshll.u32 920167782, %v8497
    %v8513 = vshrl.u32 1326507024, %v8498
    %v8514 = vor.u32 %v8512, %v8513
    %vm8515 = vcmp.lt.s32.totalorder %v8496, 1
    %vm8516 = vcmp.lt.s32.totalorder %v8496, 2
    %vm8517 = vcmp.lt.s32.totalorder %v8496, 3
    %vm8518 = vcmp.lt.s32.totalorder %v8496, 4
    %v8519 = vsel %vm8515, %v8499, %v8502
    %v8520 = vsel %vm8518, %v8508, 2102212464
    %v8521 = vsel %vm8517, %v8505, %v8520
    %v8522 = vsel %vm8516, %v8519, %v8521
    %v8523 = vsel %vm8515, %v8502, %v8505
    %v8524 = vsel %vm8518, %v8511, 920167782
    %v8525 = vsel %vm8517, %v8508, %v8524
    %v8526 = vsel %vm8516, %v8523, %v8525
    %v8527 = vsel %vm8515, %v8505, %v8508
    %v8528 = vsel %vm8518, %v8514, 1326507024
    %v8529 = vsel %vm8517, %v8511, %v8528
    %v8530 = vsel %vm8516, %v8527, %v8529
    %v8531 = vshll.u32 %v8491, 8
    %v8532 = vand.u32 %v8531, 65535
    %v8533 = vshrl.u32 %v8531, 16
    %v8534 = vand.u32 %v8530, 65535
    %v8535 = vshrl.u32 %v8530, 16
    %v8536 = vmul.u32 %v8532, %v8534
    %v8537 = vmul.u32 %v8532, %v8535
    %v8538 = vmul.u32 %v8533, %v8534
    %v8539 = vmul.u32 %v8533, %v8535
    %v8540 = vshll.u32 %v8537, 16
    %v8541 = vshrl.u32 %v8537, 16
    %v8542 = vshll.u32 %v8538, 16
    %v8543 = vshrl.u32 %v8538, 16
    %vm8544 = vc.u32 %v8536, %v8540
    %v8545 = vsel %vm8544, 1, 0
    %v8546 = vadd.s32 %v8536, %v8540
    %v8547 = vadd.s32 %v8539, %v8545
    %vm8548 = vc.u32 %v8546, %v8542
    %v8549 = vsel %vm8548, 1, 0
    %v8550 = vadd.s32 %v8546, %v8542
    %v8551 = vadd.s32 %v8547, %v8549
    %v8552 = vadd.s32 %v8551, %v8541
    %v8553 = vadd.s32 %v8552, %v8543
    %v8554 = vand.u32 %v8531, 65535
    %v8555 = vshrl.u32 %v8531, 16
    %v8556 = vand.u32 %v8526, 65535
    %v8557 = vshrl.u32 %v8526, 16
    %v8558 = vmul.u32 %v8554, %v8556
    %v8559 = vmul.u32 %v8554, %v8557
    %v8560 = vmul.u32 %v8555, %v8556
    %v8561 = vmul.u32 %v8555, %v8557
    %v8562 = vshll.u32 %v8559, 16
    %v8563 = vshrl.u32 %v8559, 16
    %v8564 = vshll.u32 %v8560, 16
    %v8565 = vshrl.u32 %v8560, 16
    %vm8566 = vc.u32 %v8558, %v8562
    %v8567 = vsel %vm8566, 1, 0
    %v8568 = vadd.s32 %v8558, %v8562
    %v8569 = vadd.s32 %v8561, %v8567
    %vm8570 = vc.u32 %v8568, %v8564
    %v8571 = vsel %vm8570, 1, 0
    %v8572 = vadd.s32 %v8568, %v8564
    %v8573 = vadd.s32 %v8569, %v8571
    %v8574 = vadd.s32 %v8573, %v8563
    %v8575 = vadd.s32 %v8574, %v8565
    %v8576 = vmul.u32 %v8531, %v8522
    %v8577 = vadd.s32 %v8553, %v8572
    %vm8578 = vc.u32 %v8553, %v8572
    %v8579 = vadd.s32 %v8575, 1
    %v8580 = vsel %vm8578, %v8579, %v8575
    %v8581 = vadd.s32 %v8576, %v8580
    %v8582 = vadd.s32 %v8581, 536870912
    %v8583 = vshrl.u32 %v8582, 30
    %v8584 = vshll.u32 %v8583, 30
    %v8585 = vsub.s32 %v8581, %v8584
    %vm8586 = vcmp.lt.s32.totalorder %v8585, 0
    %v8587 = vsub.s32 0, %v8585
    %v8588 = vsel %vm8586, %v8587, %v8585
    %v8589 = vclz %v8588
    %v8590 = vsub.s32 %v8589, 2
    %vm8591 = vcmp.gt.s32.totalorder 0, %v8590
    %v8592 = vsel %vm8591, 0, %v8590
    %v8593 = vsub.s32 32, %v8592
    %v8594 = vshll.u32 %v8585, %v8592
    %v8595 = vshrl.u32 %v8577, %v8593
    %v8596 = vor.u32 %v8594, %v8595
    %v8597 = vsub.s32 4294967266, %v8592
    %v8598 = vadd.s32 %v8597, 127
    %v8599 = vshll.u32 %v8598, 23
    %v8600 = vor.u32 4788187, %v8599
    %v8601 = vand.u32 2147483647, %v8600
    %v8603 = vcvt.s32.f32 %v8596
    %v8604 = vmul.f32 %v8603, %v8601
    %v8605 = vxor.u32 %v8604, 2147483648
    %v8606 = vsel %vm8485, %v8605, %v8604
    %v8607 = vsub.s32 4, %v8583
    %v8608 = vsel %vm8485, %v8607, %v8583
    %v8609 = vsel %vm8484, %v858, %v8606
    %v8610 = vsel %vm8484, 0, %v8608
    %v8611 = vmul.f32 %v8609, %v8609
    %v8612 = vmul.f32 %v8611, -0.001358992
    %v8613 = vadd.f32 %v8612, 0.041655596
    %v8614 = vmul.f32 %v8611, %v8613
    %v8615 = vadd.f32 %v8614, -0.4999988
    %v8616 = vmul.f32 %v8611, %v8615
    %v8617 = vadd.f32 1.0, %v8616
    %v8618 = vmul.f32 %v8609, %v8609
    %v8619 = vmul.f32 %v8618, -0.00019511016
    %v8620 = vadd.f32 %v8619, 0.008332121
    %v8621 = vmul.f32 %v8618, %v8620
    %v8622 = vadd.f32 %v8621, -0.16666654
    %v8623 = vmul.f32 %v8618, %v8622
    %v8624 = vadd.f32 %v8623, 1.0
    %v8625 = vmul.f32 %v8624, %v8609
    %vm8626 = vweird.f32 %v858
    %v8627 = vand.u32 %v8610, 3
    %vm8628 = vcmp.lt.s32.totalorder %v8627, 2
    %vm8629 = vcmp.eq.s32.totalorder %v8627, 0
    %v8630 = vxor.u32 %v8625, 2147483648
    %v8631 = vsel %vm8629, %v8617, %v8630
    %vm8632 = vcmp.eq.s32.totalorder %v8627, 2
    %v8633 = vxor.u32 %v8617, 2147483648
    %v8634 = vsel %vm8632, %v8633, %v8625
    %v8635 = vsel %vm8628, %v8631, %v8634
    %v8636 = vsel %vm8626, nan, %v8635
    %v8637 = vand.u32 2147483647, %v859
    %vm8638 = vcmp.le.f32.partialorder %v8637, 0.7853982
    %vm8639 = vcmp.lt.s32.totalorder %v859, 0
    %v8640 = vand.u32 %v859, 2139095040
    %v8641 = vshrl.u32 %v8640, 23
    %v8642 = vsub.s32 %v8641, 127
    %v8643 = vand.u32 2147483647, %v859
    %v8644 = vand.u32 %v8643, 8388607
    %v8645 = vor.u32 %v8644, 8388608
    %v8646 = vsub.s32 0, %v8645
    %v8647 = vadd.s32 %v8642, 1
    %vm8648 = vcmp.gt.s32.totalorder %v8647, 0
    %v8649 = vsel %vm8648, %v8647, 0
    %v8650 = vshrl.u32 %v8649, 5
    %v8651 = vand.u32 %v8649, 31
    %v8652 = vsub.s32 32, %v8651
    %v8653 = vshrl.u32 683565275, %v8652
    %v8654 = vshll.u32 683565275, %v8651
    %v8655 = vshrl.u32 2475754826, %v8652
    %v8656 = vor.u32 %v8654, %v8655
    %v8657 = vshll.u32 2475754826, %v8651
    %v8658 = vshrl.u32 2131351028, %v8652
    %v8659 = vor.u32 %v8657, %v8658
    %v8660 = vshll.u32 2131351028, %v8651
    %v8661 = vshrl.u32 2102212464, %v8652
    %v8662 = vor.u32 %v8660, %v8661
    %v8663 = vshll.u32 2102212464, %v8651
    %v8664 = vshrl.u32 920167782, %v8652
    %v8665 = vor.u32 %v8663, %v8664
    %v8666 = vshll.u32 920167782, %v8651
    %v8667 = vshrl.u32 1326507024, %v8652
    %v8668 = vor.u32 %v8666, %v8667
    %vm8669 = vcmp.lt.s32.totalorder %v8650, 1
    %vm8670 = vcmp.lt.s32.totalorder %v8650, 2
    %vm8671 = vcmp.lt.s32.totalorder %v8650, 3
    %vm8672 = vcmp.lt.s32.totalorder %v8650, 4
    %v8673 = vsel %vm8669, %v8653, %v8656
    %v8674 = vsel %vm8672, %v8662, 2102212464
    %v8675 = vsel %vm8671, %v8659, %v8674
    %v8676 = vsel %vm8670, %v8673, %v8675
    %v8677 = vsel %vm8669, %v8656, %v8659
    %v8678 = vsel %vm8672, %v8665, 920167782
    %v8679 = vsel %vm8671, %v8662, %v8678
    %v8680 = vsel %vm8670, %v8677, %v8679
    %v8681 = vsel %vm8669, %v8659, %v8662
    %v8682 = vsel %vm8672, %v8668, 1326507024
    %v8683 = vsel %vm8671, %v8665, %v8682
    %v8684 = vsel %vm8670, %v8681, %v8683
    %v8685 = vshll.u32 %v8645, 8
    %v8686 = vand.u32 %v8685, 65535
    %v8687 = vshrl.u32 %v8685, 16
    %v8688 = vand.u32 %v8684, 65535
    %v8689 = vshrl.u32 %v8684, 16
    %v8690 = vmul.u32 %v8686, %v8688
    %v8691 = vmul.u32 %v8686, %v8689
    %v8692 = vmul.u32 %v8687, %v8688
    %v8693 = vmul.u32 %v8687, %v8689
    %v8694 = vshll.u32 %v8691, 16
    %v8695 = vshrl.u32 %v8691, 16
    %v8696 = vshll.u32 %v8692, 16
    %v8697 = vshrl.u32 %v8692, 16
    %vm8698 = vc.u32 %v8690, %v8694
    %v8699 = vsel %vm8698, 1, 0
    %v8700 = vadd.s32 %v8690, %v8694
    %v8701 = vadd.s32 %v8693, %v8699
    %vm8702 = vc.u32 %v8700, %v8696
    %v8703 = vsel %vm8702, 1, 0
    %v8704 = vadd.s32 %v8700, %v8696
    %v8705 = vadd.s32 %v8701, %v8703
    %v8706 = vadd.s32 %v8705, %v8695
    %v8707 = vadd.s32 %v8706, %v8697
    %v8708 = vand.u32 %v8685, 65535
    %v8709 = vshrl.u32 %v8685, 16
    %v8710 = vand.u32 %v8680, 65535
    %v8711 = vshrl.u32 %v8680, 16
    %v8712 = vmul.u32 %v8708, %v8710
    %v8713 = vmul.u32 %v8708, %v8711
    %v8714 = vmul.u32 %v8709, %v8710
    %v8715 = vmul.u32 %v8709, %v8711
    %v8716 = vshll.u32 %v8713, 16
    %v8717 = vshrl.u32 %v8713, 16
    %v8718 = vshll.u32 %v8714, 16
    %v8719 = vshrl.u32 %v8714, 16
    %vm8720 = vc.u32 %v8712, %v8716
    %v8721 = vsel %vm8720, 1, 0
    %v8722 = vadd.s32 %v8712, %v8716
    %v8723 = vadd.s32 %v8715, %v8721
    %vm8724 = vc.u32 %v8722, %v8718
    %v8725 = vsel %vm8724, 1, 0
    %v8726 = vadd.s32 %v8722, %v8718
    %v8727 = vadd.s32 %v8723, %v8725
    %v8728 = vadd.s32 %v8727, %v8717
    %v8729 = vadd.s32 %v8728, %v8719
    %v8730 = vmul.u32 %v8685, %v8676
    %v8731 = vadd.s32 %v8707, %v8726
    %vm8732 = vc.u32 %v8707, %v8726
    %v8733 = vadd.s32 %v8729, 1
    %v8734 = vsel %vm8732, %v8733, %v8729
    %v8735 = vadd.s32 %v8730, %v8734
    %v8736 = vadd.s32 %v8735, 536870912
    %v8737 = vshrl.u32 %v8736, 30
    %v8738 = vshll.u32 %v8737, 30
    %v8739 = vsub.s32 %v8735, %v8738
    %vm8740 = vcmp.lt.s32.totalorder %v8739, 0
    %v8741 = vsub.s32 0, %v8739
    %v8742 = vsel %vm8740, %v8741, %v8739
    %v8743 = vclz %v8742
    %v8744 = vsub.s32 %v8743, 2
    %vm8745 = vcmp.gt.s32.totalorder 0, %v8744
    %v8746 = vsel %vm8745, 0, %v8744
    %v8747 = vsub.s32 32, %v8746
    %v8748 = vshll.u32 %v8739, %v8746
    %v8749 = vshrl.u32 %v8731, %v8747
    %v8750 = vor.u32 %v8748, %v8749
    %v8751 = vsub.s32 4294967266, %v8746
    %v8752 = vadd.s32 %v8751, 127
    %v8753 = vshll.u32 %v8752, 23
    %v8754 = vor.u32 4788187, %v8753
    %v8755 = vand.u32 2147483647, %v8754
    %v8757 = vcvt.s32.f32 %v8750
    %v8758 = vmul.f32 %v8757, %v8755
    %v8759 = vxor.u32 %v8758, 2147483648
    %v8760 = vsel %vm8639, %v8759, %v8758
    %v8761 = vsub.s32 4, %v8737
    %v8762 = vsel %vm8639, %v8761, %v8737
    %v8763 = vsel %vm8638, %v859, %v8760
    %v8764 = vsel %vm8638, 0, %v8762
    %v8765 = vmul.f32 %v8763, %v8763
    %v8766 = vmul.f32 %v8765, -0.001358992
    %v8767 = vadd.f32 %v8766, 0.041655596
    %v8768 = vmul.f32 %v8765, %v8767
    %v8769 = vadd.f32 %v8768, -0.4999988
    %v8770 = vmul.f32 %v8765, %v8769
    %v8771 = vadd.f32 1.0, %v8770
    %v8772 = vmul.f32 %v8763, %v8763
    %v8773 = vmul.f32 %v8772, -0.00019511016
    %v8774 = vadd.f32 %v8773, 0.008332121
    %v8775 = vmul.f32 %v8772, %v8774
    %v8776 = vadd.f32 %v8775, -0.16666654
    %v8777 = vmul.f32 %v8772, %v8776
    %v8778 = vadd.f32 %v8777, 1.0
    %v8779 = vmul.f32 %v8778, %v8763
    %vm8780 = vweird.f32 %v859
    %v8781 = vand.u32 %v8764, 3
    %vm8782 = vcmp.lt.s32.totalorder %v8781, 2
    %vm8783 = vcmp.eq.s32.totalorder %v8781, 0
    %v8784 = vxor.u32 %v8779, 2147483648
    %v8785 = vsel %vm8783, %v8771, %v8784
    %vm8786 = vcmp.eq.s32.totalorder %v8781, 2
    %v8787 = vxor.u32 %v8771, 2147483648
    %v8788 = vsel %vm8786, %v8787, %v8779
    %v8789 = vsel %vm8782, %v8785, %v8788
    %v8790 = vsel %vm8780, nan, %v8789
    %v8791 = vand.u32 2147483647, %v860
    %vm8792 = vcmp.le.f32.partialorder %v8791, 0.7853982
    %vm8793 = vcmp.lt.s32.totalorder %v860, 0
    %v8794 = vand.u32 %v860, 2139095040
    %v8795 = vshrl.u32 %v8794, 23
    %v8796 = vsub.s32 %v8795, 127
    %v8797 = vand.u32 2147483647, %v860
    %v8798 = vand.u32 %v8797, 8388607
    %v8799 = vor.u32 %v8798, 8388608
    %v8800 = vsub.s32 0, %v8799
    %v8801 = vadd.s32 %v8796, 1
    %vm8802 = vcmp.gt.s32.totalorder %v8801, 0
    %v8803 = vsel %vm8802, %v8801, 0
    %v8804 = vshrl.u32 %v8803, 5
    %v8805 = vand.u32 %v8803, 31
    %v8806 = vsub.s32 32, %v8805
    %v8807 = vshrl.u32 683565275, %v8806
    %v8808 = vshll.u32 683565275, %v8805
    %v8809 = vshrl.u32 2475754826, %v8806
    %v8810 = vor.u32 %v8808, %v8809
    %v8811 = vshll.u32 2475754826, %v8805
    %v8812 = vshrl.u32 2131351028, %v8806
    %v8813 = vor.u32 %v8811, %v8812
    %v8814 = vshll.u32 2131351028, %v8805
    %v8815 = vshrl.u32 2102212464, %v8806
    %v8816 = vor.u32 %v8814, %v8815
    %v8817 = vshll.u32 2102212464, %v8805
    %v8818 = vshrl.u32 920167782, %v8806
    %v8819 = vor.u32 %v8817, %v8818
    %v8820 = vshll.u32 920167782, %v8805
    %v8821 = vshrl.u32 1326507024, %v8806
    %v8822 = vor.u32 %v8820, %v8821
    %vm8823 = vcmp.lt.s32.totalorder %v8804, 1
    %vm8824 = vcmp.lt.s32.totalorder %v8804, 2
    %vm8825 = vcmp.lt.s32.totalorder %v8804, 3
    %vm8826 = vcmp.lt.s32.totalorder %v8804, 4
    %v8827 = vsel %vm8823, %v8807, %v8810
    %v8828 = vsel %vm8826, %v8816, 2102212464
    %v8829 = vsel %vm8825, %v8813, %v8828
    %v8830 = vsel %vm8824, %v8827, %v8829
    %v8831 = vsel %vm8823, %v8810, %v8813
    %v8832 = vsel %vm8826, %v8819, 920167782
    %v8833 = vsel %vm8825, %v8816, %v8832
    %v8834 = vsel %vm8824, %v8831, %v8833
    %v8835 = vsel %vm8823, %v8813, %v8816
    %v8836 = vsel %vm8826, %v8822, 1326507024
    %v8837 = vsel %vm8825, %v8819, %v8836
    %v8838 = vsel %vm8824, %v8835, %v8837
    %v8839 = vshll.u32 %v8799, 8
    %v8840 = vand.u32 %v8839, 65535
    %v8841 = vshrl.u32 %v8839, 16
    %v8842 = vand.u32 %v8838, 65535
    %v8843 = vshrl.u32 %v8838, 16
    %v8844 = vmul.u32 %v8840, %v8842
    %v8845 = vmul.u32 %v8840, %v8843
    %v8846 = vmul.u32 %v8841, %v8842
    %v8847 = vmul.u32 %v8841, %v8843
    %v8848 = vshll.u32 %v8845, 16
    %v8849 = vshrl.u32 %v8845, 16
    %v8850 = vshll.u32 %v8846, 16
    %v8851 = vshrl.u32 %v8846, 16
    %vm8852 = vc.u32 %v8844, %v8848
    %v8853 = vsel %vm8852, 1, 0
    %v8854 = vadd.s32 %v8844, %v8848
    %v8855 = vadd.s32 %v8847, %v8853
    %vm8856 = vc.u32 %v8854, %v8850
    %v8857 = vsel %vm8856, 1, 0
    %v8858 = vadd.s32 %v8854, %v8850
    %v8859 = vadd.s32 %v8855, %v8857
    %v8860 = vadd.s32 %v8859, %v8849
    %v8861 = vadd.s32 %v8860, %v8851
    %v8862 = vand.u32 %v8839, 65535
    %v8863 = vshrl.u32 %v8839, 16
    %v8864 = vand.u32 %v8834, 65535
    %v8865 = vshrl.u32 %v8834, 16
    %v8866 = vmul.u32 %v8862, %v8864
    %v8867 = vmul.u32 %v8862, %v8865
    %v8868 = vmul.u32 %v8863, %v8864
    %v8869 = vmul.u32 %v8863, %v8865
    %v8870 = vshll.u32 %v8867, 16
    %v8871 = vshrl.u32 %v8867, 16
    %v8872 = vshll.u32 %v8868, 16
    %v8873 = vshrl.u32 %v8868, 16
    %vm8874 = vc.u32 %v8866, %v8870
    %v8875 = vsel %vm8874, 1, 0
    %v8876 = vadd.s32 %v8866, %v8870
    %v8877 = vadd.s32 %v8869, %v8875
    %vm8878 = vc.u32 %v8876, %v8872
    %v8879 = vsel %vm8878, 1, 0
    %v8880 = vadd.s32 %v8876, %v8872
    %v8881 = vadd.s32 %v8877, %v8879
    %v8882 = vadd.s32 %v8881, %v8871
    %v8883 = vadd.s32 %v8882, %v8873
    %v8884 = vmul.u32 %v8839, %v8830
    %v8885 = vadd.s32 %v8861, %v8880
    %vm8886 = vc.u32 %v8861, %v8880
    %v8887 = vadd.s32 %v8883, 1
    %v8888 = vsel %vm8886, %v8887, %v8883
    %v8889 = vadd.s32 %v8884, %v8888
    %v8890 = vadd.s32 %v8889, 536870912
    %v8891 = vshrl.u32 %v8890, 30
    %v8892 = vshll.u32 %v8891, 30
    %v8893 = vsub.s32 %v8889, %v8892
    %vm8894 = vcmp.lt.s32.totalorder %v8893, 0
    %v8895 = vsub.s32 0, %v8893
    %v8896 = vsel %vm8894, %v8895, %v8893
    %v8897 = vclz %v8896
    %v8898 = vsub.s32 %v8897, 2
    %vm8899 = vcmp.gt.s32.totalorder 0, %v8898
    %v8900 = vsel %vm8899, 0, %v8898
    %v8901 = vsub.s32 32, %v8900
    %v8902 = vshll.u32 %v8893, %v8900
    %v8903 = vshrl.u32 %v8885, %v8901
    %v8904 = vor.u32 %v8902, %v8903
    %v8905 = vsub.s32 4294967266, %v8900
    %v8906 = vadd.s32 %v8905, 127
    %v8907 = vshll.u32 %v8906, 23
    %v8908 = vor.u32 4788187, %v8907
    %v8909 = vand.u32 2147483647, %v8908
    %v8911 = vcvt.s32.f32 %v8904
    %v8912 = vmul.f32 %v8911, %v8909
    %v8913 = vxor.u32 %v8912, 2147483648
    %v8914 = vsel %vm8793, %v8913, %v8912
    %v8915 = vsub.s32 4, %v8891
    %v8916 = vsel %vm8793, %v8915, %v8891
    %v8917 = vsel %vm8792, %v860, %v8914
    %v8918 = vsel %vm8792, 0, %v8916
    %v8919 = vmul.f32 %v8917, %v8917
    %v8920 = vmul.f32 %v8919, -0.001358992
    %v8921 = vadd.f32 %v8920, 0.041655596
    %v8922 = vmul.f32 %v8919, %v8921
    %v8923 = vadd.f32 %v8922, -0.4999988
    %v8924 = vmul.f32 %v8919, %v8923
    %v8925 = vadd.f32 1.0, %v8924
    %v8926 = vmul.f32 %v8917, %v8917
    %v8927 = vmul.f32 %v8926, -0.00019511016
    %v8928 = vadd.f32 %v8927, 0.008332121
    %v8929 = vmul.f32 %v8926, %v8928
    %v8930 = vadd.f32 %v8929, -0.16666654
    %v8931 = vmul.f32 %v8926, %v8930
    %v8932 = vadd.f32 %v8931, 1.0
    %v8933 = vmul.f32 %v8932, %v8917
    %vm8934 = vweird.f32 %v860
    %v8935 = vand.u32 %v8918, 3
    %vm8936 = vcmp.lt.s32.totalorder %v8935, 2
    %vm8937 = vcmp.eq.s32.totalorder %v8935, 0
    %v8938 = vxor.u32 %v8933, 2147483648
    %v8939 = vsel %vm8937, %v8925, %v8938
    %vm8940 = vcmp.eq.s32.totalorder %v8935, 2
    %v8941 = vxor.u32 %v8925, 2147483648
    %v8942 = vsel %vm8940, %v8941, %v8933
    %v8943 = vsel %vm8936, %v8939, %v8942
    %v8944 = vsel %vm8934, nan, %v8943
    %v8945 = vand.u32 2147483647, %v861
    %vm8946 = vcmp.le.f32.partialorder %v8945, 0.7853982
    %vm8947 = vcmp.lt.s32.totalorder %v861, 0
    %v8948 = vand.u32 %v861, 2139095040
    %v8949 = vshrl.u32 %v8948, 23
    %v8950 = vsub.s32 %v8949, 127
    %v8951 = vand.u32 2147483647, %v861
    %v8952 = vand.u32 %v8951, 8388607
    %v8953 = vor.u32 %v8952, 8388608
    %v8954 = vsub.s32 0, %v8953
    %v8955 = vadd.s32 %v8950, 1
    %vm8956 = vcmp.gt.s32.totalorder %v8955, 0
    %v8957 = vsel %vm8956, %v8955, 0
    %v8958 = vshrl.u32 %v8957, 5
    %v8959 = vand.u32 %v8957, 31
    %v8960 = vsub.s32 32, %v8959
    %v8961 = vshrl.u32 683565275, %v8960
    %v8962 = vshll.u32 683565275, %v8959
    %v8963 = vshrl.u32 2475754826, %v8960
    %v8964 = vor.u32 %v8962, %v8963
    %v8965 = vshll.u32 2475754826, %v8959
    %v8966 = vshrl.u32 2131351028, %v8960
    %v8967 = vor.u32 %v8965, %v8966
    %v8968 = vshll.u32 2131351028, %v8959
    %v8969 = vshrl.u32 2102212464, %v8960
    %v8970 = vor.u32 %v8968, %v8969
    %v8971 = vshll.u32 2102212464, %v8959
    %v8972 = vshrl.u32 920167782, %v8960
    %v8973 = vor.u32 %v8971, %v8972
    %v8974 = vshll.u32 920167782, %v8959
    %v8975 = vshrl.u32 1326507024, %v8960
    %v8976 = vor.u32 %v8974, %v8975
    %vm8977 = vcmp.lt.s32.totalorder %v8958, 1
    %vm8978 = vcmp.lt.s32.totalorder %v8958, 2
    %vm8979 = vcmp.lt.s32.totalorder %v8958, 3
    %vm8980 = vcmp.lt.s32.totalorder %v8958, 4
    %v8981 = vsel %vm8977, %v8961, %v8964
    %v8982 = vsel %vm8980, %v8970, 2102212464
    %v8983 = vsel %vm8979, %v8967, %v8982
    %v8984 = vsel %vm8978, %v8981, %v8983
    %v8985 = vsel %vm8977, %v8964, %v8967
    %v8986 = vsel %vm8980, %v8973, 920167782
    %v8987 = vsel %vm8979, %v8970, %v8986
    %v8988 = vsel %vm8978, %v8985, %v8987
    %v8989 = vsel %vm8977, %v8967, %v8970
    %v8990 = vsel %vm8980, %v8976, 1326507024
    %v8991 = vsel %vm8979, %v8973, %v8990
    %v8992 = vsel %vm8978, %v8989, %v8991
    %v8993 = vshll.u32 %v8953, 8
    %v8994 = vand.u32 %v8993, 65535
    %v8995 = vshrl.u32 %v8993, 16
    %v8996 = vand.u32 %v8992, 65535
    %v8997 = vshrl.u32 %v8992, 16
    %v8998 = vmul.u32 %v8994, %v8996
    %v8999 = vmul.u32 %v8994, %v8997
    %v9000 = vmul.u32 %v8995, %v8996
    %v9001 = vmul.u32 %v8995, %v8997
    %v9002 = vshll.u32 %v8999, 16
    %v9003 = vshrl.u32 %v8999, 16
    %v9004 = vshll.u32 %v9000, 16
    %v9005 = vshrl.u32 %v9000, 16
    %vm9006 = vc.u32 %v8998, %v9002
    %v9007 = vsel %vm9006, 1, 0
    %v9008 = vadd.s32 %v8998, %v9002
    %v9009 = vadd.s32 %v9001, %v9007
    %vm9010 = vc.u32 %v9008, %v9004
    %v9011 = vsel %vm9010, 1, 0
    %v9012 = vadd.s32 %v9008, %v9004
    %v9013 = vadd.s32 %v9009, %v9011
    %v9014 = vadd.s32 %v9013, %v9003
    %v9015 = vadd.s32 %v9014, %v9005
    %v9016 = vand.u32 %v8993, 65535
    %v9017 = vshrl.u32 %v8993, 16
    %v9018 = vand.u32 %v8988, 65535
    %v9019 = vshrl.u32 %v8988, 16
    %v9020 = vmul.u32 %v9016, %v9018
    %v9021 = vmul.u32 %v9016, %v9019
    %v9022 = vmul.u32 %v9017, %v9018
    %v9023 = vmul.u32 %v9017, %v9019
    %v9024 = vshll.u32 %v9021, 16
    %v9025 = vshrl.u32 %v9021, 16
    %v9026 = vshll.u32 %v9022, 16
    %v9027 = vshrl.u32 %v9022, 16
    %vm9028 = vc.u32 %v9020, %v9024
    %v9029 = vsel %vm9028, 1, 0
    %v9030 = vadd.s32 %v9020, %v9024
    %v9031 = vadd.s32 %v9023, %v9029
    %vm9032 = vc.u32 %v9030, %v9026
    %v9033 = vsel %vm9032, 1, 0
    %v9034 = vadd.s32 %v9030, %v9026
    %v9035 = vadd.s32 %v9031, %v9033
    %v9036 = vadd.s32 %v9035, %v9025
    %v9037 = vadd.s32 %v9036, %v9027
    %v9038 = vmul.u32 %v8993, %v8984
    %v9039 = vadd.s32 %v9015, %v9034
    %vm9040 = vc.u32 %v9015, %v9034
    %v9041 = vadd.s32 %v9037, 1
    %v9042 = vsel %vm9040, %v9041, %v9037
    %v9043 = vadd.s32 %v9038, %v9042
    %v9044 = vadd.s32 %v9043, 536870912
    %v9045 = vshrl.u32 %v9044, 30
    %v9046 = vshll.u32 %v9045, 30
    %v9047 = vsub.s32 %v9043, %v9046
    %vm9048 = vcmp.lt.s32.totalorder %v9047, 0
    %v9049 = vsub.s32 0, %v9047
    %v9050 = vsel %vm9048, %v9049, %v9047
    %v9051 = vclz %v9050
    %v9052 = vsub.s32 %v9051, 2
    %vm9053 = vcmp.gt.s32.totalorder 0, %v9052
    %v9054 = vsel %vm9053, 0, %v9052
    %v9055 = vsub.s32 32, %v9054
    %v9056 = vshll.u32 %v9047, %v9054
    %v9057 = vshrl.u32 %v9039, %v9055
    %v9058 = vor.u32 %v9056, %v9057
    %v9059 = vsub.s32 4294967266, %v9054
    %v9060 = vadd.s32 %v9059, 127
    %v9061 = vshll.u32 %v9060, 23
    %v9062 = vor.u32 4788187, %v9061
    %v9063 = vand.u32 2147483647, %v9062
    %v9065 = vcvt.s32.f32 %v9058
    %v9066 = vmul.f32 %v9065, %v9063
    %v9067 = vxor.u32 %v9066, 2147483648
    %v9068 = vsel %vm8947, %v9067, %v9066
    %v9069 = vsub.s32 4, %v9045
    %v9070 = vsel %vm8947, %v9069, %v9045
    %v9071 = vsel %vm8946, %v861, %v9068
    %v9072 = vsel %vm8946, 0, %v9070
    %v9073 = vmul.f32 %v9071, %v9071
    %v9074 = vmul.f32 %v9073, -0.001358992
    %v9075 = vadd.f32 %v9074, 0.041655596
    %v9076 = vmul.f32 %v9073, %v9075
    %v9077 = vadd.f32 %v9076, -0.4999988
    %v9078 = vmul.f32 %v9073, %v9077
    %v9079 = vadd.f32 1.0, %v9078
    %v9080 = vmul.f32 %v9071, %v9071
    %v9081 = vmul.f32 %v9080, -0.00019511016
    %v9082 = vadd.f32 %v9081, 0.008332121
    %v9083 = vmul.f32 %v9080, %v9082
    %v9084 = vadd.f32 %v9083, -0.16666654
    %v9085 = vmul.f32 %v9080, %v9084
    %v9086 = vadd.f32 %v9085, 1.0
    %v9087 = vmul.f32 %v9086, %v9071
    %vm9088 = vweird.f32 %v861
    %v9089 = vand.u32 %v9072, 3
    %vm9090 = vcmp.lt.s32.totalorder %v9089, 2
    %vm9091 = vcmp.eq.s32.totalorder %v9089, 0
    %v9092 = vxor.u32 %v9087, 2147483648
    %v9093 = vsel %vm9091, %v9079, %v9092
    %vm9094 = vcmp.eq.s32.totalorder %v9089, 2
    %v9095 = vxor.u32 %v9079, 2147483648
    %v9096 = vsel %vm9094, %v9095, %v9087
    %v9097 = vsel %vm9090, %v9093, %v9096
    %v9098 = vsel %vm9088, nan, %v9097
    %v9099 = vand.u32 2147483647, %v862
    %vm9100 = vcmp.le.f32.partialorder %v9099, 0.7853982
    %vm9101 = vcmp.lt.s32.totalorder %v862, 0
    %v9102 = vand.u32 %v862, 2139095040
    %v9103 = vshrl.u32 %v9102, 23
    %v9104 = vsub.s32 %v9103, 127
    %v9105 = vand.u32 2147483647, %v862
    %v9106 = vand.u32 %v9105, 8388607
    %v9107 = vor.u32 %v9106, 8388608
    %v9108 = vsub.s32 0, %v9107
    %v9109 = vadd.s32 %v9104, 1
    %vm9110 = vcmp.gt.s32.totalorder %v9109, 0
    %v9111 = vsel %vm9110, %v9109, 0
    %v9112 = vshrl.u32 %v9111, 5
    %v9113 = vand.u32 %v9111, 31
    %v9114 = vsub.s32 32, %v9113
    %v9115 = vshrl.u32 683565275, %v9114
    %v9116 = vshll.u32 683565275, %v9113
    %v9117 = vshrl.u32 2475754826, %v9114
    %v9118 = vor.u32 %v9116, %v9117
    %v9119 = vshll.u32 2475754826, %v9113
    %v9120 = vshrl.u32 2131351028, %v9114
    %v9121 = vor.u32 %v9119, %v9120
    %v9122 = vshll.u32 2131351028, %v9113
    %v9123 = vshrl.u32 2102212464, %v9114
    %v9124 = vor.u32 %v9122, %v9123
    %v9125 = vshll.u32 2102212464, %v9113
    %v9126 = vshrl.u32 920167782, %v9114
    %v9127 = vor.u32 %v9125, %v9126
    %v9128 = vshll.u32 920167782, %v9113
    %v9129 = vshrl.u32 1326507024, %v9114
    %v9130 = vor.u32 %v9128, %v9129
    %vm9131 = vcmp.lt.s32.totalorder %v9112, 1
    %vm9132 = vcmp.lt.s32.totalorder %v9112, 2
    %vm9133 = vcmp.lt.s32.totalorder %v9112, 3
    %vm9134 = vcmp.lt.s32.totalorder %v9112, 4
    %v9135 = vsel %vm9131, %v9115, %v9118
    %v9136 = vsel %vm9134, %v9124, 2102212464
    %v9137 = vsel %vm9133, %v9121, %v9136
    %v9138 = vsel %vm9132, %v9135, %v9137
    %v9139 = vsel %vm9131, %v9118, %v9121
    %v9140 = vsel %vm9134, %v9127, 920167782
    %v9141 = vsel %vm9133, %v9124, %v9140
    %v9142 = vsel %vm9132, %v9139, %v9141
    %v9143 = vsel %vm9131, %v9121, %v9124
    %v9144 = vsel %vm9134, %v9130, 1326507024
    %v9145 = vsel %vm9133, %v9127, %v9144
    %v9146 = vsel %vm9132, %v9143, %v9145
    %v9147 = vshll.u32 %v9107, 8
    %v9148 = vand.u32 %v9147, 65535
    %v9149 = vshrl.u32 %v9147, 16
    %v9150 = vand.u32 %v9146, 65535
    %v9151 = vshrl.u32 %v9146, 16
    %v9152 = vmul.u32 %v9148, %v9150
    %v9153 = vmul.u32 %v9148, %v9151
    %v9154 = vmul.u32 %v9149, %v9150
    %v9155 = vmul.u32 %v9149, %v9151
    %v9156 = vshll.u32 %v9153, 16
    %v9157 = vshrl.u32 %v9153, 16
    %v9158 = vshll.u32 %v9154, 16
    %v9159 = vshrl.u32 %v9154, 16
    %vm9160 = vc.u32 %v9152, %v9156
    %v9161 = vsel %vm9160, 1, 0
    %v9162 = vadd.s32 %v9152, %v9156
    %v9163 = vadd.s32 %v9155, %v9161
    %vm9164 = vc.u32 %v9162, %v9158
    %v9165 = vsel %vm9164, 1, 0
    %v9166 = vadd.s32 %v9162, %v9158
    %v9167 = vadd.s32 %v9163, %v9165
    %v9168 = vadd.s32 %v9167, %v9157
    %v9169 = vadd.s32 %v9168, %v9159
    %v9170 = vand.u32 %v9147, 65535
    %v9171 = vshrl.u32 %v9147, 16
    %v9172 = vand.u32 %v9142, 65535
    %v9173 = vshrl.u32 %v9142, 16
    %v9174 = vmul.u32 %v9170, %v9172
    %v9175 = vmul.u32 %v9170, %v9173
    %v9176 = vmul.u32 %v9171, %v9172
    %v9177 = vmul.u32 %v9171, %v9173
    %v9178 = vshll.u32 %v9175, 16
    %v9179 = vshrl.u32 %v9175, 16
    %v9180 = vshll.u32 %v9176, 16
    %v9181 = vshrl.u32 %v9176, 16
    %vm9182 = vc.u32 %v9174, %v9178
    %v9183 = vsel %vm9182, 1, 0
    %v9184 = vadd.s32 %v9174, %v9178
    %v9185 = vadd.s32 %v9177, %v9183
    %vm9186 = vc.u32 %v9184, %v9180
    %v9187 = vsel %vm9186, 1, 0
    %v9188 = vadd.s32 %v9184, %v9180
    %v9189 = vadd.s32 %v9185, %v9187
    %v9190 = vadd.s32 %v9189, %v9179
    %v9191 = vadd.s32 %v9190, %v9181
    %v9192 = vmul.u32 %v9147, %v9138
    %v9193 = vadd.s32 %v9169, %v9188
    %vm9194 = vc.u32 %v9169, %v9188
    %v9195 = vadd.s32 %v9191, 1
    %v9196 = vsel %vm9194, %v9195, %v9191
    %v9197 = vadd.s32 %v9192, %v9196
    %v9198 = vadd.s32 %v9197, 536870912
    %v9199 = vshrl.u32 %v9198, 30
    %v9200 = vshll.u32 %v9199, 30
    %v9201 = vsub.s32 %v9197, %v9200
    %vm9202 = vcmp.lt.s32.totalorder %v9201, 0
    %v9203 = vsub.s32 0, %v9201
    %v9204 = vsel %vm9202, %v9203, %v9201
    %v9205 = vclz %v9204
    %v9206 = vsub.s32 %v9205, 2
    %vm9207 = vcmp.gt.s32.totalorder 0, %v9206
    %v9208 = vsel %vm9207, 0, %v9206
    %v9209 = vsub.s32 32, %v9208
    %v9210 = vshll.u32 %v9201, %v9208
    %v9211 = vshrl.u32 %v9193, %v9209
    %v9212 = vor.u32 %v9210, %v9211
    %v9213 = vsub.s32 4294967266, %v9208
    %v9214 = vadd.s32 %v9213, 127
    %v9215 = vshll.u32 %v9214, 23
    %v9216 = vor.u32 4788187, %v9215
    %v9217 = vand.u32 2147483647, %v9216
    %v9219 = vcvt.s32.f32 %v9212
    %v9220 = vmul.f32 %v9219, %v9217
    %v9221 = vxor.u32 %v9220, 2147483648
    %v9222 = vsel %vm9101, %v9221, %v9220
    %v9223 = vsub.s32 4, %v9199
    %v9224 = vsel %vm9101, %v9223, %v9199
    %v9225 = vsel %vm9100, %v862, %v9222
    %v9226 = vsel %vm9100, 0, %v9224
    %v9227 = vmul.f32 %v9225, %v9225
    %v9228 = vmul.f32 %v9227, -0.001358992
    %v9229 = vadd.f32 %v9228, 0.041655596
    %v9230 = vmul.f32 %v9227, %v9229
    %v9231 = vadd.f32 %v9230, -0.4999988
    %v9232 = vmul.f32 %v9227, %v9231
    %v9233 = vadd.f32 1.0, %v9232
    %v9234 = vmul.f32 %v9225, %v9225
    %v9235 = vmul.f32 %v9234, -0.00019511016
    %v9236 = vadd.f32 %v9235, 0.008332121
    %v9237 = vmul.f32 %v9234, %v9236
    %v9238 = vadd.f32 %v9237, -0.16666654
    %v9239 = vmul.f32 %v9234, %v9238
    %v9240 = vadd.f32 %v9239, 1.0
    %v9241 = vmul.f32 %v9240, %v9225
    %vm9242 = vweird.f32 %v862
    %v9243 = vand.u32 %v9226, 3
    %vm9244 = vcmp.lt.s32.totalorder %v9243, 2
    %vm9245 = vcmp.eq.s32.totalorder %v9243, 0
    %v9246 = vxor.u32 %v9241, 2147483648
    %v9247 = vsel %vm9245, %v9233, %v9246
    %vm9248 = vcmp.eq.s32.totalorder %v9243, 2
    %v9249 = vxor.u32 %v9233, 2147483648
    %v9250 = vsel %vm9248, %v9249, %v9241
    %v9251 = vsel %vm9244, %v9247, %v9250
    %v9252 = vsel %vm9242, nan, %v9251
    %v9253 = vand.u32 2147483647, %v863
    %vm9254 = vcmp.le.f32.partialorder %v9253, 0.7853982
    %vm9255 = vcmp.lt.s32.totalorder %v863, 0
    %v9256 = vand.u32 %v863, 2139095040
    %v9257 = vshrl.u32 %v9256, 23
    %v9258 = vsub.s32 %v9257, 127
    %v9259 = vand.u32 2147483647, %v863
    %v9260 = vand.u32 %v9259, 8388607
    %v9261 = vor.u32 %v9260, 8388608
    %v9262 = vsub.s32 0, %v9261
    %v9263 = vadd.s32 %v9258, 1
    %vm9264 = vcmp.gt.s32.totalorder %v9263, 0
    %v9265 = vsel %vm9264, %v9263, 0
    %v9266 = vshrl.u32 %v9265, 5
    %v9267 = vand.u32 %v9265, 31
    %v9268 = vsub.s32 32, %v9267
    %v9269 = vshrl.u32 683565275, %v9268
    %v9270 = vshll.u32 683565275, %v9267
    %v9271 = vshrl.u32 2475754826, %v9268
    %v9272 = vor.u32 %v9270, %v9271
    %v9273 = vshll.u32 2475754826, %v9267
    %v9274 = vshrl.u32 2131351028, %v9268
    %v9275 = vor.u32 %v9273, %v9274
    %v9276 = vshll.u32 2131351028, %v9267
    %v9277 = vshrl.u32 2102212464, %v9268
    %v9278 = vor.u32 %v9276, %v9277
    %v9279 = vshll.u32 2102212464, %v9267
    %v9280 = vshrl.u32 920167782, %v9268
    %v9281 = vor.u32 %v9279, %v9280
    %v9282 = vshll.u32 920167782, %v9267
    %v9283 = vshrl.u32 1326507024, %v9268
    %v9284 = vor.u32 %v9282, %v9283
    %vm9285 = vcmp.lt.s32.totalorder %v9266, 1
    %vm9286 = vcmp.lt.s32.totalorder %v9266, 2
    %vm9287 = vcmp.lt.s32.totalorder %v9266, 3
    %vm9288 = vcmp.lt.s32.totalorder %v9266, 4
    %v9289 = vsel %vm9285, %v9269, %v9272
    %v9290 = vsel %vm9288, %v9278, 2102212464
    %v9291 = vsel %vm9287, %v9275, %v9290
    %v9292 = vsel %vm9286, %v9289, %v9291
    %v9293 = vsel %vm9285, %v9272, %v9275
    %v9294 = vsel %vm9288, %v9281, 920167782
    %v9295 = vsel %vm9287, %v9278, %v9294
    %v9296 = vsel %vm9286, %v9293, %v9295
    %v9297 = vsel %vm9285, %v9275, %v9278
    %v9298 = vsel %vm9288, %v9284, 1326507024
    %v9299 = vsel %vm9287, %v9281, %v9298
    %v9300 = vsel %vm9286, %v9297, %v9299
    %v9301 = vshll.u32 %v9261, 8
    %v9302 = vand.u32 %v9301, 65535
    %v9303 = vshrl.u32 %v9301, 16
    %v9304 = vand.u32 %v9300, 65535
    %v9305 = vshrl.u32 %v9300, 16
    %v9306 = vmul.u32 %v9302, %v9304
    %v9307 = vmul.u32 %v9302, %v9305
    %v9308 = vmul.u32 %v9303, %v9304
    %v9309 = vmul.u32 %v9303, %v9305
    %v9310 = vshll.u32 %v9307, 16
    %v9311 = vshrl.u32 %v9307, 16
    %v9312 = vshll.u32 %v9308, 16
    %v9313 = vshrl.u32 %v9308, 16
    %vm9314 = vc.u32 %v9306, %v9310
    %v9315 = vsel %vm9314, 1, 0
    %v9316 = vadd.s32 %v9306, %v9310
    %v9317 = vadd.s32 %v9309, %v9315
    %vm9318 = vc.u32 %v9316, %v9312
    %v9319 = vsel %vm9318, 1, 0
    %v9320 = vadd.s32 %v9316, %v9312
    %v9321 = vadd.s32 %v9317, %v9319
    %v9322 = vadd.s32 %v9321, %v9311
    %v9323 = vadd.s32 %v9322, %v9313
    %v9324 = vand.u32 %v9301, 65535
    %v9325 = vshrl.u32 %v9301, 16
    %v9326 = vand.u32 %v9296, 65535
    %v9327 = vshrl.u32 %v9296, 16
    %v9328 = vmul.u32 %v9324, %v9326
    %v9329 = vmul.u32 %v9324, %v9327
    %v9330 = vmul.u32 %v9325, %v9326
    %v9331 = vmul.u32 %v9325, %v9327
    %v9332 = vshll.u32 %v9329, 16
    %v9333 = vshrl.u32 %v9329, 16
    %v9334 = vshll.u32 %v9330, 16
    %v9335 = vshrl.u32 %v9330, 16
    %vm9336 = vc.u32 %v9328, %v9332
    %v9337 = vsel %vm9336, 1, 0
    %v9338 = vadd.s32 %v9328, %v9332
    %v9339 = vadd.s32 %v9331, %v9337
    %vm9340 = vc.u32 %v9338, %v9334
    %v9341 = vsel %vm9340, 1, 0
    %v9342 = vadd.s32 %v9338, %v9334
    %v9343 = vadd.s32 %v9339, %v9341
    %v9344 = vadd.s32 %v9343, %v9333
    %v9345 = vadd.s32 %v9344, %v9335
    %v9346 = vmul.u32 %v9301, %v9292
    %v9347 = vadd.s32 %v9323, %v9342
    %vm9348 = vc.u32 %v9323, %v9342
    %v9349 = vadd.s32 %v9345, 1
    %v9350 = vsel %vm9348, %v9349, %v9345
    %v9351 = vadd.s32 %v9346, %v9350
    %v9352 = vadd.s32 %v9351, 536870912
    %v9353 = vshrl.u32 %v9352, 30
    %v9354 = vshll.u32 %v9353, 30
    %v9355 = vsub.s32 %v9351, %v9354
    %vm9356 = vcmp.lt.s32.totalorder %v9355, 0
    %v9357 = vsub.s32 0, %v9355
    %v9358 = vsel %vm9356, %v9357, %v9355
    %v9359 = vclz %v9358
    %v9360 = vsub.s32 %v9359, 2
    %vm9361 = vcmp.gt.s32.totalorder 0, %v9360
    %v9362 = vsel %vm9361, 0, %v9360
    %v9363 = vsub.s32 32, %v9362
    %v9364 = vshll.u32 %v9355, %v9362
    %v9365 = vshrl.u32 %v9347, %v9363
    %v9366 = vor.u32 %v9364, %v9365
    %v9367 = vsub.s32 4294967266, %v9362
    %v9368 = vadd.s32 %v9367, 127
    %v9369 = vshll.u32 %v9368, 23
    %v9370 = vor.u32 4788187, %v9369
    %v9371 = vand.u32 2147483647, %v9370
    %v9373 = vcvt.s32.f32 %v9366
    %v9374 = vmul.f32 %v9373, %v9371
    %v9375 = vxor.u32 %v9374, 2147483648
    %v9376 = vsel %vm9255, %v9375, %v9374
    %v9377 = vsub.s32 4, %v9353
    %v9378 = vsel %vm9255, %v9377, %v9353
    %v9379 = vsel %vm9254, %v863, %v9376
    %v9380 = vsel %vm9254, 0, %v9378
    %v9381 = vmul.f32 %v9379, %v9379
    %v9382 = vmul.f32 %v9381, -0.001358992
    %v9383 = vadd.f32 %v9382, 0.041655596
    %v9384 = vmul.f32 %v9381, %v9383
    %v9385 = vadd.f32 %v9384, -0.4999988
    %v9386 = vmul.f32 %v9381, %v9385
    %v9387 = vadd.f32 1.0, %v9386
    %v9388 = vmul.f32 %v9379, %v9379
    %v9389 = vmul.f32 %v9388, -0.00019511016
    %v9390 = vadd.f32 %v9389, 0.008332121
    %v9391 = vmul.f32 %v9388, %v9390
    %v9392 = vadd.f32 %v9391, -0.16666654
    %v9393 = vmul.f32 %v9388, %v9392
    %v9394 = vadd.f32 %v9393, 1.0
    %v9395 = vmul.f32 %v9394, %v9379
    %vm9396 = vweird.f32 %v863
    %v9397 = vand.u32 %v9380, 3
    %vm9398 = vcmp.lt.s32.totalorder %v9397, 2
    %vm9399 = vcmp.eq.s32.totalorder %v9397, 0
    %v9400 = vxor.u32 %v9395, 2147483648
    %v9401 = vsel %vm9399, %v9387, %v9400
    %vm9402 = vcmp.eq.s32.totalorder %v9397, 2
    %v9403 = vxor.u32 %v9387, 2147483648
    %v9404 = vsel %vm9402, %v9403, %v9395
    %v9405 = vsel %vm9398, %v9401, %v9404
    %v9406 = vsel %vm9396, nan, %v9405
    %v9407 = vand.u32 2147483647, %v864
    %vm9408 = vcmp.le.f32.partialorder %v9407, 0.7853982
    %vm9409 = vcmp.lt.s32.totalorder %v864, 0
    %v9410 = vand.u32 %v864, 2139095040
    %v9411 = vshrl.u32 %v9410, 23
    %v9412 = vsub.s32 %v9411, 127
    %v9413 = vand.u32 2147483647, %v864
    %v9414 = vand.u32 %v9413, 8388607
    %v9415 = vor.u32 %v9414, 8388608
    %v9416 = vsub.s32 0, %v9415
    %v9417 = vadd.s32 %v9412, 1
    %vm9418 = vcmp.gt.s32.totalorder %v9417, 0
    %v9419 = vsel %vm9418, %v9417, 0
    %v9420 = vshrl.u32 %v9419, 5
    %v9421 = vand.u32 %v9419, 31
    %v9422 = vsub.s32 32, %v9421
    %v9423 = vshrl.u32 683565275, %v9422
    %v9424 = vshll.u32 683565275, %v9421
    %v9425 = vshrl.u32 2475754826, %v9422
    %v9426 = vor.u32 %v9424, %v9425
    %v9427 = vshll.u32 2475754826, %v9421
    %v9428 = vshrl.u32 2131351028, %v9422
    %v9429 = vor.u32 %v9427, %v9428
    %v9430 = vshll.u32 2131351028, %v9421
    %v9431 = vshrl.u32 2102212464, %v9422
    %v9432 = vor.u32 %v9430, %v9431
    %v9433 = vshll.u32 2102212464, %v9421
    %v9434 = vshrl.u32 920167782, %v9422
    %v9435 = vor.u32 %v9433, %v9434
    %v9436 = vshll.u32 920167782, %v9421
    %v9437 = vshrl.u32 1326507024, %v9422
    %v9438 = vor.u32 %v9436, %v9437
    %vm9439 = vcmp.lt.s32.totalorder %v9420, 1
    %vm9440 = vcmp.lt.s32.totalorder %v9420, 2
    %vm9441 = vcmp.lt.s32.totalorder %v9420, 3
    %vm9442 = vcmp.lt.s32.totalorder %v9420, 4
    %v9443 = vsel %vm9439, %v9423, %v9426
    %v9444 = vsel %vm9442, %v9432, 2102212464
    %v9445 = vsel %vm9441, %v9429, %v9444
    %v9446 = vsel %vm9440, %v9443, %v9445
    %v9447 = vsel %vm9439, %v9426, %v9429
    %v9448 = vsel %vm9442, %v9435, 920167782
    %v9449 = vsel %vm9441, %v9432, %v9448
    %v9450 = vsel %vm9440, %v9447, %v9449
    %v9451 = vsel %vm9439, %v9429, %v9432
    %v9452 = vsel %vm9442, %v9438, 1326507024
    %v9453 = vsel %vm9441, %v9435, %v9452
    %v9454 = vsel %vm9440, %v9451, %v9453
    %v9455 = vshll.u32 %v9415, 8
    %v9456 = vand.u32 %v9455, 65535
    %v9457 = vshrl.u32 %v9455, 16
    %v9458 = vand.u32 %v9454, 65535
    %v9459 = vshrl.u32 %v9454, 16
    %v9460 = vmul.u32 %v9456, %v9458
    %v9461 = vmul.u32 %v9456, %v9459
    %v9462 = vmul.u32 %v9457, %v9458
    %v9463 = vmul.u32 %v9457, %v9459
    %v9464 = vshll.u32 %v9461, 16
    %v9465 = vshrl.u32 %v9461, 16
    %v9466 = vshll.u32 %v9462, 16
    %v9467 = vshrl.u32 %v9462, 16
    %vm9468 = vc.u32 %v9460, %v9464
    %v9469 = vsel %vm9468, 1, 0
    %v9470 = vadd.s32 %v9460, %v9464
    %v9471 = vadd.s32 %v9463, %v9469
    %vm9472 = vc.u32 %v9470, %v9466
    %v9473 = vsel %vm9472, 1, 0
    %v9474 = vadd.s32 %v9470, %v9466
    %v9475 = vadd.s32 %v9471, %v9473
    %v9476 = vadd.s32 %v9475, %v9465
    %v9477 = vadd.s32 %v9476, %v9467
    %v9478 = vand.u32 %v9455, 65535
    %v9479 = vshrl.u32 %v9455, 16
    %v9480 = vand.u32 %v9450, 65535
    %v9481 = vshrl.u32 %v9450, 16
    %v9482 = vmul.u32 %v9478, %v9480
    %v9483 = vmul.u32 %v9478, %v9481
    %v9484 = vmul.u32 %v9479, %v9480
    %v9485 = vmul.u32 %v9479, %v9481
    %v9486 = vshll.u32 %v9483, 16
    %v9487 = vshrl.u32 %v9483, 16
    %v9488 = vshll.u32 %v9484, 16
    %v9489 = vshrl.u32 %v9484, 16
    %vm9490 = vc.u32 %v9482, %v9486
    %v9491 = vsel %vm9490, 1, 0
    %v9492 = vadd.s32 %v9482, %v9486
    %v9493 = vadd.s32 %v9485, %v9491
    %vm9494 = vc.u32 %v9492, %v9488
    %v9495 = vsel %vm9494, 1, 0
    %v9496 = vadd.s32 %v9492, %v9488
    %v9497 = vadd.s32 %v9493, %v9495
    %v9498 = vadd.s32 %v9497, %v9487
    %v9499 = vadd.s32 %v9498, %v9489
    %v9500 = vmul.u32 %v9455, %v9446
    %v9501 = vadd.s32 %v9477, %v9496
    %vm9502 = vc.u32 %v9477, %v9496
    %v9503 = vadd.s32 %v9499, 1
    %v9504 = vsel %vm9502, %v9503, %v9499
    %v9505 = vadd.s32 %v9500, %v9504
    %v9506 = vadd.s32 %v9505, 536870912
    %v9507 = vshrl.u32 %v9506, 30
    %v9508 = vshll.u32 %v9507, 30
    %v9509 = vsub.s32 %v9505, %v9508
    %vm9510 = vcmp.lt.s32.totalorder %v9509, 0
    %v9511 = vsub.s32 0, %v9509
    %v9512 = vsel %vm9510, %v9511, %v9509
    %v9513 = vclz %v9512
    %v9514 = vsub.s32 %v9513, 2
    %vm9515 = vcmp.gt.s32.totalorder 0, %v9514
    %v9516 = vsel %vm9515, 0, %v9514
    %v9517 = vsub.s32 32, %v9516
    %v9518 = vshll.u32 %v9509, %v9516
    %v9519 = vshrl.u32 %v9501, %v9517
    %v9520 = vor.u32 %v9518, %v9519
    %v9521 = vsub.s32 4294967266, %v9516
    %v9522 = vadd.s32 %v9521, 127
    %v9523 = vshll.u32 %v9522, 23
    %v9524 = vor.u32 4788187, %v9523
    %v9525 = vand.u32 2147483647, %v9524
    %v9527 = vcvt.s32.f32 %v9520
    %v9528 = vmul.f32 %v9527, %v9525
    %v9529 = vxor.u32 %v9528, 2147483648
    %v9530 = vsel %vm9409, %v9529, %v9528
    %v9531 = vsub.s32 4, %v9507
    %v9532 = vsel %vm9409, %v9531, %v9507
    %v9533 = vsel %vm9408, %v864, %v9530
    %v9534 = vsel %vm9408, 0, %v9532
    %v9535 = vmul.f32 %v9533, %v9533
    %v9536 = vmul.f32 %v9535, -0.001358992
    %v9537 = vadd.f32 %v9536, 0.041655596
    %v9538 = vmul.f32 %v9535, %v9537
    %v9539 = vadd.f32 %v9538, -0.4999988
    %v9540 = vmul.f32 %v9535, %v9539
    %v9541 = vadd.f32 1.0, %v9540
    %v9542 = vmul.f32 %v9533, %v9533
    %v9543 = vmul.f32 %v9542, -0.00019511016
    %v9544 = vadd.f32 %v9543, 0.008332121
    %v9545 = vmul.f32 %v9542, %v9544
    %v9546 = vadd.f32 %v9545, -0.16666654
    %v9547 = vmul.f32 %v9542, %v9546
    %v9548 = vadd.f32 %v9547, 1.0
    %v9549 = vmul.f32 %v9548, %v9533
    %vm9550 = vweird.f32 %v864
    %v9551 = vand.u32 %v9534, 3
    %vm9552 = vcmp.lt.s32.totalorder %v9551, 2
    %vm9553 = vcmp.eq.s32.totalorder %v9551, 0
    %v9554 = vxor.u32 %v9549, 2147483648
    %v9555 = vsel %vm9553, %v9541, %v9554
    %vm9556 = vcmp.eq.s32.totalorder %v9551, 2
    %v9557 = vxor.u32 %v9541, 2147483648
    %v9558 = vsel %vm9556, %v9557, %v9549
    %v9559 = vsel %vm9552, %v9555, %v9558
    %v9560 = vsel %vm9550, nan, %v9559
    %v9561 = vand.u32 2147483647, %v865
    %vm9562 = vcmp.le.f32.partialorder %v9561, 0.7853982
    %vm9563 = vcmp.lt.s32.totalorder %v865, 0
    %v9564 = vand.u32 %v865, 2139095040
    %v9565 = vshrl.u32 %v9564, 23
    %v9566 = vsub.s32 %v9565, 127
    %v9567 = vand.u32 2147483647, %v865
    %v9568 = vand.u32 %v9567, 8388607
    %v9569 = vor.u32 %v9568, 8388608
    %v9570 = vsub.s32 0, %v9569
    %v9571 = vadd.s32 %v9566, 1
    %vm9572 = vcmp.gt.s32.totalorder %v9571, 0
    %v9573 = vsel %vm9572, %v9571, 0
    %v9574 = vshrl.u32 %v9573, 5
    %v9575 = vand.u32 %v9573, 31
    %v9576 = vsub.s32 32, %v9575
    %v9577 = vshrl.u32 683565275, %v9576
    %v9578 = vshll.u32 683565275, %v9575
    %v9579 = vshrl.u32 2475754826, %v9576
    %v9580 = vor.u32 %v9578, %v9579
    %v9581 = vshll.u32 2475754826, %v9575
    %v9582 = vshrl.u32 2131351028, %v9576
    %v9583 = vor.u32 %v9581, %v9582
    %v9584 = vshll.u32 2131351028, %v9575
    %v9585 = vshrl.u32 2102212464, %v9576
    %v9586 = vor.u32 %v9584, %v9585
    %v9587 = vshll.u32 2102212464, %v9575
    %v9588 = vshrl.u32 920167782, %v9576
    %v9589 = vor.u32 %v9587, %v9588
    %v9590 = vshll.u32 920167782, %v9575
    %v9591 = vshrl.u32 1326507024, %v9576
    %v9592 = vor.u32 %v9590, %v9591
    %vm9593 = vcmp.lt.s32.totalorder %v9574, 1
    %vm9594 = vcmp.lt.s32.totalorder %v9574, 2
    %vm9595 = vcmp.lt.s32.totalorder %v9574, 3
    %vm9596 = vcmp.lt.s32.totalorder %v9574, 4
    %v9597 = vsel %vm9593, %v9577, %v9580
    %v9598 = vsel %vm9596, %v9586, 2102212464
    %v9599 = vsel %vm9595, %v9583, %v9598
    %v9600 = vsel %vm9594, %v9597, %v9599
    %v9601 = vsel %vm9593, %v9580, %v9583
    %v9602 = vsel %vm9596, %v9589, 920167782
    %v9603 = vsel %vm9595, %v9586, %v9602
    %v9604 = vsel %vm9594, %v9601, %v9603
    %v9605 = vsel %vm9593, %v9583, %v9586
    %v9606 = vsel %vm9596, %v9592, 1326507024
    %v9607 = vsel %vm9595, %v9589, %v9606
    %v9608 = vsel %vm9594, %v9605, %v9607
    %v9609 = vshll.u32 %v9569, 8
    %v9610 = vand.u32 %v9609, 65535
    %v9611 = vshrl.u32 %v9609, 16
    %v9612 = vand.u32 %v9608, 65535
    %v9613 = vshrl.u32 %v9608, 16
    %v9614 = vmul.u32 %v9610, %v9612
    %v9615 = vmul.u32 %v9610, %v9613
    %v9616 = vmul.u32 %v9611, %v9612
    %v9617 = vmul.u32 %v9611, %v9613
    %v9618 = vshll.u32 %v9615, 16
    %v9619 = vshrl.u32 %v9615, 16
    %v9620 = vshll.u32 %v9616, 16
    %v9621 = vshrl.u32 %v9616, 16
    %vm9622 = vc.u32 %v9614, %v9618
    %v9623 = vsel %vm9622, 1, 0
    %v9624 = vadd.s32 %v9614, %v9618
    %v9625 = vadd.s32 %v9617, %v9623
    %vm9626 = vc.u32 %v9624, %v9620
    %v9627 = vsel %vm9626, 1, 0
    %v9628 = vadd.s32 %v9624, %v9620
    %v9629 = vadd.s32 %v9625, %v9627
    %v9630 = vadd.s32 %v9629, %v9619
    %v9631 = vadd.s32 %v9630, %v9621
    %v9632 = vand.u32 %v9609, 65535
    %v9633 = vshrl.u32 %v9609, 16
    %v9634 = vand.u32 %v9604, 65535
    %v9635 = vshrl.u32 %v9604, 16
    %v9636 = vmul.u32 %v9632, %v9634
    %v9637 = vmul.u32 %v9632, %v9635
    %v9638 = vmul.u32 %v9633, %v9634
    %v9639 = vmul.u32 %v9633, %v9635
    %v9640 = vshll.u32 %v9637, 16
    %v9641 = vshrl.u32 %v9637, 16
    %v9642 = vshll.u32 %v9638, 16
    %v9643 = vshrl.u32 %v9638, 16
    %vm9644 = vc.u32 %v9636, %v9640
    %v9645 = vsel %vm9644, 1, 0
    %v9646 = vadd.s32 %v9636, %v9640
    %v9647 = vadd.s32 %v9639, %v9645
    %vm9648 = vc.u32 %v9646, %v9642
    %v9649 = vsel %vm9648, 1, 0
    %v9650 = vadd.s32 %v9646, %v9642
    %v9651 = vadd.s32 %v9647, %v9649
    %v9652 = vadd.s32 %v9651, %v9641
    %v9653 = vadd.s32 %v9652, %v9643
    %v9654 = vmul.u32 %v9609, %v9600
    %v9655 = vadd.s32 %v9631, %v9650
    %vm9656 = vc.u32 %v9631, %v9650
    %v9657 = vadd.s32 %v9653, 1
    %v9658 = vsel %vm9656, %v9657, %v9653
    %v9659 = vadd.s32 %v9654, %v9658
    %v9660 = vadd.s32 %v9659, 536870912
    %v9661 = vshrl.u32 %v9660, 30
    %v9662 = vshll.u32 %v9661, 30
    %v9663 = vsub.s32 %v9659, %v9662
    %vm9664 = vcmp.lt.s32.totalorder %v9663, 0
    %v9665 = vsub.s32 0, %v9663
    %v9666 = vsel %vm9664, %v9665, %v9663
    %v9667 = vclz %v9666
    %v9668 = vsub.s32 %v9667, 2
    %vm9669 = vcmp.gt.s32.totalorder 0, %v9668
    %v9670 = vsel %vm9669, 0, %v9668
    %v9671 = vsub.s32 32, %v9670
    %v9672 = vshll.u32 %v9663, %v9670
    %v9673 = vshrl.u32 %v9655, %v9671
    %v9674 = vor.u32 %v9672, %v9673
    %v9675 = vsub.s32 4294967266, %v9670
    %v9676 = vadd.s32 %v9675, 127
    %v9677 = vshll.u32 %v9676, 23
    %v9678 = vor.u32 4788187, %v9677
    %v9679 = vand.u32 2147483647, %v9678
    %v9681 = vcvt.s32.f32 %v9674
    %v9682 = vmul.f32 %v9681, %v9679
    %v9683 = vxor.u32 %v9682, 2147483648
    %v9684 = vsel %vm9563, %v9683, %v9682
    %v9685 = vsub.s32 4, %v9661
    %v9686 = vsel %vm9563, %v9685, %v9661
    %v9687 = vsel %vm9562, %v865, %v9684
    %v9688 = vsel %vm9562, 0, %v9686
    %v9689 = vmul.f32 %v9687, %v9687
    %v9690 = vmul.f32 %v9689, -0.001358992
    %v9691 = vadd.f32 %v9690, 0.041655596
    %v9692 = vmul.f32 %v9689, %v9691
    %v9693 = vadd.f32 %v9692, -0.4999988
    %v9694 = vmul.f32 %v9689, %v9693
    %v9695 = vadd.f32 1.0, %v9694
    %v9696 = vmul.f32 %v9687, %v9687
    %v9697 = vmul.f32 %v9696, -0.00019511016
    %v9698 = vadd.f32 %v9697, 0.008332121
    %v9699 = vmul.f32 %v9696, %v9698
    %v9700 = vadd.f32 %v9699, -0.16666654
    %v9701 = vmul.f32 %v9696, %v9700
    %v9702 = vadd.f32 %v9701, 1.0
    %v9703 = vmul.f32 %v9702, %v9687
    %vm9704 = vweird.f32 %v865
    %v9705 = vand.u32 %v9688, 3
    %vm9706 = vcmp.lt.s32.totalorder %v9705, 2
    %vm9707 = vcmp.eq.s32.totalorder %v9705, 0
    %v9708 = vxor.u32 %v9703, 2147483648
    %v9709 = vsel %vm9707, %v9695, %v9708
    %vm9710 = vcmp.eq.s32.totalorder %v9705, 2
    %v9711 = vxor.u32 %v9695, 2147483648
    %v9712 = vsel %vm9710, %v9711, %v9703
    %v9713 = vsel %vm9706, %v9709, %v9712
    %v9714 = vsel %vm9704, nan, %v9713
    %v9715 = vand.u32 2147483647, %v866
    %vm9716 = vcmp.le.f32.partialorder %v9715, 0.7853982
    %vm9717 = vcmp.lt.s32.totalorder %v866, 0
    %v9718 = vand.u32 %v866, 2139095040
    %v9719 = vshrl.u32 %v9718, 23
    %v9720 = vsub.s32 %v9719, 127
    %v9721 = vand.u32 2147483647, %v866
    %v9722 = vand.u32 %v9721, 8388607
    %v9723 = vor.u32 %v9722, 8388608
    %v9724 = vsub.s32 0, %v9723
    %v9725 = vadd.s32 %v9720, 1
    %vm9726 = vcmp.gt.s32.totalorder %v9725, 0
    %v9727 = vsel %vm9726, %v9725, 0
    %v9728 = vshrl.u32 %v9727, 5
    %v9729 = vand.u32 %v9727, 31
    %v9730 = vsub.s32 32, %v9729
    %v9731 = vshrl.u32 683565275, %v9730
    %v9732 = vshll.u32 683565275, %v9729
    %v9733 = vshrl.u32 2475754826, %v9730
    %v9734 = vor.u32 %v9732, %v9733
    %v9735 = vshll.u32 2475754826, %v9729
    %v9736 = vshrl.u32 2131351028, %v9730
    %v9737 = vor.u32 %v9735, %v9736
    %v9738 = vshll.u32 2131351028, %v9729
    %v9739 = vshrl.u32 2102212464, %v9730
    %v9740 = vor.u32 %v9738, %v9739
    %v9741 = vshll.u32 2102212464, %v9729
    %v9742 = vshrl.u32 920167782, %v9730
    %v9743 = vor.u32 %v9741, %v9742
    %v9744 = vshll.u32 920167782, %v9729
    %v9745 = vshrl.u32 1326507024, %v9730
    %v9746 = vor.u32 %v9744, %v9745
    %vm9747 = vcmp.lt.s32.totalorder %v9728, 1
    %vm9748 = vcmp.lt.s32.totalorder %v9728, 2
    %vm9749 = vcmp.lt.s32.totalorder %v9728, 3
    %vm9750 = vcmp.lt.s32.totalorder %v9728, 4
    %v9751 = vsel %vm9747, %v9731, %v9734
    %v9752 = vsel %vm9750, %v9740, 2102212464
    %v9753 = vsel %vm9749, %v9737, %v9752
    %v9754 = vsel %vm9748, %v9751, %v9753
    %v9755 = vsel %vm9747, %v9734, %v9737
    %v9756 = vsel %vm9750, %v9743, 920167782
    %v9757 = vsel %vm9749, %v9740, %v9756
    %v9758 = vsel %vm9748, %v9755, %v9757
    %v9759 = vsel %vm9747, %v9737, %v9740
    %v9760 = vsel %vm9750, %v9746, 1326507024
    %v9761 = vsel %vm9749, %v9743, %v9760
    %v9762 = vsel %vm9748, %v9759, %v9761
    %v9763 = vshll.u32 %v9723, 8
    %v9764 = vand.u32 %v9763, 65535
    %v9765 = vshrl.u32 %v9763, 16
    %v9766 = vand.u32 %v9762, 65535
    %v9767 = vshrl.u32 %v9762, 16
    %v9768 = vmul.u32 %v9764, %v9766
    %v9769 = vmul.u32 %v9764, %v9767
    %v9770 = vmul.u32 %v9765, %v9766
    %v9771 = vmul.u32 %v9765, %v9767
    %v9772 = vshll.u32 %v9769, 16
    %v9773 = vshrl.u32 %v9769, 16
    %v9774 = vshll.u32 %v9770, 16
    %v9775 = vshrl.u32 %v9770, 16
    %vm9776 = vc.u32 %v9768, %v9772
    %v9777 = vsel %vm9776, 1, 0
    %v9778 = vadd.s32 %v9768, %v9772
    %v9779 = vadd.s32 %v9771, %v9777
    %vm9780 = vc.u32 %v9778, %v9774
    %v9781 = vsel %vm9780, 1, 0
    %v9782 = vadd.s32 %v9778, %v9774
    %v9783 = vadd.s32 %v9779, %v9781
    %v9784 = vadd.s32 %v9783, %v9773
    %v9785 = vadd.s32 %v9784, %v9775
    %v9786 = vand.u32 %v9763, 65535
    %v9787 = vshrl.u32 %v9763, 16
    %v9788 = vand.u32 %v9758, 65535
    %v9789 = vshrl.u32 %v9758, 16
    %v9790 = vmul.u32 %v9786, %v9788
    %v9791 = vmul.u32 %v9786, %v9789
    %v9792 = vmul.u32 %v9787, %v9788
    %v9793 = vmul.u32 %v9787, %v9789
    %v9794 = vshll.u32 %v9791, 16
    %v9795 = vshrl.u32 %v9791, 16
    %v9796 = vshll.u32 %v9792, 16
    %v9797 = vshrl.u32 %v9792, 16
    %vm9798 = vc.u32 %v9790, %v9794
    %v9799 = vsel %vm9798, 1, 0
    %v9800 = vadd.s32 %v9790, %v9794
    %v9801 = vadd.s32 %v9793, %v9799
    %vm9802 = vc.u32 %v9800, %v9796
    %v9803 = vsel %vm9802, 1, 0
    %v9804 = vadd.s32 %v9800, %v9796
    %v9805 = vadd.s32 %v9801, %v9803
    %v9806 = vadd.s32 %v9805, %v9795
    %v9807 = vadd.s32 %v9806, %v9797
    %v9808 = vmul.u32 %v9763, %v9754
    %v9809 = vadd.s32 %v9785, %v9804
    %vm9810 = vc.u32 %v9785, %v9804
    %v9811 = vadd.s32 %v9807, 1
    %v9812 = vsel %vm9810, %v9811, %v9807
    %v9813 = vadd.s32 %v9808, %v9812
    %v9814 = vadd.s32 %v9813, 536870912
    %v9815 = vshrl.u32 %v9814, 30
    %v9816 = vshll.u32 %v9815, 30
    %v9817 = vsub.s32 %v9813, %v9816
    %vm9818 = vcmp.lt.s32.totalorder %v9817, 0
    %v9819 = vsub.s32 0, %v9817
    %v9820 = vsel %vm9818, %v9819, %v9817
    %v9821 = vclz %v9820
    %v9822 = vsub.s32 %v9821, 2
    %vm9823 = vcmp.gt.s32.totalorder 0, %v9822
    %v9824 = vsel %vm9823, 0, %v9822
    %v9825 = vsub.s32 32, %v9824
    %v9826 = vshll.u32 %v9817, %v9824
    %v9827 = vshrl.u32 %v9809, %v9825
    %v9828 = vor.u32 %v9826, %v9827
    %v9829 = vsub.s32 4294967266, %v9824
    %v9830 = vadd.s32 %v9829, 127
    %v9831 = vshll.u32 %v9830, 23
    %v9832 = vor.u32 4788187, %v9831
    %v9833 = vand.u32 2147483647, %v9832
    %v9835 = vcvt.s32.f32 %v9828
    %v9836 = vmul.f32 %v9835, %v9833
    %v9837 = vxor.u32 %v9836, 2147483648
    %v9838 = vsel %vm9717, %v9837, %v9836
    %v9839 = vsub.s32 4, %v9815
    %v9840 = vsel %vm9717, %v9839, %v9815
    %v9841 = vsel %vm9716, %v866, %v9838
    %v9842 = vsel %vm9716, 0, %v9840
    %v9843 = vmul.f32 %v9841, %v9841
    %v9844 = vmul.f32 %v9843, -0.001358992
    %v9845 = vadd.f32 %v9844, 0.041655596
    %v9846 = vmul.f32 %v9843, %v9845
    %v9847 = vadd.f32 %v9846, -0.4999988
    %v9848 = vmul.f32 %v9843, %v9847
    %v9849 = vadd.f32 1.0, %v9848
    %v9850 = vmul.f32 %v9841, %v9841
    %v9851 = vmul.f32 %v9850, -0.00019511016
    %v9852 = vadd.f32 %v9851, 0.008332121
    %v9853 = vmul.f32 %v9850, %v9852
    %v9854 = vadd.f32 %v9853, -0.16666654
    %v9855 = vmul.f32 %v9850, %v9854
    %v9856 = vadd.f32 %v9855, 1.0
    %v9857 = vmul.f32 %v9856, %v9841
    %vm9858 = vweird.f32 %v866
    %v9859 = vand.u32 %v9842, 3
    %vm9860 = vcmp.lt.s32.totalorder %v9859, 2
    %vm9861 = vcmp.eq.s32.totalorder %v9859, 0
    %v9862 = vxor.u32 %v9857, 2147483648
    %v9863 = vsel %vm9861, %v9849, %v9862
    %vm9864 = vcmp.eq.s32.totalorder %v9859, 2
    %v9865 = vxor.u32 %v9849, 2147483648
    %v9866 = vsel %vm9864, %v9865, %v9857
    %v9867 = vsel %vm9860, %v9863, %v9866
    %v9868 = vsel %vm9858, nan, %v9867
    %v9869 = vand.u32 2147483647, %v867
    %vm9870 = vcmp.le.f32.partialorder %v9869, 0.7853982
    %vm9871 = vcmp.lt.s32.totalorder %v867, 0
    %v9872 = vand.u32 %v867, 2139095040
    %v9873 = vshrl.u32 %v9872, 23
    %v9874 = vsub.s32 %v9873, 127
    %v9875 = vand.u32 2147483647, %v867
    %v9876 = vand.u32 %v9875, 8388607
    %v9877 = vor.u32 %v9876, 8388608
    %v9878 = vsub.s32 0, %v9877
    %v9879 = vadd.s32 %v9874, 1
    %vm9880 = vcmp.gt.s32.totalorder %v9879, 0
    %v9881 = vsel %vm9880, %v9879, 0
    %v9882 = vshrl.u32 %v9881, 5
    %v9883 = vand.u32 %v9881, 31
    %v9884 = vsub.s32 32, %v9883
    %v9885 = vshrl.u32 683565275, %v9884
    %v9886 = vshll.u32 683565275, %v9883
    %v9887 = vshrl.u32 2475754826, %v9884
    %v9888 = vor.u32 %v9886, %v9887
    %v9889 = vshll.u32 2475754826, %v9883
    %v9890 = vshrl.u32 2131351028, %v9884
    %v9891 = vor.u32 %v9889, %v9890
    %v9892 = vshll.u32 2131351028, %v9883
    %v9893 = vshrl.u32 2102212464, %v9884
    %v9894 = vor.u32 %v9892, %v9893
    %v9895 = vshll.u32 2102212464, %v9883
    %v9896 = vshrl.u32 920167782, %v9884
    %v9897 = vor.u32 %v9895, %v9896
    %v9898 = vshll.u32 920167782, %v9883
    %v9899 = vshrl.u32 1326507024, %v9884
    %v9900 = vor.u32 %v9898, %v9899
    %vm9901 = vcmp.lt.s32.totalorder %v9882, 1
    %vm9902 = vcmp.lt.s32.totalorder %v9882, 2
    %vm9903 = vcmp.lt.s32.totalorder %v9882, 3
    %vm9904 = vcmp.lt.s32.totalorder %v9882, 4
    %v9905 = vsel %vm9901, %v9885, %v9888
    %v9906 = vsel %vm9904, %v9894, 2102212464
    %v9907 = vsel %vm9903, %v9891, %v9906
    %v9908 = vsel %vm9902, %v9905, %v9907
    %v9909 = vsel %vm9901, %v9888, %v9891
    %v9910 = vsel %vm9904, %v9897, 920167782
    %v9911 = vsel %vm9903, %v9894, %v9910
    %v9912 = vsel %vm9902, %v9909, %v9911
    %v9913 = vsel %vm9901, %v9891, %v9894
    %v9914 = vsel %vm9904, %v9900, 1326507024
    %v9915 = vsel %vm9903, %v9897, %v9914
    %v9916 = vsel %vm9902, %v9913, %v9915
    %v9917 = vshll.u32 %v9877, 8
    %v9918 = vand.u32 %v9917, 65535
    %v9919 = vshrl.u32 %v9917, 16
    %v9920 = vand.u32 %v9916, 65535
    %v9921 = vshrl.u32 %v9916, 16
    %v9922 = vmul.u32 %v9918, %v9920
    %v9923 = vmul.u32 %v9918, %v9921
    %v9924 = vmul.u32 %v9919, %v9920
    %v9925 = vmul.u32 %v9919, %v9921
    %v9926 = vshll.u32 %v9923, 16
    %v9927 = vshrl.u32 %v9923, 16
    %v9928 = vshll.u32 %v9924, 16
    %v9929 = vshrl.u32 %v9924, 16
    %vm9930 = vc.u32 %v9922, %v9926
    %v9931 = vsel %vm9930, 1, 0
    %v9932 = vadd.s32 %v9922, %v9926
    %v9933 = vadd.s32 %v9925, %v9931
    %vm9934 = vc.u32 %v9932, %v9928
    %v9935 = vsel %vm9934, 1, 0
    %v9936 = vadd.s32 %v9932, %v9928
    %v9937 = vadd.s32 %v9933, %v9935
    %v9938 = vadd.s32 %v9937, %v9927
    %v9939 = vadd.s32 %v9938, %v9929
    %v9940 = vand.u32 %v9917, 65535
    %v9941 = vshrl.u32 %v9917, 16
    %v9942 = vand.u32 %v9912, 65535
    %v9943 = vshrl.u32 %v9912, 16
    %v9944 = vmul.u32 %v9940, %v9942
    %v9945 = vmul.u32 %v9940, %v9943
    %v9946 = vmul.u32 %v9941, %v9942
    %v9947 = vmul.u32 %v9941, %v9943
    %v9948 = vshll.u32 %v9945, 16
    %v9949 = vshrl.u32 %v9945, 16
    %v9950 = vshll.u32 %v9946, 16
    %v9951 = vshrl.u32 %v9946, 16
    %vm9952 = vc.u32 %v9944, %v9948
    %v9953 = vsel %vm9952, 1, 0
    %v9954 = vadd.s32 %v9944, %v9948
    %v9955 = vadd.s32 %v9947, %v9953
    %vm9956 = vc.u32 %v9954, %v9950
    %v9957 = vsel %vm9956, 1, 0
    %v9958 = vadd.s32 %v9954, %v9950
    %v9959 = vadd.s32 %v9955, %v9957
    %v9960 = vadd.s32 %v9959, %v9949
    %v9961 = vadd.s32 %v9960, %v9951
    %v9962 = vmul.u32 %v9917, %v9908
    %v9963 = vadd.s32 %v9939, %v9958
    %vm9964 = vc.u32 %v9939, %v9958
    %v9965 = vadd.s32 %v9961, 1
    %v9966 = vsel %vm9964, %v9965, %v9961
    %v9967 = vadd.s32 %v9962, %v9966
    %v9968 = vadd.s32 %v9967, 536870912
    %v9969 = vshrl.u32 %v9968, 30
    %v9970 = vshll.u32 %v9969, 30
    %v9971 = vsub.s32 %v9967, %v9970
    %vm9972 = vcmp.lt.s32.totalorder %v9971, 0
    %v9973 = vsub.s32 0, %v9971
    %v9974 = vsel %vm9972, %v9973, %v9971
    %v9975 = vclz %v9974
    %v9976 = vsub.s32 %v9975, 2
    %vm9977 = vcmp.gt.s32.totalorder 0, %v9976
    %v9978 = vsel %vm9977, 0, %v9976
    %v9979 = vsub.s32 32, %v9978
    %v9980 = vshll.u32 %v9971, %v9978
    %v9981 = vshrl.u32 %v9963, %v9979
    %v9982 = vor.u32 %v9980, %v9981
    %v9983 = vsub.s32 4294967266, %v9978
    %v9984 = vadd.s32 %v9983, 127
    %v9985 = vshll.u32 %v9984, 23
    %v9986 = vor.u32 4788187, %v9985
    %v9987 = vand.u32 2147483647, %v9986
    %v9989 = vcvt.s32.f32 %v9982
    %v9990 = vmul.f32 %v9989, %v9987
    %v9991 = vxor.u32 %v9990, 2147483648
    %v9992 = vsel %vm9871, %v9991, %v9990
    %v9993 = vsub.s32 4, %v9969
    %v9994 = vsel %vm9871, %v9993, %v9969
    %v9995 = vsel %vm9870, %v867, %v9992
    %v9996 = vsel %vm9870, 0, %v9994
    %v9997 = vmul.f32 %v9995, %v9995
    %v9998 = vmul.f32 %v9997, -0.001358992
    %v9999 = vadd.f32 %v9998, 0.041655596
    %v10000 = vmul.f32 %v9997, %v9999
    %v10001 = vadd.f32 %v10000, -0.4999988
    %v10002 = vmul.f32 %v9997, %v10001
    %v10003 = vadd.f32 1.0, %v10002
    %v10004 = vmul.f32 %v9995, %v9995
    %v10005 = vmul.f32 %v10004, -0.00019511016
    %v10006 = vadd.f32 %v10005, 0.008332121
    %v10007 = vmul.f32 %v10004, %v10006
    %v10008 = vadd.f32 %v10007, -0.16666654
    %v10009 = vmul.f32 %v10004, %v10008
    %v10010 = vadd.f32 %v10009, 1.0
    %v10011 = vmul.f32 %v10010, %v9995
    %vm10012 = vweird.f32 %v867
    %v10013 = vand.u32 %v9996, 3
    %vm10014 = vcmp.lt.s32.totalorder %v10013, 2
    %vm10015 = vcmp.eq.s32.totalorder %v10013, 0
    %v10016 = vxor.u32 %v10011, 2147483648
    %v10017 = vsel %vm10015, %v10003, %v10016
    %vm10018 = vcmp.eq.s32.totalorder %v10013, 2
    %v10019 = vxor.u32 %v10003, 2147483648
    %v10020 = vsel %vm10018, %v10019, %v10011
    %v10021 = vsel %vm10014, %v10017, %v10020
    %v10022 = vsel %vm10012, nan, %v10021
    %v10023 = vand.u32 2147483647, %v868
    %vm10024 = vcmp.le.f32.partialorder %v10023, 0.7853982
    %vm10025 = vcmp.lt.s32.totalorder %v868, 0
    %v10026 = vand.u32 %v868, 2139095040
    %v10027 = vshrl.u32 %v10026, 23
    %v10028 = vsub.s32 %v10027, 127
    %v10029 = vand.u32 2147483647, %v868
    %v10030 = vand.u32 %v10029, 8388607
    %v10031 = vor.u32 %v10030, 8388608
    %v10032 = vsub.s32 0, %v10031
    %v10033 = vadd.s32 %v10028, 1
    %vm10034 = vcmp.gt.s32.totalorder %v10033, 0
    %v10035 = vsel %vm10034, %v10033, 0
    %v10036 = vshrl.u32 %v10035, 5
    %v10037 = vand.u32 %v10035, 31
    %v10038 = vsub.s32 32, %v10037
    %v10039 = vshrl.u32 683565275, %v10038
    %v10040 = vshll.u32 683565275, %v10037
    %v10041 = vshrl.u32 2475754826, %v10038
    %v10042 = vor.u32 %v10040, %v10041
    %v10043 = vshll.u32 2475754826, %v10037
    %v10044 = vshrl.u32 2131351028, %v10038
    %v10045 = vor.u32 %v10043, %v10044
    %v10046 = vshll.u32 2131351028, %v10037
    %v10047 = vshrl.u32 2102212464, %v10038
    %v10048 = vor.u32 %v10046, %v10047
    %v10049 = vshll.u32 2102212464, %v10037
    %v10050 = vshrl.u32 920167782, %v10038
    %v10051 = vor.u32 %v10049, %v10050
    %v10052 = vshll.u32 920167782, %v10037
    %v10053 = vshrl.u32 1326507024, %v10038
    %v10054 = vor.u32 %v10052, %v10053
    %vm10055 = vcmp.lt.s32.totalorder %v10036, 1
    %vm10056 = vcmp.lt.s32.totalorder %v10036, 2
    %vm10057 = vcmp.lt.s32.totalorder %v10036, 3
    %vm10058 = vcmp.lt.s32.totalorder %v10036, 4
    %v10059 = vsel %vm10055, %v10039, %v10042
    %v10060 = vsel %vm10058, %v10048, 2102212464
    %v10061 = vsel %vm10057, %v10045, %v10060
    %v10062 = vsel %vm10056, %v10059, %v10061
    %v10063 = vsel %vm10055, %v10042, %v10045
    %v10064 = vsel %vm10058, %v10051, 920167782
    %v10065 = vsel %vm10057, %v10048, %v10064
    %v10066 = vsel %vm10056, %v10063, %v10065
    %v10067 = vsel %vm10055, %v10045, %v10048
    %v10068 = vsel %vm10058, %v10054, 1326507024
    %v10069 = vsel %vm10057, %v10051, %v10068
    %v10070 = vsel %vm10056, %v10067, %v10069
    %v10071 = vshll.u32 %v10031, 8
    %v10072 = vand.u32 %v10071, 65535
    %v10073 = vshrl.u32 %v10071, 16
    %v10074 = vand.u32 %v10070, 65535
    %v10075 = vshrl.u32 %v10070, 16
    %v10076 = vmul.u32 %v10072, %v10074
    %v10077 = vmul.u32 %v10072, %v10075
    %v10078 = vmul.u32 %v10073, %v10074
    %v10079 = vmul.u32 %v10073, %v10075
    %v10080 = vshll.u32 %v10077, 16
    %v10081 = vshrl.u32 %v10077, 16
    %v10082 = vshll.u32 %v10078, 16
    %v10083 = vshrl.u32 %v10078, 16
    %vm10084 = vc.u32 %v10076, %v10080
    %v10085 = vsel %vm10084, 1, 0
    %v10086 = vadd.s32 %v10076, %v10080
    %v10087 = vadd.s32 %v10079, %v10085
    %vm10088 = vc.u32 %v10086, %v10082
    %v10089 = vsel %vm10088, 1, 0
    %v10090 = vadd.s32 %v10086, %v10082
    %v10091 = vadd.s32 %v10087, %v10089
    %v10092 = vadd.s32 %v10091, %v10081
    %v10093 = vadd.s32 %v10092, %v10083
    %v10094 = vand.u32 %v10071, 65535
    %v10095 = vshrl.u32 %v10071, 16
    %v10096 = vand.u32 %v10066, 65535
    %v10097 = vshrl.u32 %v10066, 16
    %v10098 = vmul.u32 %v10094, %v10096
    %v10099 = vmul.u32 %v10094, %v10097
    %v10100 = vmul.u32 %v10095, %v10096
    %v10101 = vmul.u32 %v10095, %v10097
    %v10102 = vshll.u32 %v10099, 16
    %v10103 = vshrl.u32 %v10099, 16
    %v10104 = vshll.u32 %v10100, 16
    %v10105 = vshrl.u32 %v10100, 16
    %vm10106 = vc.u32 %v10098, %v10102
    %v10107 = vsel %vm10106, 1, 0
    %v10108 = vadd.s32 %v10098, %v10102
    %v10109 = vadd.s32 %v10101, %v10107
    %vm10110 = vc.u32 %v10108, %v10104
    %v10111 = vsel %vm10110, 1, 0
    %v10112 = vadd.s32 %v10108, %v10104
    %v10113 = vadd.s32 %v10109, %v10111
    %v10114 = vadd.s32 %v10113, %v10103
    %v10115 = vadd.s32 %v10114, %v10105
    %v10116 = vmul.u32 %v10071, %v10062
    %v10117 = vadd.s32 %v10093, %v10112
    %vm10118 = vc.u32 %v10093, %v10112
    %v10119 = vadd.s32 %v10115, 1
    %v10120 = vsel %vm10118, %v10119, %v10115
    %v10121 = vadd.s32 %v10116, %v10120
    %v10122 = vadd.s32 %v10121, 536870912
    %v10123 = vshrl.u32 %v10122, 30
    %v10124 = vshll.u32 %v10123, 30
    %v10125 = vsub.s32 %v10121, %v10124
    %vm10126 = vcmp.lt.s32.totalorder %v10125, 0
    %v10127 = vsub.s32 0, %v10125
    %v10128 = vsel %vm10126, %v10127, %v10125
    %v10129 = vclz %v10128
    %v10130 = vsub.s32 %v10129, 2
    %vm10131 = vcmp.gt.s32.totalorder 0, %v10130
    %v10132 = vsel %vm10131, 0, %v10130
    %v10133 = vsub.s32 32, %v10132
    %v10134 = vshll.u32 %v10125, %v10132
    %v10135 = vshrl.u32 %v10117, %v10133
    %v10136 = vor.u32 %v10134, %v10135
    %v10137 = vsub.s32 4294967266, %v10132
    %v10138 = vadd.s32 %v10137, 127
    %v10139 = vshll.u32 %v10138, 23
    %v10140 = vor.u32 4788187, %v10139
    %v10141 = vand.u32 2147483647, %v10140
    %v10143 = vcvt.s32.f32 %v10136
    %v10144 = vmul.f32 %v10143, %v10141
    %v10145 = vxor.u32 %v10144, 2147483648
    %v10146 = vsel %vm10025, %v10145, %v10144
    %v10147 = vsub.s32 4, %v10123
    %v10148 = vsel %vm10025, %v10147, %v10123
    %v10149 = vsel %vm10024, %v868, %v10146
    %v10150 = vsel %vm10024, 0, %v10148
    %v10151 = vmul.f32 %v10149, %v10149
    %v10152 = vmul.f32 %v10151, -0.001358992
    %v10153 = vadd.f32 %v10152, 0.041655596
    %v10154 = vmul.f32 %v10151, %v10153
    %v10155 = vadd.f32 %v10154, -0.4999988
    %v10156 = vmul.f32 %v10151, %v10155
    %v10157 = vadd.f32 1.0, %v10156
    %v10158 = vmul.f32 %v10149, %v10149
    %v10159 = vmul.f32 %v10158, -0.00019511016
    %v10160 = vadd.f32 %v10159, 0.008332121
    %v10161 = vmul.f32 %v10158, %v10160
    %v10162 = vadd.f32 %v10161, -0.16666654
    %v10163 = vmul.f32 %v10158, %v10162
    %v10164 = vadd.f32 %v10163, 1.0
    %v10165 = vmul.f32 %v10164, %v10149
    %vm10166 = vweird.f32 %v868
    %v10167 = vand.u32 %v10150, 3
    %vm10168 = vcmp.lt.s32.totalorder %v10167, 2
    %vm10169 = vcmp.eq.s32.totalorder %v10167, 0
    %v10170 = vxor.u32 %v10165, 2147483648
    %v10171 = vsel %vm10169, %v10157, %v10170
    %vm10172 = vcmp.eq.s32.totalorder %v10167, 2
    %v10173 = vxor.u32 %v10157, 2147483648
    %v10174 = vsel %vm10172, %v10173, %v10165
    %v10175 = vsel %vm10168, %v10171, %v10174
    %v10176 = vsel %vm10166, nan, %v10175
    %v10177 = vand.u32 2147483647, %v869
    %vm10178 = vcmp.le.f32.partialorder %v10177, 0.7853982
    %vm10179 = vcmp.lt.s32.totalorder %v869, 0
    %v10180 = vand.u32 %v869, 2139095040
    %v10181 = vshrl.u32 %v10180, 23
    %v10182 = vsub.s32 %v10181, 127
    %v10183 = vand.u32 2147483647, %v869
    %v10184 = vand.u32 %v10183, 8388607
    %v10185 = vor.u32 %v10184, 8388608
    %v10186 = vsub.s32 0, %v10185
    %v10187 = vadd.s32 %v10182, 1
    %vm10188 = vcmp.gt.s32.totalorder %v10187, 0
    %v10189 = vsel %vm10188, %v10187, 0
    %v10190 = vshrl.u32 %v10189, 5
    %v10191 = vand.u32 %v10189, 31
    %v10192 = vsub.s32 32, %v10191
    %v10193 = vshrl.u32 683565275, %v10192
    %v10194 = vshll.u32 683565275, %v10191
    %v10195 = vshrl.u32 2475754826, %v10192
    %v10196 = vor.u32 %v10194, %v10195
    %v10197 = vshll.u32 2475754826, %v10191
    %v10198 = vshrl.u32 2131351028, %v10192
    %v10199 = vor.u32 %v10197, %v10198
    %v10200 = vshll.u32 2131351028, %v10191
    %v10201 = vshrl.u32 2102212464, %v10192
    %v10202 = vor.u32 %v10200, %v10201
    %v10203 = vshll.u32 2102212464, %v10191
    %v10204 = vshrl.u32 920167782, %v10192
    %v10205 = vor.u32 %v10203, %v10204
    %v10206 = vshll.u32 920167782, %v10191
    %v10207 = vshrl.u32 1326507024, %v10192
    %v10208 = vor.u32 %v10206, %v10207
    %vm10209 = vcmp.lt.s32.totalorder %v10190, 1
    %vm10210 = vcmp.lt.s32.totalorder %v10190, 2
    %vm10211 = vcmp.lt.s32.totalorder %v10190, 3
    %vm10212 = vcmp.lt.s32.totalorder %v10190, 4
    %v10213 = vsel %vm10209, %v10193, %v10196
    %v10214 = vsel %vm10212, %v10202, 2102212464
    %v10215 = vsel %vm10211, %v10199, %v10214
    %v10216 = vsel %vm10210, %v10213, %v10215
    %v10217 = vsel %vm10209, %v10196, %v10199
    %v10218 = vsel %vm10212, %v10205, 920167782
    %v10219 = vsel %vm10211, %v10202, %v10218
    %v10220 = vsel %vm10210, %v10217, %v10219
    %v10221 = vsel %vm10209, %v10199, %v10202
    %v10222 = vsel %vm10212, %v10208, 1326507024
    %v10223 = vsel %vm10211, %v10205, %v10222
    %v10224 = vsel %vm10210, %v10221, %v10223
    %v10225 = vshll.u32 %v10185, 8
    %v10226 = vand.u32 %v10225, 65535
    %v10227 = vshrl.u32 %v10225, 16
    %v10228 = vand.u32 %v10224, 65535
    %v10229 = vshrl.u32 %v10224, 16
    %v10230 = vmul.u32 %v10226, %v10228
    %v10231 = vmul.u32 %v10226, %v10229
    %v10232 = vmul.u32 %v10227, %v10228
    %v10233 = vmul.u32 %v10227, %v10229
    %v10234 = vshll.u32 %v10231, 16
    %v10235 = vshrl.u32 %v10231, 16
    %v10236 = vshll.u32 %v10232, 16
    %v10237 = vshrl.u32 %v10232, 16
    %vm10238 = vc.u32 %v10230, %v10234
    %v10239 = vsel %vm10238, 1, 0
    %v10240 = vadd.s32 %v10230, %v10234
    %v10241 = vadd.s32 %v10233, %v10239
    %vm10242 = vc.u32 %v10240, %v10236
    %v10243 = vsel %vm10242, 1, 0
    %v10244 = vadd.s32 %v10240, %v10236
    %v10245 = vadd.s32 %v10241, %v10243
    %v10246 = vadd.s32 %v10245, %v10235
    %v10247 = vadd.s32 %v10246, %v10237
    %v10248 = vand.u32 %v10225, 65535
    %v10249 = vshrl.u32 %v10225, 16
    %v10250 = vand.u32 %v10220, 65535
    %v10251 = vshrl.u32 %v10220, 16
    %v10252 = vmul.u32 %v10248, %v10250
    %v10253 = vmul.u32 %v10248, %v10251
    %v10254 = vmul.u32 %v10249, %v10250
    %v10255 = vmul.u32 %v10249, %v10251
    %v10256 = vshll.u32 %v10253, 16
    %v10257 = vshrl.u32 %v10253, 16
    %v10258 = vshll.u32 %v10254, 16
    %v10259 = vshrl.u32 %v10254, 16
    %vm10260 = vc.u32 %v10252, %v10256
    %v10261 = vsel %vm10260, 1, 0
    %v10262 = vadd.s32 %v10252, %v10256
    %v10263 = vadd.s32 %v10255, %v10261
    %vm10264 = vc.u32 %v10262, %v10258
    %v10265 = vsel %vm10264, 1, 0
    %v10266 = vadd.s32 %v10262, %v10258
    %v10267 = vadd.s32 %v10263, %v10265
    %v10268 = vadd.s32 %v10267, %v10257
    %v10269 = vadd.s32 %v10268, %v10259
    %v10270 = vmul.u32 %v10225, %v10216
    %v10271 = vadd.s32 %v10247, %v10266
    %vm10272 = vc.u32 %v10247, %v10266
    %v10273 = vadd.s32 %v10269, 1
    %v10274 = vsel %vm10272, %v10273, %v10269
    %v10275 = vadd.s32 %v10270, %v10274
    %v10276 = vadd.s32 %v10275, 536870912
    %v10277 = vshrl.u32 %v10276, 30
    %v10278 = vshll.u32 %v10277, 30
    %v10279 = vsub.s32 %v10275, %v10278
    %vm10280 = vcmp.lt.s32.totalorder %v10279, 0
    %v10281 = vsub.s32 0, %v10279
    %v10282 = vsel %vm10280, %v10281, %v10279
    %v10283 = vclz %v10282
    %v10284 = vsub.s32 %v10283, 2
    %vm10285 = vcmp.gt.s32.totalorder 0, %v10284
    %v10286 = vsel %vm10285, 0, %v10284
    %v10287 = vsub.s32 32, %v10286
    %v10288 = vshll.u32 %v10279, %v10286
    %v10289 = vshrl.u32 %v10271, %v10287
    %v10290 = vor.u32 %v10288, %v10289
    %v10291 = vsub.s32 4294967266, %v10286
    %v10292 = vadd.s32 %v10291, 127
    %v10293 = vshll.u32 %v10292, 23
    %v10294 = vor.u32 4788187, %v10293
    %v10295 = vand.u32 2147483647, %v10294
    %v10297 = vcvt.s32.f32 %v10290
    %v10298 = vmul.f32 %v10297, %v10295
    %v10299 = vxor.u32 %v10298, 2147483648
    %v10300 = vsel %vm10179, %v10299, %v10298
    %v10301 = vsub.s32 4, %v10277
    %v10302 = vsel %vm10179, %v10301, %v10277
    %v10303 = vsel %vm10178, %v869, %v10300
    %v10304 = vsel %vm10178, 0, %v10302
    %v10305 = vmul.f32 %v10303, %v10303
    %v10306 = vmul.f32 %v10305, -0.001358992
    %v10307 = vadd.f32 %v10306, 0.041655596
    %v10308 = vmul.f32 %v10305, %v10307
    %v10309 = vadd.f32 %v10308, -0.4999988
    %v10310 = vmul.f32 %v10305, %v10309
    %v10311 = vadd.f32 1.0, %v10310
    %v10312 = vmul.f32 %v10303, %v10303
    %v10313 = vmul.f32 %v10312, -0.00019511016
    %v10314 = vadd.f32 %v10313, 0.008332121
    %v10315 = vmul.f32 %v10312, %v10314
    %v10316 = vadd.f32 %v10315, -0.16666654
    %v10317 = vmul.f32 %v10312, %v10316
    %v10318 = vadd.f32 %v10317, 1.0
    %v10319 = vmul.f32 %v10318, %v10303
    %vm10320 = vweird.f32 %v869
    %v10321 = vand.u32 %v10304, 3
    %vm10322 = vcmp.lt.s32.totalorder %v10321, 2
    %vm10323 = vcmp.eq.s32.totalorder %v10321, 0
    %v10324 = vxor.u32 %v10319, 2147483648
    %v10325 = vsel %vm10323, %v10311, %v10324
    %vm10326 = vcmp.eq.s32.totalorder %v10321, 2
    %v10327 = vxor.u32 %v10311, 2147483648
    %v10328 = vsel %vm10326, %v10327, %v10319
    %v10329 = vsel %vm10322, %v10325, %v10328
    %v10330 = vsel %vm10320, nan, %v10329
    %v10331 = vand.u32 2147483647, %v870
    %vm10332 = vcmp.le.f32.partialorder %v10331, 0.7853982
    %vm10333 = vcmp.lt.s32.totalorder %v870, 0
    %v10334 = vand.u32 %v870, 2139095040
    %v10335 = vshrl.u32 %v10334, 23
    %v10336 = vsub.s32 %v10335, 127
    %v10337 = vand.u32 2147483647, %v870
    %v10338 = vand.u32 %v10337, 8388607
    %v10339 = vor.u32 %v10338, 8388608
    %v10340 = vsub.s32 0, %v10339
    %v10341 = vadd.s32 %v10336, 1
    %vm10342 = vcmp.gt.s32.totalorder %v10341, 0
    %v10343 = vsel %vm10342, %v10341, 0
    %v10344 = vshrl.u32 %v10343, 5
    %v10345 = vand.u32 %v10343, 31
    %v10346 = vsub.s32 32, %v10345
    %v10347 = vshrl.u32 683565275, %v10346
    %v10348 = vshll.u32 683565275, %v10345
    %v10349 = vshrl.u32 2475754826, %v10346
    %v10350 = vor.u32 %v10348, %v10349
    %v10351 = vshll.u32 2475754826, %v10345
    %v10352 = vshrl.u32 2131351028, %v10346
    %v10353 = vor.u32 %v10351, %v10352
    %v10354 = vshll.u32 2131351028, %v10345
    %v10355 = vshrl.u32 2102212464, %v10346
    %v10356 = vor.u32 %v10354, %v10355
    %v10357 = vshll.u32 2102212464, %v10345
    %v10358 = vshrl.u32 920167782, %v10346
    %v10359 = vor.u32 %v10357, %v10358
    %v10360 = vshll.u32 920167782, %v10345
    %v10361 = vshrl.u32 1326507024, %v10346
    %v10362 = vor.u32 %v10360, %v10361
    %vm10363 = vcmp.lt.s32.totalorder %v10344, 1
    %vm10364 = vcmp.lt.s32.totalorder %v10344, 2
    %vm10365 = vcmp.lt.s32.totalorder %v10344, 3
    %vm10366 = vcmp.lt.s32.totalorder %v10344, 4
    %v10367 = vsel %vm10363, %v10347, %v10350
    %v10368 = vsel %vm10366, %v10356, 2102212464
    %v10369 = vsel %vm10365, %v10353, %v10368
    %v10370 = vsel %vm10364, %v10367, %v10369
    %v10371 = vsel %vm10363, %v10350, %v10353
    %v10372 = vsel %vm10366, %v10359, 920167782
    %v10373 = vsel %vm10365, %v10356, %v10372
    %v10374 = vsel %vm10364, %v10371, %v10373
    %v10375 = vsel %vm10363, %v10353, %v10356
    %v10376 = vsel %vm10366, %v10362, 1326507024
    %v10377 = vsel %vm10365, %v10359, %v10376
    %v10378 = vsel %vm10364, %v10375, %v10377
    %v10379 = vshll.u32 %v10339, 8
    %v10380 = vand.u32 %v10379, 65535
    %v10381 = vshrl.u32 %v10379, 16
    %v10382 = vand.u32 %v10378, 65535
    %v10383 = vshrl.u32 %v10378, 16
    %v10384 = vmul.u32 %v10380, %v10382
    %v10385 = vmul.u32 %v10380, %v10383
    %v10386 = vmul.u32 %v10381, %v10382
    %v10387 = vmul.u32 %v10381, %v10383
    %v10388 = vshll.u32 %v10385, 16
    %v10389 = vshrl.u32 %v10385, 16
    %v10390 = vshll.u32 %v10386, 16
    %v10391 = vshrl.u32 %v10386, 16
    %vm10392 = vc.u32 %v10384, %v10388
    %v10393 = vsel %vm10392, 1, 0
    %v10394 = vadd.s32 %v10384, %v10388
    %v10395 = vadd.s32 %v10387, %v10393
    %vm10396 = vc.u32 %v10394, %v10390
    %v10397 = vsel %vm10396, 1, 0
    %v10398 = vadd.s32 %v10394, %v10390
    %v10399 = vadd.s32 %v10395, %v10397
    %v10400 = vadd.s32 %v10399, %v10389
    %v10401 = vadd.s32 %v10400, %v10391
    %v10402 = vand.u32 %v10379, 65535
    %v10403 = vshrl.u32 %v10379, 16
    %v10404 = vand.u32 %v10374, 65535
    %v10405 = vshrl.u32 %v10374, 16
    %v10406 = vmul.u32 %v10402, %v10404
    %v10407 = vmul.u32 %v10402, %v10405
    %v10408 = vmul.u32 %v10403, %v10404
    %v10409 = vmul.u32 %v10403, %v10405
    %v10410 = vshll.u32 %v10407, 16
    %v10411 = vshrl.u32 %v10407, 16
    %v10412 = vshll.u32 %v10408, 16
    %v10413 = vshrl.u32 %v10408, 16
    %vm10414 = vc.u32 %v10406, %v10410
    %v10415 = vsel %vm10414, 1, 0
    %v10416 = vadd.s32 %v10406, %v10410
    %v10417 = vadd.s32 %v10409, %v10415
    %vm10418 = vc.u32 %v10416, %v10412
    %v10419 = vsel %vm10418, 1, 0
    %v10420 = vadd.s32 %v10416, %v10412
    %v10421 = vadd.s32 %v10417, %v10419
    %v10422 = vadd.s32 %v10421, %v10411
    %v10423 = vadd.s32 %v10422, %v10413
    %v10424 = vmul.u32 %v10379, %v10370
    %v10425 = vadd.s32 %v10401, %v10420
    %vm10426 = vc.u32 %v10401, %v10420
    %v10427 = vadd.s32 %v10423, 1
    %v10428 = vsel %vm10426, %v10427, %v10423
    %v10429 = vadd.s32 %v10424, %v10428
    %v10430 = vadd.s32 %v10429, 536870912
    %v10431 = vshrl.u32 %v10430, 30
    %v10432 = vshll.u32 %v10431, 30
    %v10433 = vsub.s32 %v10429, %v10432
    %vm10434 = vcmp.lt.s32.totalorder %v10433, 0
    %v10435 = vsub.s32 0, %v10433
    %v10436 = vsel %vm10434, %v10435, %v10433
    %v10437 = vclz %v10436
    %v10438 = vsub.s32 %v10437, 2
    %vm10439 = vcmp.gt.s32.totalorder 0, %v10438
    %v10440 = vsel %vm10439, 0, %v10438
    %v10441 = vsub.s32 32, %v10440
    %v10442 = vshll.u32 %v10433, %v10440
    %v10443 = vshrl.u32 %v10425, %v10441
    %v10444 = vor.u32 %v10442, %v10443
    %v10445 = vsub.s32 4294967266, %v10440
    %v10446 = vadd.s32 %v10445, 127
    %v10447 = vshll.u32 %v10446, 23
    %v10448 = vor.u32 4788187, %v10447
    %v10449 = vand.u32 2147483647, %v10448
    %v10451 = vcvt.s32.f32 %v10444
    %v10452 = vmul.f32 %v10451, %v10449
    %v10453 = vxor.u32 %v10452, 2147483648
    %v10454 = vsel %vm10333, %v10453, %v10452
    %v10455 = vsub.s32 4, %v10431
    %v10456 = vsel %vm10333, %v10455, %v10431
    %v10457 = vsel %vm10332, %v870, %v10454
    %v10458 = vsel %vm10332, 0, %v10456
    %v10459 = vmul.f32 %v10457, %v10457
    %v10460 = vmul.f32 %v10459, -0.001358992
    %v10461 = vadd.f32 %v10460, 0.041655596
    %v10462 = vmul.f32 %v10459, %v10461
    %v10463 = vadd.f32 %v10462, -0.4999988
    %v10464 = vmul.f32 %v10459, %v10463
    %v10465 = vadd.f32 1.0, %v10464
    %v10466 = vmul.f32 %v10457, %v10457
    %v10467 = vmul.f32 %v10466, -0.00019511016
    %v10468 = vadd.f32 %v10467, 0.008332121
    %v10469 = vmul.f32 %v10466, %v10468
    %v10470 = vadd.f32 %v10469, -0.16666654
    %v10471 = vmul.f32 %v10466, %v10470
    %v10472 = vadd.f32 %v10471, 1.0
    %v10473 = vmul.f32 %v10472, %v10457
    %vm10474 = vweird.f32 %v870
    %v10475 = vand.u32 %v10458, 3
    %vm10476 = vcmp.lt.s32.totalorder %v10475, 2
    %vm10477 = vcmp.eq.s32.totalorder %v10475, 0
    %v10478 = vxor.u32 %v10473, 2147483648
    %v10479 = vsel %vm10477, %v10465, %v10478
    %vm10480 = vcmp.eq.s32.totalorder %v10475, 2
    %v10481 = vxor.u32 %v10465, 2147483648
    %v10482 = vsel %vm10480, %v10481, %v10473
    %v10483 = vsel %vm10476, %v10479, %v10482
    %v10484 = vsel %vm10474, nan, %v10483
    %v10485 = vand.u32 2147483647, %v871
    %vm10486 = vcmp.le.f32.partialorder %v10485, 0.7853982
    %vm10487 = vcmp.lt.s32.totalorder %v871, 0
    %v10488 = vand.u32 %v871, 2139095040
    %v10489 = vshrl.u32 %v10488, 23
    %v10490 = vsub.s32 %v10489, 127
    %v10491 = vand.u32 2147483647, %v871
    %v10492 = vand.u32 %v10491, 8388607
    %v10493 = vor.u32 %v10492, 8388608
    %v10494 = vsub.s32 0, %v10493
    %v10495 = vadd.s32 %v10490, 1
    %vm10496 = vcmp.gt.s32.totalorder %v10495, 0
    %v10497 = vsel %vm10496, %v10495, 0
    %v10498 = vshrl.u32 %v10497, 5
    %v10499 = vand.u32 %v10497, 31
    %v10500 = vsub.s32 32, %v10499
    %v10501 = vshrl.u32 683565275, %v10500
    %v10502 = vshll.u32 683565275, %v10499
    %v10503 = vshrl.u32 2475754826, %v10500
    %v10504 = vor.u32 %v10502, %v10503
    %v10505 = vshll.u32 2475754826, %v10499
    %v10506 = vshrl.u32 2131351028, %v10500
    %v10507 = vor.u32 %v10505, %v10506
    %v10508 = vshll.u32 2131351028, %v10499
    %v10509 = vshrl.u32 2102212464, %v10500
    %v10510 = vor.u32 %v10508, %v10509
    %v10511 = vshll.u32 2102212464, %v10499
    %v10512 = vshrl.u32 920167782, %v10500
    %v10513 = vor.u32 %v10511, %v10512
    %v10514 = vshll.u32 920167782, %v10499
    %v10515 = vshrl.u32 1326507024, %v10500
    %v10516 = vor.u32 %v10514, %v10515
    %vm10517 = vcmp.lt.s32.totalorder %v10498, 1
    %vm10518 = vcmp.lt.s32.totalorder %v10498, 2
    %vm10519 = vcmp.lt.s32.totalorder %v10498, 3
    %vm10520 = vcmp.lt.s32.totalorder %v10498, 4
    %v10521 = vsel %vm10517, %v10501, %v10504
    %v10522 = vsel %vm10520, %v10510, 2102212464
    %v10523 = vsel %vm10519, %v10507, %v10522
    %v10524 = vsel %vm10518, %v10521, %v10523
    %v10525 = vsel %vm10517, %v10504, %v10507
    %v10526 = vsel %vm10520, %v10513, 920167782
    %v10527 = vsel %vm10519, %v10510, %v10526
    %v10528 = vsel %vm10518, %v10525, %v10527
    %v10529 = vsel %vm10517, %v10507, %v10510
    %v10530 = vsel %vm10520, %v10516, 1326507024
    %v10531 = vsel %vm10519, %v10513, %v10530
    %v10532 = vsel %vm10518, %v10529, %v10531
    %v10533 = vshll.u32 %v10493, 8
    %v10534 = vand.u32 %v10533, 65535
    %v10535 = vshrl.u32 %v10533, 16
    %v10536 = vand.u32 %v10532, 65535
    %v10537 = vshrl.u32 %v10532, 16
    %v10538 = vmul.u32 %v10534, %v10536
    %v10539 = vmul.u32 %v10534, %v10537
    %v10540 = vmul.u32 %v10535, %v10536
    %v10541 = vmul.u32 %v10535, %v10537
    %v10542 = vshll.u32 %v10539, 16
    %v10543 = vshrl.u32 %v10539, 16
    %v10544 = vshll.u32 %v10540, 16
    %v10545 = vshrl.u32 %v10540, 16
    %vm10546 = vc.u32 %v10538, %v10542
    %v10547 = vsel %vm10546, 1, 0
    %v10548 = vadd.s32 %v10538, %v10542
    %v10549 = vadd.s32 %v10541, %v10547
    %vm10550 = vc.u32 %v10548, %v10544
    %v10551 = vsel %vm10550, 1, 0
    %v10552 = vadd.s32 %v10548, %v10544
    %v10553 = vadd.s32 %v10549, %v10551
    %v10554 = vadd.s32 %v10553, %v10543
    %v10555 = vadd.s32 %v10554, %v10545
    %v10556 = vand.u32 %v10533, 65535
    %v10557 = vshrl.u32 %v10533, 16
    %v10558 = vand.u32 %v10528, 65535
    %v10559 = vshrl.u32 %v10528, 16
    %v10560 = vmul.u32 %v10556, %v10558
    %v10561 = vmul.u32 %v10556, %v10559
    %v10562 = vmul.u32 %v10557, %v10558
    %v10563 = vmul.u32 %v10557, %v10559
    %v10564 = vshll.u32 %v10561, 16
    %v10565 = vshrl.u32 %v10561, 16
    %v10566 = vshll.u32 %v10562, 16
    %v10567 = vshrl.u32 %v10562, 16
    %vm10568 = vc.u32 %v10560, %v10564
    %v10569 = vsel %vm10568, 1, 0
    %v10570 = vadd.s32 %v10560, %v10564
    %v10571 = vadd.s32 %v10563, %v10569
    %vm10572 = vc.u32 %v10570, %v10566
    %v10573 = vsel %vm10572, 1, 0
    %v10574 = vadd.s32 %v10570, %v10566
    %v10575 = vadd.s32 %v10571, %v10573
    %v10576 = vadd.s32 %v10575, %v10565
    %v10577 = vadd.s32 %v10576, %v10567
    %v10578 = vmul.u32 %v10533, %v10524
    %v10579 = vadd.s32 %v10555, %v10574
    %vm10580 = vc.u32 %v10555, %v10574
    %v10581 = vadd.s32 %v10577, 1
    %v10582 = vsel %vm10580, %v10581, %v10577
    %v10583 = vadd.s32 %v10578, %v10582
    %v10584 = vadd.s32 %v10583, 536870912
    %v10585 = vshrl.u32 %v10584, 30
    %v10586 = vshll.u32 %v10585, 30
    %v10587 = vsub.s32 %v10583, %v10586
    %vm10588 = vcmp.lt.s32.totalorder %v10587, 0
    %v10589 = vsub.s32 0, %v10587
    %v10590 = vsel %vm10588, %v10589, %v10587
    %v10591 = vclz %v10590
    %v10592 = vsub.s32 %v10591, 2
    %vm10593 = vcmp.gt.s32.totalorder 0, %v10592
    %v10594 = vsel %vm10593, 0, %v10592
    %v10595 = vsub.s32 32, %v10594
    %v10596 = vshll.u32 %v10587, %v10594
    %v10597 = vshrl.u32 %v10579, %v10595
    %v10598 = vor.u32 %v10596, %v10597
    %v10599 = vsub.s32 4294967266, %v10594
    %v10600 = vadd.s32 %v10599, 127
    %v10601 = vshll.u32 %v10600, 23
    %v10602 = vor.u32 4788187, %v10601
    %v10603 = vand.u32 2147483647, %v10602
    %v10605 = vcvt.s32.f32 %v10598
    %v10606 = vmul.f32 %v10605, %v10603
    %v10607 = vxor.u32 %v10606, 2147483648
    %v10608 = vsel %vm10487, %v10607, %v10606
    %v10609 = vsub.s32 4, %v10585
    %v10610 = vsel %vm10487, %v10609, %v10585
    %v10611 = vsel %vm10486, %v871, %v10608
    %v10612 = vsel %vm10486, 0, %v10610
    %v10613 = vmul.f32 %v10611, %v10611
    %v10614 = vmul.f32 %v10613, -0.001358992
    %v10615 = vadd.f32 %v10614, 0.041655596
    %v10616 = vmul.f32 %v10613, %v10615
    %v10617 = vadd.f32 %v10616, -0.4999988
    %v10618 = vmul.f32 %v10613, %v10617
    %v10619 = vadd.f32 1.0, %v10618
    %v10620 = vmul.f32 %v10611, %v10611
    %v10621 = vmul.f32 %v10620, -0.00019511016
    %v10622 = vadd.f32 %v10621, 0.008332121
    %v10623 = vmul.f32 %v10620, %v10622
    %v10624 = vadd.f32 %v10623, -0.16666654
    %v10625 = vmul.f32 %v10620, %v10624
    %v10626 = vadd.f32 %v10625, 1.0
    %v10627 = vmul.f32 %v10626, %v10611
    %vm10628 = vweird.f32 %v871
    %v10629 = vand.u32 %v10612, 3
    %vm10630 = vcmp.lt.s32.totalorder %v10629, 2
    %vm10631 = vcmp.eq.s32.totalorder %v10629, 0
    %v10632 = vxor.u32 %v10627, 2147483648
    %v10633 = vsel %vm10631, %v10619, %v10632
    %vm10634 = vcmp.eq.s32.totalorder %v10629, 2
    %v10635 = vxor.u32 %v10619, 2147483648
    %v10636 = vsel %vm10634, %v10635, %v10627
    %v10637 = vsel %vm10630, %v10633, %v10636
    %v10638 = vsel %vm10628, nan, %v10637
    %v10639 = vand.u32 2147483647, %v872
    %vm10640 = vcmp.le.f32.partialorder %v10639, 0.7853982
    %vm10641 = vcmp.lt.s32.totalorder %v872, 0
    %v10642 = vand.u32 %v872, 2139095040
    %v10643 = vshrl.u32 %v10642, 23
    %v10644 = vsub.s32 %v10643, 127
    %v10645 = vand.u32 2147483647, %v872
    %v10646 = vand.u32 %v10645, 8388607
    %v10647 = vor.u32 %v10646, 8388608
    %v10648 = vsub.s32 0, %v10647
    %v10649 = vadd.s32 %v10644, 1
    %vm10650 = vcmp.gt.s32.totalorder %v10649, 0
    %v10651 = vsel %vm10650, %v10649, 0
    %v10652 = vshrl.u32 %v10651, 5
    %v10653 = vand.u32 %v10651, 31
    %v10654 = vsub.s32 32, %v10653
    %v10655 = vshrl.u32 683565275, %v10654
    %v10656 = vshll.u32 683565275, %v10653
    %v10657 = vshrl.u32 2475754826, %v10654
    %v10658 = vor.u32 %v10656, %v10657
    %v10659 = vshll.u32 2475754826, %v10653
    %v10660 = vshrl.u32 2131351028, %v10654
    %v10661 = vor.u32 %v10659, %v10660
    %v10662 = vshll.u32 2131351028, %v10653
    %v10663 = vshrl.u32 2102212464, %v10654
    %v10664 = vor.u32 %v10662, %v10663
    %v10665 = vshll.u32 2102212464, %v10653
    %v10666 = vshrl.u32 920167782, %v10654
    %v10667 = vor.u32 %v10665, %v10666
    %v10668 = vshll.u32 920167782, %v10653
    %v10669 = vshrl.u32 1326507024, %v10654
    %v10670 = vor.u32 %v10668, %v10669
    %vm10671 = vcmp.lt.s32.totalorder %v10652, 1
    %vm10672 = vcmp.lt.s32.totalorder %v10652, 2
    %vm10673 = vcmp.lt.s32.totalorder %v10652, 3
    %vm10674 = vcmp.lt.s32.totalorder %v10652, 4
    %v10675 = vsel %vm10671, %v10655, %v10658
    %v10676 = vsel %vm10674, %v10664, 2102212464
    %v10677 = vsel %vm10673, %v10661, %v10676
    %v10678 = vsel %vm10672, %v10675, %v10677
    %v10679 = vsel %vm10671, %v10658, %v10661
    %v10680 = vsel %vm10674, %v10667, 920167782
    %v10681 = vsel %vm10673, %v10664, %v10680
    %v10682 = vsel %vm10672, %v10679, %v10681
    %v10683 = vsel %vm10671, %v10661, %v10664
    %v10684 = vsel %vm10674, %v10670, 1326507024
    %v10685 = vsel %vm10673, %v10667, %v10684
    %v10686 = vsel %vm10672, %v10683, %v10685
    %v10687 = vshll.u32 %v10647, 8
    %v10688 = vand.u32 %v10687, 65535
    %v10689 = vshrl.u32 %v10687, 16
    %v10690 = vand.u32 %v10686, 65535
    %v10691 = vshrl.u32 %v10686, 16
    %v10692 = vmul.u32 %v10688, %v10690
    %v10693 = vmul.u32 %v10688, %v10691
    %v10694 = vmul.u32 %v10689, %v10690
    %v10695 = vmul.u32 %v10689, %v10691
    %v10696 = vshll.u32 %v10693, 16
    %v10697 = vshrl.u32 %v10693, 16
    %v10698 = vshll.u32 %v10694, 16
    %v10699 = vshrl.u32 %v10694, 16
    %vm10700 = vc.u32 %v10692, %v10696
    %v10701 = vsel %vm10700, 1, 0
    %v10702 = vadd.s32 %v10692, %v10696
    %v10703 = vadd.s32 %v10695, %v10701
    %vm10704 = vc.u32 %v10702, %v10698
    %v10705 = vsel %vm10704, 1, 0
    %v10706 = vadd.s32 %v10702, %v10698
    %v10707 = vadd.s32 %v10703, %v10705
    %v10708 = vadd.s32 %v10707, %v10697
    %v10709 = vadd.s32 %v10708, %v10699
    %v10710 = vand.u32 %v10687, 65535
    %v10711 = vshrl.u32 %v10687, 16
    %v10712 = vand.u32 %v10682, 65535
    %v10713 = vshrl.u32 %v10682, 16
    %v10714 = vmul.u32 %v10710, %v10712
    %v10715 = vmul.u32 %v10710, %v10713
    %v10716 = vmul.u32 %v10711, %v10712
    %v10717 = vmul.u32 %v10711, %v10713
    %v10718 = vshll.u32 %v10715, 16
    %v10719 = vshrl.u32 %v10715, 16
    %v10720 = vshll.u32 %v10716, 16
    %v10721 = vshrl.u32 %v10716, 16
    %vm10722 = vc.u32 %v10714, %v10718
    %v10723 = vsel %vm10722, 1, 0
    %v10724 = vadd.s32 %v10714, %v10718
    %v10725 = vadd.s32 %v10717, %v10723
    %vm10726 = vc.u32 %v10724, %v10720
    %v10727 = vsel %vm10726, 1, 0
    %v10728 = vadd.s32 %v10724, %v10720
    %v10729 = vadd.s32 %v10725, %v10727
    %v10730 = vadd.s32 %v10729, %v10719
    %v10731 = vadd.s32 %v10730, %v10721
    %v10732 = vmul.u32 %v10687, %v10678
    %v10733 = vadd.s32 %v10709, %v10728
    %vm10734 = vc.u32 %v10709, %v10728
    %v10735 = vadd.s32 %v10731, 1
    %v10736 = vsel %vm10734, %v10735, %v10731
    %v10737 = vadd.s32 %v10732, %v10736
    %v10738 = vadd.s32 %v10737, 536870912
    %v10739 = vshrl.u32 %v10738, 30
    %v10740 = vshll.u32 %v10739, 30
    %v10741 = vsub.s32 %v10737, %v10740
    %vm10742 = vcmp.lt.s32.totalorder %v10741, 0
    %v10743 = vsub.s32 0, %v10741
    %v10744 = vsel %vm10742, %v10743, %v10741
    %v10745 = vclz %v10744
    %v10746 = vsub.s32 %v10745, 2
    %vm10747 = vcmp.gt.s32.totalorder 0, %v10746
    %v10748 = vsel %vm10747, 0, %v10746
    %v10749 = vsub.s32 32, %v10748
    %v10750 = vshll.u32 %v10741, %v10748
    %v10751 = vshrl.u32 %v10733, %v10749
    %v10752 = vor.u32 %v10750, %v10751
    %v10753 = vsub.s32 4294967266, %v10748
    %v10754 = vadd.s32 %v10753, 127
    %v10755 = vshll.u32 %v10754, 23
    %v10756 = vor.u32 4788187, %v10755
    %v10757 = vand.u32 2147483647, %v10756
    %v10759 = vcvt.s32.f32 %v10752
    %v10760 = vmul.f32 %v10759, %v10757
    %v10761 = vxor.u32 %v10760, 2147483648
    %v10762 = vsel %vm10641, %v10761, %v10760
    %v10763 = vsub.s32 4, %v10739
    %v10764 = vsel %vm10641, %v10763, %v10739
    %v10765 = vsel %vm10640, %v872, %v10762
    %v10766 = vsel %vm10640, 0, %v10764
    %v10767 = vmul.f32 %v10765, %v10765
    %v10768 = vmul.f32 %v10767, -0.001358992
    %v10769 = vadd.f32 %v10768, 0.041655596
    %v10770 = vmul.f32 %v10767, %v10769
    %v10771 = vadd.f32 %v10770, -0.4999988
    %v10772 = vmul.f32 %v10767, %v10771
    %v10773 = vadd.f32 1.0, %v10772
    %v10774 = vmul.f32 %v10765, %v10765
    %v10775 = vmul.f32 %v10774, -0.00019511016
    %v10776 = vadd.f32 %v10775, 0.008332121
    %v10777 = vmul.f32 %v10774, %v10776
    %v10778 = vadd.f32 %v10777, -0.16666654
    %v10779 = vmul.f32 %v10774, %v10778
    %v10780 = vadd.f32 %v10779, 1.0
    %v10781 = vmul.f32 %v10780, %v10765
    %vm10782 = vweird.f32 %v872
    %v10783 = vand.u32 %v10766, 3
    %vm10784 = vcmp.lt.s32.totalorder %v10783, 2
    %vm10785 = vcmp.eq.s32.totalorder %v10783, 0
    %v10786 = vxor.u32 %v10781, 2147483648
    %v10787 = vsel %vm10785, %v10773, %v10786
    %vm10788 = vcmp.eq.s32.totalorder %v10783, 2
    %v10789 = vxor.u32 %v10773, 2147483648
    %v10790 = vsel %vm10788, %v10789, %v10781
    %v10791 = vsel %vm10784, %v10787, %v10790
    %v10792 = vsel %vm10782, nan, %v10791
    %10793 = vmatpush.msra.mxu0 %v904
    %10794 = vmatpush.msra.mxu0 %v903
    %10795 = vmatpush.msra.mxu0 %v902
    %10796 = vmatpush.msra.mxu0 %v901
    %10797 = vmatpush.msra.mxu0 %v900
    %10798 = vmatpush.msra.mxu0 %v899
    %10799 = vmatpush.msra.mxu0 %v898
    %10800 = vmatpush.msra.mxu0 %v897
    %10801 = vmatpush.msra.mxu0 %v896
    %10802 = vmatpush.msra.mxu0 %v895
    %10803 = vmatpush.msra.mxu0 %v894
    %10804 = vmatpush.msra.mxu0 %v893
    %10805 = vmatpush.msra.mxu0 %v892
    %10806 = vmatpush.msra.mxu0 %v891
    %10807 = vmatpush.msra.mxu0 %v890
    %10808 = vmatpush.msra.mxu0 %v889
    %10809 = vmatmul.f32.gmra.mxu0 %v6018
    %v10810 = vpop.f32.mrf.mxu0
    %v10811 = vadd.f32 0.0, %v10810
    %10812 = vmatmul.f32.gmra.mxu0 %v6172
    %v10813 = vpop.f32.mrf.mxu0
    %v10814 = vadd.f32 0.0, %v10813
    %10815 = vmatmul.f32.gmra.mxu0 %v6326
    %v10816 = vpop.f32.mrf.mxu0
    %v10817 = vadd.f32 0.0, %v10816
    %10818 = vmatmul.f32.gmra.mxu0 %v6480
    %v10819 = vpop.f32.mrf.mxu0
    %v10820 = vadd.f32 0.0, %v10819
    %10821 = vmatmul.f32.gmra.mxu0 %v6634
    %v10822 = vpop.f32.mrf.mxu0
    %v10823 = vadd.f32 0.0, %v10822
    %10824 = vmatmul.f32.gmra.mxu0 %v6788
    %v10825 = vpop.f32.mrf.mxu0
    %v10826 = vadd.f32 0.0, %v10825
    %10827 = vmatmul.f32.gmra.mxu0 %v6942
    %v10828 = vpop.f32.mrf.mxu0
    %v10829 = vadd.f32 0.0, %v10828
    %10830 = vmatmul.f32.gmra.mxu0 %v7096
    %v10831 = vpop.f32.mrf.mxu0
    %v10832 = vadd.f32 0.0, %v10831
    %10833 = vmatmul.f32.gmra.mxu0 %v7250
    %v10834 = vpop.f32.mrf.mxu0
    %v10835 = vadd.f32 0.0, %v10834
    %10836 = vmatmul.f32.gmra.mxu0 %v7404
    %v10837 = vpop.f32.mrf.mxu0
    %v10838 = vadd.f32 0.0, %v10837
    %10839 = vmatmul.f32.gmra.mxu0 %v7558
    %v10840 = vpop.f32.mrf.mxu0
    %v10841 = vadd.f32 0.0, %v10840
    %10842 = vmatmul.f32.gmra.mxu0 %v7712
    %v10843 = vpop.f32.mrf.mxu0
    %v10844 = vadd.f32 0.0, %v10843
    %10845 = vmatmul.f32.gmra.mxu0 %v7866
    %v10846 = vpop.f32.mrf.mxu0
    %v10847 = vadd.f32 0.0, %v10846
    %10848 = vmatmul.f32.gmra.mxu0 %v8020
    %v10849 = vpop.f32.mrf.mxu0
    %v10850 = vadd.f32 0.0, %v10849
    %10851 = vmatmul.f32.gmra.mxu0 %v8174
    %v10852 = vpop.f32.mrf.mxu0
    %v10853 = vadd.f32 0.0, %v10852
    %10854 = vmatmul.f32.gmra.mxu0 %v8328
    %v10855 = vpop.f32.mrf.mxu0
    %v10856 = vadd.f32 0.0, %v10855
    %10857 = vmatmul.f32.gmra.mxu0 %v8482
    %v10858 = vpop.f32.mrf.mxu0
    %v10859 = vadd.f32 0.0, %v10858
    %10860 = vmatmul.f32.gmra.mxu0 %v8636
    %v10861 = vpop.f32.mrf.mxu0
    %v10862 = vadd.f32 0.0, %v10861
    %10863 = vmatmul.f32.gmra.mxu0 %v8790
    %v10864 = vpop.f32.mrf.mxu0
    %v10865 = vadd.f32 0.0, %v10864
    %10866 = vmatmul.f32.gmra.mxu0 %v8944
    %v10867 = vpop.f32.mrf.mxu0
    %v10868 = vadd.f32 0.0, %v10867
    %10869 = vmatmul.f32.gmra.mxu0 %v9098
    %v10870 = vpop.f32.mrf.mxu0
    %v10871 = vadd.f32 0.0, %v10870
    %10872 = vmatmul.f32.gmra.mxu0 %v9252
    %v10873 = vpop.f32.mrf.mxu0
    %v10874 = vadd.f32 0.0, %v10873
    %10875 = vmatmul.f32.gmra.mxu0 %v9406
    %v10876 = vpop.f32.mrf.mxu0
    %v10877 = vadd.f32 0.0, %v10876
    %10878 = vmatmul.f32.gmra.mxu0 %v9560
    %v10879 = vpop.f32.mrf.mxu0
    %v10880 = vadd.f32 0.0, %v10879
    %10881 = vmatmul.f32.gmra.mxu0 %v9714
    %v10882 = vpop.f32.mrf.mxu0
    %v10883 = vadd.f32 0.0, %v10882
    %10884 = vmatmul.f32.gmra.mxu0 %v9868
    %v10885 = vpop.f32.mrf.mxu0
    %v10886 = vadd.f32 0.0, %v10885
    %10887 = vmatmul.f32.gmra.mxu0 %v10022
    %v10888 = vpop.f32.mrf.mxu0
    %v10889 = vadd.f32 0.0, %v10888
    %10890 = vmatmul.f32.gmra.mxu0 %v10176
    %v10891 = vpop.f32.mrf.mxu0
    %v10892 = vadd.f32 0.0, %v10891
    %10893 = vmatmul.f32.gmra.mxu0 %v10330
    %v10894 = vpop.f32.mrf.mxu0
    %v10895 = vadd.f32 0.0, %v10894
    %10896 = vmatmul.f32.gmra.mxu0 %v10484
    %v10897 = vpop.f32.mrf.mxu0
    %v10898 = vadd.f32 0.0, %v10897
    %10899 = vmatmul.f32.gmra.mxu0 %v10638
    %v10900 = vpop.f32.mrf.mxu0
    %v10901 = vadd.f32 0.0, %v10900
    %10902 = vmatmul.f32.gmra.mxu0 %v10792
    %v10903 = vpop.f32.mrf.mxu0
    %v10904 = vadd.f32 0.0, %v10903
    %10905 = vdwg.mxu0
    %10906 = vmatpush.msra.mxu0 %v888
    %10907 = vmatpush.msra.mxu0 %v887
    %10908 = vmatpush.msra.mxu0 %v886
    %10909 = vmatpush.msra.mxu0 %v885
    %10910 = vmatpush.msra.mxu0 %v884
    %10911 = vmatpush.msra.mxu0 %v883
    %10912 = vmatpush.msra.mxu0 %v882
    %10913 = vmatpush.msra.mxu0 %v881
    %10914 = vmatpush.msra.mxu0 %v880
    %10915 = vmatpush.msra.mxu0 %v879
    %10916 = vmatpush.msra.mxu0 %v878
    %10917 = vmatpush.msra.mxu0 %v877
    %10918 = vmatpush.msra.mxu0 %v876
    %10919 = vmatpush.msra.mxu0 %v875
    %10920 = vmatpush.msra.mxu0 %v874
    %10921 = vmatpush.msra.mxu0 %v873
    %10922 = vmatmul.f32.gmra.mxu0 %v1059
    %v10923 = vpop.f32.mrf.mxu0
    %v10924 = vadd.f32 %v10811, %v10923
    %10925 = vmatmul.f32.gmra.mxu0 %v1214
    %v10926 = vpop.f32.mrf.mxu0
    %v10927 = vadd.f32 %v10814, %v10926
    %10928 = vmatmul.f32.gmra.mxu0 %v1369
    %v10929 = vpop.f32.mrf.mxu0
    %v10930 = vadd.f32 %v10817, %v10929
    %10931 = vmatmul.f32.gmra.mxu0 %v1524
    %v10932 = vpop.f32.mrf.mxu0
    %v10933 = vadd.f32 %v10820, %v10932
    %10934 = vmatmul.f32.gmra.mxu0 %v1679
    %v10935 = vpop.f32.mrf.mxu0
    %v10936 = vadd.f32 %v10823, %v10935
    %10937 = vmatmul.f32.gmra.mxu0 %v1834
    %v10938 = vpop.f32.mrf.mxu0
    %v10939 = vadd.f32 %v10826, %v10938
    %10940 = vmatmul.f32.gmra.mxu0 %v1989
    %v10941 = vpop.f32.mrf.mxu0
    %v10942 = vadd.f32 %v10829, %v10941
    %10943 = vmatmul.f32.gmra.mxu0 %v2144
    %v10944 = vpop.f32.mrf.mxu0
    %v10945 = vadd.f32 %v10832, %v10944
    %10946 = vmatmul.f32.gmra.mxu0 %v2299
    %v10947 = vpop.f32.mrf.mxu0
    %v10948 = vadd.f32 %v10835, %v10947
    %10949 = vmatmul.f32.gmra.mxu0 %v2454
    %v10950 = vpop.f32.mrf.mxu0
    %v10951 = vadd.f32 %v10838, %v10950
    %10952 = vmatmul.f32.gmra.mxu0 %v2609
    %v10953 = vpop.f32.mrf.mxu0
    %v10954 = vadd.f32 %v10841, %v10953
    %10955 = vmatmul.f32.gmra.mxu0 %v2764
    %v10956 = vpop.f32.mrf.mxu0
    %v10957 = vadd.f32 %v10844, %v10956
    %10958 = vmatmul.f32.gmra.mxu0 %v2919
    %v10959 = vpop.f32.mrf.mxu0
    %v10960 = vadd.f32 %v10847, %v10959
    %10961 = vmatmul.f32.gmra.mxu0 %v3074
    %v10962 = vpop.f32.mrf.mxu0
    %v10963 = vadd.f32 %v10850, %v10962
    %10964 = vmatmul.f32.gmra.mxu0 %v3229
    %v10965 = vpop.f32.mrf.mxu0
    %v10966 = vadd.f32 %v10853, %v10965
    %10967 = vmatmul.f32.gmra.mxu0 %v3384
    %v10968 = vpop.f32.mrf.mxu0
    %v10969 = vadd.f32 %v10856, %v10968
    %10970 = vmatmul.f32.gmra.mxu0 %v3539
    %v10971 = vpop.f32.mrf.mxu0
    %v10972 = vadd.f32 %v10859, %v10971
    %10973 = vmatmul.f32.gmra.mxu0 %v3694
    %v10974 = vpop.f32.mrf.mxu0
    %v10975 = vadd.f32 %v10862, %v10974
    %10976 = vmatmul.f32.gmra.mxu0 %v3849
    %v10977 = vpop.f32.mrf.mxu0
    %v10978 = vadd.f32 %v10865, %v10977
    %10979 = vmatmul.f32.gmra.mxu0 %v4004
    %v10980 = vpop.f32.mrf.mxu0
    %v10981 = vadd.f32 %v10868, %v10980
    %10982 = vmatmul.f32.gmra.mxu0 %v4159
    %v10983 = vpop.f32.mrf.mxu0
    %v10984 = vadd.f32 %v10871, %v10983
    %10985 = vmatmul.f32.gmra.mxu0 %v4314
    %v10986 = vpop.f32.mrf.mxu0
    %v10987 = vadd.f32 %v10874, %v10986
    %10988 = vmatmul.f32.gmra.mxu0 %v4469
    %v10989 = vpop.f32.mrf.mxu0
    %v10990 = vadd.f32 %v10877, %v10989
    %10991 = vmatmul.f32.gmra.mxu0 %v4624
    %v10992 = vpop.f32.mrf.mxu0
    %v10993 = vadd.f32 %v10880, %v10992
    %10994 = vmatmul.f32.gmra.mxu0 %v4779
    %v10995 = vpop.f32.mrf.mxu0
    %v10996 = vadd.f32 %v10883, %v10995
    %10997 = vmatmul.f32.gmra.mxu0 %v4934
    %v10998 = vpop.f32.mrf.mxu0
    %v10999 = vadd.f32 %v10886, %v10998
    %11000 = vmatmul.f32.gmra.mxu0 %v5089
    %v11001 = vpop.f32.mrf.mxu0
    %v11002 = vadd.f32 %v10889, %v11001
    %11003 = vmatmul.f32.gmra.mxu0 %v5244
    %v11004 = vpop.f32.mrf.mxu0
    %v11005 = vadd.f32 %v10892, %v11004
    %11006 = vmatmul.f32.gmra.mxu0 %v5399
    %v11007 = vpop.f32.mrf.mxu0
    %v11008 = vadd.f32 %v10895, %v11007
    %11009 = vmatmul.f32.gmra.mxu0 %v5554
    %v11010 = vpop.f32.mrf.mxu0
    %v11011 = vadd.f32 %v10898, %v11010
    %11012 = vmatmul.f32.gmra.mxu0 %v5709
    %v11013 = vpop.f32.mrf.mxu0
    %v11014 = vadd.f32 %v10901, %v11013
    %11015 = vmatmul.f32.gmra.mxu0 %v5864
    %v11016 = vpop.f32.mrf.mxu0
    %v11017 = vadd.f32 %v10904, %v11016
    %11018 = vdwg.mxu0
    %v11019 = vld [vmem:[%s4] sm:$0x1]
    %v11021 = vperm.slane %v11019, 0
    %v11023 = vadd.f32 %v10924, %v11021
    %v11024 = vadd.f32 %v10927, %v11021
    %v11025 = vadd.f32 %v10930, %v11021
    %v11026 = vadd.f32 %v10933, %v11021
    %v11027 = vadd.f32 %v10936, %v11021
    %v11028 = vadd.f32 %v10939, %v11021
    %v11029 = vadd.f32 %v10942, %v11021
    %v11030 = vadd.f32 %v10945, %v11021
    %v11031 = vadd.f32 %v10948, %v11021
    %v11032 = vadd.f32 %v10951, %v11021
    %v11033 = vadd.f32 %v10954, %v11021
    %v11034 = vadd.f32 %v10957, %v11021
    %v11035 = vadd.f32 %v10960, %v11021
    %v11036 = vadd.f32 %v10963, %v11021
    %v11037 = vadd.f32 %v10966, %v11021
    %v11038 = vadd.f32 %v10969, %v11021
    %v11039 = vadd.f32 %v10972, %v11021
    %v11040 = vadd.f32 %v10975, %v11021
    %v11041 = vadd.f32 %v10978, %v11021
    %v11042 = vadd.f32 %v10981, %v11021
    %v11043 = vadd.f32 %v10984, %v11021
    %v11044 = vadd.f32 %v10987, %v11021
    %v11045 = vadd.f32 %v10990, %v11021
    %v11046 = vadd.f32 %v10993, %v11021
    %v11047 = vadd.f32 %v10996, %v11021
    %v11048 = vadd.f32 %v10999, %v11021
    %v11049 = vadd.f32 %v11002, %v11021
    %v11050 = vadd.f32 %v11005, %v11021
    %v11051 = vadd.f32 %v11008, %v11021
    %v11052 = vadd.f32 %v11011, %v11021
    %v11053 = vadd.f32 %v11014, %v11021
    %v11054 = vadd.f32 %v11017, %v11021
    %v11055 = vtanh.pop %v11023
    %v11056 = vtanh.pop %v11024
    %v11057 = vtanh.pop %v11025
    %v11058 = vtanh.pop %v11026
    %v11059 = vtanh.pop %v11027
    %v11060 = vtanh.pop %v11028
    %v11061 = vtanh.pop %v11029
    %v11062 = vtanh.pop %v11030
    %v11063 = vtanh.pop %v11031
    %v11064 = vtanh.pop %v11032
    %v11065 = vtanh.pop %v11033
    %v11066 = vtanh.pop %v11034
    %v11067 = vtanh.pop %v11035
    %v11068 = vtanh.pop %v11036
    %v11069 = vtanh.pop %v11037
    %v11070 = vtanh.pop %v11038
    %v11071 = vtanh.pop %v11039
    %v11072 = vtanh.pop %v11040
    %v11073 = vtanh.pop %v11041
    %v11074 = vtanh.pop %v11042
    %v11075 = vtanh.pop %v11043
    %v11076 = vtanh.pop %v11044
    %v11077 = vtanh.pop %v11045
    %v11078 = vtanh.pop %v11046
    %v11079 = vtanh.pop %v11047
    %v11080 = vtanh.pop %v11048
    %v11081 = vtanh.pop %v11049
    %v11082 = vtanh.pop %v11050
    %v11083 = vtanh.pop %v11051
    %v11084 = vtanh.pop %v11052
    %v11085 = vtanh.pop %v11053
    %v11086 = vtanh.pop %v11054
    %v11087 = vld [vmem:[%s5] sm:$0xff]
    %v11088 = vld [vmem:[%s5 + $0x8] sm:$0xff]
    %v11089 = vld [vmem:[%s5 + $0x10] sm:$0xff]
    %v11090 = vld [vmem:[%s5 + $0x18] sm:$0xff]
    %v11091 = vld [vmem:[%s5 + $0x20] sm:$0xff]
    %v11092 = vld [vmem:[%s5 + $0x28] sm:$0xff]
    %v11093 = vld [vmem:[%s5 + $0x30] sm:$0xff]
    %v11094 = vld [vmem:[%s5 + $0x38] sm:$0xff]
    %v11095 = vld [vmem:[%s5 + $0x40] sm:$0xff]
    %v11096 = vld [vmem:[%s5 + $0x48] sm:$0xff]
    %v11097 = vld [vmem:[%s5 + $0x50] sm:$0xff]
    %v11098 = vld [vmem:[%s5 + $0x58] sm:$0xff]
    %v11099 = vld [vmem:[%s5 + $0x60] sm:$0xff]
    %v11100 = vld [vmem:[%s5 + $0x68] sm:$0xff]
    %v11101 = vld [vmem:[%s5 + $0x70] sm:$0xff]
    %v11102 = vld [vmem:[%s5 + $0x78] sm:$0xff]
    %v11103 = vld [vmem:[%s6] sm:$0x1]
    %v11105 = vperm.slane %v11103, 0
    %11107 = vmatpush.msra.mxu0 %v11102
    %11108 = vmatpush.msra.mxu0 %v11101
    %11109 = vmatpush.msra.mxu0 %v11100
    %11110 = vmatpush.msra.mxu0 %v11099
    %11111 = vmatpush.msra.mxu0 %v11098
    %11112 = vmatpush.msra.mxu0 %v11097
    %11113 = vmatpush.msra.mxu0 %v11096
    %11114 = vmatpush.msra.mxu0 %v11095
    %11115 = vmatpush.msra.mxu0 %v11094
    %11116 = vmatpush.msra.mxu0 %v11093
    %11117 = vmatpush.msra.mxu0 %v11092
    %11118 = vmatpush.msra.mxu0 %v11091
    %11119 = vmatpush.msra.mxu0 %v11090
    %11120 = vmatpush.msra.mxu0 %v11089
    %11121 = vmatpush.msra.mxu0 %v11088
    %11122 = vmatpush.msra.mxu0 %v11087
    %11123 = vmatmul.f32.gmra.mxu0 %v11055
    %v11124 = vpop.f32.mrf.mxu0
    %v11125 = vadd.f32 %v11105, %v11124
    %11126 = vmatmul.f32.gmra.mxu0 %v11056
    %v11127 = vpop.f32.mrf.mxu0
    %v11128 = vadd.f32 %v11105, %v11127
    %11129 = vmatmul.f32.gmra.mxu0 %v11057
    %v11130 = vpop.f32.mrf.mxu0
    %v11131 = vadd.f32 %v11105, %v11130
    %11132 = vmatmul.f32.gmra.mxu0 %v11058
    %v11133 = vpop.f32.mrf.mxu0
    %v11134 = vadd.f32 %v11105, %v11133
    %11135 = vmatmul.f32.gmra.mxu0 %v11059
    %v11136 = vpop.f32.mrf.mxu0
    %v11137 = vadd.f32 %v11105, %v11136
    %11138 = vmatmul.f32.gmra.mxu0 %v11060
    %v11139 = vpop.f32.mrf.mxu0
    %v11140 = vadd.f32 %v11105, %v11139
    %11141 = vmatmul.f32.gmra.mxu0 %v11061
    %v11142 = vpop.f32.mrf.mxu0
    %v11143 = vadd.f32 %v11105, %v11142
    %11144 = vmatmul.f32.gmra.mxu0 %v11062
    %v11145 = vpop.f32.mrf.mxu0
    %v11146 = vadd.f32 %v11105, %v11145
    %11147 = vmatmul.f32.gmra.mxu0 %v11063
    %v11148 = vpop.f32.mrf.mxu0
    %v11149 = vadd.f32 %v11105, %v11148
    %11150 = vmatmul.f32.gmra.mxu0 %v11064
    %v11151 = vpop.f32.mrf.mxu0
    %v11152 = vadd.f32 %v11105, %v11151
    %11153 = vmatmul.f32.gmra.mxu0 %v11065
    %v11154 = vpop.f32.mrf.mxu0
    %v11155 = vadd.f32 %v11105, %v11154
    %11156 = vmatmul.f32.gmra.mxu0 %v11066
    %v11157 = vpop.f32.mrf.mxu0
    %v11158 = vadd.f32 %v11105, %v11157
    %11159 = vmatmul.f32.gmra.mxu0 %v11067
    %v11160 = vpop.f32.mrf.mxu0
    %v11161 = vadd.f32 %v11105, %v11160
    %11162 = vmatmul.f32.gmra.mxu0 %v11068
    %v11163 = vpop.f32.mrf.mxu0
    %v11164 = vadd.f32 %v11105, %v11163
    %11165 = vmatmul.f32.gmra.mxu0 %v11069
    %v11166 = vpop.f32.mrf.mxu0
    %v11167 = vadd.f32 %v11105, %v11166
    %11168 = vmatmul.f32.gmra.mxu0 %v11070
    %v11169 = vpop.f32.mrf.mxu0
    %v11170 = vadd.f32 %v11105, %v11169
    %11171 = vmatmul.f32.gmra.mxu0 %v11071
    %v11172 = vpop.f32.mrf.mxu0
    %v11173 = vadd.f32 %v11105, %v11172
    %11174 = vmatmul.f32.gmra.mxu0 %v11072
    %v11175 = vpop.f32.mrf.mxu0
    %v11176 = vadd.f32 %v11105, %v11175
    %11177 = vmatmul.f32.gmra.mxu0 %v11073
    %v11178 = vpop.f32.mrf.mxu0
    %v11179 = vadd.f32 %v11105, %v11178
    %11180 = vmatmul.f32.gmra.mxu0 %v11074
    %v11181 = vpop.f32.mrf.mxu0
    %v11182 = vadd.f32 %v11105, %v11181
    %11183 = vmatmul.f32.gmra.mxu0 %v11075
    %v11184 = vpop.f32.mrf.mxu0
    %v11185 = vadd.f32 %v11105, %v11184
    %11186 = vmatmul.f32.gmra.mxu0 %v11076
    %v11187 = vpop.f32.mrf.mxu0
    %v11188 = vadd.f32 %v11105, %v11187
    %11189 = vmatmul.f32.gmra.mxu0 %v11077
    %v11190 = vpop.f32.mrf.mxu0
    %v11191 = vadd.f32 %v11105, %v11190
    %11192 = vmatmul.f32.gmra.mxu0 %v11078
    %v11193 = vpop.f32.mrf.mxu0
    %v11194 = vadd.f32 %v11105, %v11193
    %11195 = vmatmul.f32.gmra.mxu0 %v11079
    %v11196 = vpop.f32.mrf.mxu0
    %v11197 = vadd.f32 %v11105, %v11196
    %11198 = vmatmul.f32.gmra.mxu0 %v11080
    %v11199 = vpop.f32.mrf.mxu0
    %v11200 = vadd.f32 %v11105, %v11199
    %11201 = vmatmul.f32.gmra.mxu0 %v11081
    %v11202 = vpop.f32.mrf.mxu0
    %v11203 = vadd.f32 %v11105, %v11202
    %11204 = vmatmul.f32.gmra.mxu0 %v11082
    %v11205 = vpop.f32.mrf.mxu0
    %v11206 = vadd.f32 %v11105, %v11205
    %11207 = vmatmul.f32.gmra.mxu0 %v11083
    %v11208 = vpop.f32.mrf.mxu0
    %v11209 = vadd.f32 %v11105, %v11208
    %11210 = vmatmul.f32.gmra.mxu0 %v11084
    %v11211 = vpop.f32.mrf.mxu0
    %v11212 = vadd.f32 %v11105, %v11211
    %11213 = vmatmul.f32.gmra.mxu0 %v11085
    %v11214 = vpop.f32.mrf.mxu0
    %v11215 = vadd.f32 %v11105, %v11214
    %11216 = vmatmul.f32.gmra.mxu0 %v11086
    %v11217 = vpop.f32.mrf.mxu0
    %v11218 = vadd.f32 %v11105, %v11217
    %11219 = vdwg.mxu0
    %v11220 = vtanh.pop %v11125
    %v11221 = vtanh.pop %v11128
    %v11222 = vtanh.pop %v11131
    %v11223 = vtanh.pop %v11134
    %v11224 = vtanh.pop %v11137
    %v11225 = vtanh.pop %v11140
    %v11226 = vtanh.pop %v11143
    %v11227 = vtanh.pop %v11146
    %v11228 = vtanh.pop %v11149
    %v11229 = vtanh.pop %v11152
    %v11230 = vtanh.pop %v11155
    %v11231 = vtanh.pop %v11158
    %v11232 = vtanh.pop %v11161
    %v11233 = vtanh.pop %v11164
    %v11234 = vtanh.pop %v11167
    %v11235 = vtanh.pop %v11170
    %v11236 = vtanh.pop %v11173
    %v11237 = vtanh.pop %v11176
    %v11238 = vtanh.pop %v11179
    %v11239 = vtanh.pop %v11182
    %v11240 = vtanh.pop %v11185
    %v11241 = vtanh.pop %v11188
    %v11242 = vtanh.pop %v11191
    %v11243 = vtanh.pop %v11194
    %v11244 = vtanh.pop %v11197
    %v11245 = vtanh.pop %v11200
    %v11246 = vtanh.pop %v11203
    %v11247 = vtanh.pop %v11206
    %v11248 = vtanh.pop %v11209
    %v11249 = vtanh.pop %v11212
    %v11250 = vtanh.pop %v11215
    %v11251 = vtanh.pop %v11218
    %v11252 = vld [vmem:[#allocation4] sm:$0xff]
    %v11253 = vld [vmem:[#allocation4 + $0x8] sm:$0xff]
    %v11254 = vld [vmem:[#allocation4 + $0x10] sm:$0xff]
    %v11255 = vld [vmem:[#allocation4 + $0x18] sm:$0xff]
    %v11256 = vld [vmem:[#allocation4 + $0x20] sm:$0xff]
    %v11257 = vld [vmem:[#allocation4 + $0x28] sm:$0xff]
    %v11258 = vld [vmem:[#allocation4 + $0x30] sm:$0xff]
    %v11259 = vld [vmem:[#allocation4 + $0x38] sm:$0xff]
    %v11260 = vld [vmem:[#allocation4 + $0x40] sm:$0xff]
    %v11261 = vld [vmem:[#allocation4 + $0x48] sm:$0xff]
    %v11262 = vld [vmem:[#allocation4 + $0x50] sm:$0xff]
    %v11263 = vld [vmem:[#allocation4 + $0x58] sm:$0xff]
    %v11264 = vld [vmem:[#allocation4 + $0x60] sm:$0xff]
    %v11265 = vld [vmem:[#allocation4 + $0x68] sm:$0xff]
    %v11266 = vld [vmem:[#allocation4 + $0x70] sm:$0xff]
    %v11267 = vld [vmem:[#allocation4 + $0x78] sm:$0xff]
    %v11268 = vld [vmem:[%s8] sm:$0x1]
    %v11270 = vperm.slane %v11268, 0
    %11272 = vmatpush.msra.mxu0 %v11267
    %11273 = vmatpush.msra.mxu0 %v11266
    %11274 = vmatpush.msra.mxu0 %v11265
    %11275 = vmatpush.msra.mxu0 %v11264
    %11276 = vmatpush.msra.mxu0 %v11263
    %11277 = vmatpush.msra.mxu0 %v11262
    %11278 = vmatpush.msra.mxu0 %v11261
    %11279 = vmatpush.msra.mxu0 %v11260
    %11280 = vmatpush.msra.mxu0 %v11259
    %11281 = vmatpush.msra.mxu0 %v11258
    %11282 = vmatpush.msra.mxu0 %v11257
    %11283 = vmatpush.msra.mxu0 %v11256
    %11284 = vmatpush.msra.mxu0 %v11255
    %11285 = vmatpush.msra.mxu0 %v11254
    %11286 = vmatpush.msra.mxu0 %v11253
    %11287 = vmatpush.msra.mxu0 %v11252
    %11288 = vmatmul.f32.gmra.mxu0 %v11220
    %v11289 = vpop.f32.mrf.mxu0
    %v11290 = vadd.f32 %v11270, %v11289
    %11291 = vmatmul.f32.gmra.mxu0 %v11221
    %v11292 = vpop.f32.mrf.mxu0
    %v11293 = vadd.f32 %v11270, %v11292
    %11294 = vmatmul.f32.gmra.mxu0 %v11222
    %v11295 = vpop.f32.mrf.mxu0
    %v11296 = vadd.f32 %v11270, %v11295
    %11297 = vmatmul.f32.gmra.mxu0 %v11223
    %v11298 = vpop.f32.mrf.mxu0
    %v11299 = vadd.f32 %v11270, %v11298
    %11300 = vmatmul.f32.gmra.mxu0 %v11224
    %v11301 = vpop.f32.mrf.mxu0
    %v11302 = vadd.f32 %v11270, %v11301
    %11303 = vmatmul.f32.gmra.mxu0 %v11225
    %v11304 = vpop.f32.mrf.mxu0
    %v11305 = vadd.f32 %v11270, %v11304
    %11306 = vmatmul.f32.gmra.mxu0 %v11226
    %v11307 = vpop.f32.mrf.mxu0
    %v11308 = vadd.f32 %v11270, %v11307
    %11309 = vmatmul.f32.gmra.mxu0 %v11227
    %v11310 = vpop.f32.mrf.mxu0
    %v11311 = vadd.f32 %v11270, %v11310
    %11312 = vmatmul.f32.gmra.mxu0 %v11228
    %v11313 = vpop.f32.mrf.mxu0
    %v11314 = vadd.f32 %v11270, %v11313
    %11315 = vmatmul.f32.gmra.mxu0 %v11229
    %v11316 = vpop.f32.mrf.mxu0
    %v11317 = vadd.f32 %v11270, %v11316
    %11318 = vmatmul.f32.gmra.mxu0 %v11230
    %v11319 = vpop.f32.mrf.mxu0
    %v11320 = vadd.f32 %v11270, %v11319
    %11321 = vmatmul.f32.gmra.mxu0 %v11231
    %v11322 = vpop.f32.mrf.mxu0
    %v11323 = vadd.f32 %v11270, %v11322
    %11324 = vmatmul.f32.gmra.mxu0 %v11232
    %v11325 = vpop.f32.mrf.mxu0
    %v11326 = vadd.f32 %v11270, %v11325
    %11327 = vmatmul.f32.gmra.mxu0 %v11233
    %v11328 = vpop.f32.mrf.mxu0
    %v11329 = vadd.f32 %v11270, %v11328
    %11330 = vmatmul.f32.gmra.mxu0 %v11234
    %v11331 = vpop.f32.mrf.mxu0
    %v11332 = vadd.f32 %v11270, %v11331
    %11333 = vmatmul.f32.gmra.mxu0 %v11235
    %v11334 = vpop.f32.mrf.mxu0
    %v11335 = vadd.f32 %v11270, %v11334
    %11336 = vmatmul.f32.gmra.mxu0 %v11236
    %v11337 = vpop.f32.mrf.mxu0
    %v11338 = vadd.f32 %v11270, %v11337
    %11339 = vmatmul.f32.gmra.mxu0 %v11237
    %v11340 = vpop.f32.mrf.mxu0
    %v11341 = vadd.f32 %v11270, %v11340
    %11342 = vmatmul.f32.gmra.mxu0 %v11238
    %v11343 = vpop.f32.mrf.mxu0
    %v11344 = vadd.f32 %v11270, %v11343
    %11345 = vmatmul.f32.gmra.mxu0 %v11239
    %v11346 = vpop.f32.mrf.mxu0
    %v11347 = vadd.f32 %v11270, %v11346
    %11348 = vmatmul.f32.gmra.mxu0 %v11240
    %v11349 = vpop.f32.mrf.mxu0
    %v11350 = vadd.f32 %v11270, %v11349
    %11351 = vmatmul.f32.gmra.mxu0 %v11241
    %v11352 = vpop.f32.mrf.mxu0
    %v11353 = vadd.f32 %v11270, %v11352
    %11354 = vmatmul.f32.gmra.mxu0 %v11242
    %v11355 = vpop.f32.mrf.mxu0
    %v11356 = vadd.f32 %v11270, %v11355
    %11357 = vmatmul.f32.gmra.mxu0 %v11243
    %v11358 = vpop.f32.mrf.mxu0
    %v11359 = vadd.f32 %v11270, %v11358
    %11360 = vmatmul.f32.gmra.mxu0 %v11244
    %v11361 = vpop.f32.mrf.mxu0
    %v11362 = vadd.f32 %v11270, %v11361
    %11363 = vmatmul.f32.gmra.mxu0 %v11245
    %v11364 = vpop.f32.mrf.mxu0
    %v11365 = vadd.f32 %v11270, %v11364
    %11366 = vmatmul.f32.gmra.mxu0 %v11246
    %v11367 = vpop.f32.mrf.mxu0
    %v11368 = vadd.f32 %v11270, %v11367
    %11369 = vmatmul.f32.gmra.mxu0 %v11247
    %v11370 = vpop.f32.mrf.mxu0
    %v11371 = vadd.f32 %v11270, %v11370
    %11372 = vmatmul.f32.gmra.mxu0 %v11248
    %v11373 = vpop.f32.mrf.mxu0
    %v11374 = vadd.f32 %v11270, %v11373
    %11375 = vmatmul.f32.gmra.mxu0 %v11249
    %v11376 = vpop.f32.mrf.mxu0
    %v11377 = vadd.f32 %v11270, %v11376
    %11378 = vmatmul.f32.gmra.mxu0 %v11250
    %v11379 = vpop.f32.mrf.mxu0
    %v11380 = vadd.f32 %v11270, %v11379
    %11381 = vmatmul.f32.gmra.mxu0 %v11251
    %v11382 = vpop.f32.mrf.mxu0
    %v11383 = vadd.f32 %v11270, %v11382
    %11384 = vdwg.mxu0
    %v11385 = vtanh.pop %v11290
    %v11386 = vtanh.pop %v11293
    %v11387 = vtanh.pop %v11296
    %v11388 = vtanh.pop %v11299
    %v11389 = vtanh.pop %v11302
    %v11390 = vtanh.pop %v11305
    %v11391 = vtanh.pop %v11308
    %v11392 = vtanh.pop %v11311
    %v11393 = vtanh.pop %v11314
    %v11394 = vtanh.pop %v11317
    %v11395 = vtanh.pop %v11320
    %v11396 = vtanh.pop %v11323
    %v11397 = vtanh.pop %v11326
    %v11398 = vtanh.pop %v11329
    %v11399 = vtanh.pop %v11332
    %v11400 = vtanh.pop %v11335
    %v11401 = vtanh.pop %v11338
    %v11402 = vtanh.pop %v11341
    %v11403 = vtanh.pop %v11344
    %v11404 = vtanh.pop %v11347
    %v11405 = vtanh.pop %v11350
    %v11406 = vtanh.pop %v11353
    %v11407 = vtanh.pop %v11356
    %v11408 = vtanh.pop %v11359
    %v11409 = vtanh.pop %v11362
    %v11410 = vtanh.pop %v11365
    %v11411 = vtanh.pop %v11368
    %v11412 = vtanh.pop %v11371
    %v11413 = vtanh.pop %v11374
    %v11414 = vtanh.pop %v11377
    %v11415 = vtanh.pop %v11380
    %v11416 = vtanh.pop %v11383
    %v11417 = vld [vmem:[%s9] sm:$0xff]
    %v11418 = vld [vmem:[%s9 + $0x8] sm:$0xff]
    %v11419 = vld [vmem:[%s9 + $0x10] sm:$0xff]
    %v11420 = vld [vmem:[%s9 + $0x18] sm:$0xff]
    %v11421 = vld [vmem:[%s9 + $0x20] sm:$0xff]
    %v11422 = vld [vmem:[%s9 + $0x28] sm:$0xff]
    %v11423 = vld [vmem:[%s9 + $0x30] sm:$0xff]
    %v11424 = vld [vmem:[%s9 + $0x38] sm:$0xff]
    %v11425 = vld [vmem:[%s9 + $0x40] sm:$0xff]
    %v11426 = vld [vmem:[%s9 + $0x48] sm:$0xff]
    %v11427 = vld [vmem:[%s9 + $0x50] sm:$0xff]
    %v11428 = vld [vmem:[%s9 + $0x58] sm:$0xff]
    %v11429 = vld [vmem:[%s9 + $0x60] sm:$0xff]
    %v11430 = vld [vmem:[%s9 + $0x68] sm:$0xff]
    %v11431 = vld [vmem:[%s9 + $0x70] sm:$0xff]
    %v11432 = vld [vmem:[%s9 + $0x78] sm:$0xff]
    %v11433 = vld [vmem:[%s10] sm:$0x1]
    %v11435 = vperm.slane %v11433, 0
    %11437 = vmatpush.msra.mxu0 %v11432
    %11438 = vmatpush.msra.mxu0 %v11431
    %11439 = vmatpush.msra.mxu0 %v11430
    %11440 = vmatpush.msra.mxu0 %v11429
    %11441 = vmatpush.msra.mxu0 %v11428
    %11442 = vmatpush.msra.mxu0 %v11427
    %11443 = vmatpush.msra.mxu0 %v11426
    %11444 = vmatpush.msra.mxu0 %v11425
    %11445 = vmatpush.msra.mxu0 %v11424
    %11446 = vmatpush.msra.mxu0 %v11423
    %11447 = vmatpush.msra.mxu0 %v11422
    %11448 = vmatpush.msra.mxu0 %v11421
    %11449 = vmatpush.msra.mxu0 %v11420
    %11450 = vmatpush.msra.mxu0 %v11419
    %11451 = vmatpush.msra.mxu0 %v11418
    %11452 = vmatpush.msra.mxu0 %v11417
    %11453 = vmatmul.f32.gmra.mxu0 %v11385
    %v11454 = vpop.f32.mrf.mxu0
    %v11455 = vadd.f32 %v11435, %v11454
    %11456 = vmatmul.f32.gmra.mxu0 %v11386
    %v11457 = vpop.f32.mrf.mxu0
    %v11458 = vadd.f32 %v11435, %v11457
    %11459 = vmatmul.f32.gmra.mxu0 %v11387
    %v11460 = vpop.f32.mrf.mxu0
    %v11461 = vadd.f32 %v11435, %v11460
    %11462 = vmatmul.f32.gmra.mxu0 %v11388
    %v11463 = vpop.f32.mrf.mxu0
    %v11464 = vadd.f32 %v11435, %v11463
    %11465 = vmatmul.f32.gmra.mxu0 %v11389
    %v11466 = vpop.f32.mrf.mxu0
    %v11467 = vadd.f32 %v11435, %v11466
    %11468 = vmatmul.f32.gmra.mxu0 %v11390
    %v11469 = vpop.f32.mrf.mxu0
    %v11470 = vadd.f32 %v11435, %v11469
    %11471 = vmatmul.f32.gmra.mxu0 %v11391
    %v11472 = vpop.f32.mrf.mxu0
    %v11473 = vadd.f32 %v11435, %v11472
    %11474 = vmatmul.f32.gmra.mxu0 %v11392
    %v11475 = vpop.f32.mrf.mxu0
    %v11476 = vadd.f32 %v11435, %v11475
    %11477 = vmatmul.f32.gmra.mxu0 %v11393
    %v11478 = vpop.f32.mrf.mxu0
    %v11479 = vadd.f32 %v11435, %v11478
    %11480 = vmatmul.f32.gmra.mxu0 %v11394
    %v11481 = vpop.f32.mrf.mxu0
    %v11482 = vadd.f32 %v11435, %v11481
    %11483 = vmatmul.f32.gmra.mxu0 %v11395
    %v11484 = vpop.f32.mrf.mxu0
    %v11485 = vadd.f32 %v11435, %v11484
    %11486 = vmatmul.f32.gmra.mxu0 %v11396
    %v11487 = vpop.f32.mrf.mxu0
    %v11488 = vadd.f32 %v11435, %v11487
    %11489 = vmatmul.f32.gmra.mxu0 %v11397
    %v11490 = vpop.f32.mrf.mxu0
    %v11491 = vadd.f32 %v11435, %v11490
    %11492 = vmatmul.f32.gmra.mxu0 %v11398
    %v11493 = vpop.f32.mrf.mxu0
    %v11494 = vadd.f32 %v11435, %v11493
    %11495 = vmatmul.f32.gmra.mxu0 %v11399
    %v11496 = vpop.f32.mrf.mxu0
    %v11497 = vadd.f32 %v11435, %v11496
    %11498 = vmatmul.f32.gmra.mxu0 %v11400
    %v11499 = vpop.f32.mrf.mxu0
    %v11500 = vadd.f32 %v11435, %v11499
    %11501 = vmatmul.f32.gmra.mxu0 %v11401
    %v11502 = vpop.f32.mrf.mxu0
    %v11503 = vadd.f32 %v11435, %v11502
    %11504 = vmatmul.f32.gmra.mxu0 %v11402
    %v11505 = vpop.f32.mrf.mxu0
    %v11506 = vadd.f32 %v11435, %v11505
    %11507 = vmatmul.f32.gmra.mxu0 %v11403
    %v11508 = vpop.f32.mrf.mxu0
    %v11509 = vadd.f32 %v11435, %v11508
    %11510 = vmatmul.f32.gmra.mxu0 %v11404
    %v11511 = vpop.f32.mrf.mxu0
    %v11512 = vadd.f32 %v11435, %v11511
    %11513 = vmatmul.f32.gmra.mxu0 %v11405
    %v11514 = vpop.f32.mrf.mxu0
    %v11515 = vadd.f32 %v11435, %v11514
    %11516 = vmatmul.f32.gmra.mxu0 %v11406
    %v11517 = vpop.f32.mrf.mxu0
    %v11518 = vadd.f32 %v11435, %v11517
    %11519 = vmatmul.f32.gmra.mxu0 %v11407
    %v11520 = vpop.f32.mrf.mxu0
    %v11521 = vadd.f32 %v11435, %v11520
    %11522 = vmatmul.f32.gmra.mxu0 %v11408
    %v11523 = vpop.f32.mrf.mxu0
    %v11524 = vadd.f32 %v11435, %v11523
    %11525 = vmatmul.f32.gmra.mxu0 %v11409
    %v11526 = vpop.f32.mrf.mxu0
    %v11527 = vadd.f32 %v11435, %v11526
    %11528 = vmatmul.f32.gmra.mxu0 %v11410
    %v11529 = vpop.f32.mrf.mxu0
    %v11530 = vadd.f32 %v11435, %v11529
    %11531 = vmatmul.f32.gmra.mxu0 %v11411
    %v11532 = vpop.f32.mrf.mxu0
    %v11533 = vadd.f32 %v11435, %v11532
    %11534 = vmatmul.f32.gmra.mxu0 %v11412
    %v11535 = vpop.f32.mrf.mxu0
    %v11536 = vadd.f32 %v11435, %v11535
    %11537 = vmatmul.f32.gmra.mxu0 %v11413
    %v11538 = vpop.f32.mrf.mxu0
    %v11539 = vadd.f32 %v11435, %v11538
    %11540 = vmatmul.f32.gmra.mxu0 %v11414
    %v11541 = vpop.f32.mrf.mxu0
    %v11542 = vadd.f32 %v11435, %v11541
    %11543 = vmatmul.f32.gmra.mxu0 %v11415
    %v11544 = vpop.f32.mrf.mxu0
    %v11545 = vadd.f32 %v11435, %v11544
    %11546 = vmatmul.f32.gmra.mxu0 %v11416
    %v11547 = vpop.f32.mrf.mxu0
    %v11548 = vadd.f32 %v11435, %v11547
    %11549 = vdwg.mxu0
    %vm11550 = vcmask 15360
    %11551 = vst.msk [vmem:[%s11] sm:$0xff] %vm11550, %v11455
    %11552 = vst.msk [vmem:[%s11 + $0x8] sm:$0xff] %vm11550, %v11458
    %11553 = vst.msk [vmem:[%s11 + $0x10] sm:$0xff] %vm11550, %v11461
    %11554 = vst.msk [vmem:[%s11 + $0x18] sm:$0xff] %vm11550, %v11464
    %11555 = vst.msk [vmem:[%s11 + $0x20] sm:$0xff] %vm11550, %v11467
    %11556 = vst.msk [vmem:[%s11 + $0x28] sm:$0xff] %vm11550, %v11470
    %11557 = vst.msk [vmem:[%s11 + $0x30] sm:$0xff] %vm11550, %v11473
    %11558 = vst.msk [vmem:[%s11 + $0x38] sm:$0xff] %vm11550, %v11476
    %11559 = vst.msk [vmem:[%s11 + $0x40] sm:$0xff] %vm11550, %v11479
    %11560 = vst.msk [vmem:[%s11 + $0x48] sm:$0xff] %vm11550, %v11482
    %11561 = vst.msk [vmem:[%s11 + $0x50] sm:$0xff] %vm11550, %v11485
    %11562 = vst.msk [vmem:[%s11 + $0x58] sm:$0xff] %vm11550, %v11488
    %11563 = vst.msk [vmem:[%s11 + $0x60] sm:$0xff] %vm11550, %v11491
    %11564 = vst.msk [vmem:[%s11 + $0x68] sm:$0xff] %vm11550, %v11494
    %11565 = vst.msk [vmem:[%s11 + $0x70] sm:$0xff] %vm11550, %v11497
    %11566 = vst.msk [vmem:[%s11 + $0x78] sm:$0xff] %vm11550, %v11500
    %11567 = vst.msk [vmem:[%s11 + $0x80] sm:$0xff] %vm11550, %v11503
    %11568 = vst.msk [vmem:[%s11 + $0x88] sm:$0xff] %vm11550, %v11506
    %11569 = vst.msk [vmem:[%s11 + $0x90] sm:$0xff] %vm11550, %v11509
    %11570 = vst.msk [vmem:[%s11 + $0x98] sm:$0xff] %vm11550, %v11512
    %11571 = vst.msk [vmem:[%s11 + $0xa0] sm:$0xff] %vm11550, %v11515
    %11572 = vst.msk [vmem:[%s11 + $0xa8] sm:$0xff] %vm11550, %v11518
    %11573 = vst.msk [vmem:[%s11 + $0xb0] sm:$0xff] %vm11550, %v11521
    %11574 = vst.msk [vmem:[%s11 + $0xb8] sm:$0xff] %vm11550, %v11524
    %11575 = vst.msk [vmem:[%s11 + $0xc0] sm:$0xff] %vm11550, %v11527
    %11576 = vst.msk [vmem:[%s11 + $0xc8] sm:$0xff] %vm11550, %v11530
    %11577 = vst.msk [vmem:[%s11 + $0xd0] sm:$0xff] %vm11550, %v11533
    %11578 = vst.msk [vmem:[%s11 + $0xd8] sm:$0xff] %vm11550, %v11536
    %11579 = vst.msk [vmem:[%s11 + $0xe0] sm:$0xff] %vm11550, %v11539
    %11580 = vst.msk [vmem:[%s11 + $0xe8] sm:$0xff] %vm11550, %v11542
    %11581 = vst.msk [vmem:[%s11 + $0xf0] sm:$0xff] %vm11550, %v11545
    %11582 = vst.msk [vmem:[%s11 + $0xf8] sm:$0xff] %vm11550, %v11548
    // Predicated region
    $region54: #{tpu_custom_call.1} parent=1 // pred_check
      _
    $region55: #{tpu_custom_call.1} parent=1 // pred_check_branch
      %11584 = sbr.rel (0) target = $region57
    $region56: #{tpu_custom_call.1} parent=1 // pred_region
      _
    $region57: #{tpu_custom_call.1} parent=1 // pred_fallthru
      _
    // Predicated region
    $region58: #{tpu_custom_call.1} parent=1 // pred_check
      _
    $region59: #{tpu_custom_call.1} parent=1 // pred_check_branch
      %11586 = sbr.rel (0) target = $region61
    $region60: #{tpu_custom_call.1} parent=1 // pred_region
      _
    $region61: #{tpu_custom_call.1} parent=1 // pred_fallthru
      _
    %11587 = vsyncpa [#allocation3], 1
    %11588 = vsyncpa [#allocation5], 1

</llo_original>
